<compile_context>
chip_gen: v7x
topology: tpu7x:2x2x1
jax: 0.10.0
libtpu: 0.0.40
codegen_flags: <defaults>
</compile_context>

<pallas_src>
import functools

import jax
import jax.numpy as jnp
from jax import lax
from jax.experimental import pallas as pl
from jax.experimental.pallas import tpu as pltpu

NEG_SLOPE = 0.01  # F.leaky_relu default negative_slope


def _leaky(v):
    return jnp.where(v >= 0, v, NEG_SLOPE * v)


# ----------------------------------------------------------------------------
# Fused GLConv kernel: global conv + local (halved) conv + leaky_relu epilogue
# ----------------------------------------------------------------------------
def _glconv_kernel(x_ref, wg_ref, wl_ref, o_ref, acc_g, acc_l, a_buf, *,
                   S, H, W, Cin, Cout, split, fm_sign):
    """One grid step computes the fused GLConv output plane for one (n, s).

    x_ref : [S, H*W, Cin]     full sample (channels-last, h/w flattened)
    wg_ref: [9, 3*Cin, Cout]  global conv weights, laid out (kd*3+kh, kw*Cin+ci, co)
    wl_ref: [9, 3*Cin, Cout]  local  conv weights
    o_ref : [M_out, Cout]     M_out = H*W (add path) or 2*H*W (fm_sign concat)
    acc_g, acc_l : [H*W, Cout] f32 scratch accumulators
    a_buf        : [H*W, 3*Cin] f32 scratch (kw-folded activation slab)
    """
    M = H * W
    s = pl.program_id(1)

    # Row-index helpers (trace-time constants).
    p = lax.broadcasted_iota(jnp.int32, (M, 1), 0)
    w_idx = p % W
    h_idx = p // W
    # Source-row masks for the +/-1 w shifts (kill cross-row wrap == w padding).
    m_not_last = (w_idx != W - 1).astype(jnp.float32)   # valid source for kw=0 slab
    m_not_first = (w_idx != 0).astype(jnp.float32)      # valid source for kw=2 slab
    # Local-conv split-boundary masks on the kh-shift source rows.
    if split < H:
        m_split_kh0 = jnp.where(h_idx % split == split - 1, 0.0, 1.0)
        m_split_kh2 = jnp.where(h_idx % split == 0, 0.0, 1.0)
    else:
        m_split_kh0 = None
        m_split_kh2 = None

    acc_g[...] = jnp.zeros_like(acc_g)
    acc_l[...] = jnp.zeros_like(acc_l)
    # Slab halo rows that the kd loop never overwrites (top of kw=0, bottom of kw=2).
    a_buf[0:1, 0:Cin] = jnp.zeros((1, Cin), jnp.float32)
    a_buf[M - 1:M, 2 * Cin:3 * Cin] = jnp.zeros((1, Cin), jnp.float32)

    for kd in range(3):
        d = s + kd - 1
        in_depth = jnp.logical_and(d >= 0, d < S)
        d_c = jnp.clip(d, 0, S - 1)
        md = jnp.where(in_depth, 1.0, 0.0).astype(jnp.float32)   # depth-pad mask
        P = x_ref[d_c].astype(jnp.float32) * md                  # [M, Cin]

        # Assemble kw-folded slab: A[p, kw*Cin + c] = x[d, p + (kw-1), c]
        # (zero outside the w-row, i.e. the width padding).
        a_buf[:, Cin:2 * Cin] = P                                   # kw = 1 (center)
        a_buf[1:M, 0:Cin] = (P * m_not_last)[0:M - 1]               # kw = 0 (w - 1)
        a_buf[0:M - 1, 2 * Cin:3 * Cin] = (P * m_not_first)[1:M]    # kw = 2 (w + 1)
        A = a_buf[...]                                              # [M, 3*Cin]

        for kh in range(3):
            wg = wg_ref[kd * 3 + kh]    # [3*Cin, Cout]
            wl = wl_ref[kd * 3 + kh]
            if kh == 1:
                acc_g[...] += jnp.dot(A, wg, preferred_element_type=jnp.float32)
                acc_l[...] += jnp.dot(A, wl, preferred_element_type=jnp.float32)
            elif H > 1 and kh == 0:
                # output rows [1, H) read input rows [0, H-1)
                src = A[0:M - W]
                acc_g[W:M, :] += jnp.dot(src, wg,
                                         preferred_element_type=jnp.float32)
                src_l = src if m_split_kh0 is None else src * m_split_kh0[0:M - W]
                acc_l[W:M, :] += jnp.dot(src_l, wl,
                                         preferred_element_type=jnp.float32)
            elif H > 1 and kh == 2:
                # output rows [0, H-1) read input rows [1, H)
                src = A[W:M]
                acc_g[0:M - W, :] += jnp.dot(src, wg,
                                             preferred_element_type=jnp.float32)
                src_l = src if m_split_kh2 is None else src * m_split_kh2[W:M]
                acc_l[0:M - W, :] += jnp.dot(src_l, wl,
                                             preferred_element_type=jnp.float32)

    g = _leaky(acc_g[...])
    l = _leaky(acc_l[...])
    if fm_sign:
        # torch.cat([gob, lcl], dim=h) == stacking along the flattened h*w axis
        o_ref[0:M, :] = g.astype(o_ref.dtype)
        o_ref[M:2 * M, :] = l.astype(o_ref.dtype)
    else:
        o_ref[...] = (g + l).astype(o_ref.dtype)


def glconv_pallas(x2, wg_k, wl_k, *, H, W, split, fm_sign):
    """x2: [N, S, H*W, Cin]; wg_k/wl_k: [9, 3*Cin, Cout] -> [N, S, M_out, Cout]."""
    N, S, M, Cin = x2.shape
    Cout = wg_k.shape[-1]
    M_out = 2 * M if fm_sign else M
    kern = functools.partial(_glconv_kernel, S=S, H=H, W=W, Cin=Cin, Cout=Cout,
                             split=split, fm_sign=fm_sign)
    return pl.pallas_call(
        kern,
        out_shape=jax.ShapeDtypeStruct((N, S, M_out, Cout), x2.dtype),
        grid=(N, S),
        in_specs=[
            # Full sample block: DMA'd from HBM once per n, reused for every s.
            pl.BlockSpec((None, S, M, Cin), lambda n, s: (n, 0, 0, 0)),
            pl.BlockSpec((9, 3 * Cin, Cout), lambda n, s: (0, 0, 0)),
            pl.BlockSpec((9, 3 * Cin, Cout), lambda n, s: (0, 0, 0)),
        ],
        out_specs=pl.BlockSpec((None, None, M_out, Cout),
                               lambda n, s: (n, s, 0, 0)),
        scratch_shapes=[pltpu.VMEM((M, Cout), jnp.float32),
                        pltpu.VMEM((M, Cout), jnp.float32),
                        pltpu.VMEM((M, 3 * Cin), jnp.float32)],
        compiler_params=pltpu.CompilerParams(
            dimension_semantics=("parallel", "parallel"),
            vmem_limit_bytes=64 * 1024 * 1024),
    )(x2, wg_k, wl_k)


# ----------------------------------------------------------------------------
# GLConv module (Pallas-backed)
# ----------------------------------------------------------------------------
class GLConvPallas:
    def __init__(self, in_channels, out_channels, halving, fm_sign=False,
                 key=None):
        self.halving = halving
        self.fm_sign = fm_sign
        self.in_channels = in_channels
        self.out_channels = out_channels
        if key is None:
            key = jax.random.PRNGKey(0)
        kg, kl = jax.random.split(key)
        # PyTorch Conv3d weight: [out_c, in_c, 3, 3, 3]; kaiming-uniform-like bound
        bound = 1.0 / jnp.sqrt(in_channels * 27.0)
        wg = jax.random.uniform(kg, (out_channels, in_channels, 3, 3, 3),
                                jnp.float32, -bound, bound)
        wl = jax.random.uniform(kl, (out_channels, in_channels, 3, 3, 3),
                                jnp.float32, -bound, bound)
        # DHWIO layout (used by the lax.conv reference) ...
        self.w_global = jnp.transpose(wg, (2, 3, 4, 1, 0))   # [3,3,3,Cin,Cout]
        self.w_local = jnp.transpose(wl, (2, 3, 4, 1, 0))
        # ... and the kernel layout (kd*3+kh, kw*Cin+ci, co).
        self._wg_k = self.w_global.reshape(9, 3 * in_channels, out_channels)
        self._wl_k = self.w_local.reshape(9, 3 * in_channels, out_channels)

    def __call__(self, x):
        """x: [n, c, s, h, w] (PyTorch layout) -> [n, c_out, s, h', w]."""
        n, c, s, h, w = x.shape
        if self.halving == 0:
            split = h
        else:
            split = h // (2 ** self.halving)
            assert split > 0 and h % split == 0, "h must split evenly"
        xt = jnp.transpose(x, (0, 2, 3, 4, 1))        # [n, s, h, w, c]
        x2 = xt.reshape(n, s, h * w, c)               # flatten (h, w)
        out2 = glconv_pallas(x2, self._wg_k, self._wl_k,
                             H=h, W=w, split=split, fm_sign=self.fm_sign)
        h_out = 2 * h if self.fm_sign else h
        feat = out2.reshape(n, s, h_out, w, self.out_channels)
        return jnp.transpose(feat, (0, 4, 1, 2, 3))   # back to [n, c_out, s, h', w]


# ----------------------------------------------------------------------------
# Pure-JAX reference (for verification only)
# ----------------------------------------------------------------------------
def _conv_ref(z, w):
    return lax.conv_general_dilated(
        z, w, window_strides=(1, 1, 1),
        padding=((1, 1), (1, 1), (1, 1)),
        dimension_numbers=("NDHWC", "DHWIO", "NDHWC"))


def glconv_ref(x, w_g, w_l, halving, fm_sign):
    xt = jnp.transpose(x, (0, 2, 3, 4, 1))
    gob = _conv_ref(xt, w_g)
    if halving == 0:
        lcl = _conv_ref(xt, w_l)
    else:
        h = xt.shape[2]
        split = h // (2 ** halving)
        chunks = [xt[:, :, i * split:(i + 1) * split] for i in range(h // split)]
        lcl = jnp.concatenate([_conv_ref(ch, w_l) for ch in chunks], axis=2)
    if not fm_sign:
        feat = jax.nn.leaky_relu(gob, NEG_SLOPE) + jax.nn.leaky_relu(lcl, NEG_SLOPE)
    else:
        feat = jax.nn.leaky_relu(jnp.concatenate([gob, lcl], axis=2), NEG_SLOPE)
    return jnp.transpose(feat, (0, 4, 1, 2, 3))


# ----------------------------------------------------------------------------
if __name__ == "__main__":
    key = jax.random.PRNGKey(0)
    kx, kp = jax.random.split(key)

    n, c_in, c_out, s, h, w = 2, 4, 8, 8, 16, 16
    x = jax.random.normal(kx, (n, c_in, s, h, w), jnp.float32)

    for halving, fm_sign in [(0, False), (1, False), (2, True)]:
        mod = GLConvPallas(c_in, c_out, halving, fm_sign=fm_sign, key=kp)
        out = jax.block_until_ready(mod(x))
        ref = glconv_ref(x, mod.w_global, mod.w_local, halving, fm_sign)
        assert out.shape == ref.shape, (out.shape, ref.shape)
        err = float(jnp.max(jnp.abs(out - ref)))
        assert err < 1e-3, f"max abs err {err} (halving={halving}, fm_sign={fm_sign})"

    print("KERNEL_OK")
</pallas_src>

<mosaic_0001>
module attributes {stable_mosaic.version = 11 : i64} {
  func.func @_glconv_kernel(%arg0: i32, %arg1: i32, %arg2: memref<1x8x256x4xf32, #tpu.memory_space<vmem>>, %arg3: memref<9x12x8xf32, #tpu.memory_space<vmem>>, %arg4: memref<9x12x8xf32, #tpu.memory_space<vmem>>, %arg5: memref<1x1x256x8xf32, #tpu.memory_space<vmem>>, %arg6: memref<256x8xf32, #tpu.memory_space<vmem>>, %arg7: memref<256x8xf32, #tpu.memory_space<vmem>>, %arg8: memref<256x12xf32, #tpu.memory_space<vmem>>) attributes {dimension_semantics = [#tpu.dimension_semantics<parallel>, #tpu.dimension_semantics<parallel>], iteration_bounds = array<i64: 2, 8>, scalar_prefetch = 0 : i64, scratch_operands = 3 : i64, tpu.core_type = #tpu.core_type<tc>, window_params = [{transform_indices = @transform_0, window_bounds = array<i64: 1, 8, 256, 4>}, {pipeline_mode = #tpu.pipeline_mode<synchronous>, transform_indices = @transform_1, window_bounds = array<i64: 9, 12, 8>}, {pipeline_mode = #tpu.pipeline_mode<synchronous>, transform_indices = @transform_2, window_bounds = array<i64: 9, 12, 8>}, {transform_indices = @transform_3, window_bounds = array<i64: 1, 1, 256, 8>}]} {
    %0 = tpu.iota {dimensions = array<i32: 0>} : vector<256x1xi32>
    %c16_i32 = arith.constant 16 : i32
    %c0_i32 = arith.constant 0 : i32
    %1 = arith.cmpi eq, %c16_i32, %c0_i32 : i32
    %c1_i32 = arith.constant 1 : i32
    %2 = arith.select %1, %c1_i32, %c16_i32 : i32
    %3 = vector.broadcast %2 : i32 to vector<256x1xi32>
    %4 = arith.remsi %0, %3 : vector<256x1xi32>
    %c0_i32_0 = arith.constant 0 : i32
    %5 = vector.broadcast %c0_i32_0 : i32 to vector<256x1xi32>
    %6 = arith.cmpi ne, %4, %5 : vector<256x1xi32>
    %c0_i32_1 = arith.constant 0 : i32
    %7 = vector.broadcast %c0_i32_1 : i32 to vector<256x1xi32>
    %8 = arith.cmpi slt, %4, %7 : vector<256x1xi32>
    %c0_i32_2 = arith.constant 0 : i32
    %9 = arith.cmpi slt, %2, %c0_i32_2 : i32
    %10 = vector.broadcast %9 : i1 to vector<256x1xi1>
    %11 = vector.broadcast %10 : vector<256x1xi1> to vector<256x1xi1>
    %12 = arith.xori %8, %11 : vector<256x1xi1>
    %13 = arith.andi %12, %6 : vector<256x1xi1>
    %14 = vector.broadcast %2 : i32 to vector<256x1xi32>
    %15 = arith.addi %4, %14 : vector<256x1xi32>
    %16 = arith.select %13, %15, %4 : vector<256x1xi1>, vector<256x1xi32>
    %c15_i32 = arith.constant 15 : i32
    %17 = vector.broadcast %c15_i32 : i32 to vector<256x1xi32>
    %18 = arith.cmpi ne, %16, %17 : vector<256x1xi32>
    %19 = arith.extui %18 : vector<256x1xi1> to vector<256x1xi32>
    %20 = arith.sitofp %19 : vector<256x1xi32> to vector<256x1xf32>
    %c0_i32_3 = arith.constant 0 : i32
    %21 = vector.broadcast %c0_i32_3 : i32 to vector<256x1xi32>
    %22 = arith.cmpi ne, %16, %21 : vector<256x1xi32>
    %23 = arith.extui %22 : vector<256x1xi1> to vector<256x1xi32>
    %24 = arith.sitofp %23 : vector<256x1xi32> to vector<256x1xf32>
    %cst = arith.constant 0.000000e+00 : f32
    %25 = vector.broadcast %cst : f32 to vector<256x8xf32>
    %c0 = arith.constant 0 : index
    %c0_4 = arith.constant 0 : index
    %26 = vector.load %arg6[%c0, %c0_4] : memref<256x8xf32, #tpu.memory_space<vmem>>, vector<256x8xf32>
    tpu.vector_store %arg6[%c0, %c0_4], %25 {strides = array<i32>} : memref<256x8xf32, #tpu.memory_space<vmem>>, vector<256x8xf32>,
    %cst_5 = arith.constant 0.000000e+00 : f32
    %27 = vector.broadcast %cst_5 : f32 to vector<256x8xf32>
    %c0_6 = arith.constant 0 : index
    %c0_7 = arith.constant 0 : index
    %28 = vector.load %arg7[%c0_6, %c0_7] : memref<256x8xf32, #tpu.memory_space<vmem>>, vector<256x8xf32>
    tpu.vector_store %arg7[%c0_6, %c0_7], %27 {strides = array<i32>} : memref<256x8xf32, #tpu.memory_space<vmem>>, vector<256x8xf32>,
    %cst_8 = arith.constant 0.000000e+00 : f32
    %29 = vector.broadcast %cst_8 : f32 to vector<1x4xf32>
    %c0_9 = arith.constant 0 : index
    %c0_10 = arith.constant 0 : index
    %30 = vector.load %arg8[%c0_9, %c0_10] : memref<256x12xf32, #tpu.memory_space<vmem>>, vector<1x4xf32>
    tpu.vector_store %arg8[%c0_9, %c0_10], %29 {strides = array<i32>} : memref<256x12xf32, #tpu.memory_space<vmem>>, vector<1x4xf32>,
    %cst_11 = arith.constant 0.000000e+00 : f32
    %31 = vector.broadcast %cst_11 : f32 to vector<1x4xf32>
    %c255 = arith.constant 255 : index
    %c8 = arith.constant 8 : index
    %32 = vector.load %arg8[%c255, %c8] : memref<256x12xf32, #tpu.memory_space<vmem>>, vector<1x4xf32>
    tpu.vector_store %arg8[%c255, %c8], %31 {strides = array<i32>} : memref<256x12xf32, #tpu.memory_space<vmem>>, vector<1x4xf32>,
    %c0_i32_12 = arith.constant 0 : i32
    %33 = arith.addi %arg1, %c0_i32_12 : i32
    %c1_i32_13 = arith.constant 1 : i32
    %34 = arith.subi %33, %c1_i32_13 : i32
    %c0_i32_14 = arith.constant 0 : i32
    %35 = arith.cmpi sge, %34, %c0_i32_14 : i32
    %c8_i32 = arith.constant 8 : i32
    %36 = arith.cmpi slt, %34, %c8_i32 : i32
    %37 = arith.andi %35, %36 : i1
    %c0_i32_15 = arith.constant 0 : i32
    %c7_i32 = arith.constant 7 : i32
    %38 = arith.maxsi %c0_i32_15, %34 : i32
    %39 = arith.minsi %c7_i32, %38 : i32
    %cst_16 = arith.constant 1.000000e+00 : f32
    %cst_17 = arith.constant 0.000000e+00 : f32
    %40 = arith.select %37, %cst_16, %cst_17 : f32
    %c0_18 = arith.constant 0 : index
    %41 = arith.index_cast %39 : i32 to index
    %c0_19 = arith.constant 0 : index
    %c0_20 = arith.constant 0 : index
    %42 = vector.load %arg2[%c0_18, %41, %c0_19, %c0_20] : memref<1x8x256x4xf32, #tpu.memory_space<vmem>>, vector<1x1x256x4xf32>
    %43 = vector.shape_cast %42 : vector<1x1x256x4xf32> to vector<256x4xf32>
    %44 = vector.broadcast %40 : f32 to vector<256x4xf32>
    %45 = arith.mulf %43, %44 : vector<256x4xf32>
    %c0_21 = arith.constant 0 : index
    %c4 = arith.constant 4 : index
    %46 = vector.load %arg8[%c0_21, %c4] : memref<256x12xf32, #tpu.memory_space<vmem>>, vector<256x4xf32>
    tpu.vector_store %arg8[%c0_21, %c4], %45 {strides = array<i32>} : memref<256x12xf32, #tpu.memory_space<vmem>>, vector<256x4xf32>,
    %47 = vector.broadcast %20 : vector<256x1xf32> to vector<256x4xf32>
    %48 = arith.mulf %45, %47 : vector<256x4xf32>
    %49 = vector.extract_strided_slice %48 {offsets = [0, 0], sizes = [255, 4], strides = [1, 1]} : vector<256x4xf32> to vector<255x4xf32>
    %c1 = arith.constant 1 : index
    %c0_22 = arith.constant 0 : index
    %50 = vector.load %arg8[%c1, %c0_22] : memref<256x12xf32, #tpu.memory_space<vmem>>, vector<255x4xf32>
    tpu.vector_store %arg8[%c1, %c0_22], %49 {strides = array<i32>} : memref<256x12xf32, #tpu.memory_space<vmem>>, vector<255x4xf32>,
    %51 = vector.broadcast %24 : vector<256x1xf32> to vector<256x4xf32>
    %52 = arith.mulf %45, %51 : vector<256x4xf32>
    %53 = vector.extract_strided_slice %52 {offsets = [1, 0], sizes = [255, 4], strides = [1, 1]} : vector<256x4xf32> to vector<255x4xf32>
    %c0_23 = arith.constant 0 : index
    %c8_24 = arith.constant 8 : index
    %54 = vector.load %arg8[%c0_23, %c8_24] : memref<256x12xf32, #tpu.memory_space<vmem>>, vector<255x4xf32>
    tpu.vector_store %arg8[%c0_23, %c8_24], %53 {strides = array<i32>} : memref<256x12xf32, #tpu.memory_space<vmem>>, vector<255x4xf32>,
    %c0_25 = arith.constant 0 : index
    %c0_26 = arith.constant 0 : index
    %55 = vector.load %arg8[%c0_25, %c0_26] : memref<256x12xf32, #tpu.memory_space<vmem>>, vector<256x12xf32>
    %c0_27 = arith.constant 0 : index
    %c0_28 = arith.constant 0 : index
    %c0_29 = arith.constant 0 : index
    %56 = vector.load %arg3[%c0_27, %c0_28, %c0_29] : memref<9x12x8xf32, #tpu.memory_space<vmem>>, vector<1x12x8xf32>
    %57 = vector.shape_cast %56 : vector<1x12x8xf32> to vector<12x8xf32>
    %c0_30 = arith.constant 0 : index
    %c0_31 = arith.constant 0 : index
    %c0_32 = arith.constant 0 : index
    %58 = vector.load %arg4[%c0_30, %c0_31, %c0_32] : memref<9x12x8xf32, #tpu.memory_space<vmem>>, vector<1x12x8xf32>
    %59 = vector.shape_cast %58 : vector<1x12x8xf32> to vector<12x8xf32>
    %60 = vector.extract_strided_slice %55 {offsets = [0, 0], sizes = [240, 12], strides = [1, 1]} : vector<256x12xf32> to vector<240x12xf32>
    %c16 = arith.constant 16 : index
    %c0_33 = arith.constant 0 : index
    %61 = vector.load %arg6[%c16, %c0_33] : memref<256x8xf32, #tpu.memory_space<vmem>>, vector<240x8xf32>
    %cst_34 = arith.constant dense<0.000000e+00> : vector<240x8xf32>
    %62 = tpu.matmul %60, %57, %cst_34 {dimension_numbers = #tpu.dot_dimension_numbers<[1], [0], [0], [1], [0, 0, 1, 1], [], []>} : vector<240x12xf32>, vector<12x8xf32>, vector<240x8xf32> -> vector<240x8xf32>
    %63 = arith.addf %61, %62 : vector<240x8xf32>
    %c16_35 = arith.constant 16 : index
    %c0_36 = arith.constant 0 : index
    %64 = vector.load %arg6[%c16_35, %c0_36] : memref<256x8xf32, #tpu.memory_space<vmem>>, vector<240x8xf32>
    tpu.vector_store %arg6[%c16_35, %c0_36], %63 {strides = array<i32>} : memref<256x8xf32, #tpu.memory_space<vmem>>, vector<240x8xf32>,
    %c16_37 = arith.constant 16 : index
    %c0_38 = arith.constant 0 : index
    %65 = vector.load %arg7[%c16_37, %c0_38] : memref<256x8xf32, #tpu.memory_space<vmem>>, vector<240x8xf32>
    %cst_39 = arith.constant dense<0.000000e+00> : vector<240x8xf32>
    %66 = tpu.matmul %60, %59, %cst_39 {dimension_numbers = #tpu.dot_dimension_numbers<[1], [0], [0], [1], [0, 0, 1, 1], [], []>} : vector<240x12xf32>, vector<12x8xf32>, vector<240x8xf32> -> vector<240x8xf32>
    %67 = arith.addf %65, %66 : vector<240x8xf32>
    %c16_40 = arith.constant 16 : index
    %c0_41 = arith.constant 0 : index
    %68 = vector.load %arg7[%c16_40, %c0_41] : memref<256x8xf32, #tpu.memory_space<vmem>>, vector<240x8xf32>
    tpu.vector_store %arg7[%c16_40, %c0_41], %67 {strides = array<i32>} : memref<256x8xf32, #tpu.memory_space<vmem>>, vector<240x8xf32>,
    %c1_42 = arith.constant 1 : index
    %c0_43 = arith.constant 0 : index
    %c0_44 = arith.constant 0 : index
    %69 = vector.load %arg3[%c1_42, %c0_43, %c0_44] : memref<9x12x8xf32, #tpu.memory_space<vmem>>, vector<1x12x8xf32>
    %70 = vector.shape_cast %69 : vector<1x12x8xf32> to vector<12x8xf32>
    %c1_45 = arith.constant 1 : index
    %c0_46 = arith.constant 0 : index
    %c0_47 = arith.constant 0 : index
    %71 = vector.load %arg4[%c1_45, %c0_46, %c0_47] : memref<9x12x8xf32, #tpu.memory_space<vmem>>, vector<1x12x8xf32>
    %72 = vector.shape_cast %71 : vector<1x12x8xf32> to vector<12x8xf32>
    %c0_48 = arith.constant 0 : index
    %c0_49 = arith.constant 0 : index
    %73 = vector.load %arg6[%c0_48, %c0_49] : memref<256x8xf32, #tpu.memory_space<vmem>>, vector<256x8xf32>
    %cst_50 = arith.constant dense<0.000000e+00> : vector<256x8xf32>
    %74 = tpu.matmul %55, %70, %cst_50 {dimension_numbers = #tpu.dot_dimension_numbers<[1], [0], [0], [1], [0, 0, 1, 1], [], []>} : vector<256x12xf32>, vector<12x8xf32>, vector<256x8xf32> -> vector<256x8xf32>
    %75 = arith.addf %73, %74 : vector<256x8xf32>
    %c0_51 = arith.constant 0 : index
    %c0_52 = arith.constant 0 : index
    %76 = vector.load %arg6[%c0_51, %c0_52] : memref<256x8xf32, #tpu.memory_space<vmem>>, vector<256x8xf32>
    tpu.vector_store %arg6[%c0_51, %c0_52], %75 {strides = array<i32>} : memref<256x8xf32, #tpu.memory_space<vmem>>, vector<256x8xf32>,
    %c0_53 = arith.constant 0 : index
    %c0_54 = arith.constant 0 : index
    %77 = vector.load %arg7[%c0_53, %c0_54] : memref<256x8xf32, #tpu.memory_space<vmem>>, vector<256x8xf32>
    %cst_55 = arith.constant dense<0.000000e+00> : vector<256x8xf32>
    %78 = tpu.matmul %55, %72, %cst_55 {dimension_numbers = #tpu.dot_dimension_numbers<[1], [0], [0], [1], [0, 0, 1, 1], [], []>} : vector<256x12xf32>, vector<12x8xf32>, vector<256x8xf32> -> vector<256x8xf32>
    %79 = arith.addf %77, %78 : vector<256x8xf32>
    %c0_56 = arith.constant 0 : index
    %c0_57 = arith.constant 0 : index
    %80 = vector.load %arg7[%c0_56, %c0_57] : memref<256x8xf32, #tpu.memory_space<vmem>>, vector<256x8xf32>
    tpu.vector_store %arg7[%c0_56, %c0_57], %79 {strides = array<i32>} : memref<256x8xf32, #tpu.memory_space<vmem>>, vector<256x8xf32>,
    %c2 = arith.constant 2 : index
    %c0_58 = arith.constant 0 : index
    %c0_59 = arith.constant 0 : index
    %81 = vector.load %arg3[%c2, %c0_58, %c0_59] : memref<9x12x8xf32, #tpu.memory_space<vmem>>, vector<1x12x8xf32>
    %82 = vector.shape_cast %81 : vector<1x12x8xf32> to vector<12x8xf32>
    %c2_60 = arith.constant 2 : index
    %c0_61 = arith.constant 0 : index
    %c0_62 = arith.constant 0 : index
    %83 = vector.load %arg4[%c2_60, %c0_61, %c0_62] : memref<9x12x8xf32, #tpu.memory_space<vmem>>, vector<1x12x8xf32>
    %84 = vector.shape_cast %83 : vector<1x12x8xf32> to vector<12x8xf32>
    %85 = vector.extract_strided_slice %55 {offsets = [16, 0], sizes = [240, 12], strides = [1, 1]} : vector<256x12xf32> to vector<240x12xf32>
    %c0_63 = arith.constant 0 : index
    %c0_64 = arith.constant 0 : index
    %86 = vector.load %arg6[%c0_63, %c0_64] : memref<256x8xf32, #tpu.memory_space<vmem>>, vector<240x8xf32>
    %cst_65 = arith.constant dense<0.000000e+00> : vector<240x8xf32>
    %87 = tpu.matmul %85, %82, %cst_65 {dimension_numbers = #tpu.dot_dimension_numbers<[1], [0], [0], [1], [0, 0, 1, 1], [], []>} : vector<240x12xf32>, vector<12x8xf32>, vector<240x8xf32> -> vector<240x8xf32>
    %88 = arith.addf %86, %87 : vector<240x8xf32>
    %c0_66 = arith.constant 0 : index
    %c0_67 = arith.constant 0 : index
    %89 = vector.load %arg6[%c0_66, %c0_67] : memref<256x8xf32, #tpu.memory_space<vmem>>, vector<240x8xf32>
    tpu.vector_store %arg6[%c0_66, %c0_67], %88 {strides = array<i32>} : memref<256x8xf32, #tpu.memory_space<vmem>>, vector<240x8xf32>,
    %c0_68 = arith.constant 0 : index
    %c0_69 = arith.constant 0 : index
    %90 = vector.load %arg7[%c0_68, %c0_69] : memref<256x8xf32, #tpu.memory_space<vmem>>, vector<240x8xf32>
    %cst_70 = arith.constant dense<0.000000e+00> : vector<240x8xf32>
    %91 = tpu.matmul %85, %84, %cst_70 {dimension_numbers = #tpu.dot_dimension_numbers<[1], [0], [0], [1], [0, 0, 1, 1], [], []>} : vector<240x12xf32>, vector<12x8xf32>, vector<240x8xf32> -> vector<240x8xf32>
    %92 = arith.addf %90, %91 : vector<240x8xf32>
    %c0_71 = arith.constant 0 : index
    %c0_72 = arith.constant 0 : index
    %93 = vector.load %arg7[%c0_71, %c0_72] : memref<256x8xf32, #tpu.memory_space<vmem>>, vector<240x8xf32>
    tpu.vector_store %arg7[%c0_71, %c0_72], %92 {strides = array<i32>} : memref<256x8xf32, #tpu.memory_space<vmem>>, vector<240x8xf32>,
    %c1_i32_73 = arith.constant 1 : i32
    %94 = arith.addi %arg1, %c1_i32_73 : i32
    %c1_i32_74 = arith.constant 1 : i32
    %95 = arith.subi %94, %c1_i32_74 : i32
    %c0_i32_75 = arith.constant 0 : i32
    %96 = arith.cmpi sge, %95, %c0_i32_75 : i32
    %c8_i32_76 = arith.constant 8 : i32
    %97 = arith.cmpi slt, %95, %c8_i32_76 : i32
    %98 = arith.andi %96, %97 : i1
    %c0_i32_77 = arith.constant 0 : i32
    %c7_i32_78 = arith.constant 7 : i32
    %99 = arith.maxsi %c0_i32_77, %95 : i32
    %100 = arith.minsi %c7_i32_78, %99 : i32
    %cst_79 = arith.constant 1.000000e+00 : f32
    %cst_80 = arith.constant 0.000000e+00 : f32
    %101 = arith.select %98, %cst_79, %cst_80 : f32
    %c0_81 = arith.constant 0 : index
    %102 = arith.index_cast %100 : i32 to index
    %c0_82 = arith.constant 0 : index
    %c0_83 = arith.constant 0 : index
    %103 = vector.load %arg2[%c0_81, %102, %c0_82, %c0_83] : memref<1x8x256x4xf32, #tpu.memory_space<vmem>>, vector<1x1x256x4xf32>
    %104 = vector.shape_cast %103 : vector<1x1x256x4xf32> to vector<256x4xf32>
    %105 = vector.broadcast %101 : f32 to vector<256x4xf32>
    %106 = arith.mulf %104, %105 : vector<256x4xf32>
    %c0_84 = arith.constant 0 : index
    %c4_85 = arith.constant 4 : index
    %107 = vector.load %arg8[%c0_84, %c4_85] : memref<256x12xf32, #tpu.memory_space<vmem>>, vector<256x4xf32>
    tpu.vector_store %arg8[%c0_84, %c4_85], %106 {strides = array<i32>} : memref<256x12xf32, #tpu.memory_space<vmem>>, vector<256x4xf32>,
    %108 = vector.broadcast %20 : vector<256x1xf32> to vector<256x4xf32>
    %109 = arith.mulf %106, %108 : vector<256x4xf32>
    %110 = vector.extract_strided_slice %109 {offsets = [0, 0], sizes = [255, 4], strides = [1, 1]} : vector<256x4xf32> to vector<255x4xf32>
    %c1_86 = arith.constant 1 : index
    %c0_87 = arith.constant 0 : index
    %111 = vector.load %arg8[%c1_86, %c0_87] : memref<256x12xf32, #tpu.memory_space<vmem>>, vector<255x4xf32>
    tpu.vector_store %arg8[%c1_86, %c0_87], %110 {strides = array<i32>} : memref<256x12xf32, #tpu.memory_space<vmem>>, vector<255x4xf32>,
    %112 = vector.broadcast %24 : vector<256x1xf32> to vector<256x4xf32>
    %113 = arith.mulf %106, %112 : vector<256x4xf32>
    %114 = vector.extract_strided_slice %113 {offsets = [1, 0], sizes = [255, 4], strides = [1, 1]} : vector<256x4xf32> to vector<255x4xf32>
    %c0_88 = arith.constant 0 : index
    %c8_89 = arith.constant 8 : index
    %115 = vector.load %arg8[%c0_88, %c8_89] : memref<256x12xf32, #tpu.memory_space<vmem>>, vector<255x4xf32>
    tpu.vector_store %arg8[%c0_88, %c8_89], %114 {strides = array<i32>} : memref<256x12xf32, #tpu.memory_space<vmem>>, vector<255x4xf32>,
    %c0_90 = arith.constant 0 : index
    %c0_91 = arith.constant 0 : index
    %116 = vector.load %arg8[%c0_90, %c0_91] : memref<256x12xf32, #tpu.memory_space<vmem>>, vector<256x12xf32>
    %c3 = arith.constant 3 : index
    %c0_92 = arith.constant 0 : index
    %c0_93 = arith.constant 0 : index
    %117 = vector.load %arg3[%c3, %c0_92, %c0_93] : memref<9x12x8xf32, #tpu.memory_space<vmem>>, vector<1x12x8xf32>
    %118 = vector.shape_cast %117 : vector<1x12x8xf32> to vector<12x8xf32>
    %c3_94 = arith.constant 3 : index
    %c0_95 = arith.constant 0 : index
    %c0_96 = arith.constant 0 : index
    %119 = vector.load %arg4[%c3_94, %c0_95, %c0_96] : memref<9x12x8xf32, #tpu.memory_space<vmem>>, vector<1x12x8xf32>
    %120 = vector.shape_cast %119 : vector<1x12x8xf32> to vector<12x8xf32>
    %121 = vector.extract_strided_slice %116 {offsets = [0, 0], sizes = [240, 12], strides = [1, 1]} : vector<256x12xf32> to vector<240x12xf32>
    %c16_97 = arith.constant 16 : index
    %c0_98 = arith.constant 0 : index
    %122 = vector.load %arg6[%c16_97, %c0_98] : memref<256x8xf32, #tpu.memory_space<vmem>>, vector<240x8xf32>
    %cst_99 = arith.constant dense<0.000000e+00> : vector<240x8xf32>
    %123 = tpu.matmul %121, %118, %cst_99 {dimension_numbers = #tpu.dot_dimension_numbers<[1], [0], [0], [1], [0, 0, 1, 1], [], []>} : vector<240x12xf32>, vector<12x8xf32>, vector<240x8xf32> -> vector<240x8xf32>
    %124 = arith.addf %122, %123 : vector<240x8xf32>
    %c16_100 = arith.constant 16 : index
    %c0_101 = arith.constant 0 : index
    %125 = vector.load %arg6[%c16_100, %c0_101] : memref<256x8xf32, #tpu.memory_space<vmem>>, vector<240x8xf32>
    tpu.vector_store %arg6[%c16_100, %c0_101], %124 {strides = array<i32>} : memref<256x8xf32, #tpu.memory_space<vmem>>, vector<240x8xf32>,
    %c16_102 = arith.constant 16 : index
    %c0_103 = arith.constant 0 : index
    %126 = vector.load %arg7[%c16_102, %c0_103] : memref<256x8xf32, #tpu.memory_space<vmem>>, vector<240x8xf32>
    %cst_104 = arith.constant dense<0.000000e+00> : vector<240x8xf32>
    %127 = tpu.matmul %121, %120, %cst_104 {dimension_numbers = #tpu.dot_dimension_numbers<[1], [0], [0], [1], [0, 0, 1, 1], [], []>} : vector<240x12xf32>, vector<12x8xf32>, vector<240x8xf32> -> vector<240x8xf32>
    %128 = arith.addf %126, %127 : vector<240x8xf32>
    %c16_105 = arith.constant 16 : index
    %c0_106 = arith.constant 0 : index
    %129 = vector.load %arg7[%c16_105, %c0_106] : memref<256x8xf32, #tpu.memory_space<vmem>>, vector<240x8xf32>
    tpu.vector_store %arg7[%c16_105, %c0_106], %128 {strides = array<i32>} : memref<256x8xf32, #tpu.memory_space<vmem>>, vector<240x8xf32>,
    %c4_107 = arith.constant 4 : index
    %c0_108 = arith.constant 0 : index
    %c0_109 = arith.constant 0 : index
    %130 = vector.load %arg3[%c4_107, %c0_108, %c0_109] : memref<9x12x8xf32, #tpu.memory_space<vmem>>, vector<1x12x8xf32>
    %131 = vector.shape_cast %130 : vector<1x12x8xf32> to vector<12x8xf32>
    %c4_110 = arith.constant 4 : index
    %c0_111 = arith.constant 0 : index
    %c0_112 = arith.constant 0 : index
    %132 = vector.load %arg4[%c4_110, %c0_111, %c0_112] : memref<9x12x8xf32, #tpu.memory_space<vmem>>, vector<1x12x8xf32>
    %133 = vector.shape_cast %132 : vector<1x12x8xf32> to vector<12x8xf32>
    %c0_113 = arith.constant 0 : index
    %c0_114 = arith.constant 0 : index
    %134 = vector.load %arg6[%c0_113, %c0_114] : memref<256x8xf32, #tpu.memory_space<vmem>>, vector<256x8xf32>
    %cst_115 = arith.constant dense<0.000000e+00> : vector<256x8xf32>
    %135 = tpu.matmul %116, %131, %cst_115 {dimension_numbers = #tpu.dot_dimension_numbers<[1], [0], [0], [1], [0, 0, 1, 1], [], []>} : vector<256x12xf32>, vector<12x8xf32>, vector<256x8xf32> -> vector<256x8xf32>
    %136 = arith.addf %134, %135 : vector<256x8xf32>
    %c0_116 = arith.constant 0 : index
    %c0_117 = arith.constant 0 : index
    %137 = vector.load %arg6[%c0_116, %c0_117] : memref<256x8xf32, #tpu.memory_space<vmem>>, vector<256x8xf32>
    tpu.vector_store %arg6[%c0_116, %c0_117], %136 {strides = array<i32>} : memref<256x8xf32, #tpu.memory_space<vmem>>, vector<256x8xf32>,
    %c0_118 = arith.constant 0 : index
    %c0_119 = arith.constant 0 : index
    %138 = vector.load %arg7[%c0_118, %c0_119] : memref<256x8xf32, #tpu.memory_space<vmem>>, vector<256x8xf32>
    %cst_120 = arith.constant dense<0.000000e+00> : vector<256x8xf32>
    %139 = tpu.matmul %116, %133, %cst_120 {dimension_numbers = #tpu.dot_dimension_numbers<[1], [0], [0], [1], [0, 0, 1, 1], [], []>} : vector<256x12xf32>, vector<12x8xf32>, vector<256x8xf32> -> vector<256x8xf32>
    %140 = arith.addf %138, %139 : vector<256x8xf32>
    %c0_121 = arith.constant 0 : index
    %c0_122 = arith.constant 0 : index
    %141 = vector.load %arg7[%c0_121, %c0_122] : memref<256x8xf32, #tpu.memory_space<vmem>>, vector<256x8xf32>
    tpu.vector_store %arg7[%c0_121, %c0_122], %140 {strides = array<i32>} : memref<256x8xf32, #tpu.memory_space<vmem>>, vector<256x8xf32>,
    %c5 = arith.constant 5 : index
    %c0_123 = arith.constant 0 : index
    %c0_124 = arith.constant 0 : index
    %142 = vector.load %arg3[%c5, %c0_123, %c0_124] : memref<9x12x8xf32, #tpu.memory_space<vmem>>, vector<1x12x8xf32>
    %143 = vector.shape_cast %142 : vector<1x12x8xf32> to vector<12x8xf32>
    %c5_125 = arith.constant 5 : index
    %c0_126 = arith.constant 0 : index
    %c0_127 = arith.constant 0 : index
    %144 = vector.load %arg4[%c5_125, %c0_126, %c0_127] : memref<9x12x8xf32, #tpu.memory_space<vmem>>, vector<1x12x8xf32>
    %145 = vector.shape_cast %144 : vector<1x12x8xf32> to vector<12x8xf32>
    %146 = vector.extract_strided_slice %116 {offsets = [16, 0], sizes = [240, 12], strides = [1, 1]} : vector<256x12xf32> to vector<240x12xf32>
    %c0_128 = arith.constant 0 : index
    %c0_129 = arith.constant 0 : index
    %147 = vector.load %arg6[%c0_128, %c0_129] : memref<256x8xf32, #tpu.memory_space<vmem>>, vector<240x8xf32>
    %cst_130 = arith.constant dense<0.000000e+00> : vector<240x8xf32>
    %148 = tpu.matmul %146, %143, %cst_130 {dimension_numbers = #tpu.dot_dimension_numbers<[1], [0], [0], [1], [0, 0, 1, 1], [], []>} : vector<240x12xf32>, vector<12x8xf32>, vector<240x8xf32> -> vector<240x8xf32>
    %149 = arith.addf %147, %148 : vector<240x8xf32>
    %c0_131 = arith.constant 0 : index
    %c0_132 = arith.constant 0 : index
    %150 = vector.load %arg6[%c0_131, %c0_132] : memref<256x8xf32, #tpu.memory_space<vmem>>, vector<240x8xf32>
    tpu.vector_store %arg6[%c0_131, %c0_132], %149 {strides = array<i32>} : memref<256x8xf32, #tpu.memory_space<vmem>>, vector<240x8xf32>,
    %c0_133 = arith.constant 0 : index
    %c0_134 = arith.constant 0 : index
    %151 = vector.load %arg7[%c0_133, %c0_134] : memref<256x8xf32, #tpu.memory_space<vmem>>, vector<240x8xf32>
    %cst_135 = arith.constant dense<0.000000e+00> : vector<240x8xf32>
    %152 = tpu.matmul %146, %145, %cst_135 {dimension_numbers = #tpu.dot_dimension_numbers<[1], [0], [0], [1], [0, 0, 1, 1], [], []>} : vector<240x12xf32>, vector<12x8xf32>, vector<240x8xf32> -> vector<240x8xf32>
    %153 = arith.addf %151, %152 : vector<240x8xf32>
    %c0_136 = arith.constant 0 : index
    %c0_137 = arith.constant 0 : index
    %154 = vector.load %arg7[%c0_136, %c0_137] : memref<256x8xf32, #tpu.memory_space<vmem>>, vector<240x8xf32>
    tpu.vector_store %arg7[%c0_136, %c0_137], %153 {strides = array<i32>} : memref<256x8xf32, #tpu.memory_space<vmem>>, vector<240x8xf32>,
    %c2_i32 = arith.constant 2 : i32
    %155 = arith.addi %arg1, %c2_i32 : i32
    %c1_i32_138 = arith.constant 1 : i32
    %156 = arith.subi %155, %c1_i32_138 : i32
    %c0_i32_139 = arith.constant 0 : i32
    %157 = arith.cmpi sge, %156, %c0_i32_139 : i32
    %c8_i32_140 = arith.constant 8 : i32
    %158 = arith.cmpi slt, %156, %c8_i32_140 : i32
    %159 = arith.andi %157, %158 : i1
    %c0_i32_141 = arith.constant 0 : i32
    %c7_i32_142 = arith.constant 7 : i32
    %160 = arith.maxsi %c0_i32_141, %156 : i32
    %161 = arith.minsi %c7_i32_142, %160 : i32
    %cst_143 = arith.constant 1.000000e+00 : f32
    %cst_144 = arith.constant 0.000000e+00 : f32
    %162 = arith.select %159, %cst_143, %cst_144 : f32
    %c0_145 = arith.constant 0 : index
    %163 = arith.index_cast %161 : i32 to index
    %c0_146 = arith.constant 0 : index
    %c0_147 = arith.constant 0 : index
    %164 = vector.load %arg2[%c0_145, %163, %c0_146, %c0_147] : memref<1x8x256x4xf32, #tpu.memory_space<vmem>>, vector<1x1x256x4xf32>
    %165 = vector.shape_cast %164 : vector<1x1x256x4xf32> to vector<256x4xf32>
    %166 = vector.broadcast %162 : f32 to vector<256x4xf32>
    %167 = arith.mulf %165, %166 : vector<256x4xf32>
    %c0_148 = arith.constant 0 : index
    %c4_149 = arith.constant 4 : index
    %168 = vector.load %arg8[%c0_148, %c4_149] : memref<256x12xf32, #tpu.memory_space<vmem>>, vector<256x4xf32>
    tpu.vector_store %arg8[%c0_148, %c4_149], %167 {strides = array<i32>} : memref<256x12xf32, #tpu.memory_space<vmem>>, vector<256x4xf32>,
    %169 = vector.broadcast %20 : vector<256x1xf32> to vector<256x4xf32>
    %170 = arith.mulf %167, %169 : vector<256x4xf32>
    %171 = vector.extract_strided_slice %170 {offsets = [0, 0], sizes = [255, 4], strides = [1, 1]} : vector<256x4xf32> to vector<255x4xf32>
    %c1_150 = arith.constant 1 : index
    %c0_151 = arith.constant 0 : index
    %172 = vector.load %arg8[%c1_150, %c0_151] : memref<256x12xf32, #tpu.memory_space<vmem>>, vector<255x4xf32>
    tpu.vector_store %arg8[%c1_150, %c0_151], %171 {strides = array<i32>} : memref<256x12xf32, #tpu.memory_space<vmem>>, vector<255x4xf32>,
    %173 = vector.broadcast %24 : vector<256x1xf32> to vector<256x4xf32>
    %174 = arith.mulf %167, %173 : vector<256x4xf32>
    %175 = vector.extract_strided_slice %174 {offsets = [1, 0], sizes = [255, 4], strides = [1, 1]} : vector<256x4xf32> to vector<255x4xf32>
    %c0_152 = arith.constant 0 : index
    %c8_153 = arith.constant 8 : index
    %176 = vector.load %arg8[%c0_152, %c8_153] : memref<256x12xf32, #tpu.memory_space<vmem>>, vector<255x4xf32>
    tpu.vector_store %arg8[%c0_152, %c8_153], %175 {strides = array<i32>} : memref<256x12xf32, #tpu.memory_space<vmem>>, vector<255x4xf32>,
    %c0_154 = arith.constant 0 : index
    %c0_155 = arith.constant 0 : index
    %177 = vector.load %arg8[%c0_154, %c0_155] : memref<256x12xf32, #tpu.memory_space<vmem>>, vector<256x12xf32>
    %c6 = arith.constant 6 : index
    %c0_156 = arith.constant 0 : index
    %c0_157 = arith.constant 0 : index
    %178 = vector.load %arg3[%c6, %c0_156, %c0_157] : memref<9x12x8xf32, #tpu.memory_space<vmem>>, vector<1x12x8xf32>
    %179 = vector.shape_cast %178 : vector<1x12x8xf32> to vector<12x8xf32>
    %c6_158 = arith.constant 6 : index
    %c0_159 = arith.constant 0 : index
    %c0_160 = arith.constant 0 : index
    %180 = vector.load %arg4[%c6_158, %c0_159, %c0_160] : memref<9x12x8xf32, #tpu.memory_space<vmem>>, vector<1x12x8xf32>
    %181 = vector.shape_cast %180 : vector<1x12x8xf32> to vector<12x8xf32>
    %182 = vector.extract_strided_slice %177 {offsets = [0, 0], sizes = [240, 12], strides = [1, 1]} : vector<256x12xf32> to vector<240x12xf32>
    %c16_161 = arith.constant 16 : index
    %c0_162 = arith.constant 0 : index
    %183 = vector.load %arg6[%c16_161, %c0_162] : memref<256x8xf32, #tpu.memory_space<vmem>>, vector<240x8xf32>
    %cst_163 = arith.constant dense<0.000000e+00> : vector<240x8xf32>
    %184 = tpu.matmul %182, %179, %cst_163 {dimension_numbers = #tpu.dot_dimension_numbers<[1], [0], [0], [1], [0, 0, 1, 1], [], []>} : vector<240x12xf32>, vector<12x8xf32>, vector<240x8xf32> -> vector<240x8xf32>
    %185 = arith.addf %183, %184 : vector<240x8xf32>
    %c16_164 = arith.constant 16 : index
    %c0_165 = arith.constant 0 : index
    %186 = vector.load %arg6[%c16_164, %c0_165] : memref<256x8xf32, #tpu.memory_space<vmem>>, vector<240x8xf32>
    tpu.vector_store %arg6[%c16_164, %c0_165], %185 {strides = array<i32>} : memref<256x8xf32, #tpu.memory_space<vmem>>, vector<240x8xf32>,
    %c16_166 = arith.constant 16 : index
    %c0_167 = arith.constant 0 : index
    %187 = vector.load %arg7[%c16_166, %c0_167] : memref<256x8xf32, #tpu.memory_space<vmem>>, vector<240x8xf32>
    %cst_168 = arith.constant dense<0.000000e+00> : vector<240x8xf32>
    %188 = tpu.matmul %182, %181, %cst_168 {dimension_numbers = #tpu.dot_dimension_numbers<[1], [0], [0], [1], [0, 0, 1, 1], [], []>} : vector<240x12xf32>, vector<12x8xf32>, vector<240x8xf32> -> vector<240x8xf32>
    %189 = arith.addf %187, %188 : vector<240x8xf32>
    %c16_169 = arith.constant 16 : index
    %c0_170 = arith.constant 0 : index
    %190 = vector.load %arg7[%c16_169, %c0_170] : memref<256x8xf32, #tpu.memory_space<vmem>>, vector<240x8xf32>
    tpu.vector_store %arg7[%c16_169, %c0_170], %189 {strides = array<i32>} : memref<256x8xf32, #tpu.memory_space<vmem>>, vector<240x8xf32>,
    %c7 = arith.constant 7 : index
    %c0_171 = arith.constant 0 : index
    %c0_172 = arith.constant 0 : index
    %191 = vector.load %arg3[%c7, %c0_171, %c0_172] : memref<9x12x8xf32, #tpu.memory_space<vmem>>, vector<1x12x8xf32>
    %192 = vector.shape_cast %191 : vector<1x12x8xf32> to vector<12x8xf32>
    %c7_173 = arith.constant 7 : index
    %c0_174 = arith.constant 0 : index
    %c0_175 = arith.constant 0 : index
    %193 = vector.load %arg4[%c7_173, %c0_174, %c0_175] : memref<9x12x8xf32, #tpu.memory_space<vmem>>, vector<1x12x8xf32>
    %194 = vector.shape_cast %193 : vector<1x12x8xf32> to vector<12x8xf32>
    %c0_176 = arith.constant 0 : index
    %c0_177 = arith.constant 0 : index
    %195 = vector.load %arg6[%c0_176, %c0_177] : memref<256x8xf32, #tpu.memory_space<vmem>>, vector<256x8xf32>
    %cst_178 = arith.constant dense<0.000000e+00> : vector<256x8xf32>
    %196 = tpu.matmul %177, %192, %cst_178 {dimension_numbers = #tpu.dot_dimension_numbers<[1], [0], [0], [1], [0, 0, 1, 1], [], []>} : vector<256x12xf32>, vector<12x8xf32>, vector<256x8xf32> -> vector<256x8xf32>
    %197 = arith.addf %195, %196 : vector<256x8xf32>
    %c0_179 = arith.constant 0 : index
    %c0_180 = arith.constant 0 : index
    %198 = vector.load %arg6[%c0_179, %c0_180] : memref<256x8xf32, #tpu.memory_space<vmem>>, vector<256x8xf32>
    tpu.vector_store %arg6[%c0_179, %c0_180], %197 {strides = array<i32>} : memref<256x8xf32, #tpu.memory_space<vmem>>, vector<256x8xf32>,
    %c0_181 = arith.constant 0 : index
    %c0_182 = arith.constant 0 : index
    %199 = vector.load %arg7[%c0_181, %c0_182] : memref<256x8xf32, #tpu.memory_space<vmem>>, vector<256x8xf32>
    %cst_183 = arith.constant dense<0.000000e+00> : vector<256x8xf32>
    %200 = tpu.matmul %177, %194, %cst_183 {dimension_numbers = #tpu.dot_dimension_numbers<[1], [0], [0], [1], [0, 0, 1, 1], [], []>} : vector<256x12xf32>, vector<12x8xf32>, vector<256x8xf32> -> vector<256x8xf32>
    %201 = arith.addf %199, %200 : vector<256x8xf32>
    %c0_184 = arith.constant 0 : index
    %c0_185 = arith.constant 0 : index
    %202 = vector.load %arg7[%c0_184, %c0_185] : memref<256x8xf32, #tpu.memory_space<vmem>>, vector<256x8xf32>
    tpu.vector_store %arg7[%c0_184, %c0_185], %201 {strides = array<i32>} : memref<256x8xf32, #tpu.memory_space<vmem>>, vector<256x8xf32>,
    %c8_186 = arith.constant 8 : index
    %c0_187 = arith.constant 0 : index
    %c0_188 = arith.constant 0 : index
    %203 = vector.load %arg3[%c8_186, %c0_187, %c0_188] : memref<9x12x8xf32, #tpu.memory_space<vmem>>, vector<1x12x8xf32>
    %204 = vector.shape_cast %203 : vector<1x12x8xf32> to vector<12x8xf32>
    %c8_189 = arith.constant 8 : index
    %c0_190 = arith.constant 0 : index
    %c0_191 = arith.constant 0 : index
    %205 = vector.load %arg4[%c8_189, %c0_190, %c0_191] : memref<9x12x8xf32, #tpu.memory_space<vmem>>, vector<1x12x8xf32>
    %206 = vector.shape_cast %205 : vector<1x12x8xf32> to vector<12x8xf32>
    %207 = vector.extract_strided_slice %177 {offsets = [16, 0], sizes = [240, 12], strides = [1, 1]} : vector<256x12xf32> to vector<240x12xf32>
    %c0_192 = arith.constant 0 : index
    %c0_193 = arith.constant 0 : index
    %208 = vector.load %arg6[%c0_192, %c0_193] : memref<256x8xf32, #tpu.memory_space<vmem>>, vector<240x8xf32>
    %cst_194 = arith.constant dense<0.000000e+00> : vector<240x8xf32>
    %209 = tpu.matmul %207, %204, %cst_194 {dimension_numbers = #tpu.dot_dimension_numbers<[1], [0], [0], [1], [0, 0, 1, 1], [], []>} : vector<240x12xf32>, vector<12x8xf32>, vector<240x8xf32> -> vector<240x8xf32>
    %210 = arith.addf %208, %209 : vector<240x8xf32>
    %c0_195 = arith.constant 0 : index
    %c0_196 = arith.constant 0 : index
    %211 = vector.load %arg6[%c0_195, %c0_196] : memref<256x8xf32, #tpu.memory_space<vmem>>, vector<240x8xf32>
    tpu.vector_store %arg6[%c0_195, %c0_196], %210 {strides = array<i32>} : memref<256x8xf32, #tpu.memory_space<vmem>>, vector<240x8xf32>,
    %c0_197 = arith.constant 0 : index
    %c0_198 = arith.constant 0 : index
    %212 = vector.load %arg7[%c0_197, %c0_198] : memref<256x8xf32, #tpu.memory_space<vmem>>, vector<240x8xf32>
    %cst_199 = arith.constant dense<0.000000e+00> : vector<240x8xf32>
    %213 = tpu.matmul %207, %206, %cst_199 {dimension_numbers = #tpu.dot_dimension_numbers<[1], [0], [0], [1], [0, 0, 1, 1], [], []>} : vector<240x12xf32>, vector<12x8xf32>, vector<240x8xf32> -> vector<240x8xf32>
    %214 = arith.addf %212, %213 : vector<240x8xf32>
    %c0_200 = arith.constant 0 : index
    %c0_201 = arith.constant 0 : index
    %215 = vector.load %arg7[%c0_200, %c0_201] : memref<256x8xf32, #tpu.memory_space<vmem>>, vector<240x8xf32>
    tpu.vector_store %arg7[%c0_200, %c0_201], %214 {strides = array<i32>} : memref<256x8xf32, #tpu.memory_space<vmem>>, vector<240x8xf32>,
    %c0_202 = arith.constant 0 : index
    %c0_203 = arith.constant 0 : index
    %216 = vector.load %arg6[%c0_202, %c0_203] : memref<256x8xf32, #tpu.memory_space<vmem>>, vector<256x8xf32>
    %cst_204 = arith.constant 0.000000e+00 : f32
    %217 = vector.broadcast %cst_204 : f32 to vector<256x8xf32>
    %218 = arith.cmpf oge, %216, %217 : vector<256x8xf32>
    %cst_205 = arith.constant 0.00999999977 : f32
    %219 = vector.broadcast %cst_205 : f32 to vector<256x8xf32>
    %220 = arith.mulf %219, %216 : vector<256x8xf32>
    %221 = arith.select %218, %216, %220 : vector<256x8xi1>, vector<256x8xf32>
    %c0_206 = arith.constant 0 : index
    %c0_207 = arith.constant 0 : index
    %222 = vector.load %arg7[%c0_206, %c0_207] : memref<256x8xf32, #tpu.memory_space<vmem>>, vector<256x8xf32>
    %cst_208 = arith.constant 0.000000e+00 : f32
    %223 = vector.broadcast %cst_208 : f32 to vector<256x8xf32>
    %224 = arith.cmpf oge, %222, %223 : vector<256x8xf32>
    %cst_209 = arith.constant 0.00999999977 : f32
    %225 = vector.broadcast %cst_209 : f32 to vector<256x8xf32>
    %226 = arith.mulf %225, %222 : vector<256x8xf32>
    %227 = arith.select %224, %222, %226 : vector<256x8xi1>, vector<256x8xf32>
    %228 = arith.addf %221, %227 : vector<256x8xf32>
    %c0_210 = arith.constant 0 : index
    %c0_211 = arith.constant 0 : index
    %c0_212 = arith.constant 0 : index
    %c0_213 = arith.constant 0 : index
    %229 = vector.load %arg5[%c0_210, %c0_211, %c0_212, %c0_213] : memref<1x1x256x8xf32, #tpu.memory_space<vmem>>, vector<1x1x256x8xf32>
    %230 = vector.shape_cast %229 : vector<1x1x256x8xf32> to vector<256x8xf32>
    %231 = vector.shape_cast %228 : vector<256x8xf32> to vector<1x1x256x8xf32>
    tpu.vector_store %arg5[%c0_210, %c0_211, %c0_212, %c0_213], %231 {strides = array<i32>} : memref<1x1x256x8xf32, #tpu.memory_space<vmem>>, vector<1x1x256x8xf32>,
    return
  }
  func.func @transform_0(%arg0: i32, %arg1: i32) -> (i32, i32, i32, i32) {
    %c0_i32 = arith.constant 0 : i32
    %c0_i32_0 = arith.constant 0 : i32
    %c0_i32_1 = arith.constant 0 : i32
    %c0_i32_2 = arith.constant 0 : i32
    return %arg0, %c0_i32, %c0_i32_0, %c0_i32_1 : i32, i32, i32, i32
  }
  func.func @transform_1(%arg0: i32, %arg1: i32) -> (i32, i32, i32) {
    %c0_i32 = arith.constant 0 : i32
    %c0_i32_0 = arith.constant 0 : i32
    %c0_i32_1 = arith.constant 0 : i32
    %c0_i32_2 = arith.constant 0 : i32
    return %c0_i32, %c0_i32_0, %c0_i32_1 : i32, i32, i32
  }
  func.func @transform_2(%arg0: i32, %arg1: i32) -> (i32, i32, i32) {
    %c0_i32 = arith.constant 0 : i32
    %c0_i32_0 = arith.constant 0 : i32
    %c0_i32_1 = arith.constant 0 : i32
    %c0_i32_2 = arith.constant 0 : i32
    return %c0_i32, %c0_i32_0, %c0_i32_1 : i32, i32, i32
  }
  func.func @transform_3(%arg0: i32, %arg1: i32) -> (i32, i32, i32, i32) {
    %c0_i32 = arith.constant 0 : i32
    %c0_i32_0 = arith.constant 0 : i32
    %c0_i32_1 = arith.constant 0 : i32
    return %arg0, %arg1, %c0_i32, %c0_i32_0 : i32, i32, i32, i32
  }
}

</mosaic_0001>

<llo_original>
// kernel: tpu_custom_call.1
$region0: #{tpu_custom_call.1}
  #allocation0 [shape = 'u32[]', space=smem, size = 0x4, offset = 0x4, fixed_abs, tag = 'smem constant byte address 0x4 - core index']
  #allocation1 [shape = 'u32[144,128]{1,0:T(1,128)}', space=vmem, size = 0x12000, scoped, tag = 'internal scratch']
  #allocation2 [shape = 'f32[256,8]{1,0:T(8,128)}', space=vmem, size = 0x20000, scoped, tag = 'scratch operand']
  #allocation3 [shape = 'f32[256,8]{1,0:T(8,128)}', space=vmem, size = 0x20000, scoped, tag = 'scratch operand']
  #allocation4 [shape = 'f32[256,12]{1,0:T(8,128)}', space=vmem, size = 0x20000, scoped, tag = 'scratch operand']
  %s0 = inlined_call_operand.hbm [shape: f32[2,8,256,4], index: 0, kind: input, shape index: {}]
  %s1 = inlined_call_operand.hbm [shape: f32[9,12,8], index: 1, kind: input, shape index: {}]
  %s2 = inlined_call_operand.hbm [shape: f32[9,12,8], index: 2, kind: input, shape index: {}]
  %s3 = inlined_call_operand.hbm [shape: f32[2,8,256,8], index: 3, kind: output, shape index: {}]
  %s4 = sld [smem:[#allocation0]]
  $region57: #{tpu_custom_call.1} parent=0
    _
  %s6 = ssub.s32 1, %s4
  %s7 = scalar_select 0, %s6, %s4
  $region1: #{tpu_custom_call.1} parent=0
    #allocation5 [shape = 'u8[2097152]{0}', space=vmem, size = 0x200000, scoped, tag = 'input window, operand 0']
    #allocation6 [shape = 's32[2]{0}', space=sflag, size = 0x8, scoped, tag = 'scoped memory for tpu_custom_call.1']
    #allocation7 [shape = 's32[2]{0}', space=sflag, size = 0x8, scoped, tag = 'scoped memory for tpu_custom_call.1']
    #allocation8 [shape = 'u8[73728]{0}', space=vmem, size = 0x12000, scoped, tag = 'input window, operand 1, single buffered']
    #allocation9 [shape = 's32[1]{0}', space=sflag, size = 0x4, scoped, tag = 'scoped memory for tpu_custom_call.1']
    #allocation10 [shape = 'u8[73728]{0}', space=vmem, size = 0x12000, scoped, tag = 'input window, operand 2, single buffered']
    #allocation11 [shape = 'u8[262144]{0}', space=vmem, size = 0x40000, scoped, tag = 'output window, operand 0']
    %8 = vsyncpa [#allocation6], 0
    %s9 = scalar_lea.sflag [#allocation6], 1
    %10 = vsyncpa %s9, 0
    %11 = vsyncpa [#allocation9], 0
    %12 = vsyncpa [#allocation7], 0
    %s13 = scalar_lea.sflag [#allocation7], 1
    %14 = vsyncpa %s13, 0
    loop: start=0, step=1, limit=18
    $region2: #{tpu_custom_call.1} parent=1 // loop_pre_header
      _
    $region3: #{tpu_custom_call.1} parent=1 // loop_header
      %s16 = sphi 0, %s20
      %p17 = scmp.ge.s32.totalorder %s16, 18
      %s23 = sphi 0, %s35
      %s24 = sphi 0, %s31
      %s25 = sphi 0, %s23
      %s26 = sphi 0, %s24
      %s27 = sphi 0, %s25
      %s28 = sphi 0, %s26
      %s38 = sphi 0, %s40
      %s41 = sphi 0, %s38
      %s42 = sphi 0, %s41
      %s58 = sphi 0, %s42
      %s62 = sphi 0, %s62
      %s64 = sphi 0, %s62
      %s65 = sphi 0, %s64
      %s79 = sphi 0, %s65
      %s83 = sphi 0, %s83
      %s85 = sphi 0, %s83
      %s86 = sphi 0, %s85
      %s100 = sphi 0, %s86
      %s108 = sphi 0, %s110
      %s111 = sphi 0, %s108
      %s112 = sphi 0, %s111
      %s128 = sphi 0, %s112
    $region4: #{tpu_custom_call.1} parent=1 // loop_header_branch
      %19 = sbr.rel (%p17) target = $region8
    $region5: #{tpu_custom_call.1} parent=1 // loop_body
      %s21 = ssub.s32 %s16, 1
      %s22 = ssub.s32 %s16, 2
      %s29 = sadd.s32 1, %s24
      %p30 = scmp.ge.s32.totalorder %s29, 8
      %s31 = scalar_select %p30, 0, %s29
      %s32 = sadd.s32 1, %s23
      %s33 = scalar_select %p30, %s32, %s23
      %p34 = scmp.ge.s32.totalorder %s33, 2
      %s35 = scalar_select %p34, 0, %s33
      %s36 = ssub.s32 %s23, %s35
      %p37 = scmp.eq.s32.totalorder %s36, 0
      %s39 = sadd.s32 %s38, 1
      %s40 = scalar_select %p37, %s38, %s39
      %p43 = pneg %p37
      %p44 = scmp.eq.s32.totalorder %s16, 15
      %p45 = por %p43, %p44
      %p46 = scmp.ne.s32.totalorder %s38, %s41
      %p47 = scmp.eq.s32.totalorder %s16, 0
      %p48 = por %p46, %p47
      %p49 = scmp.ne.s32.totalorder %s38, %s41
      %p50 = scmp.eq.s32.totalorder %s21, 15
      %p51 = por %p49, %p50
      %p52 = scmp.ne.s32.totalorder %s41, %s42
      %p53 = scmp.eq.s32.totalorder %s21, 0
      %p54 = por %p52, %p53
      %p55 = scmp.ne.s32.totalorder %s41, %s42
      %p56 = scmp.eq.s32.totalorder %s22, 15
      %p57 = por %p55, %p56
      %p59 = scmp.ne.s32.totalorder %s42, %s58
      %p60 = scmp.eq.s32.totalorder %s22, 0
      %p61 = por %p59, %p60
      %s63 = sadd.s32 %s62, 1
      %p66 = scmp.eq.s32.totalorder %s16, 15
      %p67 = scmp.ne.s32.totalorder %s62, %s64
      %p68 = scmp.eq.s32.totalorder %s16, 0
      %p69 = por %p67, %p68
      %p70 = scmp.ne.s32.totalorder %s62, %s64
      %p71 = scmp.eq.s32.totalorder %s21, 15
      %p72 = por %p70, %p71
      %p73 = scmp.ne.s32.totalorder %s64, %s65
      %p74 = scmp.eq.s32.totalorder %s21, 0
      %p75 = por %p73, %p74
      %p76 = scmp.ne.s32.totalorder %s64, %s65
      %p77 = scmp.eq.s32.totalorder %s22, 15
      %p78 = por %p76, %p77
      %p80 = scmp.ne.s32.totalorder %s65, %s79
      %p81 = scmp.eq.s32.totalorder %s22, 0
      %p82 = por %p80, %p81
      %s84 = sadd.s32 %s83, 1
      %p87 = scmp.eq.s32.totalorder %s16, 15
      %p88 = scmp.ne.s32.totalorder %s83, %s85
      %p89 = scmp.eq.s32.totalorder %s16, 0
      %p90 = por %p88, %p89
      %p91 = scmp.ne.s32.totalorder %s83, %s85
      %p92 = scmp.eq.s32.totalorder %s21, 15
      %p93 = por %p91, %p92
      %p94 = scmp.ne.s32.totalorder %s85, %s86
      %p95 = scmp.eq.s32.totalorder %s21, 0
      %p96 = por %p94, %p95
      %p97 = scmp.ne.s32.totalorder %s85, %s86
      %p98 = scmp.eq.s32.totalorder %s22, 15
      %p99 = por %p97, %p98
      %p101 = scmp.ne.s32.totalorder %s86, %s100
      %p102 = scmp.eq.s32.totalorder %s22, 0
      %p103 = por %p101, %p102
      %s104 = ssub.s32 %s23, %s35
      %s105 = ssub.s32 %s24, %s31
      %s106 = sor.u32 %s104, %s105
      %p107 = scmp.eq.s32.totalorder %s106, 0
      %s109 = sadd.s32 %s108, 1
      %s110 = scalar_select %p107, %s108, %s109
      %p113 = pneg %p107
      %p114 = scmp.eq.s32.totalorder %s16, 15
      %p115 = por %p113, %p114
      %p116 = scmp.ne.s32.totalorder %s108, %s111
      %p117 = scmp.eq.s32.totalorder %s16, 0
      %p118 = por %p116, %p117
      %p119 = scmp.ne.s32.totalorder %s108, %s111
      %p120 = scmp.eq.s32.totalorder %s21, 15
      %p121 = por %p119, %p120
      %p122 = scmp.ne.s32.totalorder %s111, %s112
      %p123 = scmp.eq.s32.totalorder %s21, 0
      %p124 = por %p122, %p123
      %p125 = scmp.ne.s32.totalorder %s111, %s112
      %p126 = scmp.eq.s32.totalorder %s22, 15
      %p127 = por %p125, %p126
      %p129 = scmp.ne.s32.totalorder %s112, %s128
      %p130 = scmp.eq.s32.totalorder %s22, 0
      %p131 = por %p129, %p130
      %p132 = scmp.le.s32.totalorder 1, %s16
      %p133 = scmp.lt.s32.totalorder %s16, 17
      %p134 = pnand %p132, %p133
      %p135 = pneg %p134
      // Predicated region
      $region9: #{tpu_custom_call.1} parent=5 // pred_check
        _
      $region10: #{tpu_custom_call.1} parent=5 // pred_check_branch
        %137 = sbr.rel (%p134) target = $region12
      $region11: #{tpu_custom_call.1} parent=5 // pred_region
        %s138 = ssub.s32 %s16, 1
        // Predicated region
        $region13: #{tpu_custom_call.1} parent=11 // pred_check
          %p139 = pneg %p75
        $region14: #{tpu_custom_call.1} parent=11 // pred_check_branch
          %141 = sbr.rel (%p139) target = $region16
        $region15: #{tpu_custom_call.1} parent=11 // pred_region
          %s143 = ssub.s32 2304, 2304
          %144 = vsyncadd [#allocation9], %s143
          %s145 = sshll.u32 [#allocation8], 4
          %s146 = int_to_ptr.vmem [resolvable:$true] %s145
          %151 = dma.hbm_to_vmem [thread:$0]  %s1, 2304, %s146, [#allocation9], 128, 128, 8
        $region16: #{tpu_custom_call.1} parent=11 // pred_fallthru
          _
        // Predicated region
        $region17: #{tpu_custom_call.1} parent=11 // pred_check
          %p152 = pneg %p96
        $region18: #{tpu_custom_call.1} parent=11 // pred_check_branch
          %154 = sbr.rel (%p152) target = $region20
        $region19: #{tpu_custom_call.1} parent=11 // pred_region
          %s156 = ssub.s32 2304, 2304
          %157 = vsyncadd [#allocation9], %s156
          %s158 = sshll.u32 [#allocation10], 4
          %s159 = int_to_ptr.vmem [resolvable:$true] %s158
          %164 = dma.hbm_to_vmem [thread:$0]  %s2, 2304, %s159, [#allocation9], 128, 128, 8
        $region20: #{tpu_custom_call.1} parent=11 // pred_fallthru
          _
      $region12: #{tpu_custom_call.1} parent=5 // pred_fallthru
        _
      %p165 = scmp.lt.s32.totalorder %s16, 16
      // Predicated region
      $region21: #{tpu_custom_call.1} parent=5 // pred_check
        %p166 = pneg %p165
      $region22: #{tpu_custom_call.1} parent=5 // pred_check_branch
        %168 = sbr.rel (%p166) target = $region24
      $region23: #{tpu_custom_call.1} parent=5 // pred_region
        // Predicated region
        $region25: #{tpu_custom_call.1} parent=23 // pred_check
          %p169 = pneg %p48
        $region26: #{tpu_custom_call.1} parent=23 // pred_check_branch
          %171 = sbr.rel (%p169) target = $region28
        $region27: #{tpu_custom_call.1} parent=23 // pred_region
          %s172 = sand.u32 %s38, 1
          %s173 = scalar_lea.sflag [#allocation6], %s172
          %s174 = sand.u32 %s38, 1
          %s175 = smul.addr %s174, 2048
          %s176 = scalar_lea.vmem [#allocation5], %s175
          %s178 = ssub.s32 32768, 32768
          %179 = vsyncadd %s173, %s178
          %s180 = smul.addr %s23, 256
          %s181 = smul.addr %s180, 128
          %s182 = scalar_lea.hbm %s0, %s181
          %s183 = sshll.u32 %s176, 4
          %s184 = int_to_ptr.vmem [resolvable:$true] %s183
          %189 = dma.hbm_to_vmem [thread:$0]  %s182, 32768, %s184, %s173, 128, 128, 8
        $region28: #{tpu_custom_call.1} parent=23 // pred_fallthru
          _
      $region24: #{tpu_custom_call.1} parent=5 // pred_fallthru
        _
      %p190 = scmp.le.s32.totalorder 1, %s16
      %p191 = scmp.lt.s32.totalorder %s16, 17
      %p192 = pnand %p190, %p191
      %p193 = pneg %p192
      // Predicated region
      $region29: #{tpu_custom_call.1} parent=5 // pred_check
        _
      $region30: #{tpu_custom_call.1} parent=5 // pred_check_branch
        %195 = sbr.rel (%p192) target = $region32
      $region31: #{tpu_custom_call.1} parent=5 // pred_region
        %s196 = ssub.s32 %s16, 1
        %s197 = sand.u32 %s41, 1
        %s198 = scalar_lea.sflag [#allocation6], %s197
        %s199 = sand.u32 %s41, 1
        %s200 = smul.addr %s199, 2048
        %s201 = scalar_lea.vmem [#allocation5], %s200
        // Predicated region
        $region33: #{tpu_custom_call.1} parent=31 // pred_check
          %p202 = pneg %p54
        $region34: #{tpu_custom_call.1} parent=31 // pred_check_branch
          %204 = sbr.rel (%p202) target = $region36
        $region35: #{tpu_custom_call.1} parent=31 // pred_region
          %205 = dma.done %s198, 32768
        $region36: #{tpu_custom_call.1} parent=31 // pred_fallthru
          _
        // Predicated region
        $region37: #{tpu_custom_call.1} parent=31 // pred_check
          %p206 = pneg %p75
        $region38: #{tpu_custom_call.1} parent=31 // pred_check_branch
          %208 = sbr.rel (%p206) target = $region40
        $region39: #{tpu_custom_call.1} parent=31 // pred_region
          %209 = dma.done [#allocation9], 2304
        $region40: #{tpu_custom_call.1} parent=31 // pred_fallthru
          _
        // Predicated region
        $region41: #{tpu_custom_call.1} parent=31 // pred_check
          %p210 = pneg %p96
        $region42: #{tpu_custom_call.1} parent=31 // pred_check_branch
          %212 = sbr.rel (%p210) target = $region44
        $region43: #{tpu_custom_call.1} parent=31 // pred_region
          %213 = dma.done [#allocation9], 2304
        $region44: #{tpu_custom_call.1} parent=31 // pred_fallthru
          _
        %s214 = sand.u32 %s41, 1
        %s215 = scalar_lea.sflag [#allocation6], %s214
        %s216 = sand.u32 %s41, 1
        %s217 = smul.addr %s216, 2048
        %s218 = scalar_lea.vmem [#allocation5], %s217
        %p219 = pneg %p54
        %p220 = pneg %p51
        %p221 = pneg %p75
        %p222 = pneg %p72
        %p223 = pneg %p96
        %p224 = pneg %p93
        %p225 = pneg %p124
        %p226 = pneg %p121
        %s227 = sand.u32 %s111, 1
        %s228 = scalar_lea.sflag [#allocation7], %s227
        %s229 = sand.u32 %s111, 1
        %s230 = smul.addr %s229, 256
        %s231 = scalar_lea.vmem [#allocation11], %s230
        %v232 = vlaneseq
        %v233 = vshrl.u32 %v232, 7
        %v234 = vadd.s32 %v233, 8
        %v235 = vadd.s32 %v233, 16
        %v236 = vadd.s32 %v233, 24
        %v237 = vadd.s32 %v233, 32
        %v238 = vadd.s32 %v233, 40
        %v239 = vadd.s32 %v233, 48
        %v240 = vadd.s32 %v233, 56
        %v241 = vadd.s32 %v233, 64
        %v242 = vadd.s32 %v233, 72
        %v243 = vadd.s32 %v233, 80
        %v244 = vadd.s32 %v233, 88
        %v245 = vadd.s32 %v233, 96
        %v246 = vadd.s32 %v233, 104
        %v247 = vadd.s32 %v233, 112
        %v248 = vadd.s32 %v233, 120
        %v249 = vadd.s32 %v233, 128
        %v250 = vadd.s32 %v233, 136
        %v251 = vadd.s32 %v233, 144
        %v252 = vadd.s32 %v233, 152
        %v253 = vadd.s32 %v233, 160
        %v254 = vadd.s32 %v233, 168
        %v255 = vadd.s32 %v233, 176
        %v256 = vadd.s32 %v233, 184
        %v257 = vadd.s32 %v233, 192
        %v258 = vadd.s32 %v233, 200
        %v259 = vadd.s32 %v233, 208
        %v260 = vadd.s32 %v233, 216
        %v261 = vadd.s32 %v233, 224
        %v262 = vadd.s32 %v233, 232
        %v263 = vadd.s32 %v233, 240
        %v264 = vadd.s32 %v233, 248
        %vm265 = vcmp.lt.s32.totalorder %v233, 0
        %v266 = vsub.s32 0, %v233
        %v267 = vsel %vm265, %v266, %v233
        %v268 = vshrl.u32 %v267, 4
        %v269 = vand.u32 %v267, 15
        %v270 = vsub.s32 0, %v269
        %v271 = vsel %vm265, %v270, %v269
        %vm272 = vcmp.lt.s32.totalorder %v234, 0
        %v273 = vsub.s32 0, %v234
        %v274 = vsel %vm272, %v273, %v234
        %v275 = vshrl.u32 %v274, 4
        %v276 = vand.u32 %v274, 15
        %v277 = vsub.s32 0, %v276
        %v278 = vsel %vm272, %v277, %v276
        %vm279 = vcmp.lt.s32.totalorder %v235, 0
        %v280 = vsub.s32 0, %v235
        %v281 = vsel %vm279, %v280, %v235
        %v282 = vshrl.u32 %v281, 4
        %v283 = vand.u32 %v281, 15
        %v284 = vsub.s32 0, %v283
        %v285 = vsel %vm279, %v284, %v283
        %vm286 = vcmp.lt.s32.totalorder %v236, 0
        %v287 = vsub.s32 0, %v236
        %v288 = vsel %vm286, %v287, %v236
        %v289 = vshrl.u32 %v288, 4
        %v290 = vand.u32 %v288, 15
        %v291 = vsub.s32 0, %v290
        %v292 = vsel %vm286, %v291, %v290
        %vm293 = vcmp.lt.s32.totalorder %v237, 0
        %v294 = vsub.s32 0, %v237
        %v295 = vsel %vm293, %v294, %v237
        %v296 = vshrl.u32 %v295, 4
        %v297 = vand.u32 %v295, 15
        %v298 = vsub.s32 0, %v297
        %v299 = vsel %vm293, %v298, %v297
        %vm300 = vcmp.lt.s32.totalorder %v238, 0
        %v301 = vsub.s32 0, %v238
        %v302 = vsel %vm300, %v301, %v238
        %v303 = vshrl.u32 %v302, 4
        %v304 = vand.u32 %v302, 15
        %v305 = vsub.s32 0, %v304
        %v306 = vsel %vm300, %v305, %v304
        %vm307 = vcmp.lt.s32.totalorder %v239, 0
        %v308 = vsub.s32 0, %v239
        %v309 = vsel %vm307, %v308, %v239
        %v310 = vshrl.u32 %v309, 4
        %v311 = vand.u32 %v309, 15
        %v312 = vsub.s32 0, %v311
        %v313 = vsel %vm307, %v312, %v311
        %vm314 = vcmp.lt.s32.totalorder %v240, 0
        %v315 = vsub.s32 0, %v240
        %v316 = vsel %vm314, %v315, %v240
        %v317 = vshrl.u32 %v316, 4
        %v318 = vand.u32 %v316, 15
        %v319 = vsub.s32 0, %v318
        %v320 = vsel %vm314, %v319, %v318
        %vm321 = vcmp.lt.s32.totalorder %v241, 0
        %v322 = vsub.s32 0, %v241
        %v323 = vsel %vm321, %v322, %v241
        %v324 = vshrl.u32 %v323, 4
        %v325 = vand.u32 %v323, 15
        %v326 = vsub.s32 0, %v325
        %v327 = vsel %vm321, %v326, %v325
        %vm328 = vcmp.lt.s32.totalorder %v242, 0
        %v329 = vsub.s32 0, %v242
        %v330 = vsel %vm328, %v329, %v242
        %v331 = vshrl.u32 %v330, 4
        %v332 = vand.u32 %v330, 15
        %v333 = vsub.s32 0, %v332
        %v334 = vsel %vm328, %v333, %v332
        %vm335 = vcmp.lt.s32.totalorder %v243, 0
        %v336 = vsub.s32 0, %v243
        %v337 = vsel %vm335, %v336, %v243
        %v338 = vshrl.u32 %v337, 4
        %v339 = vand.u32 %v337, 15
        %v340 = vsub.s32 0, %v339
        %v341 = vsel %vm335, %v340, %v339
        %vm342 = vcmp.lt.s32.totalorder %v244, 0
        %v343 = vsub.s32 0, %v244
        %v344 = vsel %vm342, %v343, %v244
        %v345 = vshrl.u32 %v344, 4
        %v346 = vand.u32 %v344, 15
        %v347 = vsub.s32 0, %v346
        %v348 = vsel %vm342, %v347, %v346
        %vm349 = vcmp.lt.s32.totalorder %v245, 0
        %v350 = vsub.s32 0, %v245
        %v351 = vsel %vm349, %v350, %v245
        %v352 = vshrl.u32 %v351, 4
        %v353 = vand.u32 %v351, 15
        %v354 = vsub.s32 0, %v353
        %v355 = vsel %vm349, %v354, %v353
        %vm356 = vcmp.lt.s32.totalorder %v246, 0
        %v357 = vsub.s32 0, %v246
        %v358 = vsel %vm356, %v357, %v246
        %v359 = vshrl.u32 %v358, 4
        %v360 = vand.u32 %v358, 15
        %v361 = vsub.s32 0, %v360
        %v362 = vsel %vm356, %v361, %v360
        %vm363 = vcmp.lt.s32.totalorder %v247, 0
        %v364 = vsub.s32 0, %v247
        %v365 = vsel %vm363, %v364, %v247
        %v366 = vshrl.u32 %v365, 4
        %v367 = vand.u32 %v365, 15
        %v368 = vsub.s32 0, %v367
        %v369 = vsel %vm363, %v368, %v367
        %vm370 = vcmp.lt.s32.totalorder %v248, 0
        %v371 = vsub.s32 0, %v248
        %v372 = vsel %vm370, %v371, %v248
        %v373 = vshrl.u32 %v372, 4
        %v374 = vand.u32 %v372, 15
        %v375 = vsub.s32 0, %v374
        %v376 = vsel %vm370, %v375, %v374
        %vm377 = vcmp.lt.s32.totalorder %v249, 0
        %v378 = vsub.s32 0, %v249
        %v379 = vsel %vm377, %v378, %v249
        %v380 = vshrl.u32 %v379, 4
        %v381 = vand.u32 %v379, 15
        %v382 = vsub.s32 0, %v381
        %v383 = vsel %vm377, %v382, %v381
        %vm384 = vcmp.lt.s32.totalorder %v250, 0
        %v385 = vsub.s32 0, %v250
        %v386 = vsel %vm384, %v385, %v250
        %v387 = vshrl.u32 %v386, 4
        %v388 = vand.u32 %v386, 15
        %v389 = vsub.s32 0, %v388
        %v390 = vsel %vm384, %v389, %v388
        %vm391 = vcmp.lt.s32.totalorder %v251, 0
        %v392 = vsub.s32 0, %v251
        %v393 = vsel %vm391, %v392, %v251
        %v394 = vshrl.u32 %v393, 4
        %v395 = vand.u32 %v393, 15
        %v396 = vsub.s32 0, %v395
        %v397 = vsel %vm391, %v396, %v395
        %vm398 = vcmp.lt.s32.totalorder %v252, 0
        %v399 = vsub.s32 0, %v252
        %v400 = vsel %vm398, %v399, %v252
        %v401 = vshrl.u32 %v400, 4
        %v402 = vand.u32 %v400, 15
        %v403 = vsub.s32 0, %v402
        %v404 = vsel %vm398, %v403, %v402
        %vm405 = vcmp.lt.s32.totalorder %v253, 0
        %v406 = vsub.s32 0, %v253
        %v407 = vsel %vm405, %v406, %v253
        %v408 = vshrl.u32 %v407, 4
        %v409 = vand.u32 %v407, 15
        %v410 = vsub.s32 0, %v409
        %v411 = vsel %vm405, %v410, %v409
        %vm412 = vcmp.lt.s32.totalorder %v254, 0
        %v413 = vsub.s32 0, %v254
        %v414 = vsel %vm412, %v413, %v254
        %v415 = vshrl.u32 %v414, 4
        %v416 = vand.u32 %v414, 15
        %v417 = vsub.s32 0, %v416
        %v418 = vsel %vm412, %v417, %v416
        %vm419 = vcmp.lt.s32.totalorder %v255, 0
        %v420 = vsub.s32 0, %v255
        %v421 = vsel %vm419, %v420, %v255
        %v422 = vshrl.u32 %v421, 4
        %v423 = vand.u32 %v421, 15
        %v424 = vsub.s32 0, %v423
        %v425 = vsel %vm419, %v424, %v423
        %vm426 = vcmp.lt.s32.totalorder %v256, 0
        %v427 = vsub.s32 0, %v256
        %v428 = vsel %vm426, %v427, %v256
        %v429 = vshrl.u32 %v428, 4
        %v430 = vand.u32 %v428, 15
        %v431 = vsub.s32 0, %v430
        %v432 = vsel %vm426, %v431, %v430
        %vm433 = vcmp.lt.s32.totalorder %v257, 0
        %v434 = vsub.s32 0, %v257
        %v435 = vsel %vm433, %v434, %v257
        %v436 = vshrl.u32 %v435, 4
        %v437 = vand.u32 %v435, 15
        %v438 = vsub.s32 0, %v437
        %v439 = vsel %vm433, %v438, %v437
        %vm440 = vcmp.lt.s32.totalorder %v258, 0
        %v441 = vsub.s32 0, %v258
        %v442 = vsel %vm440, %v441, %v258
        %v443 = vshrl.u32 %v442, 4
        %v444 = vand.u32 %v442, 15
        %v445 = vsub.s32 0, %v444
        %v446 = vsel %vm440, %v445, %v444
        %vm447 = vcmp.lt.s32.totalorder %v259, 0
        %v448 = vsub.s32 0, %v259
        %v449 = vsel %vm447, %v448, %v259
        %v450 = vshrl.u32 %v449, 4
        %v451 = vand.u32 %v449, 15
        %v452 = vsub.s32 0, %v451
        %v453 = vsel %vm447, %v452, %v451
        %vm454 = vcmp.lt.s32.totalorder %v260, 0
        %v455 = vsub.s32 0, %v260
        %v456 = vsel %vm454, %v455, %v260
        %v457 = vshrl.u32 %v456, 4
        %v458 = vand.u32 %v456, 15
        %v459 = vsub.s32 0, %v458
        %v460 = vsel %vm454, %v459, %v458
        %vm461 = vcmp.lt.s32.totalorder %v261, 0
        %v462 = vsub.s32 0, %v261
        %v463 = vsel %vm461, %v462, %v261
        %v464 = vshrl.u32 %v463, 4
        %v465 = vand.u32 %v463, 15
        %v466 = vsub.s32 0, %v465
        %v467 = vsel %vm461, %v466, %v465
        %vm468 = vcmp.lt.s32.totalorder %v262, 0
        %v469 = vsub.s32 0, %v262
        %v470 = vsel %vm468, %v469, %v262
        %v471 = vshrl.u32 %v470, 4
        %v472 = vand.u32 %v470, 15
        %v473 = vsub.s32 0, %v472
        %v474 = vsel %vm468, %v473, %v472
        %vm475 = vcmp.lt.s32.totalorder %v263, 0
        %v476 = vsub.s32 0, %v263
        %v477 = vsel %vm475, %v476, %v263
        %v478 = vshrl.u32 %v477, 4
        %v479 = vand.u32 %v477, 15
        %v480 = vsub.s32 0, %v479
        %v481 = vsel %vm475, %v480, %v479
        %vm482 = vcmp.lt.s32.totalorder %v264, 0
        %v483 = vsub.s32 0, %v264
        %v484 = vsel %vm482, %v483, %v264
        %v485 = vshrl.u32 %v484, 4
        %v486 = vand.u32 %v484, 15
        %v487 = vsub.s32 0, %v486
        %v488 = vsel %vm482, %v487, %v486
        %vm489 = vcmp.ne.s32.totalorder %v271, 0
        %vm490 = vcmp.ne.s32.totalorder %v278, 0
        %vm491 = vcmp.ne.s32.totalorder %v285, 0
        %vm492 = vcmp.ne.s32.totalorder %v292, 0
        %vm493 = vcmp.ne.s32.totalorder %v299, 0
        %vm494 = vcmp.ne.s32.totalorder %v306, 0
        %vm495 = vcmp.ne.s32.totalorder %v313, 0
        %vm496 = vcmp.ne.s32.totalorder %v320, 0
        %vm497 = vcmp.ne.s32.totalorder %v327, 0
        %vm498 = vcmp.ne.s32.totalorder %v334, 0
        %vm499 = vcmp.ne.s32.totalorder %v341, 0
        %vm500 = vcmp.ne.s32.totalorder %v348, 0
        %vm501 = vcmp.ne.s32.totalorder %v355, 0
        %vm502 = vcmp.ne.s32.totalorder %v362, 0
        %vm503 = vcmp.ne.s32.totalorder %v369, 0
        %vm504 = vcmp.ne.s32.totalorder %v376, 0
        %vm505 = vcmp.ne.s32.totalorder %v383, 0
        %vm506 = vcmp.ne.s32.totalorder %v390, 0
        %vm507 = vcmp.ne.s32.totalorder %v397, 0
        %vm508 = vcmp.ne.s32.totalorder %v404, 0
        %vm509 = vcmp.ne.s32.totalorder %v411, 0
        %vm510 = vcmp.ne.s32.totalorder %v418, 0
        %vm511 = vcmp.ne.s32.totalorder %v425, 0
        %vm512 = vcmp.ne.s32.totalorder %v432, 0
        %vm513 = vcmp.ne.s32.totalorder %v439, 0
        %vm514 = vcmp.ne.s32.totalorder %v446, 0
        %vm515 = vcmp.ne.s32.totalorder %v453, 0
        %vm516 = vcmp.ne.s32.totalorder %v460, 0
        %vm517 = vcmp.ne.s32.totalorder %v467, 0
        %vm518 = vcmp.ne.s32.totalorder %v474, 0
        %vm519 = vcmp.ne.s32.totalorder %v481, 0
        %vm520 = vcmp.ne.s32.totalorder %v488, 0
        %vm521 = vcmp.lt.s32.totalorder %v271, 0
        %vm522 = vcmp.lt.s32.totalorder %v278, 0
        %vm523 = vcmp.lt.s32.totalorder %v285, 0
        %vm524 = vcmp.lt.s32.totalorder %v292, 0
        %vm525 = vcmp.lt.s32.totalorder %v299, 0
        %vm526 = vcmp.lt.s32.totalorder %v306, 0
        %vm527 = vcmp.lt.s32.totalorder %v313, 0
        %vm528 = vcmp.lt.s32.totalorder %v320, 0
        %vm529 = vcmp.lt.s32.totalorder %v327, 0
        %vm530 = vcmp.lt.s32.totalorder %v334, 0
        %vm531 = vcmp.lt.s32.totalorder %v341, 0
        %vm532 = vcmp.lt.s32.totalorder %v348, 0
        %vm533 = vcmp.lt.s32.totalorder %v355, 0
        %vm534 = vcmp.lt.s32.totalorder %v362, 0
        %vm535 = vcmp.lt.s32.totalorder %v369, 0
        %vm536 = vcmp.lt.s32.totalorder %v376, 0
        %vm537 = vcmp.lt.s32.totalorder %v383, 0
        %vm538 = vcmp.lt.s32.totalorder %v390, 0
        %vm539 = vcmp.lt.s32.totalorder %v397, 0
        %vm540 = vcmp.lt.s32.totalorder %v404, 0
        %vm541 = vcmp.lt.s32.totalorder %v411, 0
        %vm542 = vcmp.lt.s32.totalorder %v418, 0
        %vm543 = vcmp.lt.s32.totalorder %v425, 0
        %vm544 = vcmp.lt.s32.totalorder %v432, 0
        %vm545 = vcmp.lt.s32.totalorder %v439, 0
        %vm546 = vcmp.lt.s32.totalorder %v446, 0
        %vm547 = vcmp.lt.s32.totalorder %v453, 0
        %vm548 = vcmp.lt.s32.totalorder %v460, 0
        %vm549 = vcmp.lt.s32.totalorder %v467, 0
        %vm550 = vcmp.lt.s32.totalorder %v474, 0
        %vm551 = vcmp.lt.s32.totalorder %v481, 0
        %vm552 = vcmp.lt.s32.totalorder %v488, 0
        %vm553 = vmand %vm521, %vm489
        %vm554 = vmand %vm522, %vm490
        %vm555 = vmand %vm523, %vm491
        %vm556 = vmand %vm524, %vm492
        %vm557 = vmand %vm525, %vm493
        %vm558 = vmand %vm526, %vm494
        %vm559 = vmand %vm527, %vm495
        %vm560 = vmand %vm528, %vm496
        %vm561 = vmand %vm529, %vm497
        %vm562 = vmand %vm530, %vm498
        %vm563 = vmand %vm531, %vm499
        %vm564 = vmand %vm532, %vm500
        %vm565 = vmand %vm533, %vm501
        %vm566 = vmand %vm534, %vm502
        %vm567 = vmand %vm535, %vm503
        %vm568 = vmand %vm536, %vm504
        %vm569 = vmand %vm537, %vm505
        %vm570 = vmand %vm538, %vm506
        %vm571 = vmand %vm539, %vm507
        %vm572 = vmand %vm540, %vm508
        %vm573 = vmand %vm541, %vm509
        %vm574 = vmand %vm542, %vm510
        %vm575 = vmand %vm543, %vm511
        %vm576 = vmand %vm544, %vm512
        %vm577 = vmand %vm545, %vm513
        %vm578 = vmand %vm546, %vm514
        %vm579 = vmand %vm547, %vm515
        %vm580 = vmand %vm548, %vm516
        %vm581 = vmand %vm549, %vm517
        %vm582 = vmand %vm550, %vm518
        %vm583 = vmand %vm551, %vm519
        %vm584 = vmand %vm552, %vm520
        %v585 = vadd.s32 %v271, 16
        %v586 = vadd.s32 %v278, 16
        %v587 = vadd.s32 %v285, 16
        %v588 = vadd.s32 %v292, 16
        %v589 = vadd.s32 %v299, 16
        %v590 = vadd.s32 %v306, 16
        %v591 = vadd.s32 %v313, 16
        %v592 = vadd.s32 %v320, 16
        %v593 = vadd.s32 %v327, 16
        %v594 = vadd.s32 %v334, 16
        %v595 = vadd.s32 %v341, 16
        %v596 = vadd.s32 %v348, 16
        %v597 = vadd.s32 %v355, 16
        %v598 = vadd.s32 %v362, 16
        %v599 = vadd.s32 %v369, 16
        %v600 = vadd.s32 %v376, 16
        %v601 = vadd.s32 %v383, 16
        %v602 = vadd.s32 %v390, 16
        %v603 = vadd.s32 %v397, 16
        %v604 = vadd.s32 %v404, 16
        %v605 = vadd.s32 %v411, 16
        %v606 = vadd.s32 %v418, 16
        %v607 = vadd.s32 %v425, 16
        %v608 = vadd.s32 %v432, 16
        %v609 = vadd.s32 %v439, 16
        %v610 = vadd.s32 %v446, 16
        %v611 = vadd.s32 %v453, 16
        %v612 = vadd.s32 %v460, 16
        %v613 = vadd.s32 %v467, 16
        %v614 = vadd.s32 %v474, 16
        %v615 = vadd.s32 %v481, 16
        %v616 = vadd.s32 %v488, 16
        %v617 = vsel %vm553, %v585, %v271
        %v618 = vsel %vm554, %v586, %v278
        %v619 = vsel %vm555, %v587, %v285
        %v620 = vsel %vm556, %v588, %v292
        %v621 = vsel %vm557, %v589, %v299
        %v622 = vsel %vm558, %v590, %v306
        %v623 = vsel %vm559, %v591, %v313
        %v624 = vsel %vm560, %v592, %v320
        %v625 = vsel %vm561, %v593, %v327
        %v626 = vsel %vm562, %v594, %v334
        %v627 = vsel %vm563, %v595, %v341
        %v628 = vsel %vm564, %v596, %v348
        %v629 = vsel %vm565, %v597, %v355
        %v630 = vsel %vm566, %v598, %v362
        %v631 = vsel %vm567, %v599, %v369
        %v632 = vsel %vm568, %v600, %v376
        %v633 = vsel %vm569, %v601, %v383
        %v634 = vsel %vm570, %v602, %v390
        %v635 = vsel %vm571, %v603, %v397
        %v636 = vsel %vm572, %v604, %v404
        %v637 = vsel %vm573, %v605, %v411
        %v638 = vsel %vm574, %v606, %v418
        %v639 = vsel %vm575, %v607, %v425
        %v640 = vsel %vm576, %v608, %v432
        %v641 = vsel %vm577, %v609, %v439
        %v642 = vsel %vm578, %v610, %v446
        %v643 = vsel %vm579, %v611, %v453
        %v644 = vsel %vm580, %v612, %v460
        %v645 = vsel %vm581, %v613, %v467
        %v646 = vsel %vm582, %v614, %v474
        %v647 = vsel %vm583, %v615, %v481
        %v648 = vsel %vm584, %v616, %v488
        %vm649 = vcmp.ne.s32.totalorder %v617, 15
        %vm650 = vcmp.ne.s32.totalorder %v618, 15
        %vm651 = vcmp.ne.s32.totalorder %v619, 15
        %vm652 = vcmp.ne.s32.totalorder %v620, 15
        %vm653 = vcmp.ne.s32.totalorder %v621, 15
        %vm654 = vcmp.ne.s32.totalorder %v622, 15
        %vm655 = vcmp.ne.s32.totalorder %v623, 15
        %vm656 = vcmp.ne.s32.totalorder %v624, 15
        %vm657 = vcmp.ne.s32.totalorder %v625, 15
        %vm658 = vcmp.ne.s32.totalorder %v626, 15
        %vm659 = vcmp.ne.s32.totalorder %v627, 15
        %vm660 = vcmp.ne.s32.totalorder %v628, 15
        %vm661 = vcmp.ne.s32.totalorder %v629, 15
        %vm662 = vcmp.ne.s32.totalorder %v630, 15
        %vm663 = vcmp.ne.s32.totalorder %v631, 15
        %vm664 = vcmp.ne.s32.totalorder %v632, 15
        %vm665 = vcmp.ne.s32.totalorder %v633, 15
        %vm666 = vcmp.ne.s32.totalorder %v634, 15
        %vm667 = vcmp.ne.s32.totalorder %v635, 15
        %vm668 = vcmp.ne.s32.totalorder %v636, 15
        %vm669 = vcmp.ne.s32.totalorder %v637, 15
        %vm670 = vcmp.ne.s32.totalorder %v638, 15
        %vm671 = vcmp.ne.s32.totalorder %v639, 15
        %vm672 = vcmp.ne.s32.totalorder %v640, 15
        %vm673 = vcmp.ne.s32.totalorder %v641, 15
        %vm674 = vcmp.ne.s32.totalorder %v642, 15
        %vm675 = vcmp.ne.s32.totalorder %v643, 15
        %vm676 = vcmp.ne.s32.totalorder %v644, 15
        %vm677 = vcmp.ne.s32.totalorder %v645, 15
        %vm678 = vcmp.ne.s32.totalorder %v646, 15
        %vm679 = vcmp.ne.s32.totalorder %v647, 15
        %vm680 = vcmp.ne.s32.totalorder %v648, 15
        %v681 = vsel %vm649, 1, 0
        %v682 = vsel %vm650, 1, 0
        %v683 = vsel %vm651, 1, 0
        %v684 = vsel %vm652, 1, 0
        %v685 = vsel %vm653, 1, 0
        %v686 = vsel %vm654, 1, 0
        %v687 = vsel %vm655, 1, 0
        %v688 = vsel %vm656, 1, 0
        %v689 = vsel %vm657, 1, 0
        %v690 = vsel %vm658, 1, 0
        %v691 = vsel %vm659, 1, 0
        %v692 = vsel %vm660, 1, 0
        %v693 = vsel %vm661, 1, 0
        %v694 = vsel %vm662, 1, 0
        %v695 = vsel %vm663, 1, 0
        %v696 = vsel %vm664, 1, 0
        %v697 = vsel %vm665, 1, 0
        %v698 = vsel %vm666, 1, 0
        %v699 = vsel %vm667, 1, 0
        %v700 = vsel %vm668, 1, 0
        %v701 = vsel %vm669, 1, 0
        %v702 = vsel %vm670, 1, 0
        %v703 = vsel %vm671, 1, 0
        %v704 = vsel %vm672, 1, 0
        %v705 = vsel %vm673, 1, 0
        %v706 = vsel %vm674, 1, 0
        %v707 = vsel %vm675, 1, 0
        %v708 = vsel %vm676, 1, 0
        %v709 = vsel %vm677, 1, 0
        %v710 = vsel %vm678, 1, 0
        %v711 = vsel %vm679, 1, 0
        %v712 = vsel %vm680, 1, 0
        %v713 = vcvt.s32.f32 %v681
        %v714 = vcvt.s32.f32 %v682
        %v715 = vcvt.s32.f32 %v683
        %v716 = vcvt.s32.f32 %v684
        %v717 = vcvt.s32.f32 %v685
        %v718 = vcvt.s32.f32 %v686
        %v719 = vcvt.s32.f32 %v687
        %v720 = vcvt.s32.f32 %v688
        %v721 = vcvt.s32.f32 %v689
        %v722 = vcvt.s32.f32 %v690
        %v723 = vcvt.s32.f32 %v691
        %v724 = vcvt.s32.f32 %v692
        %v725 = vcvt.s32.f32 %v693
        %v726 = vcvt.s32.f32 %v694
        %v727 = vcvt.s32.f32 %v695
        %v728 = vcvt.s32.f32 %v696
        %v729 = vcvt.s32.f32 %v697
        %v730 = vcvt.s32.f32 %v698
        %v731 = vcvt.s32.f32 %v699
        %v732 = vcvt.s32.f32 %v700
        %v733 = vcvt.s32.f32 %v701
        %v734 = vcvt.s32.f32 %v702
        %v735 = vcvt.s32.f32 %v703
        %v736 = vcvt.s32.f32 %v704
        %v737 = vcvt.s32.f32 %v705
        %v738 = vcvt.s32.f32 %v706
        %v739 = vcvt.s32.f32 %v707
        %v740 = vcvt.s32.f32 %v708
        %v741 = vcvt.s32.f32 %v709
        %v742 = vcvt.s32.f32 %v710
        %v743 = vcvt.s32.f32 %v711
        %v744 = vcvt.s32.f32 %v712
        %vm745 = vcmp.ne.s32.totalorder %v617, 0
        %vm746 = vcmp.ne.s32.totalorder %v618, 0
        %vm747 = vcmp.ne.s32.totalorder %v619, 0
        %vm748 = vcmp.ne.s32.totalorder %v620, 0
        %vm749 = vcmp.ne.s32.totalorder %v621, 0
        %vm750 = vcmp.ne.s32.totalorder %v622, 0
        %vm751 = vcmp.ne.s32.totalorder %v623, 0
        %vm752 = vcmp.ne.s32.totalorder %v624, 0
        %vm753 = vcmp.ne.s32.totalorder %v625, 0
        %vm754 = vcmp.ne.s32.totalorder %v626, 0
        %vm755 = vcmp.ne.s32.totalorder %v627, 0
        %vm756 = vcmp.ne.s32.totalorder %v628, 0
        %vm757 = vcmp.ne.s32.totalorder %v629, 0
        %vm758 = vcmp.ne.s32.totalorder %v630, 0
        %vm759 = vcmp.ne.s32.totalorder %v631, 0
        %vm760 = vcmp.ne.s32.totalorder %v632, 0
        %vm761 = vcmp.ne.s32.totalorder %v633, 0
        %vm762 = vcmp.ne.s32.totalorder %v634, 0
        %vm763 = vcmp.ne.s32.totalorder %v635, 0
        %vm764 = vcmp.ne.s32.totalorder %v636, 0
        %vm765 = vcmp.ne.s32.totalorder %v637, 0
        %vm766 = vcmp.ne.s32.totalorder %v638, 0
        %vm767 = vcmp.ne.s32.totalorder %v639, 0
        %vm768 = vcmp.ne.s32.totalorder %v640, 0
        %vm769 = vcmp.ne.s32.totalorder %v641, 0
        %vm770 = vcmp.ne.s32.totalorder %v642, 0
        %vm771 = vcmp.ne.s32.totalorder %v643, 0
        %vm772 = vcmp.ne.s32.totalorder %v644, 0
        %vm773 = vcmp.ne.s32.totalorder %v645, 0
        %vm774 = vcmp.ne.s32.totalorder %v646, 0
        %vm775 = vcmp.ne.s32.totalorder %v647, 0
        %vm776 = vcmp.ne.s32.totalorder %v648, 0
        %v777 = vsel %vm745, 1, 0
        %v778 = vsel %vm746, 1, 0
        %v779 = vsel %vm747, 1, 0
        %v780 = vsel %vm748, 1, 0
        %v781 = vsel %vm749, 1, 0
        %v782 = vsel %vm750, 1, 0
        %v783 = vsel %vm751, 1, 0
        %v784 = vsel %vm752, 1, 0
        %v785 = vsel %vm753, 1, 0
        %v786 = vsel %vm754, 1, 0
        %v787 = vsel %vm755, 1, 0
        %v788 = vsel %vm756, 1, 0
        %v789 = vsel %vm757, 1, 0
        %v790 = vsel %vm758, 1, 0
        %v791 = vsel %vm759, 1, 0
        %v792 = vsel %vm760, 1, 0
        %v793 = vsel %vm761, 1, 0
        %v794 = vsel %vm762, 1, 0
        %v795 = vsel %vm763, 1, 0
        %v796 = vsel %vm764, 1, 0
        %v797 = vsel %vm765, 1, 0
        %v798 = vsel %vm766, 1, 0
        %v799 = vsel %vm767, 1, 0
        %v800 = vsel %vm768, 1, 0
        %v801 = vsel %vm769, 1, 0
        %v802 = vsel %vm770, 1, 0
        %v803 = vsel %vm771, 1, 0
        %v804 = vsel %vm772, 1, 0
        %v805 = vsel %vm773, 1, 0
        %v806 = vsel %vm774, 1, 0
        %v807 = vsel %vm775, 1, 0
        %v808 = vsel %vm776, 1, 0
        %v809 = vcvt.s32.f32 %v777
        %v810 = vcvt.s32.f32 %v778
        %v811 = vcvt.s32.f32 %v779
        %v812 = vcvt.s32.f32 %v780
        %v813 = vcvt.s32.f32 %v781
        %v814 = vcvt.s32.f32 %v782
        %v815 = vcvt.s32.f32 %v783
        %v816 = vcvt.s32.f32 %v784
        %v817 = vcvt.s32.f32 %v785
        %v818 = vcvt.s32.f32 %v786
        %v819 = vcvt.s32.f32 %v787
        %v820 = vcvt.s32.f32 %v788
        %v821 = vcvt.s32.f32 %v789
        %v822 = vcvt.s32.f32 %v790
        %v823 = vcvt.s32.f32 %v791
        %v824 = vcvt.s32.f32 %v792
        %v825 = vcvt.s32.f32 %v793
        %v826 = vcvt.s32.f32 %v794
        %v827 = vcvt.s32.f32 %v795
        %v828 = vcvt.s32.f32 %v796
        %v829 = vcvt.s32.f32 %v797
        %v830 = vcvt.s32.f32 %v798
        %v831 = vcvt.s32.f32 %v799
        %v832 = vcvt.s32.f32 %v800
        %v833 = vcvt.s32.f32 %v801
        %v834 = vcvt.s32.f32 %v802
        %v835 = vcvt.s32.f32 %v803
        %v836 = vcvt.s32.f32 %v804
        %v837 = vcvt.s32.f32 %v805
        %v838 = vcvt.s32.f32 %v806
        %v839 = vcvt.s32.f32 %v807
        %v840 = vcvt.s32.f32 %v808
        %vm841 = vcmask 64512
        %842 = vst.msk [vmem:[#allocation2] sm:$0xff] %vm841, 0.0
        %843 = vst.msk [vmem:[#allocation2 + $0x8] sm:$0xff] %vm841, 0.0
        %844 = vst.msk [vmem:[#allocation2 + $0x10] sm:$0xff] %vm841, 0.0
        %845 = vst.msk [vmem:[#allocation2 + $0x18] sm:$0xff] %vm841, 0.0
        %846 = vst.msk [vmem:[#allocation2 + $0x20] sm:$0xff] %vm841, 0.0
        %847 = vst.msk [vmem:[#allocation2 + $0x28] sm:$0xff] %vm841, 0.0
        %848 = vst.msk [vmem:[#allocation2 + $0x30] sm:$0xff] %vm841, 0.0
        %849 = vst.msk [vmem:[#allocation2 + $0x38] sm:$0xff] %vm841, 0.0
        %850 = vst.msk [vmem:[#allocation2 + $0x40] sm:$0xff] %vm841, 0.0
        %851 = vst.msk [vmem:[#allocation2 + $0x48] sm:$0xff] %vm841, 0.0
        %852 = vst.msk [vmem:[#allocation2 + $0x50] sm:$0xff] %vm841, 0.0
        %853 = vst.msk [vmem:[#allocation2 + $0x58] sm:$0xff] %vm841, 0.0
        %854 = vst.msk [vmem:[#allocation2 + $0x60] sm:$0xff] %vm841, 0.0
        %855 = vst.msk [vmem:[#allocation2 + $0x68] sm:$0xff] %vm841, 0.0
        %856 = vst.msk [vmem:[#allocation2 + $0x70] sm:$0xff] %vm841, 0.0
        %857 = vst.msk [vmem:[#allocation2 + $0x78] sm:$0xff] %vm841, 0.0
        %858 = vst.msk [vmem:[#allocation2 + $0x80] sm:$0xff] %vm841, 0.0
        %859 = vst.msk [vmem:[#allocation2 + $0x88] sm:$0xff] %vm841, 0.0
        %860 = vst.msk [vmem:[#allocation2 + $0x90] sm:$0xff] %vm841, 0.0
        %861 = vst.msk [vmem:[#allocation2 + $0x98] sm:$0xff] %vm841, 0.0
        %862 = vst.msk [vmem:[#allocation2 + $0xa0] sm:$0xff] %vm841, 0.0
        %863 = vst.msk [vmem:[#allocation2 + $0xa8] sm:$0xff] %vm841, 0.0
        %864 = vst.msk [vmem:[#allocation2 + $0xb0] sm:$0xff] %vm841, 0.0
        %865 = vst.msk [vmem:[#allocation2 + $0xb8] sm:$0xff] %vm841, 0.0
        %866 = vst.msk [vmem:[#allocation2 + $0xc0] sm:$0xff] %vm841, 0.0
        %867 = vst.msk [vmem:[#allocation2 + $0xc8] sm:$0xff] %vm841, 0.0
        %868 = vst.msk [vmem:[#allocation2 + $0xd0] sm:$0xff] %vm841, 0.0
        %869 = vst.msk [vmem:[#allocation2 + $0xd8] sm:$0xff] %vm841, 0.0
        %870 = vst.msk [vmem:[#allocation2 + $0xe0] sm:$0xff] %vm841, 0.0
        %871 = vst.msk [vmem:[#allocation2 + $0xe8] sm:$0xff] %vm841, 0.0
        %872 = vst.msk [vmem:[#allocation2 + $0xf0] sm:$0xff] %vm841, 0.0
        %873 = vst.msk [vmem:[#allocation2 + $0xf8] sm:$0xff] %vm841, 0.0
        %874 = vst.msk [vmem:[#allocation3] sm:$0xff] %vm841, 0.0
        %875 = vst.msk [vmem:[#allocation3 + $0x8] sm:$0xff] %vm841, 0.0
        %876 = vst.msk [vmem:[#allocation3 + $0x10] sm:$0xff] %vm841, 0.0
        %877 = vst.msk [vmem:[#allocation3 + $0x18] sm:$0xff] %vm841, 0.0
        %878 = vst.msk [vmem:[#allocation3 + $0x20] sm:$0xff] %vm841, 0.0
        %879 = vst.msk [vmem:[#allocation3 + $0x28] sm:$0xff] %vm841, 0.0
        %880 = vst.msk [vmem:[#allocation3 + $0x30] sm:$0xff] %vm841, 0.0
        %881 = vst.msk [vmem:[#allocation3 + $0x38] sm:$0xff] %vm841, 0.0
        %882 = vst.msk [vmem:[#allocation3 + $0x40] sm:$0xff] %vm841, 0.0
        %883 = vst.msk [vmem:[#allocation3 + $0x48] sm:$0xff] %vm841, 0.0
        %884 = vst.msk [vmem:[#allocation3 + $0x50] sm:$0xff] %vm841, 0.0
        %885 = vst.msk [vmem:[#allocation3 + $0x58] sm:$0xff] %vm841, 0.0
        %886 = vst.msk [vmem:[#allocation3 + $0x60] sm:$0xff] %vm841, 0.0
        %887 = vst.msk [vmem:[#allocation3 + $0x68] sm:$0xff] %vm841, 0.0
        %888 = vst.msk [vmem:[#allocation3 + $0x70] sm:$0xff] %vm841, 0.0
        %889 = vst.msk [vmem:[#allocation3 + $0x78] sm:$0xff] %vm841, 0.0
        %890 = vst.msk [vmem:[#allocation3 + $0x80] sm:$0xff] %vm841, 0.0
        %891 = vst.msk [vmem:[#allocation3 + $0x88] sm:$0xff] %vm841, 0.0
        %892 = vst.msk [vmem:[#allocation3 + $0x90] sm:$0xff] %vm841, 0.0
        %893 = vst.msk [vmem:[#allocation3 + $0x98] sm:$0xff] %vm841, 0.0
        %894 = vst.msk [vmem:[#allocation3 + $0xa0] sm:$0xff] %vm841, 0.0
        %895 = vst.msk [vmem:[#allocation3 + $0xa8] sm:$0xff] %vm841, 0.0
        %896 = vst.msk [vmem:[#allocation3 + $0xb0] sm:$0xff] %vm841, 0.0
        %897 = vst.msk [vmem:[#allocation3 + $0xb8] sm:$0xff] %vm841, 0.0
        %898 = vst.msk [vmem:[#allocation3 + $0xc0] sm:$0xff] %vm841, 0.0
        %899 = vst.msk [vmem:[#allocation3 + $0xc8] sm:$0xff] %vm841, 0.0
        %900 = vst.msk [vmem:[#allocation3 + $0xd0] sm:$0xff] %vm841, 0.0
        %901 = vst.msk [vmem:[#allocation3 + $0xd8] sm:$0xff] %vm841, 0.0
        %902 = vst.msk [vmem:[#allocation3 + $0xe0] sm:$0xff] %vm841, 0.0
        %903 = vst.msk [vmem:[#allocation3 + $0xe8] sm:$0xff] %vm841, 0.0
        %904 = vst.msk [vmem:[#allocation3 + $0xf0] sm:$0xff] %vm841, 0.0
        %905 = vst.msk [vmem:[#allocation3 + $0xf8] sm:$0xff] %vm841, 0.0
        %vm906 = vcmask 24576
        %907 = vst.msk [vmem:[#allocation4] sm:$0x1] %vm906, 0.0
        %vm908 = vcmask 90176
        %909 = vst.msk [vmem:[#allocation4 + $0xff] sm:$0x1] %vm908, 0.0
        %s910 = sadd.s32 %s26, 4294967295
        %p911 = scmp.ge.s32.totalorder %s910, 0
        %p912 = scmp.lt.s32.totalorder %s910, 8
        %p913 = pnand %p911, %p912
        %p914 = pneg %p913
        %p915 = scmp.gt.s32.totalorder %s910, 0
        %s916 = scalar_select %p915, %s910, 0
        %p917 = scmp.lt.s32.totalorder %s916, 7
        %s918 = scalar_select %p917, %s916, 7
        %s919 = scalar_select %p914, 1.0, 0.0
        %s920 = smul.u32 %s918, 256
        %s921 = scalar_lea.vmem %s201, %s920 [#allocation5]
        %v922 = vld [vmem:[%s921] sm:$0xff]
        %v923 = vld [vmem:[%s921 + $0x8] sm:$0xff]
        %v924 = vld [vmem:[%s921 + $0x10] sm:$0xff]
        %v925 = vld [vmem:[%s921 + $0x18] sm:$0xff]
        %v926 = vld [vmem:[%s921 + $0x20] sm:$0xff]
        %v927 = vld [vmem:[%s921 + $0x28] sm:$0xff]
        %v928 = vld [vmem:[%s921 + $0x30] sm:$0xff]
        %v929 = vld [vmem:[%s921 + $0x38] sm:$0xff]
        %v930 = vld [vmem:[%s921 + $0x40] sm:$0xff]
        %v931 = vld [vmem:[%s921 + $0x48] sm:$0xff]
        %v932 = vld [vmem:[%s921 + $0x50] sm:$0xff]
        %v933 = vld [vmem:[%s921 + $0x58] sm:$0xff]
        %v934 = vld [vmem:[%s921 + $0x60] sm:$0xff]
        %v935 = vld [vmem:[%s921 + $0x68] sm:$0xff]
        %v936 = vld [vmem:[%s921 + $0x70] sm:$0xff]
        %v937 = vld [vmem:[%s921 + $0x78] sm:$0xff]
        %v938 = vld [vmem:[%s921 + $0x80] sm:$0xff]
        %v939 = vld [vmem:[%s921 + $0x88] sm:$0xff]
        %v940 = vld [vmem:[%s921 + $0x90] sm:$0xff]
        %v941 = vld [vmem:[%s921 + $0x98] sm:$0xff]
        %v942 = vld [vmem:[%s921 + $0xa0] sm:$0xff]
        %v943 = vld [vmem:[%s921 + $0xa8] sm:$0xff]
        %v944 = vld [vmem:[%s921 + $0xb0] sm:$0xff]
        %v945 = vld [vmem:[%s921 + $0xb8] sm:$0xff]
        %v946 = vld [vmem:[%s921 + $0xc0] sm:$0xff]
        %v947 = vld [vmem:[%s921 + $0xc8] sm:$0xff]
        %v948 = vld [vmem:[%s921 + $0xd0] sm:$0xff]
        %v949 = vld [vmem:[%s921 + $0xd8] sm:$0xff]
        %v950 = vld [vmem:[%s921 + $0xe0] sm:$0xff]
        %v951 = vld [vmem:[%s921 + $0xe8] sm:$0xff]
        %v952 = vld [vmem:[%s921 + $0xf0] sm:$0xff]
        %v953 = vld [vmem:[%s921 + $0xf8] sm:$0xff]
        %v954 = vstv %s919
        %v955 = vmul.f32 %v922, %v954
        %v956 = vmul.f32 %v923, %v954
        %v957 = vmul.f32 %v924, %v954
        %v958 = vmul.f32 %v925, %v954
        %v959 = vmul.f32 %v926, %v954
        %v960 = vmul.f32 %v927, %v954
        %v961 = vmul.f32 %v928, %v954
        %v962 = vmul.f32 %v929, %v954
        %v963 = vmul.f32 %v930, %v954
        %v964 = vmul.f32 %v931, %v954
        %v965 = vmul.f32 %v932, %v954
        %v966 = vmul.f32 %v933, %v954
        %v967 = vmul.f32 %v934, %v954
        %v968 = vmul.f32 %v935, %v954
        %v969 = vmul.f32 %v936, %v954
        %v970 = vmul.f32 %v937, %v954
        %v971 = vmul.f32 %v938, %v954
        %v972 = vmul.f32 %v939, %v954
        %v973 = vmul.f32 %v940, %v954
        %v974 = vmul.f32 %v941, %v954
        %v975 = vmul.f32 %v942, %v954
        %v976 = vmul.f32 %v943, %v954
        %v977 = vmul.f32 %v944, %v954
        %v978 = vmul.f32 %v945, %v954
        %v979 = vmul.f32 %v946, %v954
        %v980 = vmul.f32 %v947, %v954
        %v981 = vmul.f32 %v948, %v954
        %v982 = vmul.f32 %v949, %v954
        %v983 = vmul.f32 %v950, %v954
        %v984 = vmul.f32 %v951, %v954
        %v985 = vmul.f32 %v952, %v954
        %v986 = vmul.f32 %v953, %v954
        %1019 = vrot.lane.b32.xlu0 %v955, 4
        %v1020 = vpop.permute.xlu0 %1019
        %1021 = vrot.lane.b32.xlu0 %v956, 4
        %v1022 = vpop.permute.xlu0 %1021
        %1023 = vrot.lane.b32.xlu0 %v957, 4
        %v1024 = vpop.permute.xlu0 %1023
        %1025 = vrot.lane.b32.xlu0 %v958, 4
        %v1026 = vpop.permute.xlu0 %1025
        %1027 = vrot.lane.b32.xlu0 %v959, 4
        %v1028 = vpop.permute.xlu0 %1027
        %1029 = vrot.lane.b32.xlu0 %v960, 4
        %v1030 = vpop.permute.xlu0 %1029
        %1031 = vrot.lane.b32.xlu0 %v961, 4
        %v1032 = vpop.permute.xlu0 %1031
        %1033 = vrot.lane.b32.xlu0 %v962, 4
        %v1034 = vpop.permute.xlu0 %1033
        %1035 = vrot.lane.b32.xlu0 %v963, 4
        %v1036 = vpop.permute.xlu0 %1035
        %1037 = vrot.lane.b32.xlu0 %v964, 4
        %v1038 = vpop.permute.xlu0 %1037
        %1039 = vrot.lane.b32.xlu0 %v965, 4
        %v1040 = vpop.permute.xlu0 %1039
        %1041 = vrot.lane.b32.xlu0 %v966, 4
        %v1042 = vpop.permute.xlu0 %1041
        %1043 = vrot.lane.b32.xlu0 %v967, 4
        %v1044 = vpop.permute.xlu0 %1043
        %1045 = vrot.lane.b32.xlu0 %v968, 4
        %v1046 = vpop.permute.xlu0 %1045
        %1047 = vrot.lane.b32.xlu0 %v969, 4
        %v1048 = vpop.permute.xlu0 %1047
        %1049 = vrot.lane.b32.xlu0 %v970, 4
        %v1050 = vpop.permute.xlu0 %1049
        %1051 = vrot.lane.b32.xlu0 %v971, 4
        %v1052 = vpop.permute.xlu0 %1051
        %1053 = vrot.lane.b32.xlu0 %v972, 4
        %v1054 = vpop.permute.xlu0 %1053
        %1055 = vrot.lane.b32.xlu0 %v973, 4
        %v1056 = vpop.permute.xlu0 %1055
        %1057 = vrot.lane.b32.xlu0 %v974, 4
        %v1058 = vpop.permute.xlu0 %1057
        %1059 = vrot.lane.b32.xlu0 %v975, 4
        %v1060 = vpop.permute.xlu0 %1059
        %1061 = vrot.lane.b32.xlu0 %v976, 4
        %v1062 = vpop.permute.xlu0 %1061
        %1063 = vrot.lane.b32.xlu0 %v977, 4
        %v1064 = vpop.permute.xlu0 %1063
        %1065 = vrot.lane.b32.xlu0 %v978, 4
        %v1066 = vpop.permute.xlu0 %1065
        %1067 = vrot.lane.b32.xlu0 %v979, 4
        %v1068 = vpop.permute.xlu0 %1067
        %1069 = vrot.lane.b32.xlu0 %v980, 4
        %v1070 = vpop.permute.xlu0 %1069
        %1071 = vrot.lane.b32.xlu0 %v981, 4
        %v1072 = vpop.permute.xlu0 %1071
        %1073 = vrot.lane.b32.xlu0 %v982, 4
        %v1074 = vpop.permute.xlu0 %1073
        %1075 = vrot.lane.b32.xlu0 %v983, 4
        %v1076 = vpop.permute.xlu0 %1075
        %1077 = vrot.lane.b32.xlu0 %v984, 4
        %v1078 = vpop.permute.xlu0 %1077
        %1079 = vrot.lane.b32.xlu0 %v985, 4
        %v1080 = vpop.permute.xlu0 %1079
        %1081 = vrot.lane.b32.xlu0 %v986, 4
        %v1082 = vpop.permute.xlu0 %1081
        %vm1115 = vcmask 64544
        %1116 = vst.msk [vmem:[#allocation4] sm:$0xff] %vm1115, %v1020
        %1117 = vst.msk [vmem:[#allocation4 + $0x8] sm:$0xff] %vm1115, %v1022
        %1118 = vst.msk [vmem:[#allocation4 + $0x10] sm:$0xff] %vm1115, %v1024
        %1119 = vst.msk [vmem:[#allocation4 + $0x18] sm:$0xff] %vm1115, %v1026
        %1120 = vst.msk [vmem:[#allocation4 + $0x20] sm:$0xff] %vm1115, %v1028
        %1121 = vst.msk [vmem:[#allocation4 + $0x28] sm:$0xff] %vm1115, %v1030
        %1122 = vst.msk [vmem:[#allocation4 + $0x30] sm:$0xff] %vm1115, %v1032
        %1123 = vst.msk [vmem:[#allocation4 + $0x38] sm:$0xff] %vm1115, %v1034
        %1124 = vst.msk [vmem:[#allocation4 + $0x40] sm:$0xff] %vm1115, %v1036
        %1125 = vst.msk [vmem:[#allocation4 + $0x48] sm:$0xff] %vm1115, %v1038
        %1126 = vst.msk [vmem:[#allocation4 + $0x50] sm:$0xff] %vm1115, %v1040
        %1127 = vst.msk [vmem:[#allocation4 + $0x58] sm:$0xff] %vm1115, %v1042
        %1128 = vst.msk [vmem:[#allocation4 + $0x60] sm:$0xff] %vm1115, %v1044
        %1129 = vst.msk [vmem:[#allocation4 + $0x68] sm:$0xff] %vm1115, %v1046
        %1130 = vst.msk [vmem:[#allocation4 + $0x70] sm:$0xff] %vm1115, %v1048
        %1131 = vst.msk [vmem:[#allocation4 + $0x78] sm:$0xff] %vm1115, %v1050
        %1132 = vst.msk [vmem:[#allocation4 + $0x80] sm:$0xff] %vm1115, %v1052
        %1133 = vst.msk [vmem:[#allocation4 + $0x88] sm:$0xff] %vm1115, %v1054
        %1134 = vst.msk [vmem:[#allocation4 + $0x90] sm:$0xff] %vm1115, %v1056
        %1135 = vst.msk [vmem:[#allocation4 + $0x98] sm:$0xff] %vm1115, %v1058
        %1136 = vst.msk [vmem:[#allocation4 + $0xa0] sm:$0xff] %vm1115, %v1060
        %1137 = vst.msk [vmem:[#allocation4 + $0xa8] sm:$0xff] %vm1115, %v1062
        %1138 = vst.msk [vmem:[#allocation4 + $0xb0] sm:$0xff] %vm1115, %v1064
        %1139 = vst.msk [vmem:[#allocation4 + $0xb8] sm:$0xff] %vm1115, %v1066
        %1140 = vst.msk [vmem:[#allocation4 + $0xc0] sm:$0xff] %vm1115, %v1068
        %1141 = vst.msk [vmem:[#allocation4 + $0xc8] sm:$0xff] %vm1115, %v1070
        %1142 = vst.msk [vmem:[#allocation4 + $0xd0] sm:$0xff] %vm1115, %v1072
        %1143 = vst.msk [vmem:[#allocation4 + $0xd8] sm:$0xff] %vm1115, %v1074
        %1144 = vst.msk [vmem:[#allocation4 + $0xe0] sm:$0xff] %vm1115, %v1076
        %1145 = vst.msk [vmem:[#allocation4 + $0xe8] sm:$0xff] %vm1115, %v1078
        %1146 = vst.msk [vmem:[#allocation4 + $0xf0] sm:$0xff] %vm1115, %v1080
        %1147 = vst.msk [vmem:[#allocation4 + $0xf8] sm:$0xff] %vm1115, %v1082
        %v1148 = vmul.f32 %v955, %v713
        %v1149 = vmul.f32 %v956, %v714
        %v1150 = vmul.f32 %v957, %v715
        %v1151 = vmul.f32 %v958, %v716
        %v1152 = vmul.f32 %v959, %v717
        %v1153 = vmul.f32 %v960, %v718
        %v1154 = vmul.f32 %v961, %v719
        %v1155 = vmul.f32 %v962, %v720
        %v1156 = vmul.f32 %v963, %v721
        %v1157 = vmul.f32 %v964, %v722
        %v1158 = vmul.f32 %v965, %v723
        %v1159 = vmul.f32 %v966, %v724
        %v1160 = vmul.f32 %v967, %v725
        %v1161 = vmul.f32 %v968, %v726
        %v1162 = vmul.f32 %v969, %v727
        %v1163 = vmul.f32 %v970, %v728
        %v1164 = vmul.f32 %v971, %v729
        %v1165 = vmul.f32 %v972, %v730
        %v1166 = vmul.f32 %v973, %v731
        %v1167 = vmul.f32 %v974, %v732
        %v1168 = vmul.f32 %v975, %v733
        %v1169 = vmul.f32 %v976, %v734
        %v1170 = vmul.f32 %v977, %v735
        %v1171 = vmul.f32 %v978, %v736
        %v1172 = vmul.f32 %v979, %v737
        %v1173 = vmul.f32 %v980, %v738
        %v1174 = vmul.f32 %v981, %v739
        %v1175 = vmul.f32 %v982, %v740
        %v1176 = vmul.f32 %v983, %v741
        %v1177 = vmul.f32 %v984, %v742
        %v1178 = vmul.f32 %v985, %v743
        %v1179 = vmul.f32 %v986, %v744
        %vm1180 = vcmask 31744
        %1181 = vst.msk [vmem:[#allocation4 + $0x1] sm:$0xff] %vm1180, %v1148
        %1182 = vst.msk [vmem:[#allocation4 + $0x9] sm:$0xff] %vm1180, %v1149
        %1183 = vst.msk [vmem:[#allocation4 + $0x11] sm:$0xff] %vm1180, %v1150
        %1184 = vst.msk [vmem:[#allocation4 + $0x19] sm:$0xff] %vm1180, %v1151
        %1185 = vst.msk [vmem:[#allocation4 + $0x21] sm:$0xff] %vm1180, %v1152
        %1186 = vst.msk [vmem:[#allocation4 + $0x29] sm:$0xff] %vm1180, %v1153
        %1187 = vst.msk [vmem:[#allocation4 + $0x31] sm:$0xff] %vm1180, %v1154
        %1188 = vst.msk [vmem:[#allocation4 + $0x39] sm:$0xff] %vm1180, %v1155
        %1189 = vst.msk [vmem:[#allocation4 + $0x41] sm:$0xff] %vm1180, %v1156
        %1190 = vst.msk [vmem:[#allocation4 + $0x49] sm:$0xff] %vm1180, %v1157
        %1191 = vst.msk [vmem:[#allocation4 + $0x51] sm:$0xff] %vm1180, %v1158
        %1192 = vst.msk [vmem:[#allocation4 + $0x59] sm:$0xff] %vm1180, %v1159
        %1193 = vst.msk [vmem:[#allocation4 + $0x61] sm:$0xff] %vm1180, %v1160
        %1194 = vst.msk [vmem:[#allocation4 + $0x69] sm:$0xff] %vm1180, %v1161
        %1195 = vst.msk [vmem:[#allocation4 + $0x71] sm:$0xff] %vm1180, %v1162
        %1196 = vst.msk [vmem:[#allocation4 + $0x79] sm:$0xff] %vm1180, %v1163
        %1197 = vst.msk [vmem:[#allocation4 + $0x81] sm:$0xff] %vm1180, %v1164
        %1198 = vst.msk [vmem:[#allocation4 + $0x89] sm:$0xff] %vm1180, %v1165
        %1199 = vst.msk [vmem:[#allocation4 + $0x91] sm:$0xff] %vm1180, %v1166
        %1200 = vst.msk [vmem:[#allocation4 + $0x99] sm:$0xff] %vm1180, %v1167
        %1201 = vst.msk [vmem:[#allocation4 + $0xa1] sm:$0xff] %vm1180, %v1168
        %1202 = vst.msk [vmem:[#allocation4 + $0xa9] sm:$0xff] %vm1180, %v1169
        %1203 = vst.msk [vmem:[#allocation4 + $0xb1] sm:$0xff] %vm1180, %v1170
        %1204 = vst.msk [vmem:[#allocation4 + $0xb9] sm:$0xff] %vm1180, %v1171
        %1205 = vst.msk [vmem:[#allocation4 + $0xc1] sm:$0xff] %vm1180, %v1172
        %1206 = vst.msk [vmem:[#allocation4 + $0xc9] sm:$0xff] %vm1180, %v1173
        %1207 = vst.msk [vmem:[#allocation4 + $0xd1] sm:$0xff] %vm1180, %v1174
        %1208 = vst.msk [vmem:[#allocation4 + $0xd9] sm:$0xff] %vm1180, %v1175
        %1209 = vst.msk [vmem:[#allocation4 + $0xe1] sm:$0xff] %vm1180, %v1176
        %1210 = vst.msk [vmem:[#allocation4 + $0xe9] sm:$0xff] %vm1180, %v1177
        %1211 = vst.msk [vmem:[#allocation4 + $0xf1] sm:$0xff] %vm1180, %v1178
        %vm1212 = vcmask 30720
        %1213 = vst.msk [vmem:[#allocation4 + $0xf9] sm:$0x7f] %vm1212, %v1179
        %v1214 = vmul.f32 %v955, %v809
        %v1215 = vmul.f32 %v956, %v810
        %v1216 = vmul.f32 %v957, %v811
        %v1217 = vmul.f32 %v958, %v812
        %v1218 = vmul.f32 %v959, %v813
        %v1219 = vmul.f32 %v960, %v814
        %v1220 = vmul.f32 %v961, %v815
        %v1221 = vmul.f32 %v962, %v816
        %v1222 = vmul.f32 %v963, %v817
        %v1223 = vmul.f32 %v964, %v818
        %v1224 = vmul.f32 %v965, %v819
        %v1225 = vmul.f32 %v966, %v820
        %v1226 = vmul.f32 %v967, %v821
        %v1227 = vmul.f32 %v968, %v822
        %v1228 = vmul.f32 %v969, %v823
        %v1229 = vmul.f32 %v970, %v824
        %v1230 = vmul.f32 %v971, %v825
        %v1231 = vmul.f32 %v972, %v826
        %v1232 = vmul.f32 %v973, %v827
        %v1233 = vmul.f32 %v974, %v828
        %v1234 = vmul.f32 %v975, %v829
        %v1235 = vmul.f32 %v976, %v830
        %v1236 = vmul.f32 %v977, %v831
        %v1237 = vmul.f32 %v978, %v832
        %v1238 = vmul.f32 %v979, %v833
        %v1239 = vmul.f32 %v980, %v834
        %v1240 = vmul.f32 %v981, %v835
        %v1241 = vmul.f32 %v982, %v836
        %v1242 = vmul.f32 %v983, %v837
        %v1243 = vmul.f32 %v984, %v838
        %v1244 = vmul.f32 %v985, %v839
        %v1245 = vmul.f32 %v986, %v840
        %1278 = vrot.lane.b32.xlu0 %v1214, 8
        %v1279 = vpop.permute.xlu0 %1278
        %1280 = vrot.lane.b32.xlu0 %v1215, 8
        %v1281 = vpop.permute.xlu0 %1280
        %1282 = vrot.lane.b32.xlu0 %v1216, 8
        %v1283 = vpop.permute.xlu0 %1282
        %1284 = vrot.lane.b32.xlu0 %v1217, 8
        %v1285 = vpop.permute.xlu0 %1284
        %1286 = vrot.lane.b32.xlu0 %v1218, 8
        %v1287 = vpop.permute.xlu0 %1286
        %1288 = vrot.lane.b32.xlu0 %v1219, 8
        %v1289 = vpop.permute.xlu0 %1288
        %1290 = vrot.lane.b32.xlu0 %v1220, 8
        %v1291 = vpop.permute.xlu0 %1290
        %1292 = vrot.lane.b32.xlu0 %v1221, 8
        %v1293 = vpop.permute.xlu0 %1292
        %1294 = vrot.lane.b32.xlu0 %v1222, 8
        %v1295 = vpop.permute.xlu0 %1294
        %1296 = vrot.lane.b32.xlu0 %v1223, 8
        %v1297 = vpop.permute.xlu0 %1296
        %1298 = vrot.lane.b32.xlu0 %v1224, 8
        %v1299 = vpop.permute.xlu0 %1298
        %1300 = vrot.lane.b32.xlu0 %v1225, 8
        %v1301 = vpop.permute.xlu0 %1300
        %1302 = vrot.lane.b32.xlu0 %v1226, 8
        %v1303 = vpop.permute.xlu0 %1302
        %1304 = vrot.lane.b32.xlu0 %v1227, 8
        %v1305 = vpop.permute.xlu0 %1304
        %1306 = vrot.lane.b32.xlu0 %v1228, 8
        %v1307 = vpop.permute.xlu0 %1306
        %1308 = vrot.lane.b32.xlu0 %v1229, 8
        %v1309 = vpop.permute.xlu0 %1308
        %1310 = vrot.lane.b32.xlu0 %v1230, 8
        %v1311 = vpop.permute.xlu0 %1310
        %1312 = vrot.lane.b32.xlu0 %v1231, 8
        %v1313 = vpop.permute.xlu0 %1312
        %1314 = vrot.lane.b32.xlu0 %v1232, 8
        %v1315 = vpop.permute.xlu0 %1314
        %1316 = vrot.lane.b32.xlu0 %v1233, 8
        %v1317 = vpop.permute.xlu0 %1316
        %1318 = vrot.lane.b32.xlu0 %v1234, 8
        %v1319 = vpop.permute.xlu0 %1318
        %1320 = vrot.lane.b32.xlu0 %v1235, 8
        %v1321 = vpop.permute.xlu0 %1320
        %1322 = vrot.lane.b32.xlu0 %v1236, 8
        %v1323 = vpop.permute.xlu0 %1322
        %1324 = vrot.lane.b32.xlu0 %v1237, 8
        %v1325 = vpop.permute.xlu0 %1324
        %1326 = vrot.lane.b32.xlu0 %v1238, 8
        %v1327 = vpop.permute.xlu0 %1326
        %1328 = vrot.lane.b32.xlu0 %v1239, 8
        %v1329 = vpop.permute.xlu0 %1328
        %1330 = vrot.lane.b32.xlu0 %v1240, 8
        %v1331 = vpop.permute.xlu0 %1330
        %1332 = vrot.lane.b32.xlu0 %v1241, 8
        %v1333 = vpop.permute.xlu0 %1332
        %1334 = vrot.lane.b32.xlu0 %v1242, 8
        %v1335 = vpop.permute.xlu0 %1334
        %1336 = vrot.lane.b32.xlu0 %v1243, 8
        %v1337 = vpop.permute.xlu0 %1336
        %1338 = vrot.lane.b32.xlu0 %v1244, 8
        %v1339 = vpop.permute.xlu0 %1338
        %1340 = vrot.lane.b32.xlu0 %v1245, 8
        %v1341 = vpop.permute.xlu0 %1340
        %vm1374 = vcmask 97345
        %1375 = vst.msk [vmem:[#allocation4 - $0x1] sm:$0xfe] %vm1374, %v1279
        %vm1376 = vcmask 97344
        %1377 = vst.msk [vmem:[#allocation4 + $0x7] sm:$0xff] %vm1376, %v1281
        %1378 = vst.msk [vmem:[#allocation4 + $0xf] sm:$0xff] %vm1376, %v1283
        %1379 = vst.msk [vmem:[#allocation4 + $0x17] sm:$0xff] %vm1376, %v1285
        %1380 = vst.msk [vmem:[#allocation4 + $0x1f] sm:$0xff] %vm1376, %v1287
        %1381 = vst.msk [vmem:[#allocation4 + $0x27] sm:$0xff] %vm1376, %v1289
        %1382 = vst.msk [vmem:[#allocation4 + $0x2f] sm:$0xff] %vm1376, %v1291
        %1383 = vst.msk [vmem:[#allocation4 + $0x37] sm:$0xff] %vm1376, %v1293
        %1384 = vst.msk [vmem:[#allocation4 + $0x3f] sm:$0xff] %vm1376, %v1295
        %1385 = vst.msk [vmem:[#allocation4 + $0x47] sm:$0xff] %vm1376, %v1297
        %1386 = vst.msk [vmem:[#allocation4 + $0x4f] sm:$0xff] %vm1376, %v1299
        %1387 = vst.msk [vmem:[#allocation4 + $0x57] sm:$0xff] %vm1376, %v1301
        %1388 = vst.msk [vmem:[#allocation4 + $0x5f] sm:$0xff] %vm1376, %v1303
        %1389 = vst.msk [vmem:[#allocation4 + $0x67] sm:$0xff] %vm1376, %v1305
        %1390 = vst.msk [vmem:[#allocation4 + $0x6f] sm:$0xff] %vm1376, %v1307
        %1391 = vst.msk [vmem:[#allocation4 + $0x77] sm:$0xff] %vm1376, %v1309
        %1392 = vst.msk [vmem:[#allocation4 + $0x7f] sm:$0xff] %vm1376, %v1311
        %1393 = vst.msk [vmem:[#allocation4 + $0x87] sm:$0xff] %vm1376, %v1313
        %1394 = vst.msk [vmem:[#allocation4 + $0x8f] sm:$0xff] %vm1376, %v1315
        %1395 = vst.msk [vmem:[#allocation4 + $0x97] sm:$0xff] %vm1376, %v1317
        %1396 = vst.msk [vmem:[#allocation4 + $0x9f] sm:$0xff] %vm1376, %v1319
        %1397 = vst.msk [vmem:[#allocation4 + $0xa7] sm:$0xff] %vm1376, %v1321
        %1398 = vst.msk [vmem:[#allocation4 + $0xaf] sm:$0xff] %vm1376, %v1323
        %1399 = vst.msk [vmem:[#allocation4 + $0xb7] sm:$0xff] %vm1376, %v1325
        %1400 = vst.msk [vmem:[#allocation4 + $0xbf] sm:$0xff] %vm1376, %v1327
        %1401 = vst.msk [vmem:[#allocation4 + $0xc7] sm:$0xff] %vm1376, %v1329
        %1402 = vst.msk [vmem:[#allocation4 + $0xcf] sm:$0xff] %vm1376, %v1331
        %1403 = vst.msk [vmem:[#allocation4 + $0xd7] sm:$0xff] %vm1376, %v1333
        %1404 = vst.msk [vmem:[#allocation4 + $0xdf] sm:$0xff] %vm1376, %v1335
        %1405 = vst.msk [vmem:[#allocation4 + $0xe7] sm:$0xff] %vm1376, %v1337
        %1406 = vst.msk [vmem:[#allocation4 + $0xef] sm:$0xff] %vm1376, %v1339
        %1407 = vst.msk [vmem:[#allocation4 + $0xf7] sm:$0xff] %vm1376, %v1341
        %v1408 = vld [vmem:[#allocation4] sm:$0xff]
        %v1409 = vld [vmem:[#allocation4 + $0x8] sm:$0xff]
        %v1410 = vld [vmem:[#allocation4 + $0x10] sm:$0xff]
        %v1411 = vld [vmem:[#allocation4 + $0x18] sm:$0xff]
        %v1412 = vld [vmem:[#allocation4 + $0x20] sm:$0xff]
        %v1413 = vld [vmem:[#allocation4 + $0x28] sm:$0xff]
        %v1414 = vld [vmem:[#allocation4 + $0x30] sm:$0xff]
        %v1415 = vld [vmem:[#allocation4 + $0x38] sm:$0xff]
        %v1416 = vld [vmem:[#allocation4 + $0x40] sm:$0xff]
        %v1417 = vld [vmem:[#allocation4 + $0x48] sm:$0xff]
        %v1418 = vld [vmem:[#allocation4 + $0x50] sm:$0xff]
        %v1419 = vld [vmem:[#allocation4 + $0x58] sm:$0xff]
        %v1420 = vld [vmem:[#allocation4 + $0x60] sm:$0xff]
        %v1421 = vld [vmem:[#allocation4 + $0x68] sm:$0xff]
        %v1422 = vld [vmem:[#allocation4 + $0x70] sm:$0xff]
        %v1423 = vld [vmem:[#allocation4 + $0x78] sm:$0xff]
        %v1424 = vld [vmem:[#allocation4 + $0x80] sm:$0xff]
        %v1425 = vld [vmem:[#allocation4 + $0x88] sm:$0xff]
        %v1426 = vld [vmem:[#allocation4 + $0x90] sm:$0xff]
        %v1427 = vld [vmem:[#allocation4 + $0x98] sm:$0xff]
        %v1428 = vld [vmem:[#allocation4 + $0xa0] sm:$0xff]
        %v1429 = vld [vmem:[#allocation4 + $0xa8] sm:$0xff]
        %v1430 = vld [vmem:[#allocation4 + $0xb0] sm:$0xff]
        %v1431 = vld [vmem:[#allocation4 + $0xb8] sm:$0xff]
        %v1432 = vld [vmem:[#allocation4 + $0xc0] sm:$0xff]
        %v1433 = vld [vmem:[#allocation4 + $0xc8] sm:$0xff]
        %v1434 = vld [vmem:[#allocation4 + $0xd0] sm:$0xff]
        %v1435 = vld [vmem:[#allocation4 + $0xd8] sm:$0xff]
        %v1436 = vld [vmem:[#allocation4 + $0xe0] sm:$0xff]
        %v1437 = vld [vmem:[#allocation4 + $0xe8] sm:$0xff]
        %v1438 = vld [vmem:[#allocation4 + $0xf0] sm:$0xff]
        %v1439 = vld [vmem:[#allocation4 + $0xf8] sm:$0xff]
        %v1440 = vld [vmem:[#allocation8] sm:$0xff]
        %v1441 = vld [vmem:[#allocation8 + $0x8] sm:$0xf]
        %v1442 = vld [vmem:[#allocation10] sm:$0xff]
        %v1443 = vld [vmem:[#allocation10 + $0x8] sm:$0xf]
        %v1444 = vld [vmem:[#allocation2 + $0x10] sm:$0xff]
        %v1445 = vld [vmem:[#allocation2 + $0x18] sm:$0xff]
        %v1446 = vld [vmem:[#allocation2 + $0x20] sm:$0xff]
        %v1447 = vld [vmem:[#allocation2 + $0x28] sm:$0xff]
        %v1448 = vld [vmem:[#allocation2 + $0x30] sm:$0xff]
        %v1449 = vld [vmem:[#allocation2 + $0x38] sm:$0xff]
        %v1450 = vld [vmem:[#allocation2 + $0x40] sm:$0xff]
        %v1451 = vld [vmem:[#allocation2 + $0x48] sm:$0xff]
        %v1452 = vld [vmem:[#allocation2 + $0x50] sm:$0xff]
        %v1453 = vld [vmem:[#allocation2 + $0x58] sm:$0xff]
        %v1454 = vld [vmem:[#allocation2 + $0x60] sm:$0xff]
        %v1455 = vld [vmem:[#allocation2 + $0x68] sm:$0xff]
        %v1456 = vld [vmem:[#allocation2 + $0x70] sm:$0xff]
        %v1457 = vld [vmem:[#allocation2 + $0x78] sm:$0xff]
        %v1458 = vld [vmem:[#allocation2 + $0x80] sm:$0xff]
        %v1459 = vld [vmem:[#allocation2 + $0x88] sm:$0xff]
        %v1460 = vld [vmem:[#allocation2 + $0x90] sm:$0xff]
        %v1461 = vld [vmem:[#allocation2 + $0x98] sm:$0xff]
        %v1462 = vld [vmem:[#allocation2 + $0xa0] sm:$0xff]
        %v1463 = vld [vmem:[#allocation2 + $0xa8] sm:$0xff]
        %v1464 = vld [vmem:[#allocation2 + $0xb0] sm:$0xff]
        %v1465 = vld [vmem:[#allocation2 + $0xb8] sm:$0xff]
        %v1466 = vld [vmem:[#allocation2 + $0xc0] sm:$0xff]
        %v1467 = vld [vmem:[#allocation2 + $0xc8] sm:$0xff]
        %v1468 = vld [vmem:[#allocation2 + $0xd0] sm:$0xff]
        %v1469 = vld [vmem:[#allocation2 + $0xd8] sm:$0xff]
        %v1470 = vld [vmem:[#allocation2 + $0xe0] sm:$0xff]
        %v1471 = vld [vmem:[#allocation2 + $0xe8] sm:$0xff]
        %v1472 = vld [vmem:[#allocation2 + $0xf0] sm:$0xff]
        %v1473 = vld [vmem:[#allocation2 + $0xf8] sm:$0xff]
        %vm1474 = vcmask 97280
        %v1476 = vsel %vm1474, %v1408, 0
        %v1479 = vsel %vm1474, %v1409, 0
        %v1482 = vsel %vm1474, %v1410, 0
        %v1485 = vsel %vm1474, %v1411, 0
        %v1488 = vsel %vm1474, %v1412, 0
        %v1491 = vsel %vm1474, %v1413, 0
        %v1494 = vsel %vm1474, %v1414, 0
        %v1497 = vsel %vm1474, %v1415, 0
        %v1500 = vsel %vm1474, %v1416, 0
        %v1503 = vsel %vm1474, %v1417, 0
        %v1506 = vsel %vm1474, %v1418, 0
        %v1509 = vsel %vm1474, %v1419, 0
        %v1512 = vsel %vm1474, %v1420, 0
        %v1515 = vsel %vm1474, %v1421, 0
        %v1518 = vsel %vm1474, %v1422, 0
        %v1521 = vsel %vm1474, %v1423, 0
        %v1524 = vsel %vm1474, %v1424, 0
        %v1527 = vsel %vm1474, %v1425, 0
        %v1530 = vsel %vm1474, %v1426, 0
        %v1533 = vsel %vm1474, %v1427, 0
        %v1536 = vsel %vm1474, %v1428, 0
        %v1539 = vsel %vm1474, %v1429, 0
        %v1542 = vsel %vm1474, %v1430, 0
        %v1545 = vsel %vm1474, %v1431, 0
        %v1548 = vsel %vm1474, %v1432, 0
        %v1551 = vsel %vm1474, %v1433, 0
        %v1554 = vsel %vm1474, %v1434, 0
        %v1557 = vsel %vm1474, %v1435, 0
        %v1560 = vsel %vm1474, %v1436, 0
        %v1563 = vsel %vm1474, %v1437, 0
        %vm1565 = vcmask 1043456
        %v1567 = vsel %vm1565, %v1441, 0
        %1569 = vmatprep.subr.mxu0 0.0
        %1570 = vmatpush1.msra.mxu0 %v1440
        %1571 = vmatprep.subr.mxu0 0.0
        %1572 = vmatpush1.msra.mxu0 %v1567
        %1573 = vmatprep.subr.mxu0 0.0
        %1574 = vmatpush1.msra.mxu0 0.0
        %1575 = vmatprep.subr.mxu0 0.0
        %1576 = vmatpush1.msra.mxu0 0.0
        %1577 = vmatprep.subr.mxu0 0.0
        %1578 = vmatpush1.msra.mxu0 0.0
        %1579 = vmatprep.subr.mxu0 0.0
        %1580 = vmatpush1.msra.mxu0 0.0
        %1581 = vmatprep.subr.mxu0 0.0
        %1582 = vmatpush1.msra.mxu0 0.0
        %1583 = vmatprep.subr.mxu0 0.0
        %1584 = vmatpush1.msra.mxu0 0.0
        %1585 = vmatprep.subr.mxu0 0.0
        %1586 = vmatpush1.msra.mxu0 0.0
        %1587 = vmatprep.subr.mxu0 0.0
        %1588 = vmatpush1.msra.mxu0 0.0
        %1589 = vmatprep.subr.mxu0 0.0
        %1590 = vmatpush1.msra.mxu0 0.0
        %1591 = vmatprep.subr.mxu0 0.0
        %1592 = vmatpush1.msra.mxu0 0.0
        %1593 = vmatprep.subr.mxu0 0.0
        %1594 = vmatpush1.msra.mxu0 0.0
        %1595 = vmatprep.subr.mxu0 0.0
        %1596 = vmatpush1.msra.mxu0 0.0
        %1597 = vmatprep.subr.mxu0 0.0
        %1598 = vmatpush1.msra.mxu0 0.0
        %1599 = vmatprep.subr.mxu0 0.0
        %1600 = vmatpush1.msra.mxu0 0.0
        %1601 = vmatprep.subr.mxu0 0.0
        %1602 = vmatpush1.msra.mxu0 0.0
        %1603 = vmatprep.subr.mxu0 0.0
        %1604 = vmatpush1.msra.mxu0 0.0
        %1605 = vmatprep.subr.mxu0 0.0
        %1606 = vmatpush1.msra.mxu0 0.0
        %1607 = vmatprep.subr.mxu0 0.0
        %1608 = vmatpush1.msra.mxu0 0.0
        %1609 = vmatprep.subr.mxu0 0.0
        %1610 = vmatpush1.msra.mxu0 0.0
        %1611 = vmatprep.subr.mxu0 0.0
        %1612 = vmatpush1.msra.mxu0 0.0
        %1613 = vmatprep.subr.mxu0 0.0
        %1614 = vmatpush1.msra.mxu0 0.0
        %1615 = vmatprep.subr.mxu0 0.0
        %1616 = vmatpush1.msra.mxu0 0.0
        %1617 = vmatprep.subr.mxu0 0.0
        %1618 = vmatpush1.msra.mxu0 0.0
        %1619 = vmatprep.subr.mxu0 0.0
        %1620 = vmatpush1.msra.mxu0 0.0
        %1621 = vmatprep.subr.mxu0 0.0
        %1622 = vmatpush1.msra.mxu0 0.0
        %1623 = vmatprep.subr.mxu0 0.0
        %1624 = vmatpush1.msra.mxu0 0.0
        %1625 = vmatprep.subr.mxu0 0.0
        %1626 = vmatpush1.msra.mxu0 0.0
        %1627 = vmatprep.subr.mxu0 0.0
        %1628 = vmatpush1.msra.mxu0 0.0
        %1629 = vmatprep.subr.mxu0 0.0
        %1630 = vmatpush1.msra.mxu0 0.0
        %1631 = vmatprep.subr.mxu0 0.0
        %1632 = vmatpush1.msra.mxu0 0.0
        %1633 = vmatprep.mubr.f32.mxu0 0.0
        %1634 = vmatmul.mubr.f32.gmra.mrb[0].mxu0 %v1476
        %v1635 = vpop.f32.mrb[0].mxu0
        %v1636 = vadd.f32 0.0, %v1635
        %v1637 = vpop.f32.mrb[0].mxu0
        %1638 = vmatprep.mubr.f32.mxu0 0.0
        %1639 = vmatmul.mubr.f32.gmra.mrb[0].mxu0 %v1479
        %v1640 = vpop.f32.mrb[0].mxu0
        %v1641 = vadd.f32 0.0, %v1640
        %v1642 = vpop.f32.mrb[0].mxu0
        %1643 = vmatprep.mubr.f32.mxu0 0.0
        %1644 = vmatmul.mubr.f32.gmra.mrb[0].mxu0 %v1482
        %v1645 = vpop.f32.mrb[0].mxu0
        %v1646 = vadd.f32 0.0, %v1645
        %v1647 = vpop.f32.mrb[0].mxu0
        %1648 = vmatprep.mubr.f32.mxu0 0.0
        %1649 = vmatmul.mubr.f32.gmra.mrb[0].mxu0 %v1485
        %v1650 = vpop.f32.mrb[0].mxu0
        %v1651 = vadd.f32 0.0, %v1650
        %v1652 = vpop.f32.mrb[0].mxu0
        %1653 = vmatprep.mubr.f32.mxu0 0.0
        %1654 = vmatmul.mubr.f32.gmra.mrb[0].mxu0 %v1488
        %v1655 = vpop.f32.mrb[0].mxu0
        %v1656 = vadd.f32 0.0, %v1655
        %v1657 = vpop.f32.mrb[0].mxu0
        %1658 = vmatprep.mubr.f32.mxu0 0.0
        %1659 = vmatmul.mubr.f32.gmra.mrb[0].mxu0 %v1491
        %v1660 = vpop.f32.mrb[0].mxu0
        %v1661 = vadd.f32 0.0, %v1660
        %v1662 = vpop.f32.mrb[0].mxu0
        %1663 = vmatprep.mubr.f32.mxu0 0.0
        %1664 = vmatmul.mubr.f32.gmra.mrb[0].mxu0 %v1494
        %v1665 = vpop.f32.mrb[0].mxu0
        %v1666 = vadd.f32 0.0, %v1665
        %v1667 = vpop.f32.mrb[0].mxu0
        %1668 = vmatprep.mubr.f32.mxu0 0.0
        %1669 = vmatmul.mubr.f32.gmra.mrb[0].mxu0 %v1497
        %v1670 = vpop.f32.mrb[0].mxu0
        %v1671 = vadd.f32 0.0, %v1670
        %v1672 = vpop.f32.mrb[0].mxu0
        %1673 = vmatprep.mubr.f32.mxu0 0.0
        %1674 = vmatmul.mubr.f32.gmra.mrb[0].mxu0 %v1500
        %v1675 = vpop.f32.mrb[0].mxu0
        %v1676 = vadd.f32 0.0, %v1675
        %v1677 = vpop.f32.mrb[0].mxu0
        %1678 = vmatprep.mubr.f32.mxu0 0.0
        %1679 = vmatmul.mubr.f32.gmra.mrb[0].mxu0 %v1503
        %v1680 = vpop.f32.mrb[0].mxu0
        %v1681 = vadd.f32 0.0, %v1680
        %v1682 = vpop.f32.mrb[0].mxu0
        %1683 = vmatprep.mubr.f32.mxu0 0.0
        %1684 = vmatmul.mubr.f32.gmra.mrb[0].mxu0 %v1506
        %v1685 = vpop.f32.mrb[0].mxu0
        %v1686 = vadd.f32 0.0, %v1685
        %v1687 = vpop.f32.mrb[0].mxu0
        %1688 = vmatprep.mubr.f32.mxu0 0.0
        %1689 = vmatmul.mubr.f32.gmra.mrb[0].mxu0 %v1509
        %v1690 = vpop.f32.mrb[0].mxu0
        %v1691 = vadd.f32 0.0, %v1690
        %v1692 = vpop.f32.mrb[0].mxu0
        %1693 = vmatprep.mubr.f32.mxu0 0.0
        %1694 = vmatmul.mubr.f32.gmra.mrb[0].mxu0 %v1512
        %v1695 = vpop.f32.mrb[0].mxu0
        %v1696 = vadd.f32 0.0, %v1695
        %v1697 = vpop.f32.mrb[0].mxu0
        %1698 = vmatprep.mubr.f32.mxu0 0.0
        %1699 = vmatmul.mubr.f32.gmra.mrb[0].mxu0 %v1515
        %v1700 = vpop.f32.mrb[0].mxu0
        %v1701 = vadd.f32 0.0, %v1700
        %v1702 = vpop.f32.mrb[0].mxu0
        %1703 = vmatprep.mubr.f32.mxu0 0.0
        %1704 = vmatmul.mubr.f32.gmra.mrb[0].mxu0 %v1518
        %v1705 = vpop.f32.mrb[0].mxu0
        %v1706 = vadd.f32 0.0, %v1705
        %v1707 = vpop.f32.mrb[0].mxu0
        %1708 = vmatprep.mubr.f32.mxu0 0.0
        %1709 = vmatmul.mubr.f32.gmra.mrb[0].mxu0 %v1521
        %v1710 = vpop.f32.mrb[0].mxu0
        %v1711 = vadd.f32 0.0, %v1710
        %v1712 = vpop.f32.mrb[0].mxu0
        %1713 = vmatprep.mubr.f32.mxu0 0.0
        %1714 = vmatmul.mubr.f32.gmra.mrb[0].mxu0 %v1524
        %v1715 = vpop.f32.mrb[0].mxu0
        %v1716 = vadd.f32 0.0, %v1715
        %v1717 = vpop.f32.mrb[0].mxu0
        %1718 = vmatprep.mubr.f32.mxu0 0.0
        %1719 = vmatmul.mubr.f32.gmra.mrb[0].mxu0 %v1527
        %v1720 = vpop.f32.mrb[0].mxu0
        %v1721 = vadd.f32 0.0, %v1720
        %v1722 = vpop.f32.mrb[0].mxu0
        %1723 = vmatprep.mubr.f32.mxu0 0.0
        %1724 = vmatmul.mubr.f32.gmra.mrb[0].mxu0 %v1530
        %v1725 = vpop.f32.mrb[0].mxu0
        %v1726 = vadd.f32 0.0, %v1725
        %v1727 = vpop.f32.mrb[0].mxu0
        %1728 = vmatprep.mubr.f32.mxu0 0.0
        %1729 = vmatmul.mubr.f32.gmra.mrb[0].mxu0 %v1533
        %v1730 = vpop.f32.mrb[0].mxu0
        %v1731 = vadd.f32 0.0, %v1730
        %v1732 = vpop.f32.mrb[0].mxu0
        %1733 = vmatprep.mubr.f32.mxu0 0.0
        %1734 = vmatmul.mubr.f32.gmra.mrb[0].mxu0 %v1536
        %v1735 = vpop.f32.mrb[0].mxu0
        %v1736 = vadd.f32 0.0, %v1735
        %v1737 = vpop.f32.mrb[0].mxu0
        %1738 = vmatprep.mubr.f32.mxu0 0.0
        %1739 = vmatmul.mubr.f32.gmra.mrb[0].mxu0 %v1539
        %v1740 = vpop.f32.mrb[0].mxu0
        %v1741 = vadd.f32 0.0, %v1740
        %v1742 = vpop.f32.mrb[0].mxu0
        %1743 = vmatprep.mubr.f32.mxu0 0.0
        %1744 = vmatmul.mubr.f32.gmra.mrb[0].mxu0 %v1542
        %v1745 = vpop.f32.mrb[0].mxu0
        %v1746 = vadd.f32 0.0, %v1745
        %v1747 = vpop.f32.mrb[0].mxu0
        %1748 = vmatprep.mubr.f32.mxu0 0.0
        %1749 = vmatmul.mubr.f32.gmra.mrb[0].mxu0 %v1545
        %v1750 = vpop.f32.mrb[0].mxu0
        %v1751 = vadd.f32 0.0, %v1750
        %v1752 = vpop.f32.mrb[0].mxu0
        %1753 = vmatprep.mubr.f32.mxu0 0.0
        %1754 = vmatmul.mubr.f32.gmra.mrb[0].mxu0 %v1548
        %v1755 = vpop.f32.mrb[0].mxu0
        %v1756 = vadd.f32 0.0, %v1755
        %v1757 = vpop.f32.mrb[0].mxu0
        %1758 = vmatprep.mubr.f32.mxu0 0.0
        %1759 = vmatmul.mubr.f32.gmra.mrb[0].mxu0 %v1551
        %v1760 = vpop.f32.mrb[0].mxu0
        %v1761 = vadd.f32 0.0, %v1760
        %v1762 = vpop.f32.mrb[0].mxu0
        %1763 = vmatprep.mubr.f32.mxu0 0.0
        %1764 = vmatmul.mubr.f32.gmra.mrb[0].mxu0 %v1554
        %v1765 = vpop.f32.mrb[0].mxu0
        %v1766 = vadd.f32 0.0, %v1765
        %v1767 = vpop.f32.mrb[0].mxu0
        %1768 = vmatprep.mubr.f32.mxu0 0.0
        %1769 = vmatmul.mubr.f32.gmra.mrb[0].mxu0 %v1557
        %v1770 = vpop.f32.mrb[0].mxu0
        %v1771 = vadd.f32 0.0, %v1770
        %v1772 = vpop.f32.mrb[0].mxu0
        %1773 = vmatprep.mubr.f32.mxu0 0.0
        %1774 = vmatmul.mubr.f32.gmra.mrb[0].mxu0 %v1560
        %v1775 = vpop.f32.mrb[0].mxu0
        %v1776 = vadd.f32 0.0, %v1775
        %v1777 = vpop.f32.mrb[0].mxu0
        %1778 = vmatprep.mubr.f32.mxu0 0.0
        %1779 = vmatmul.mubr.f32.gmra.mrb[0].mxu0 %v1563
        %v1780 = vpop.f32.mrb[0].mxu0
        %v1781 = vadd.f32 0.0, %v1780
        %v1782 = vpop.f32.mrb[0].mxu0
        %1783 = vdwg.mxu0
        %v1784 = vadd.f32 %v1444, %v1636
        %v1785 = vadd.f32 %v1445, %v1641
        %v1786 = vadd.f32 %v1446, %v1646
        %v1787 = vadd.f32 %v1447, %v1651
        %v1788 = vadd.f32 %v1448, %v1656
        %v1789 = vadd.f32 %v1449, %v1661
        %v1790 = vadd.f32 %v1450, %v1666
        %v1791 = vadd.f32 %v1451, %v1671
        %v1792 = vadd.f32 %v1452, %v1676
        %v1793 = vadd.f32 %v1453, %v1681
        %v1794 = vadd.f32 %v1454, %v1686
        %v1795 = vadd.f32 %v1455, %v1691
        %v1796 = vadd.f32 %v1456, %v1696
        %v1797 = vadd.f32 %v1457, %v1701
        %v1798 = vadd.f32 %v1458, %v1706
        %v1799 = vadd.f32 %v1459, %v1711
        %v1800 = vadd.f32 %v1460, %v1716
        %v1801 = vadd.f32 %v1461, %v1721
        %v1802 = vadd.f32 %v1462, %v1726
        %v1803 = vadd.f32 %v1463, %v1731
        %v1804 = vadd.f32 %v1464, %v1736
        %v1805 = vadd.f32 %v1465, %v1741
        %v1806 = vadd.f32 %v1466, %v1746
        %v1807 = vadd.f32 %v1467, %v1751
        %v1808 = vadd.f32 %v1468, %v1756
        %v1809 = vadd.f32 %v1469, %v1761
        %v1810 = vadd.f32 %v1470, %v1766
        %v1811 = vadd.f32 %v1471, %v1771
        %v1812 = vadd.f32 %v1472, %v1776
        %v1813 = vadd.f32 %v1473, %v1781
        %1814 = vst.msk [vmem:[#allocation2 + $0x10] sm:$0xff] %vm841, %v1784
        %1815 = vst.msk [vmem:[#allocation2 + $0x18] sm:$0xff] %vm841, %v1785
        %1816 = vst.msk [vmem:[#allocation2 + $0x20] sm:$0xff] %vm841, %v1786
        %1817 = vst.msk [vmem:[#allocation2 + $0x28] sm:$0xff] %vm841, %v1787
        %1818 = vst.msk [vmem:[#allocation2 + $0x30] sm:$0xff] %vm841, %v1788
        %1819 = vst.msk [vmem:[#allocation2 + $0x38] sm:$0xff] %vm841, %v1789
        %1820 = vst.msk [vmem:[#allocation2 + $0x40] sm:$0xff] %vm841, %v1790
        %1821 = vst.msk [vmem:[#allocation2 + $0x48] sm:$0xff] %vm841, %v1791
        %1822 = vst.msk [vmem:[#allocation2 + $0x50] sm:$0xff] %vm841, %v1792
        %1823 = vst.msk [vmem:[#allocation2 + $0x58] sm:$0xff] %vm841, %v1793
        %1824 = vst.msk [vmem:[#allocation2 + $0x60] sm:$0xff] %vm841, %v1794
        %1825 = vst.msk [vmem:[#allocation2 + $0x68] sm:$0xff] %vm841, %v1795
        %1826 = vst.msk [vmem:[#allocation2 + $0x70] sm:$0xff] %vm841, %v1796
        %1827 = vst.msk [vmem:[#allocation2 + $0x78] sm:$0xff] %vm841, %v1797
        %1828 = vst.msk [vmem:[#allocation2 + $0x80] sm:$0xff] %vm841, %v1798
        %1829 = vst.msk [vmem:[#allocation2 + $0x88] sm:$0xff] %vm841, %v1799
        %1830 = vst.msk [vmem:[#allocation2 + $0x90] sm:$0xff] %vm841, %v1800
        %1831 = vst.msk [vmem:[#allocation2 + $0x98] sm:$0xff] %vm841, %v1801
        %1832 = vst.msk [vmem:[#allocation2 + $0xa0] sm:$0xff] %vm841, %v1802
        %1833 = vst.msk [vmem:[#allocation2 + $0xa8] sm:$0xff] %vm841, %v1803
        %1834 = vst.msk [vmem:[#allocation2 + $0xb0] sm:$0xff] %vm841, %v1804
        %1835 = vst.msk [vmem:[#allocation2 + $0xb8] sm:$0xff] %vm841, %v1805
        %1836 = vst.msk [vmem:[#allocation2 + $0xc0] sm:$0xff] %vm841, %v1806
        %1837 = vst.msk [vmem:[#allocation2 + $0xc8] sm:$0xff] %vm841, %v1807
        %1838 = vst.msk [vmem:[#allocation2 + $0xd0] sm:$0xff] %vm841, %v1808
        %1839 = vst.msk [vmem:[#allocation2 + $0xd8] sm:$0xff] %vm841, %v1809
        %1840 = vst.msk [vmem:[#allocation2 + $0xe0] sm:$0xff] %vm841, %v1810
        %1841 = vst.msk [vmem:[#allocation2 + $0xe8] sm:$0xff] %vm841, %v1811
        %1842 = vst.msk [vmem:[#allocation2 + $0xf0] sm:$0xff] %vm841, %v1812
        %1843 = vst.msk [vmem:[#allocation2 + $0xf8] sm:$0xff] %vm841, %v1813
        %v1844 = vld [vmem:[#allocation3 + $0x10] sm:$0xff]
        %v1845 = vld [vmem:[#allocation3 + $0x18] sm:$0xff]
        %v1846 = vld [vmem:[#allocation3 + $0x20] sm:$0xff]
        %v1847 = vld [vmem:[#allocation3 + $0x28] sm:$0xff]
        %v1848 = vld [vmem:[#allocation3 + $0x30] sm:$0xff]
        %v1849 = vld [vmem:[#allocation3 + $0x38] sm:$0xff]
        %v1850 = vld [vmem:[#allocation3 + $0x40] sm:$0xff]
        %v1851 = vld [vmem:[#allocation3 + $0x48] sm:$0xff]
        %v1852 = vld [vmem:[#allocation3 + $0x50] sm:$0xff]
        %v1853 = vld [vmem:[#allocation3 + $0x58] sm:$0xff]
        %v1854 = vld [vmem:[#allocation3 + $0x60] sm:$0xff]
        %v1855 = vld [vmem:[#allocation3 + $0x68] sm:$0xff]
        %v1856 = vld [vmem:[#allocation3 + $0x70] sm:$0xff]
        %v1857 = vld [vmem:[#allocation3 + $0x78] sm:$0xff]
        %v1858 = vld [vmem:[#allocation3 + $0x80] sm:$0xff]
        %v1859 = vld [vmem:[#allocation3 + $0x88] sm:$0xff]
        %v1860 = vld [vmem:[#allocation3 + $0x90] sm:$0xff]
        %v1861 = vld [vmem:[#allocation3 + $0x98] sm:$0xff]
        %v1862 = vld [vmem:[#allocation3 + $0xa0] sm:$0xff]
        %v1863 = vld [vmem:[#allocation3 + $0xa8] sm:$0xff]
        %v1864 = vld [vmem:[#allocation3 + $0xb0] sm:$0xff]
        %v1865 = vld [vmem:[#allocation3 + $0xb8] sm:$0xff]
        %v1866 = vld [vmem:[#allocation3 + $0xc0] sm:$0xff]
        %v1867 = vld [vmem:[#allocation3 + $0xc8] sm:$0xff]
        %v1868 = vld [vmem:[#allocation3 + $0xd0] sm:$0xff]
        %v1869 = vld [vmem:[#allocation3 + $0xd8] sm:$0xff]
        %v1870 = vld [vmem:[#allocation3 + $0xe0] sm:$0xff]
        %v1871 = vld [vmem:[#allocation3 + $0xe8] sm:$0xff]
        %v1872 = vld [vmem:[#allocation3 + $0xf0] sm:$0xff]
        %v1873 = vld [vmem:[#allocation3 + $0xf8] sm:$0xff]
        %v1875 = vsel %vm1565, %v1443, 0
        %1877 = vmatprep.subr.mxu0 0.0
        %1878 = vmatpush1.msra.mxu0 %v1442
        %1879 = vmatprep.subr.mxu0 0.0
        %1880 = vmatpush1.msra.mxu0 %v1875
        %1881 = vmatprep.subr.mxu0 0.0
        %1882 = vmatpush1.msra.mxu0 0.0
        %1883 = vmatprep.subr.mxu0 0.0
        %1884 = vmatpush1.msra.mxu0 0.0
        %1885 = vmatprep.subr.mxu0 0.0
        %1886 = vmatpush1.msra.mxu0 0.0
        %1887 = vmatprep.subr.mxu0 0.0
        %1888 = vmatpush1.msra.mxu0 0.0
        %1889 = vmatprep.subr.mxu0 0.0
        %1890 = vmatpush1.msra.mxu0 0.0
        %1891 = vmatprep.subr.mxu0 0.0
        %1892 = vmatpush1.msra.mxu0 0.0
        %1893 = vmatprep.subr.mxu0 0.0
        %1894 = vmatpush1.msra.mxu0 0.0
        %1895 = vmatprep.subr.mxu0 0.0
        %1896 = vmatpush1.msra.mxu0 0.0
        %1897 = vmatprep.subr.mxu0 0.0
        %1898 = vmatpush1.msra.mxu0 0.0
        %1899 = vmatprep.subr.mxu0 0.0
        %1900 = vmatpush1.msra.mxu0 0.0
        %1901 = vmatprep.subr.mxu0 0.0
        %1902 = vmatpush1.msra.mxu0 0.0
        %1903 = vmatprep.subr.mxu0 0.0
        %1904 = vmatpush1.msra.mxu0 0.0
        %1905 = vmatprep.subr.mxu0 0.0
        %1906 = vmatpush1.msra.mxu0 0.0
        %1907 = vmatprep.subr.mxu0 0.0
        %1908 = vmatpush1.msra.mxu0 0.0
        %1909 = vmatprep.subr.mxu0 0.0
        %1910 = vmatpush1.msra.mxu0 0.0
        %1911 = vmatprep.subr.mxu0 0.0
        %1912 = vmatpush1.msra.mxu0 0.0
        %1913 = vmatprep.subr.mxu0 0.0
        %1914 = vmatpush1.msra.mxu0 0.0
        %1915 = vmatprep.subr.mxu0 0.0
        %1916 = vmatpush1.msra.mxu0 0.0
        %1917 = vmatprep.subr.mxu0 0.0
        %1918 = vmatpush1.msra.mxu0 0.0
        %1919 = vmatprep.subr.mxu0 0.0
        %1920 = vmatpush1.msra.mxu0 0.0
        %1921 = vmatprep.subr.mxu0 0.0
        %1922 = vmatpush1.msra.mxu0 0.0
        %1923 = vmatprep.subr.mxu0 0.0
        %1924 = vmatpush1.msra.mxu0 0.0
        %1925 = vmatprep.subr.mxu0 0.0
        %1926 = vmatpush1.msra.mxu0 0.0
        %1927 = vmatprep.subr.mxu0 0.0
        %1928 = vmatpush1.msra.mxu0 0.0
        %1929 = vmatprep.subr.mxu0 0.0
        %1930 = vmatpush1.msra.mxu0 0.0
        %1931 = vmatprep.subr.mxu0 0.0
        %1932 = vmatpush1.msra.mxu0 0.0
        %1933 = vmatprep.subr.mxu0 0.0
        %1934 = vmatpush1.msra.mxu0 0.0
        %1935 = vmatprep.subr.mxu0 0.0
        %1936 = vmatpush1.msra.mxu0 0.0
        %1937 = vmatprep.subr.mxu0 0.0
        %1938 = vmatpush1.msra.mxu0 0.0
        %1939 = vmatprep.subr.mxu0 0.0
        %1940 = vmatpush1.msra.mxu0 0.0
        %1941 = vmatprep.mubr.f32.mxu0 0.0
        %1942 = vmatmul.mubr.f32.gmra.mrb[0].mxu0 %v1476
        %v1943 = vpop.f32.mrb[0].mxu0
        %v1944 = vadd.f32 0.0, %v1943
        %v1945 = vpop.f32.mrb[0].mxu0
        %1946 = vmatprep.mubr.f32.mxu0 0.0
        %1947 = vmatmul.mubr.f32.gmra.mrb[0].mxu0 %v1479
        %v1948 = vpop.f32.mrb[0].mxu0
        %v1949 = vadd.f32 0.0, %v1948
        %v1950 = vpop.f32.mrb[0].mxu0
        %1951 = vmatprep.mubr.f32.mxu0 0.0
        %1952 = vmatmul.mubr.f32.gmra.mrb[0].mxu0 %v1482
        %v1953 = vpop.f32.mrb[0].mxu0
        %v1954 = vadd.f32 0.0, %v1953
        %v1955 = vpop.f32.mrb[0].mxu0
        %1956 = vmatprep.mubr.f32.mxu0 0.0
        %1957 = vmatmul.mubr.f32.gmra.mrb[0].mxu0 %v1485
        %v1958 = vpop.f32.mrb[0].mxu0
        %v1959 = vadd.f32 0.0, %v1958
        %v1960 = vpop.f32.mrb[0].mxu0
        %1961 = vmatprep.mubr.f32.mxu0 0.0
        %1962 = vmatmul.mubr.f32.gmra.mrb[0].mxu0 %v1488
        %v1963 = vpop.f32.mrb[0].mxu0
        %v1964 = vadd.f32 0.0, %v1963
        %v1965 = vpop.f32.mrb[0].mxu0
        %1966 = vmatprep.mubr.f32.mxu0 0.0
        %1967 = vmatmul.mubr.f32.gmra.mrb[0].mxu0 %v1491
        %v1968 = vpop.f32.mrb[0].mxu0
        %v1969 = vadd.f32 0.0, %v1968
        %v1970 = vpop.f32.mrb[0].mxu0
        %1971 = vmatprep.mubr.f32.mxu0 0.0
        %1972 = vmatmul.mubr.f32.gmra.mrb[0].mxu0 %v1494
        %v1973 = vpop.f32.mrb[0].mxu0
        %v1974 = vadd.f32 0.0, %v1973
        %v1975 = vpop.f32.mrb[0].mxu0
        %1976 = vmatprep.mubr.f32.mxu0 0.0
        %1977 = vmatmul.mubr.f32.gmra.mrb[0].mxu0 %v1497
        %v1978 = vpop.f32.mrb[0].mxu0
        %v1979 = vadd.f32 0.0, %v1978
        %v1980 = vpop.f32.mrb[0].mxu0
        %1981 = vmatprep.mubr.f32.mxu0 0.0
        %1982 = vmatmul.mubr.f32.gmra.mrb[0].mxu0 %v1500
        %v1983 = vpop.f32.mrb[0].mxu0
        %v1984 = vadd.f32 0.0, %v1983
        %v1985 = vpop.f32.mrb[0].mxu0
        %1986 = vmatprep.mubr.f32.mxu0 0.0
        %1987 = vmatmul.mubr.f32.gmra.mrb[0].mxu0 %v1503
        %v1988 = vpop.f32.mrb[0].mxu0
        %v1989 = vadd.f32 0.0, %v1988
        %v1990 = vpop.f32.mrb[0].mxu0
        %1991 = vmatprep.mubr.f32.mxu0 0.0
        %1992 = vmatmul.mubr.f32.gmra.mrb[0].mxu0 %v1506
        %v1993 = vpop.f32.mrb[0].mxu0
        %v1994 = vadd.f32 0.0, %v1993
        %v1995 = vpop.f32.mrb[0].mxu0
        %1996 = vmatprep.mubr.f32.mxu0 0.0
        %1997 = vmatmul.mubr.f32.gmra.mrb[0].mxu0 %v1509
        %v1998 = vpop.f32.mrb[0].mxu0
        %v1999 = vadd.f32 0.0, %v1998
        %v2000 = vpop.f32.mrb[0].mxu0
        %2001 = vmatprep.mubr.f32.mxu0 0.0
        %2002 = vmatmul.mubr.f32.gmra.mrb[0].mxu0 %v1512
        %v2003 = vpop.f32.mrb[0].mxu0
        %v2004 = vadd.f32 0.0, %v2003
        %v2005 = vpop.f32.mrb[0].mxu0
        %2006 = vmatprep.mubr.f32.mxu0 0.0
        %2007 = vmatmul.mubr.f32.gmra.mrb[0].mxu0 %v1515
        %v2008 = vpop.f32.mrb[0].mxu0
        %v2009 = vadd.f32 0.0, %v2008
        %v2010 = vpop.f32.mrb[0].mxu0
        %2011 = vmatprep.mubr.f32.mxu0 0.0
        %2012 = vmatmul.mubr.f32.gmra.mrb[0].mxu0 %v1518
        %v2013 = vpop.f32.mrb[0].mxu0
        %v2014 = vadd.f32 0.0, %v2013
        %v2015 = vpop.f32.mrb[0].mxu0
        %2016 = vmatprep.mubr.f32.mxu0 0.0
        %2017 = vmatmul.mubr.f32.gmra.mrb[0].mxu0 %v1521
        %v2018 = vpop.f32.mrb[0].mxu0
        %v2019 = vadd.f32 0.0, %v2018
        %v2020 = vpop.f32.mrb[0].mxu0
        %2021 = vmatprep.mubr.f32.mxu0 0.0
        %2022 = vmatmul.mubr.f32.gmra.mrb[0].mxu0 %v1524
        %v2023 = vpop.f32.mrb[0].mxu0
        %v2024 = vadd.f32 0.0, %v2023
        %v2025 = vpop.f32.mrb[0].mxu0
        %2026 = vmatprep.mubr.f32.mxu0 0.0
        %2027 = vmatmul.mubr.f32.gmra.mrb[0].mxu0 %v1527
        %v2028 = vpop.f32.mrb[0].mxu0
        %v2029 = vadd.f32 0.0, %v2028
        %v2030 = vpop.f32.mrb[0].mxu0
        %2031 = vmatprep.mubr.f32.mxu0 0.0
        %2032 = vmatmul.mubr.f32.gmra.mrb[0].mxu0 %v1530
        %v2033 = vpop.f32.mrb[0].mxu0
        %v2034 = vadd.f32 0.0, %v2033
        %v2035 = vpop.f32.mrb[0].mxu0
        %2036 = vmatprep.mubr.f32.mxu0 0.0
        %2037 = vmatmul.mubr.f32.gmra.mrb[0].mxu0 %v1533
        %v2038 = vpop.f32.mrb[0].mxu0
        %v2039 = vadd.f32 0.0, %v2038
        %v2040 = vpop.f32.mrb[0].mxu0
        %2041 = vmatprep.mubr.f32.mxu0 0.0
        %2042 = vmatmul.mubr.f32.gmra.mrb[0].mxu0 %v1536
        %v2043 = vpop.f32.mrb[0].mxu0
        %v2044 = vadd.f32 0.0, %v2043
        %v2045 = vpop.f32.mrb[0].mxu0
        %2046 = vmatprep.mubr.f32.mxu0 0.0
        %2047 = vmatmul.mubr.f32.gmra.mrb[0].mxu0 %v1539
        %v2048 = vpop.f32.mrb[0].mxu0
        %v2049 = vadd.f32 0.0, %v2048
        %v2050 = vpop.f32.mrb[0].mxu0
        %2051 = vmatprep.mubr.f32.mxu0 0.0
        %2052 = vmatmul.mubr.f32.gmra.mrb[0].mxu0 %v1542
        %v2053 = vpop.f32.mrb[0].mxu0
        %v2054 = vadd.f32 0.0, %v2053
        %v2055 = vpop.f32.mrb[0].mxu0
        %2056 = vmatprep.mubr.f32.mxu0 0.0
        %2057 = vmatmul.mubr.f32.gmra.mrb[0].mxu0 %v1545
        %v2058 = vpop.f32.mrb[0].mxu0
        %v2059 = vadd.f32 0.0, %v2058
        %v2060 = vpop.f32.mrb[0].mxu0
        %2061 = vmatprep.mubr.f32.mxu0 0.0
        %2062 = vmatmul.mubr.f32.gmra.mrb[0].mxu0 %v1548
        %v2063 = vpop.f32.mrb[0].mxu0
        %v2064 = vadd.f32 0.0, %v2063
        %v2065 = vpop.f32.mrb[0].mxu0
        %2066 = vmatprep.mubr.f32.mxu0 0.0
        %2067 = vmatmul.mubr.f32.gmra.mrb[0].mxu0 %v1551
        %v2068 = vpop.f32.mrb[0].mxu0
        %v2069 = vadd.f32 0.0, %v2068
        %v2070 = vpop.f32.mrb[0].mxu0
        %2071 = vmatprep.mubr.f32.mxu0 0.0
        %2072 = vmatmul.mubr.f32.gmra.mrb[0].mxu0 %v1554
        %v2073 = vpop.f32.mrb[0].mxu0
        %v2074 = vadd.f32 0.0, %v2073
        %v2075 = vpop.f32.mrb[0].mxu0
        %2076 = vmatprep.mubr.f32.mxu0 0.0
        %2077 = vmatmul.mubr.f32.gmra.mrb[0].mxu0 %v1557
        %v2078 = vpop.f32.mrb[0].mxu0
        %v2079 = vadd.f32 0.0, %v2078
        %v2080 = vpop.f32.mrb[0].mxu0
        %2081 = vmatprep.mubr.f32.mxu0 0.0
        %2082 = vmatmul.mubr.f32.gmra.mrb[0].mxu0 %v1560
        %v2083 = vpop.f32.mrb[0].mxu0
        %v2084 = vadd.f32 0.0, %v2083
        %v2085 = vpop.f32.mrb[0].mxu0
        %2086 = vmatprep.mubr.f32.mxu0 0.0
        %2087 = vmatmul.mubr.f32.gmra.mrb[0].mxu0 %v1563
        %v2088 = vpop.f32.mrb[0].mxu0
        %v2089 = vadd.f32 0.0, %v2088
        %v2090 = vpop.f32.mrb[0].mxu0
        %2091 = vdwg.mxu0
        %v2092 = vadd.f32 %v1844, %v1944
        %v2093 = vadd.f32 %v1845, %v1949
        %v2094 = vadd.f32 %v1846, %v1954
        %v2095 = vadd.f32 %v1847, %v1959
        %v2096 = vadd.f32 %v1848, %v1964
        %v2097 = vadd.f32 %v1849, %v1969
        %v2098 = vadd.f32 %v1850, %v1974
        %v2099 = vadd.f32 %v1851, %v1979
        %v2100 = vadd.f32 %v1852, %v1984
        %v2101 = vadd.f32 %v1853, %v1989
        %v2102 = vadd.f32 %v1854, %v1994
        %v2103 = vadd.f32 %v1855, %v1999
        %v2104 = vadd.f32 %v1856, %v2004
        %v2105 = vadd.f32 %v1857, %v2009
        %v2106 = vadd.f32 %v1858, %v2014
        %v2107 = vadd.f32 %v1859, %v2019
        %v2108 = vadd.f32 %v1860, %v2024
        %v2109 = vadd.f32 %v1861, %v2029
        %v2110 = vadd.f32 %v1862, %v2034
        %v2111 = vadd.f32 %v1863, %v2039
        %v2112 = vadd.f32 %v1864, %v2044
        %v2113 = vadd.f32 %v1865, %v2049
        %v2114 = vadd.f32 %v1866, %v2054
        %v2115 = vadd.f32 %v1867, %v2059
        %v2116 = vadd.f32 %v1868, %v2064
        %v2117 = vadd.f32 %v1869, %v2069
        %v2118 = vadd.f32 %v1870, %v2074
        %v2119 = vadd.f32 %v1871, %v2079
        %v2120 = vadd.f32 %v1872, %v2084
        %v2121 = vadd.f32 %v1873, %v2089
        %2122 = vst.msk [vmem:[#allocation3 + $0x10] sm:$0xff] %vm841, %v2092
        %2123 = vst.msk [vmem:[#allocation3 + $0x18] sm:$0xff] %vm841, %v2093
        %2124 = vst.msk [vmem:[#allocation3 + $0x20] sm:$0xff] %vm841, %v2094
        %2125 = vst.msk [vmem:[#allocation3 + $0x28] sm:$0xff] %vm841, %v2095
        %2126 = vst.msk [vmem:[#allocation3 + $0x30] sm:$0xff] %vm841, %v2096
        %2127 = vst.msk [vmem:[#allocation3 + $0x38] sm:$0xff] %vm841, %v2097
        %2128 = vst.msk [vmem:[#allocation3 + $0x40] sm:$0xff] %vm841, %v2098
        %2129 = vst.msk [vmem:[#allocation3 + $0x48] sm:$0xff] %vm841, %v2099
        %2130 = vst.msk [vmem:[#allocation3 + $0x50] sm:$0xff] %vm841, %v2100
        %2131 = vst.msk [vmem:[#allocation3 + $0x58] sm:$0xff] %vm841, %v2101
        %2132 = vst.msk [vmem:[#allocation3 + $0x60] sm:$0xff] %vm841, %v2102
        %2133 = vst.msk [vmem:[#allocation3 + $0x68] sm:$0xff] %vm841, %v2103
        %2134 = vst.msk [vmem:[#allocation3 + $0x70] sm:$0xff] %vm841, %v2104
        %2135 = vst.msk [vmem:[#allocation3 + $0x78] sm:$0xff] %vm841, %v2105
        %2136 = vst.msk [vmem:[#allocation3 + $0x80] sm:$0xff] %vm841, %v2106
        %2137 = vst.msk [vmem:[#allocation3 + $0x88] sm:$0xff] %vm841, %v2107
        %2138 = vst.msk [vmem:[#allocation3 + $0x90] sm:$0xff] %vm841, %v2108
        %2139 = vst.msk [vmem:[#allocation3 + $0x98] sm:$0xff] %vm841, %v2109
        %2140 = vst.msk [vmem:[#allocation3 + $0xa0] sm:$0xff] %vm841, %v2110
        %2141 = vst.msk [vmem:[#allocation3 + $0xa8] sm:$0xff] %vm841, %v2111
        %2142 = vst.msk [vmem:[#allocation3 + $0xb0] sm:$0xff] %vm841, %v2112
        %2143 = vst.msk [vmem:[#allocation3 + $0xb8] sm:$0xff] %vm841, %v2113
        %2144 = vst.msk [vmem:[#allocation3 + $0xc0] sm:$0xff] %vm841, %v2114
        %2145 = vst.msk [vmem:[#allocation3 + $0xc8] sm:$0xff] %vm841, %v2115
        %2146 = vst.msk [vmem:[#allocation3 + $0xd0] sm:$0xff] %vm841, %v2116
        %2147 = vst.msk [vmem:[#allocation3 + $0xd8] sm:$0xff] %vm841, %v2117
        %2148 = vst.msk [vmem:[#allocation3 + $0xe0] sm:$0xff] %vm841, %v2118
        %2149 = vst.msk [vmem:[#allocation3 + $0xe8] sm:$0xff] %vm841, %v2119
        %2150 = vst.msk [vmem:[#allocation3 + $0xf0] sm:$0xff] %vm841, %v2120
        %2151 = vst.msk [vmem:[#allocation3 + $0xf8] sm:$0xff] %vm841, %v2121
        %s2152 = scalar_lea.vmem [#allocation8], 16
        %v2153 = vld [vmem:[%s2152] sm:$0xff]
        %v2154 = vld [vmem:[%s2152 + $0x8] sm:$0xf]
        %s2155 = scalar_lea.vmem [#allocation10], 16
        %v2156 = vld [vmem:[%s2155] sm:$0xff]
        %v2157 = vld [vmem:[%s2155 + $0x8] sm:$0xf]
        %v2158 = vld [vmem:[#allocation2] sm:$0xff]
        %v2159 = vld [vmem:[#allocation2 + $0x8] sm:$0xff]
        %v2160 = vld [vmem:[#allocation2 + $0x10] sm:$0xff]
        %v2161 = vld [vmem:[#allocation2 + $0x18] sm:$0xff]
        %v2162 = vld [vmem:[#allocation2 + $0x20] sm:$0xff]
        %v2163 = vld [vmem:[#allocation2 + $0x28] sm:$0xff]
        %v2164 = vld [vmem:[#allocation2 + $0x30] sm:$0xff]
        %v2165 = vld [vmem:[#allocation2 + $0x38] sm:$0xff]
        %v2166 = vld [vmem:[#allocation2 + $0x40] sm:$0xff]
        %v2167 = vld [vmem:[#allocation2 + $0x48] sm:$0xff]
        %v2168 = vld [vmem:[#allocation2 + $0x50] sm:$0xff]
        %v2169 = vld [vmem:[#allocation2 + $0x58] sm:$0xff]
        %v2170 = vld [vmem:[#allocation2 + $0x60] sm:$0xff]
        %v2171 = vld [vmem:[#allocation2 + $0x68] sm:$0xff]
        %v2172 = vld [vmem:[#allocation2 + $0x70] sm:$0xff]
        %v2173 = vld [vmem:[#allocation2 + $0x78] sm:$0xff]
        %v2174 = vld [vmem:[#allocation2 + $0x80] sm:$0xff]
        %v2175 = vld [vmem:[#allocation2 + $0x88] sm:$0xff]
        %v2176 = vld [vmem:[#allocation2 + $0x90] sm:$0xff]
        %v2177 = vld [vmem:[#allocation2 + $0x98] sm:$0xff]
        %v2178 = vld [vmem:[#allocation2 + $0xa0] sm:$0xff]
        %v2179 = vld [vmem:[#allocation2 + $0xa8] sm:$0xff]
        %v2180 = vld [vmem:[#allocation2 + $0xb0] sm:$0xff]
        %v2181 = vld [vmem:[#allocation2 + $0xb8] sm:$0xff]
        %v2182 = vld [vmem:[#allocation2 + $0xc0] sm:$0xff]
        %v2183 = vld [vmem:[#allocation2 + $0xc8] sm:$0xff]
        %v2184 = vld [vmem:[#allocation2 + $0xd0] sm:$0xff]
        %v2185 = vld [vmem:[#allocation2 + $0xd8] sm:$0xff]
        %v2186 = vld [vmem:[#allocation2 + $0xe0] sm:$0xff]
        %v2187 = vld [vmem:[#allocation2 + $0xe8] sm:$0xff]
        %v2188 = vld [vmem:[#allocation2 + $0xf0] sm:$0xff]
        %v2189 = vld [vmem:[#allocation2 + $0xf8] sm:$0xff]
        %v2191 = vsel %vm1474, %v1438, 0
        %v2194 = vsel %vm1474, %v1439, 0
        %v2197 = vsel %vm1565, %v2154, 0
        %2199 = vmatprep.subr.mxu0 0.0
        %2200 = vmatpush1.msra.mxu0 %v2153
        %2201 = vmatprep.subr.mxu0 0.0
        %2202 = vmatpush1.msra.mxu0 %v2197
        %2203 = vmatprep.subr.mxu0 0.0
        %2204 = vmatpush1.msra.mxu0 0.0
        %2205 = vmatprep.subr.mxu0 0.0
        %2206 = vmatpush1.msra.mxu0 0.0
        %2207 = vmatprep.subr.mxu0 0.0
        %2208 = vmatpush1.msra.mxu0 0.0
        %2209 = vmatprep.subr.mxu0 0.0
        %2210 = vmatpush1.msra.mxu0 0.0
        %2211 = vmatprep.subr.mxu0 0.0
        %2212 = vmatpush1.msra.mxu0 0.0
        %2213 = vmatprep.subr.mxu0 0.0
        %2214 = vmatpush1.msra.mxu0 0.0
        %2215 = vmatprep.subr.mxu0 0.0
        %2216 = vmatpush1.msra.mxu0 0.0
        %2217 = vmatprep.subr.mxu0 0.0
        %2218 = vmatpush1.msra.mxu0 0.0
        %2219 = vmatprep.subr.mxu0 0.0
        %2220 = vmatpush1.msra.mxu0 0.0
        %2221 = vmatprep.subr.mxu0 0.0
        %2222 = vmatpush1.msra.mxu0 0.0
        %2223 = vmatprep.subr.mxu0 0.0
        %2224 = vmatpush1.msra.mxu0 0.0
        %2225 = vmatprep.subr.mxu0 0.0
        %2226 = vmatpush1.msra.mxu0 0.0
        %2227 = vmatprep.subr.mxu0 0.0
        %2228 = vmatpush1.msra.mxu0 0.0
        %2229 = vmatprep.subr.mxu0 0.0
        %2230 = vmatpush1.msra.mxu0 0.0
        %2231 = vmatprep.subr.mxu0 0.0
        %2232 = vmatpush1.msra.mxu0 0.0
        %2233 = vmatprep.subr.mxu0 0.0
        %2234 = vmatpush1.msra.mxu0 0.0
        %2235 = vmatprep.subr.mxu0 0.0
        %2236 = vmatpush1.msra.mxu0 0.0
        %2237 = vmatprep.subr.mxu0 0.0
        %2238 = vmatpush1.msra.mxu0 0.0
        %2239 = vmatprep.subr.mxu0 0.0
        %2240 = vmatpush1.msra.mxu0 0.0
        %2241 = vmatprep.subr.mxu0 0.0
        %2242 = vmatpush1.msra.mxu0 0.0
        %2243 = vmatprep.subr.mxu0 0.0
        %2244 = vmatpush1.msra.mxu0 0.0
        %2245 = vmatprep.subr.mxu0 0.0
        %2246 = vmatpush1.msra.mxu0 0.0
        %2247 = vmatprep.subr.mxu0 0.0
        %2248 = vmatpush1.msra.mxu0 0.0
        %2249 = vmatprep.subr.mxu0 0.0
        %2250 = vmatpush1.msra.mxu0 0.0
        %2251 = vmatprep.subr.mxu0 0.0
        %2252 = vmatpush1.msra.mxu0 0.0
        %2253 = vmatprep.subr.mxu0 0.0
        %2254 = vmatpush1.msra.mxu0 0.0
        %2255 = vmatprep.subr.mxu0 0.0
        %2256 = vmatpush1.msra.mxu0 0.0
        %2257 = vmatprep.subr.mxu0 0.0
        %2258 = vmatpush1.msra.mxu0 0.0
        %2259 = vmatprep.subr.mxu0 0.0
        %2260 = vmatpush1.msra.mxu0 0.0
        %2261 = vmatprep.subr.mxu0 0.0
        %2262 = vmatpush1.msra.mxu0 0.0
        %2263 = vmatprep.mubr.f32.mxu0 0.0
        %2264 = vmatmul.mubr.f32.gmra.mrb[0].mxu0 %v1476
        %v2265 = vpop.f32.mrb[0].mxu0
        %v2266 = vadd.f32 0.0, %v2265
        %v2267 = vpop.f32.mrb[0].mxu0
        %2268 = vmatprep.mubr.f32.mxu0 0.0
        %2269 = vmatmul.mubr.f32.gmra.mrb[0].mxu0 %v1479
        %v2270 = vpop.f32.mrb[0].mxu0
        %v2271 = vadd.f32 0.0, %v2270
        %v2272 = vpop.f32.mrb[0].mxu0
        %2273 = vmatprep.mubr.f32.mxu0 0.0
        %2274 = vmatmul.mubr.f32.gmra.mrb[0].mxu0 %v1482
        %v2275 = vpop.f32.mrb[0].mxu0
        %v2276 = vadd.f32 0.0, %v2275
        %v2277 = vpop.f32.mrb[0].mxu0
        %2278 = vmatprep.mubr.f32.mxu0 0.0
        %2279 = vmatmul.mubr.f32.gmra.mrb[0].mxu0 %v1485
        %v2280 = vpop.f32.mrb[0].mxu0
        %v2281 = vadd.f32 0.0, %v2280
        %v2282 = vpop.f32.mrb[0].mxu0
        %2283 = vmatprep.mubr.f32.mxu0 0.0
        %2284 = vmatmul.mubr.f32.gmra.mrb[0].mxu0 %v1488
        %v2285 = vpop.f32.mrb[0].mxu0
        %v2286 = vadd.f32 0.0, %v2285
        %v2287 = vpop.f32.mrb[0].mxu0
        %2288 = vmatprep.mubr.f32.mxu0 0.0
        %2289 = vmatmul.mubr.f32.gmra.mrb[0].mxu0 %v1491
        %v2290 = vpop.f32.mrb[0].mxu0
        %v2291 = vadd.f32 0.0, %v2290
        %v2292 = vpop.f32.mrb[0].mxu0
        %2293 = vmatprep.mubr.f32.mxu0 0.0
        %2294 = vmatmul.mubr.f32.gmra.mrb[0].mxu0 %v1494
        %v2295 = vpop.f32.mrb[0].mxu0
        %v2296 = vadd.f32 0.0, %v2295
        %v2297 = vpop.f32.mrb[0].mxu0
        %2298 = vmatprep.mubr.f32.mxu0 0.0
        %2299 = vmatmul.mubr.f32.gmra.mrb[0].mxu0 %v1497
        %v2300 = vpop.f32.mrb[0].mxu0
        %v2301 = vadd.f32 0.0, %v2300
        %v2302 = vpop.f32.mrb[0].mxu0
        %2303 = vmatprep.mubr.f32.mxu0 0.0
        %2304 = vmatmul.mubr.f32.gmra.mrb[0].mxu0 %v1500
        %v2305 = vpop.f32.mrb[0].mxu0
        %v2306 = vadd.f32 0.0, %v2305
        %v2307 = vpop.f32.mrb[0].mxu0
        %2308 = vmatprep.mubr.f32.mxu0 0.0
        %2309 = vmatmul.mubr.f32.gmra.mrb[0].mxu0 %v1503
        %v2310 = vpop.f32.mrb[0].mxu0
        %v2311 = vadd.f32 0.0, %v2310
        %v2312 = vpop.f32.mrb[0].mxu0
        %2313 = vmatprep.mubr.f32.mxu0 0.0
        %2314 = vmatmul.mubr.f32.gmra.mrb[0].mxu0 %v1506
        %v2315 = vpop.f32.mrb[0].mxu0
        %v2316 = vadd.f32 0.0, %v2315
        %v2317 = vpop.f32.mrb[0].mxu0
        %2318 = vmatprep.mubr.f32.mxu0 0.0
        %2319 = vmatmul.mubr.f32.gmra.mrb[0].mxu0 %v1509
        %v2320 = vpop.f32.mrb[0].mxu0
        %v2321 = vadd.f32 0.0, %v2320
        %v2322 = vpop.f32.mrb[0].mxu0
        %2323 = vmatprep.mubr.f32.mxu0 0.0
        %2324 = vmatmul.mubr.f32.gmra.mrb[0].mxu0 %v1512
        %v2325 = vpop.f32.mrb[0].mxu0
        %v2326 = vadd.f32 0.0, %v2325
        %v2327 = vpop.f32.mrb[0].mxu0
        %2328 = vmatprep.mubr.f32.mxu0 0.0
        %2329 = vmatmul.mubr.f32.gmra.mrb[0].mxu0 %v1515
        %v2330 = vpop.f32.mrb[0].mxu0
        %v2331 = vadd.f32 0.0, %v2330
        %v2332 = vpop.f32.mrb[0].mxu0
        %2333 = vmatprep.mubr.f32.mxu0 0.0
        %2334 = vmatmul.mubr.f32.gmra.mrb[0].mxu0 %v1518
        %v2335 = vpop.f32.mrb[0].mxu0
        %v2336 = vadd.f32 0.0, %v2335
        %v2337 = vpop.f32.mrb[0].mxu0
        %2338 = vmatprep.mubr.f32.mxu0 0.0
        %2339 = vmatmul.mubr.f32.gmra.mrb[0].mxu0 %v1521
        %v2340 = vpop.f32.mrb[0].mxu0
        %v2341 = vadd.f32 0.0, %v2340
        %v2342 = vpop.f32.mrb[0].mxu0
        %2343 = vmatprep.mubr.f32.mxu0 0.0
        %2344 = vmatmul.mubr.f32.gmra.mrb[0].mxu0 %v1524
        %v2345 = vpop.f32.mrb[0].mxu0
        %v2346 = vadd.f32 0.0, %v2345
        %v2347 = vpop.f32.mrb[0].mxu0
        %2348 = vmatprep.mubr.f32.mxu0 0.0
        %2349 = vmatmul.mubr.f32.gmra.mrb[0].mxu0 %v1527
        %v2350 = vpop.f32.mrb[0].mxu0
        %v2351 = vadd.f32 0.0, %v2350
        %v2352 = vpop.f32.mrb[0].mxu0
        %2353 = vmatprep.mubr.f32.mxu0 0.0
        %2354 = vmatmul.mubr.f32.gmra.mrb[0].mxu0 %v1530
        %v2355 = vpop.f32.mrb[0].mxu0
        %v2356 = vadd.f32 0.0, %v2355
        %v2357 = vpop.f32.mrb[0].mxu0
        %2358 = vmatprep.mubr.f32.mxu0 0.0
        %2359 = vmatmul.mubr.f32.gmra.mrb[0].mxu0 %v1533
        %v2360 = vpop.f32.mrb[0].mxu0
        %v2361 = vadd.f32 0.0, %v2360
        %v2362 = vpop.f32.mrb[0].mxu0
        %2363 = vmatprep.mubr.f32.mxu0 0.0
        %2364 = vmatmul.mubr.f32.gmra.mrb[0].mxu0 %v1536
        %v2365 = vpop.f32.mrb[0].mxu0
        %v2366 = vadd.f32 0.0, %v2365
        %v2367 = vpop.f32.mrb[0].mxu0
        %2368 = vmatprep.mubr.f32.mxu0 0.0
        %2369 = vmatmul.mubr.f32.gmra.mrb[0].mxu0 %v1539
        %v2370 = vpop.f32.mrb[0].mxu0
        %v2371 = vadd.f32 0.0, %v2370
        %v2372 = vpop.f32.mrb[0].mxu0
        %2373 = vmatprep.mubr.f32.mxu0 0.0
        %2374 = vmatmul.mubr.f32.gmra.mrb[0].mxu0 %v1542
        %v2375 = vpop.f32.mrb[0].mxu0
        %v2376 = vadd.f32 0.0, %v2375
        %v2377 = vpop.f32.mrb[0].mxu0
        %2378 = vmatprep.mubr.f32.mxu0 0.0
        %2379 = vmatmul.mubr.f32.gmra.mrb[0].mxu0 %v1545
        %v2380 = vpop.f32.mrb[0].mxu0
        %v2381 = vadd.f32 0.0, %v2380
        %v2382 = vpop.f32.mrb[0].mxu0
        %2383 = vmatprep.mubr.f32.mxu0 0.0
        %2384 = vmatmul.mubr.f32.gmra.mrb[0].mxu0 %v1548
        %v2385 = vpop.f32.mrb[0].mxu0
        %v2386 = vadd.f32 0.0, %v2385
        %v2387 = vpop.f32.mrb[0].mxu0
        %2388 = vmatprep.mubr.f32.mxu0 0.0
        %2389 = vmatmul.mubr.f32.gmra.mrb[0].mxu0 %v1551
        %v2390 = vpop.f32.mrb[0].mxu0
        %v2391 = vadd.f32 0.0, %v2390
        %v2392 = vpop.f32.mrb[0].mxu0
        %2393 = vmatprep.mubr.f32.mxu0 0.0
        %2394 = vmatmul.mubr.f32.gmra.mrb[0].mxu0 %v1554
        %v2395 = vpop.f32.mrb[0].mxu0
        %v2396 = vadd.f32 0.0, %v2395
        %v2397 = vpop.f32.mrb[0].mxu0
        %2398 = vmatprep.mubr.f32.mxu0 0.0
        %2399 = vmatmul.mubr.f32.gmra.mrb[0].mxu0 %v1557
        %v2400 = vpop.f32.mrb[0].mxu0
        %v2401 = vadd.f32 0.0, %v2400
        %v2402 = vpop.f32.mrb[0].mxu0
        %2403 = vmatprep.mubr.f32.mxu0 0.0
        %2404 = vmatmul.mubr.f32.gmra.mrb[0].mxu0 %v1560
        %v2405 = vpop.f32.mrb[0].mxu0
        %v2406 = vadd.f32 0.0, %v2405
        %v2407 = vpop.f32.mrb[0].mxu0
        %2408 = vmatprep.mubr.f32.mxu0 0.0
        %2409 = vmatmul.mubr.f32.gmra.mrb[0].mxu0 %v1563
        %v2410 = vpop.f32.mrb[0].mxu0
        %v2411 = vadd.f32 0.0, %v2410
        %v2412 = vpop.f32.mrb[0].mxu0
        %2413 = vmatprep.mubr.f32.mxu0 0.0
        %2414 = vmatmul.mubr.f32.gmra.mrb[0].mxu0 %v2191
        %v2415 = vpop.f32.mrb[0].mxu0
        %v2416 = vadd.f32 0.0, %v2415
        %v2417 = vpop.f32.mrb[0].mxu0
        %2418 = vmatprep.mubr.f32.mxu0 0.0
        %2419 = vmatmul.mubr.f32.gmra.mrb[0].mxu0 %v2194
        %v2420 = vpop.f32.mrb[0].mxu0
        %v2421 = vadd.f32 0.0, %v2420
        %v2422 = vpop.f32.mrb[0].mxu0
        %2423 = vdwg.mxu0
        %v2424 = vadd.f32 %v2158, %v2266
        %v2425 = vadd.f32 %v2159, %v2271
        %v2426 = vadd.f32 %v2160, %v2276
        %v2427 = vadd.f32 %v2161, %v2281
        %v2428 = vadd.f32 %v2162, %v2286
        %v2429 = vadd.f32 %v2163, %v2291
        %v2430 = vadd.f32 %v2164, %v2296
        %v2431 = vadd.f32 %v2165, %v2301
        %v2432 = vadd.f32 %v2166, %v2306
        %v2433 = vadd.f32 %v2167, %v2311
        %v2434 = vadd.f32 %v2168, %v2316
        %v2435 = vadd.f32 %v2169, %v2321
        %v2436 = vadd.f32 %v2170, %v2326
        %v2437 = vadd.f32 %v2171, %v2331
        %v2438 = vadd.f32 %v2172, %v2336
        %v2439 = vadd.f32 %v2173, %v2341
        %v2440 = vadd.f32 %v2174, %v2346
        %v2441 = vadd.f32 %v2175, %v2351
        %v2442 = vadd.f32 %v2176, %v2356
        %v2443 = vadd.f32 %v2177, %v2361
        %v2444 = vadd.f32 %v2178, %v2366
        %v2445 = vadd.f32 %v2179, %v2371
        %v2446 = vadd.f32 %v2180, %v2376
        %v2447 = vadd.f32 %v2181, %v2381
        %v2448 = vadd.f32 %v2182, %v2386
        %v2449 = vadd.f32 %v2183, %v2391
        %v2450 = vadd.f32 %v2184, %v2396
        %v2451 = vadd.f32 %v2185, %v2401
        %v2452 = vadd.f32 %v2186, %v2406
        %v2453 = vadd.f32 %v2187, %v2411
        %v2454 = vadd.f32 %v2188, %v2416
        %v2455 = vadd.f32 %v2189, %v2421
        %2456 = vst.msk [vmem:[#allocation2] sm:$0xff] %vm841, %v2424
        %2457 = vst.msk [vmem:[#allocation2 + $0x8] sm:$0xff] %vm841, %v2425
        %2458 = vst.msk [vmem:[#allocation2 + $0x10] sm:$0xff] %vm841, %v2426
        %2459 = vst.msk [vmem:[#allocation2 + $0x18] sm:$0xff] %vm841, %v2427
        %2460 = vst.msk [vmem:[#allocation2 + $0x20] sm:$0xff] %vm841, %v2428
        %2461 = vst.msk [vmem:[#allocation2 + $0x28] sm:$0xff] %vm841, %v2429
        %2462 = vst.msk [vmem:[#allocation2 + $0x30] sm:$0xff] %vm841, %v2430
        %2463 = vst.msk [vmem:[#allocation2 + $0x38] sm:$0xff] %vm841, %v2431
        %2464 = vst.msk [vmem:[#allocation2 + $0x40] sm:$0xff] %vm841, %v2432
        %2465 = vst.msk [vmem:[#allocation2 + $0x48] sm:$0xff] %vm841, %v2433
        %2466 = vst.msk [vmem:[#allocation2 + $0x50] sm:$0xff] %vm841, %v2434
        %2467 = vst.msk [vmem:[#allocation2 + $0x58] sm:$0xff] %vm841, %v2435
        %2468 = vst.msk [vmem:[#allocation2 + $0x60] sm:$0xff] %vm841, %v2436
        %2469 = vst.msk [vmem:[#allocation2 + $0x68] sm:$0xff] %vm841, %v2437
        %2470 = vst.msk [vmem:[#allocation2 + $0x70] sm:$0xff] %vm841, %v2438
        %2471 = vst.msk [vmem:[#allocation2 + $0x78] sm:$0xff] %vm841, %v2439
        %2472 = vst.msk [vmem:[#allocation2 + $0x80] sm:$0xff] %vm841, %v2440
        %2473 = vst.msk [vmem:[#allocation2 + $0x88] sm:$0xff] %vm841, %v2441
        %2474 = vst.msk [vmem:[#allocation2 + $0x90] sm:$0xff] %vm841, %v2442
        %2475 = vst.msk [vmem:[#allocation2 + $0x98] sm:$0xff] %vm841, %v2443
        %2476 = vst.msk [vmem:[#allocation2 + $0xa0] sm:$0xff] %vm841, %v2444
        %2477 = vst.msk [vmem:[#allocation2 + $0xa8] sm:$0xff] %vm841, %v2445
        %2478 = vst.msk [vmem:[#allocation2 + $0xb0] sm:$0xff] %vm841, %v2446
        %2479 = vst.msk [vmem:[#allocation2 + $0xb8] sm:$0xff] %vm841, %v2447
        %2480 = vst.msk [vmem:[#allocation2 + $0xc0] sm:$0xff] %vm841, %v2448
        %2481 = vst.msk [vmem:[#allocation2 + $0xc8] sm:$0xff] %vm841, %v2449
        %2482 = vst.msk [vmem:[#allocation2 + $0xd0] sm:$0xff] %vm841, %v2450
        %2483 = vst.msk [vmem:[#allocation2 + $0xd8] sm:$0xff] %vm841, %v2451
        %2484 = vst.msk [vmem:[#allocation2 + $0xe0] sm:$0xff] %vm841, %v2452
        %2485 = vst.msk [vmem:[#allocation2 + $0xe8] sm:$0xff] %vm841, %v2453
        %2486 = vst.msk [vmem:[#allocation2 + $0xf0] sm:$0xff] %vm841, %v2454
        %2487 = vst.msk [vmem:[#allocation2 + $0xf8] sm:$0xff] %vm841, %v2455
        %v2488 = vld [vmem:[#allocation3] sm:$0xff]
        %v2489 = vld [vmem:[#allocation3 + $0x8] sm:$0xff]
        %v2490 = vld [vmem:[#allocation3 + $0x10] sm:$0xff]
        %v2491 = vld [vmem:[#allocation3 + $0x18] sm:$0xff]
        %v2492 = vld [vmem:[#allocation3 + $0x20] sm:$0xff]
        %v2493 = vld [vmem:[#allocation3 + $0x28] sm:$0xff]
        %v2494 = vld [vmem:[#allocation3 + $0x30] sm:$0xff]
        %v2495 = vld [vmem:[#allocation3 + $0x38] sm:$0xff]
        %v2496 = vld [vmem:[#allocation3 + $0x40] sm:$0xff]
        %v2497 = vld [vmem:[#allocation3 + $0x48] sm:$0xff]
        %v2498 = vld [vmem:[#allocation3 + $0x50] sm:$0xff]
        %v2499 = vld [vmem:[#allocation3 + $0x58] sm:$0xff]
        %v2500 = vld [vmem:[#allocation3 + $0x60] sm:$0xff]
        %v2501 = vld [vmem:[#allocation3 + $0x68] sm:$0xff]
        %v2502 = vld [vmem:[#allocation3 + $0x70] sm:$0xff]
        %v2503 = vld [vmem:[#allocation3 + $0x78] sm:$0xff]
        %v2504 = vld [vmem:[#allocation3 + $0x80] sm:$0xff]
        %v2505 = vld [vmem:[#allocation3 + $0x88] sm:$0xff]
        %v2506 = vld [vmem:[#allocation3 + $0x90] sm:$0xff]
        %v2507 = vld [vmem:[#allocation3 + $0x98] sm:$0xff]
        %v2508 = vld [vmem:[#allocation3 + $0xa0] sm:$0xff]
        %v2509 = vld [vmem:[#allocation3 + $0xa8] sm:$0xff]
        %v2510 = vld [vmem:[#allocation3 + $0xb0] sm:$0xff]
        %v2511 = vld [vmem:[#allocation3 + $0xb8] sm:$0xff]
        %v2512 = vld [vmem:[#allocation3 + $0xc0] sm:$0xff]
        %v2513 = vld [vmem:[#allocation3 + $0xc8] sm:$0xff]
        %v2514 = vld [vmem:[#allocation3 + $0xd0] sm:$0xff]
        %v2515 = vld [vmem:[#allocation3 + $0xd8] sm:$0xff]
        %v2516 = vld [vmem:[#allocation3 + $0xe0] sm:$0xff]
        %v2517 = vld [vmem:[#allocation3 + $0xe8] sm:$0xff]
        %v2518 = vld [vmem:[#allocation3 + $0xf0] sm:$0xff]
        %v2519 = vld [vmem:[#allocation3 + $0xf8] sm:$0xff]
        %v2521 = vsel %vm1565, %v2157, 0
        %2523 = vmatprep.subr.mxu0 0.0
        %2524 = vmatpush1.msra.mxu0 %v2156
        %2525 = vmatprep.subr.mxu0 0.0
        %2526 = vmatpush1.msra.mxu0 %v2521
        %2527 = vmatprep.subr.mxu0 0.0
        %2528 = vmatpush1.msra.mxu0 0.0
        %2529 = vmatprep.subr.mxu0 0.0
        %2530 = vmatpush1.msra.mxu0 0.0
        %2531 = vmatprep.subr.mxu0 0.0
        %2532 = vmatpush1.msra.mxu0 0.0
        %2533 = vmatprep.subr.mxu0 0.0
        %2534 = vmatpush1.msra.mxu0 0.0
        %2535 = vmatprep.subr.mxu0 0.0
        %2536 = vmatpush1.msra.mxu0 0.0
        %2537 = vmatprep.subr.mxu0 0.0
        %2538 = vmatpush1.msra.mxu0 0.0
        %2539 = vmatprep.subr.mxu0 0.0
        %2540 = vmatpush1.msra.mxu0 0.0
        %2541 = vmatprep.subr.mxu0 0.0
        %2542 = vmatpush1.msra.mxu0 0.0
        %2543 = vmatprep.subr.mxu0 0.0
        %2544 = vmatpush1.msra.mxu0 0.0
        %2545 = vmatprep.subr.mxu0 0.0
        %2546 = vmatpush1.msra.mxu0 0.0
        %2547 = vmatprep.subr.mxu0 0.0
        %2548 = vmatpush1.msra.mxu0 0.0
        %2549 = vmatprep.subr.mxu0 0.0
        %2550 = vmatpush1.msra.mxu0 0.0
        %2551 = vmatprep.subr.mxu0 0.0
        %2552 = vmatpush1.msra.mxu0 0.0
        %2553 = vmatprep.subr.mxu0 0.0
        %2554 = vmatpush1.msra.mxu0 0.0
        %2555 = vmatprep.subr.mxu0 0.0
        %2556 = vmatpush1.msra.mxu0 0.0
        %2557 = vmatprep.subr.mxu0 0.0
        %2558 = vmatpush1.msra.mxu0 0.0
        %2559 = vmatprep.subr.mxu0 0.0
        %2560 = vmatpush1.msra.mxu0 0.0
        %2561 = vmatprep.subr.mxu0 0.0
        %2562 = vmatpush1.msra.mxu0 0.0
        %2563 = vmatprep.subr.mxu0 0.0
        %2564 = vmatpush1.msra.mxu0 0.0
        %2565 = vmatprep.subr.mxu0 0.0
        %2566 = vmatpush1.msra.mxu0 0.0
        %2567 = vmatprep.subr.mxu0 0.0
        %2568 = vmatpush1.msra.mxu0 0.0
        %2569 = vmatprep.subr.mxu0 0.0
        %2570 = vmatpush1.msra.mxu0 0.0
        %2571 = vmatprep.subr.mxu0 0.0
        %2572 = vmatpush1.msra.mxu0 0.0
        %2573 = vmatprep.subr.mxu0 0.0
        %2574 = vmatpush1.msra.mxu0 0.0
        %2575 = vmatprep.subr.mxu0 0.0
        %2576 = vmatpush1.msra.mxu0 0.0
        %2577 = vmatprep.subr.mxu0 0.0
        %2578 = vmatpush1.msra.mxu0 0.0
        %2579 = vmatprep.subr.mxu0 0.0
        %2580 = vmatpush1.msra.mxu0 0.0
        %2581 = vmatprep.subr.mxu0 0.0
        %2582 = vmatpush1.msra.mxu0 0.0
        %2583 = vmatprep.subr.mxu0 0.0
        %2584 = vmatpush1.msra.mxu0 0.0
        %2585 = vmatprep.subr.mxu0 0.0
        %2586 = vmatpush1.msra.mxu0 0.0
        %2587 = vmatprep.mubr.f32.mxu0 0.0
        %2588 = vmatmul.mubr.f32.gmra.mrb[0].mxu0 %v1476
        %v2589 = vpop.f32.mrb[0].mxu0
        %v2590 = vadd.f32 0.0, %v2589
        %v2591 = vpop.f32.mrb[0].mxu0
        %2592 = vmatprep.mubr.f32.mxu0 0.0
        %2593 = vmatmul.mubr.f32.gmra.mrb[0].mxu0 %v1479
        %v2594 = vpop.f32.mrb[0].mxu0
        %v2595 = vadd.f32 0.0, %v2594
        %v2596 = vpop.f32.mrb[0].mxu0
        %2597 = vmatprep.mubr.f32.mxu0 0.0
        %2598 = vmatmul.mubr.f32.gmra.mrb[0].mxu0 %v1482
        %v2599 = vpop.f32.mrb[0].mxu0
        %v2600 = vadd.f32 0.0, %v2599
        %v2601 = vpop.f32.mrb[0].mxu0
        %2602 = vmatprep.mubr.f32.mxu0 0.0
        %2603 = vmatmul.mubr.f32.gmra.mrb[0].mxu0 %v1485
        %v2604 = vpop.f32.mrb[0].mxu0
        %v2605 = vadd.f32 0.0, %v2604
        %v2606 = vpop.f32.mrb[0].mxu0
        %2607 = vmatprep.mubr.f32.mxu0 0.0
        %2608 = vmatmul.mubr.f32.gmra.mrb[0].mxu0 %v1488
        %v2609 = vpop.f32.mrb[0].mxu0
        %v2610 = vadd.f32 0.0, %v2609
        %v2611 = vpop.f32.mrb[0].mxu0
        %2612 = vmatprep.mubr.f32.mxu0 0.0
        %2613 = vmatmul.mubr.f32.gmra.mrb[0].mxu0 %v1491
        %v2614 = vpop.f32.mrb[0].mxu0
        %v2615 = vadd.f32 0.0, %v2614
        %v2616 = vpop.f32.mrb[0].mxu0
        %2617 = vmatprep.mubr.f32.mxu0 0.0
        %2618 = vmatmul.mubr.f32.gmra.mrb[0].mxu0 %v1494
        %v2619 = vpop.f32.mrb[0].mxu0
        %v2620 = vadd.f32 0.0, %v2619
        %v2621 = vpop.f32.mrb[0].mxu0
        %2622 = vmatprep.mubr.f32.mxu0 0.0
        %2623 = vmatmul.mubr.f32.gmra.mrb[0].mxu0 %v1497
        %v2624 = vpop.f32.mrb[0].mxu0
        %v2625 = vadd.f32 0.0, %v2624
        %v2626 = vpop.f32.mrb[0].mxu0
        %2627 = vmatprep.mubr.f32.mxu0 0.0
        %2628 = vmatmul.mubr.f32.gmra.mrb[0].mxu0 %v1500
        %v2629 = vpop.f32.mrb[0].mxu0
        %v2630 = vadd.f32 0.0, %v2629
        %v2631 = vpop.f32.mrb[0].mxu0
        %2632 = vmatprep.mubr.f32.mxu0 0.0
        %2633 = vmatmul.mubr.f32.gmra.mrb[0].mxu0 %v1503
        %v2634 = vpop.f32.mrb[0].mxu0
        %v2635 = vadd.f32 0.0, %v2634
        %v2636 = vpop.f32.mrb[0].mxu0
        %2637 = vmatprep.mubr.f32.mxu0 0.0
        %2638 = vmatmul.mubr.f32.gmra.mrb[0].mxu0 %v1506
        %v2639 = vpop.f32.mrb[0].mxu0
        %v2640 = vadd.f32 0.0, %v2639
        %v2641 = vpop.f32.mrb[0].mxu0
        %2642 = vmatprep.mubr.f32.mxu0 0.0
        %2643 = vmatmul.mubr.f32.gmra.mrb[0].mxu0 %v1509
        %v2644 = vpop.f32.mrb[0].mxu0
        %v2645 = vadd.f32 0.0, %v2644
        %v2646 = vpop.f32.mrb[0].mxu0
        %2647 = vmatprep.mubr.f32.mxu0 0.0
        %2648 = vmatmul.mubr.f32.gmra.mrb[0].mxu0 %v1512
        %v2649 = vpop.f32.mrb[0].mxu0
        %v2650 = vadd.f32 0.0, %v2649
        %v2651 = vpop.f32.mrb[0].mxu0
        %2652 = vmatprep.mubr.f32.mxu0 0.0
        %2653 = vmatmul.mubr.f32.gmra.mrb[0].mxu0 %v1515
        %v2654 = vpop.f32.mrb[0].mxu0
        %v2655 = vadd.f32 0.0, %v2654
        %v2656 = vpop.f32.mrb[0].mxu0
        %2657 = vmatprep.mubr.f32.mxu0 0.0
        %2658 = vmatmul.mubr.f32.gmra.mrb[0].mxu0 %v1518
        %v2659 = vpop.f32.mrb[0].mxu0
        %v2660 = vadd.f32 0.0, %v2659
        %v2661 = vpop.f32.mrb[0].mxu0
        %2662 = vmatprep.mubr.f32.mxu0 0.0
        %2663 = vmatmul.mubr.f32.gmra.mrb[0].mxu0 %v1521
        %v2664 = vpop.f32.mrb[0].mxu0
        %v2665 = vadd.f32 0.0, %v2664
        %v2666 = vpop.f32.mrb[0].mxu0
        %2667 = vmatprep.mubr.f32.mxu0 0.0
        %2668 = vmatmul.mubr.f32.gmra.mrb[0].mxu0 %v1524
        %v2669 = vpop.f32.mrb[0].mxu0
        %v2670 = vadd.f32 0.0, %v2669
        %v2671 = vpop.f32.mrb[0].mxu0
        %2672 = vmatprep.mubr.f32.mxu0 0.0
        %2673 = vmatmul.mubr.f32.gmra.mrb[0].mxu0 %v1527
        %v2674 = vpop.f32.mrb[0].mxu0
        %v2675 = vadd.f32 0.0, %v2674
        %v2676 = vpop.f32.mrb[0].mxu0
        %2677 = vmatprep.mubr.f32.mxu0 0.0
        %2678 = vmatmul.mubr.f32.gmra.mrb[0].mxu0 %v1530
        %v2679 = vpop.f32.mrb[0].mxu0
        %v2680 = vadd.f32 0.0, %v2679
        %v2681 = vpop.f32.mrb[0].mxu0
        %2682 = vmatprep.mubr.f32.mxu0 0.0
        %2683 = vmatmul.mubr.f32.gmra.mrb[0].mxu0 %v1533
        %v2684 = vpop.f32.mrb[0].mxu0
        %v2685 = vadd.f32 0.0, %v2684
        %v2686 = vpop.f32.mrb[0].mxu0
        %2687 = vmatprep.mubr.f32.mxu0 0.0
        %2688 = vmatmul.mubr.f32.gmra.mrb[0].mxu0 %v1536
        %v2689 = vpop.f32.mrb[0].mxu0
        %v2690 = vadd.f32 0.0, %v2689
        %v2691 = vpop.f32.mrb[0].mxu0
        %2692 = vmatprep.mubr.f32.mxu0 0.0
        %2693 = vmatmul.mubr.f32.gmra.mrb[0].mxu0 %v1539
        %v2694 = vpop.f32.mrb[0].mxu0
        %v2695 = vadd.f32 0.0, %v2694
        %v2696 = vpop.f32.mrb[0].mxu0
        %2697 = vmatprep.mubr.f32.mxu0 0.0
        %2698 = vmatmul.mubr.f32.gmra.mrb[0].mxu0 %v1542
        %v2699 = vpop.f32.mrb[0].mxu0
        %v2700 = vadd.f32 0.0, %v2699
        %v2701 = vpop.f32.mrb[0].mxu0
        %2702 = vmatprep.mubr.f32.mxu0 0.0
        %2703 = vmatmul.mubr.f32.gmra.mrb[0].mxu0 %v1545
        %v2704 = vpop.f32.mrb[0].mxu0
        %v2705 = vadd.f32 0.0, %v2704
        %v2706 = vpop.f32.mrb[0].mxu0
        %2707 = vmatprep.mubr.f32.mxu0 0.0
        %2708 = vmatmul.mubr.f32.gmra.mrb[0].mxu0 %v1548
        %v2709 = vpop.f32.mrb[0].mxu0
        %v2710 = vadd.f32 0.0, %v2709
        %v2711 = vpop.f32.mrb[0].mxu0
        %2712 = vmatprep.mubr.f32.mxu0 0.0
        %2713 = vmatmul.mubr.f32.gmra.mrb[0].mxu0 %v1551
        %v2714 = vpop.f32.mrb[0].mxu0
        %v2715 = vadd.f32 0.0, %v2714
        %v2716 = vpop.f32.mrb[0].mxu0
        %2717 = vmatprep.mubr.f32.mxu0 0.0
        %2718 = vmatmul.mubr.f32.gmra.mrb[0].mxu0 %v1554
        %v2719 = vpop.f32.mrb[0].mxu0
        %v2720 = vadd.f32 0.0, %v2719
        %v2721 = vpop.f32.mrb[0].mxu0
        %2722 = vmatprep.mubr.f32.mxu0 0.0
        %2723 = vmatmul.mubr.f32.gmra.mrb[0].mxu0 %v1557
        %v2724 = vpop.f32.mrb[0].mxu0
        %v2725 = vadd.f32 0.0, %v2724
        %v2726 = vpop.f32.mrb[0].mxu0
        %2727 = vmatprep.mubr.f32.mxu0 0.0
        %2728 = vmatmul.mubr.f32.gmra.mrb[0].mxu0 %v1560
        %v2729 = vpop.f32.mrb[0].mxu0
        %v2730 = vadd.f32 0.0, %v2729
        %v2731 = vpop.f32.mrb[0].mxu0
        %2732 = vmatprep.mubr.f32.mxu0 0.0
        %2733 = vmatmul.mubr.f32.gmra.mrb[0].mxu0 %v1563
        %v2734 = vpop.f32.mrb[0].mxu0
        %v2735 = vadd.f32 0.0, %v2734
        %v2736 = vpop.f32.mrb[0].mxu0
        %2737 = vmatprep.mubr.f32.mxu0 0.0
        %2738 = vmatmul.mubr.f32.gmra.mrb[0].mxu0 %v2191
        %v2739 = vpop.f32.mrb[0].mxu0
        %v2740 = vadd.f32 0.0, %v2739
        %v2741 = vpop.f32.mrb[0].mxu0
        %2742 = vmatprep.mubr.f32.mxu0 0.0
        %2743 = vmatmul.mubr.f32.gmra.mrb[0].mxu0 %v2194
        %v2744 = vpop.f32.mrb[0].mxu0
        %v2745 = vadd.f32 0.0, %v2744
        %v2746 = vpop.f32.mrb[0].mxu0
        %2747 = vdwg.mxu0
        %v2748 = vadd.f32 %v2488, %v2590
        %v2749 = vadd.f32 %v2489, %v2595
        %v2750 = vadd.f32 %v2490, %v2600
        %v2751 = vadd.f32 %v2491, %v2605
        %v2752 = vadd.f32 %v2492, %v2610
        %v2753 = vadd.f32 %v2493, %v2615
        %v2754 = vadd.f32 %v2494, %v2620
        %v2755 = vadd.f32 %v2495, %v2625
        %v2756 = vadd.f32 %v2496, %v2630
        %v2757 = vadd.f32 %v2497, %v2635
        %v2758 = vadd.f32 %v2498, %v2640
        %v2759 = vadd.f32 %v2499, %v2645
        %v2760 = vadd.f32 %v2500, %v2650
        %v2761 = vadd.f32 %v2501, %v2655
        %v2762 = vadd.f32 %v2502, %v2660
        %v2763 = vadd.f32 %v2503, %v2665
        %v2764 = vadd.f32 %v2504, %v2670
        %v2765 = vadd.f32 %v2505, %v2675
        %v2766 = vadd.f32 %v2506, %v2680
        %v2767 = vadd.f32 %v2507, %v2685
        %v2768 = vadd.f32 %v2508, %v2690
        %v2769 = vadd.f32 %v2509, %v2695
        %v2770 = vadd.f32 %v2510, %v2700
        %v2771 = vadd.f32 %v2511, %v2705
        %v2772 = vadd.f32 %v2512, %v2710
        %v2773 = vadd.f32 %v2513, %v2715
        %v2774 = vadd.f32 %v2514, %v2720
        %v2775 = vadd.f32 %v2515, %v2725
        %v2776 = vadd.f32 %v2516, %v2730
        %v2777 = vadd.f32 %v2517, %v2735
        %v2778 = vadd.f32 %v2518, %v2740
        %v2779 = vadd.f32 %v2519, %v2745
        %2780 = vst.msk [vmem:[#allocation3] sm:$0xff] %vm841, %v2748
        %2781 = vst.msk [vmem:[#allocation3 + $0x8] sm:$0xff] %vm841, %v2749
        %2782 = vst.msk [vmem:[#allocation3 + $0x10] sm:$0xff] %vm841, %v2750
        %2783 = vst.msk [vmem:[#allocation3 + $0x18] sm:$0xff] %vm841, %v2751
        %2784 = vst.msk [vmem:[#allocation3 + $0x20] sm:$0xff] %vm841, %v2752
        %2785 = vst.msk [vmem:[#allocation3 + $0x28] sm:$0xff] %vm841, %v2753
        %2786 = vst.msk [vmem:[#allocation3 + $0x30] sm:$0xff] %vm841, %v2754
        %2787 = vst.msk [vmem:[#allocation3 + $0x38] sm:$0xff] %vm841, %v2755
        %2788 = vst.msk [vmem:[#allocation3 + $0x40] sm:$0xff] %vm841, %v2756
        %2789 = vst.msk [vmem:[#allocation3 + $0x48] sm:$0xff] %vm841, %v2757
        %2790 = vst.msk [vmem:[#allocation3 + $0x50] sm:$0xff] %vm841, %v2758
        %2791 = vst.msk [vmem:[#allocation3 + $0x58] sm:$0xff] %vm841, %v2759
        %2792 = vst.msk [vmem:[#allocation3 + $0x60] sm:$0xff] %vm841, %v2760
        %2793 = vst.msk [vmem:[#allocation3 + $0x68] sm:$0xff] %vm841, %v2761
        %2794 = vst.msk [vmem:[#allocation3 + $0x70] sm:$0xff] %vm841, %v2762
        %2795 = vst.msk [vmem:[#allocation3 + $0x78] sm:$0xff] %vm841, %v2763
        %2796 = vst.msk [vmem:[#allocation3 + $0x80] sm:$0xff] %vm841, %v2764
        %2797 = vst.msk [vmem:[#allocation3 + $0x88] sm:$0xff] %vm841, %v2765
        %2798 = vst.msk [vmem:[#allocation3 + $0x90] sm:$0xff] %vm841, %v2766
        %2799 = vst.msk [vmem:[#allocation3 + $0x98] sm:$0xff] %vm841, %v2767
        %2800 = vst.msk [vmem:[#allocation3 + $0xa0] sm:$0xff] %vm841, %v2768
        %2801 = vst.msk [vmem:[#allocation3 + $0xa8] sm:$0xff] %vm841, %v2769
        %2802 = vst.msk [vmem:[#allocation3 + $0xb0] sm:$0xff] %vm841, %v2770
        %2803 = vst.msk [vmem:[#allocation3 + $0xb8] sm:$0xff] %vm841, %v2771
        %2804 = vst.msk [vmem:[#allocation3 + $0xc0] sm:$0xff] %vm841, %v2772
        %2805 = vst.msk [vmem:[#allocation3 + $0xc8] sm:$0xff] %vm841, %v2773
        %2806 = vst.msk [vmem:[#allocation3 + $0xd0] sm:$0xff] %vm841, %v2774
        %2807 = vst.msk [vmem:[#allocation3 + $0xd8] sm:$0xff] %vm841, %v2775
        %2808 = vst.msk [vmem:[#allocation3 + $0xe0] sm:$0xff] %vm841, %v2776
        %2809 = vst.msk [vmem:[#allocation3 + $0xe8] sm:$0xff] %vm841, %v2777
        %2810 = vst.msk [vmem:[#allocation3 + $0xf0] sm:$0xff] %vm841, %v2778
        %2811 = vst.msk [vmem:[#allocation3 + $0xf8] sm:$0xff] %vm841, %v2779
        %s2812 = scalar_lea.vmem [#allocation8], 32
        %v2813 = vld [vmem:[%s2812] sm:$0xff]
        %v2814 = vld [vmem:[%s2812 + $0x8] sm:$0xf]
        %s2815 = scalar_lea.vmem [#allocation10], 32
        %v2816 = vld [vmem:[%s2815] sm:$0xff]
        %v2817 = vld [vmem:[%s2815 + $0x8] sm:$0xf]
        %v2818 = vld [vmem:[#allocation2] sm:$0xff]
        %v2819 = vld [vmem:[#allocation2 + $0x8] sm:$0xff]
        %v2820 = vld [vmem:[#allocation2 + $0x10] sm:$0xff]
        %v2821 = vld [vmem:[#allocation2 + $0x18] sm:$0xff]
        %v2822 = vld [vmem:[#allocation2 + $0x20] sm:$0xff]
        %v2823 = vld [vmem:[#allocation2 + $0x28] sm:$0xff]
        %v2824 = vld [vmem:[#allocation2 + $0x30] sm:$0xff]
        %v2825 = vld [vmem:[#allocation2 + $0x38] sm:$0xff]
        %v2826 = vld [vmem:[#allocation2 + $0x40] sm:$0xff]
        %v2827 = vld [vmem:[#allocation2 + $0x48] sm:$0xff]
        %v2828 = vld [vmem:[#allocation2 + $0x50] sm:$0xff]
        %v2829 = vld [vmem:[#allocation2 + $0x58] sm:$0xff]
        %v2830 = vld [vmem:[#allocation2 + $0x60] sm:$0xff]
        %v2831 = vld [vmem:[#allocation2 + $0x68] sm:$0xff]
        %v2832 = vld [vmem:[#allocation2 + $0x70] sm:$0xff]
        %v2833 = vld [vmem:[#allocation2 + $0x78] sm:$0xff]
        %v2834 = vld [vmem:[#allocation2 + $0x80] sm:$0xff]
        %v2835 = vld [vmem:[#allocation2 + $0x88] sm:$0xff]
        %v2836 = vld [vmem:[#allocation2 + $0x90] sm:$0xff]
        %v2837 = vld [vmem:[#allocation2 + $0x98] sm:$0xff]
        %v2838 = vld [vmem:[#allocation2 + $0xa0] sm:$0xff]
        %v2839 = vld [vmem:[#allocation2 + $0xa8] sm:$0xff]
        %v2840 = vld [vmem:[#allocation2 + $0xb0] sm:$0xff]
        %v2841 = vld [vmem:[#allocation2 + $0xb8] sm:$0xff]
        %v2842 = vld [vmem:[#allocation2 + $0xc0] sm:$0xff]
        %v2843 = vld [vmem:[#allocation2 + $0xc8] sm:$0xff]
        %v2844 = vld [vmem:[#allocation2 + $0xd0] sm:$0xff]
        %v2845 = vld [vmem:[#allocation2 + $0xd8] sm:$0xff]
        %v2846 = vld [vmem:[#allocation2 + $0xe0] sm:$0xff]
        %v2847 = vld [vmem:[#allocation2 + $0xe8] sm:$0xff]
        %v2849 = vsel %vm1565, %v2814, 0
        %2851 = vmatprep.subr.mxu0 0.0
        %2852 = vmatpush1.msra.mxu0 %v2813
        %2853 = vmatprep.subr.mxu0 0.0
        %2854 = vmatpush1.msra.mxu0 %v2849
        %2855 = vmatprep.subr.mxu0 0.0
        %2856 = vmatpush1.msra.mxu0 0.0
        %2857 = vmatprep.subr.mxu0 0.0
        %2858 = vmatpush1.msra.mxu0 0.0
        %2859 = vmatprep.subr.mxu0 0.0
        %2860 = vmatpush1.msra.mxu0 0.0
        %2861 = vmatprep.subr.mxu0 0.0
        %2862 = vmatpush1.msra.mxu0 0.0
        %2863 = vmatprep.subr.mxu0 0.0
        %2864 = vmatpush1.msra.mxu0 0.0
        %2865 = vmatprep.subr.mxu0 0.0
        %2866 = vmatpush1.msra.mxu0 0.0
        %2867 = vmatprep.subr.mxu0 0.0
        %2868 = vmatpush1.msra.mxu0 0.0
        %2869 = vmatprep.subr.mxu0 0.0
        %2870 = vmatpush1.msra.mxu0 0.0
        %2871 = vmatprep.subr.mxu0 0.0
        %2872 = vmatpush1.msra.mxu0 0.0
        %2873 = vmatprep.subr.mxu0 0.0
        %2874 = vmatpush1.msra.mxu0 0.0
        %2875 = vmatprep.subr.mxu0 0.0
        %2876 = vmatpush1.msra.mxu0 0.0
        %2877 = vmatprep.subr.mxu0 0.0
        %2878 = vmatpush1.msra.mxu0 0.0
        %2879 = vmatprep.subr.mxu0 0.0
        %2880 = vmatpush1.msra.mxu0 0.0
        %2881 = vmatprep.subr.mxu0 0.0
        %2882 = vmatpush1.msra.mxu0 0.0
        %2883 = vmatprep.subr.mxu0 0.0
        %2884 = vmatpush1.msra.mxu0 0.0
        %2885 = vmatprep.subr.mxu0 0.0
        %2886 = vmatpush1.msra.mxu0 0.0
        %2887 = vmatprep.subr.mxu0 0.0
        %2888 = vmatpush1.msra.mxu0 0.0
        %2889 = vmatprep.subr.mxu0 0.0
        %2890 = vmatpush1.msra.mxu0 0.0
        %2891 = vmatprep.subr.mxu0 0.0
        %2892 = vmatpush1.msra.mxu0 0.0
        %2893 = vmatprep.subr.mxu0 0.0
        %2894 = vmatpush1.msra.mxu0 0.0
        %2895 = vmatprep.subr.mxu0 0.0
        %2896 = vmatpush1.msra.mxu0 0.0
        %2897 = vmatprep.subr.mxu0 0.0
        %2898 = vmatpush1.msra.mxu0 0.0
        %2899 = vmatprep.subr.mxu0 0.0
        %2900 = vmatpush1.msra.mxu0 0.0
        %2901 = vmatprep.subr.mxu0 0.0
        %2902 = vmatpush1.msra.mxu0 0.0
        %2903 = vmatprep.subr.mxu0 0.0
        %2904 = vmatpush1.msra.mxu0 0.0
        %2905 = vmatprep.subr.mxu0 0.0
        %2906 = vmatpush1.msra.mxu0 0.0
        %2907 = vmatprep.subr.mxu0 0.0
        %2908 = vmatpush1.msra.mxu0 0.0
        %2909 = vmatprep.subr.mxu0 0.0
        %2910 = vmatpush1.msra.mxu0 0.0
        %2911 = vmatprep.subr.mxu0 0.0
        %2912 = vmatpush1.msra.mxu0 0.0
        %2913 = vmatprep.subr.mxu0 0.0
        %2914 = vmatpush1.msra.mxu0 0.0
        %2915 = vmatprep.mubr.f32.mxu0 0.0
        %2916 = vmatmul.mubr.f32.gmra.mrb[0].mxu0 %v1482
        %v2917 = vpop.f32.mrb[0].mxu0
        %v2918 = vadd.f32 0.0, %v2917
        %v2919 = vpop.f32.mrb[0].mxu0
        %2920 = vmatprep.mubr.f32.mxu0 0.0
        %2921 = vmatmul.mubr.f32.gmra.mrb[0].mxu0 %v1485
        %v2922 = vpop.f32.mrb[0].mxu0
        %v2923 = vadd.f32 0.0, %v2922
        %v2924 = vpop.f32.mrb[0].mxu0
        %2925 = vmatprep.mubr.f32.mxu0 0.0
        %2926 = vmatmul.mubr.f32.gmra.mrb[0].mxu0 %v1488
        %v2927 = vpop.f32.mrb[0].mxu0
        %v2928 = vadd.f32 0.0, %v2927
        %v2929 = vpop.f32.mrb[0].mxu0
        %2930 = vmatprep.mubr.f32.mxu0 0.0
        %2931 = vmatmul.mubr.f32.gmra.mrb[0].mxu0 %v1491
        %v2932 = vpop.f32.mrb[0].mxu0
        %v2933 = vadd.f32 0.0, %v2932
        %v2934 = vpop.f32.mrb[0].mxu0
        %2935 = vmatprep.mubr.f32.mxu0 0.0
        %2936 = vmatmul.mubr.f32.gmra.mrb[0].mxu0 %v1494
        %v2937 = vpop.f32.mrb[0].mxu0
        %v2938 = vadd.f32 0.0, %v2937
        %v2939 = vpop.f32.mrb[0].mxu0
        %2940 = vmatprep.mubr.f32.mxu0 0.0
        %2941 = vmatmul.mubr.f32.gmra.mrb[0].mxu0 %v1497
        %v2942 = vpop.f32.mrb[0].mxu0
        %v2943 = vadd.f32 0.0, %v2942
        %v2944 = vpop.f32.mrb[0].mxu0
        %2945 = vmatprep.mubr.f32.mxu0 0.0
        %2946 = vmatmul.mubr.f32.gmra.mrb[0].mxu0 %v1500
        %v2947 = vpop.f32.mrb[0].mxu0
        %v2948 = vadd.f32 0.0, %v2947
        %v2949 = vpop.f32.mrb[0].mxu0
        %2950 = vmatprep.mubr.f32.mxu0 0.0
        %2951 = vmatmul.mubr.f32.gmra.mrb[0].mxu0 %v1503
        %v2952 = vpop.f32.mrb[0].mxu0
        %v2953 = vadd.f32 0.0, %v2952
        %v2954 = vpop.f32.mrb[0].mxu0
        %2955 = vmatprep.mubr.f32.mxu0 0.0
        %2956 = vmatmul.mubr.f32.gmra.mrb[0].mxu0 %v1506
        %v2957 = vpop.f32.mrb[0].mxu0
        %v2958 = vadd.f32 0.0, %v2957
        %v2959 = vpop.f32.mrb[0].mxu0
        %2960 = vmatprep.mubr.f32.mxu0 0.0
        %2961 = vmatmul.mubr.f32.gmra.mrb[0].mxu0 %v1509
        %v2962 = vpop.f32.mrb[0].mxu0
        %v2963 = vadd.f32 0.0, %v2962
        %v2964 = vpop.f32.mrb[0].mxu0
        %2965 = vmatprep.mubr.f32.mxu0 0.0
        %2966 = vmatmul.mubr.f32.gmra.mrb[0].mxu0 %v1512
        %v2967 = vpop.f32.mrb[0].mxu0
        %v2968 = vadd.f32 0.0, %v2967
        %v2969 = vpop.f32.mrb[0].mxu0
        %2970 = vmatprep.mubr.f32.mxu0 0.0
        %2971 = vmatmul.mubr.f32.gmra.mrb[0].mxu0 %v1515
        %v2972 = vpop.f32.mrb[0].mxu0
        %v2973 = vadd.f32 0.0, %v2972
        %v2974 = vpop.f32.mrb[0].mxu0
        %2975 = vmatprep.mubr.f32.mxu0 0.0
        %2976 = vmatmul.mubr.f32.gmra.mrb[0].mxu0 %v1518
        %v2977 = vpop.f32.mrb[0].mxu0
        %v2978 = vadd.f32 0.0, %v2977
        %v2979 = vpop.f32.mrb[0].mxu0
        %2980 = vmatprep.mubr.f32.mxu0 0.0
        %2981 = vmatmul.mubr.f32.gmra.mrb[0].mxu0 %v1521
        %v2982 = vpop.f32.mrb[0].mxu0
        %v2983 = vadd.f32 0.0, %v2982
        %v2984 = vpop.f32.mrb[0].mxu0
        %2985 = vmatprep.mubr.f32.mxu0 0.0
        %2986 = vmatmul.mubr.f32.gmra.mrb[0].mxu0 %v1524
        %v2987 = vpop.f32.mrb[0].mxu0
        %v2988 = vadd.f32 0.0, %v2987
        %v2989 = vpop.f32.mrb[0].mxu0
        %2990 = vmatprep.mubr.f32.mxu0 0.0
        %2991 = vmatmul.mubr.f32.gmra.mrb[0].mxu0 %v1527
        %v2992 = vpop.f32.mrb[0].mxu0
        %v2993 = vadd.f32 0.0, %v2992
        %v2994 = vpop.f32.mrb[0].mxu0
        %2995 = vmatprep.mubr.f32.mxu0 0.0
        %2996 = vmatmul.mubr.f32.gmra.mrb[0].mxu0 %v1530
        %v2997 = vpop.f32.mrb[0].mxu0
        %v2998 = vadd.f32 0.0, %v2997
        %v2999 = vpop.f32.mrb[0].mxu0
        %3000 = vmatprep.mubr.f32.mxu0 0.0
        %3001 = vmatmul.mubr.f32.gmra.mrb[0].mxu0 %v1533
        %v3002 = vpop.f32.mrb[0].mxu0
        %v3003 = vadd.f32 0.0, %v3002
        %v3004 = vpop.f32.mrb[0].mxu0
        %3005 = vmatprep.mubr.f32.mxu0 0.0
        %3006 = vmatmul.mubr.f32.gmra.mrb[0].mxu0 %v1536
        %v3007 = vpop.f32.mrb[0].mxu0
        %v3008 = vadd.f32 0.0, %v3007
        %v3009 = vpop.f32.mrb[0].mxu0
        %3010 = vmatprep.mubr.f32.mxu0 0.0
        %3011 = vmatmul.mubr.f32.gmra.mrb[0].mxu0 %v1539
        %v3012 = vpop.f32.mrb[0].mxu0
        %v3013 = vadd.f32 0.0, %v3012
        %v3014 = vpop.f32.mrb[0].mxu0
        %3015 = vmatprep.mubr.f32.mxu0 0.0
        %3016 = vmatmul.mubr.f32.gmra.mrb[0].mxu0 %v1542
        %v3017 = vpop.f32.mrb[0].mxu0
        %v3018 = vadd.f32 0.0, %v3017
        %v3019 = vpop.f32.mrb[0].mxu0
        %3020 = vmatprep.mubr.f32.mxu0 0.0
        %3021 = vmatmul.mubr.f32.gmra.mrb[0].mxu0 %v1545
        %v3022 = vpop.f32.mrb[0].mxu0
        %v3023 = vadd.f32 0.0, %v3022
        %v3024 = vpop.f32.mrb[0].mxu0
        %3025 = vmatprep.mubr.f32.mxu0 0.0
        %3026 = vmatmul.mubr.f32.gmra.mrb[0].mxu0 %v1548
        %v3027 = vpop.f32.mrb[0].mxu0
        %v3028 = vadd.f32 0.0, %v3027
        %v3029 = vpop.f32.mrb[0].mxu0
        %3030 = vmatprep.mubr.f32.mxu0 0.0
        %3031 = vmatmul.mubr.f32.gmra.mrb[0].mxu0 %v1551
        %v3032 = vpop.f32.mrb[0].mxu0
        %v3033 = vadd.f32 0.0, %v3032
        %v3034 = vpop.f32.mrb[0].mxu0
        %3035 = vmatprep.mubr.f32.mxu0 0.0
        %3036 = vmatmul.mubr.f32.gmra.mrb[0].mxu0 %v1554
        %v3037 = vpop.f32.mrb[0].mxu0
        %v3038 = vadd.f32 0.0, %v3037
        %v3039 = vpop.f32.mrb[0].mxu0
        %3040 = vmatprep.mubr.f32.mxu0 0.0
        %3041 = vmatmul.mubr.f32.gmra.mrb[0].mxu0 %v1557
        %v3042 = vpop.f32.mrb[0].mxu0
        %v3043 = vadd.f32 0.0, %v3042
        %v3044 = vpop.f32.mrb[0].mxu0
        %3045 = vmatprep.mubr.f32.mxu0 0.0
        %3046 = vmatmul.mubr.f32.gmra.mrb[0].mxu0 %v1560
        %v3047 = vpop.f32.mrb[0].mxu0
        %v3048 = vadd.f32 0.0, %v3047
        %v3049 = vpop.f32.mrb[0].mxu0
        %3050 = vmatprep.mubr.f32.mxu0 0.0
        %3051 = vmatmul.mubr.f32.gmra.mrb[0].mxu0 %v1563
        %v3052 = vpop.f32.mrb[0].mxu0
        %v3053 = vadd.f32 0.0, %v3052
        %v3054 = vpop.f32.mrb[0].mxu0
        %3055 = vmatprep.mubr.f32.mxu0 0.0
        %3056 = vmatmul.mubr.f32.gmra.mrb[0].mxu0 %v2191
        %v3057 = vpop.f32.mrb[0].mxu0
        %v3058 = vadd.f32 0.0, %v3057
        %v3059 = vpop.f32.mrb[0].mxu0
        %3060 = vmatprep.mubr.f32.mxu0 0.0
        %3061 = vmatmul.mubr.f32.gmra.mrb[0].mxu0 %v2194
        %v3062 = vpop.f32.mrb[0].mxu0
        %v3063 = vadd.f32 0.0, %v3062
        %v3064 = vpop.f32.mrb[0].mxu0
        %3065 = vdwg.mxu0
        %v3066 = vadd.f32 %v2818, %v2918
        %v3067 = vadd.f32 %v2819, %v2923
        %v3068 = vadd.f32 %v2820, %v2928
        %v3069 = vadd.f32 %v2821, %v2933
        %v3070 = vadd.f32 %v2822, %v2938
        %v3071 = vadd.f32 %v2823, %v2943
        %v3072 = vadd.f32 %v2824, %v2948
        %v3073 = vadd.f32 %v2825, %v2953
        %v3074 = vadd.f32 %v2826, %v2958
        %v3075 = vadd.f32 %v2827, %v2963
        %v3076 = vadd.f32 %v2828, %v2968
        %v3077 = vadd.f32 %v2829, %v2973
        %v3078 = vadd.f32 %v2830, %v2978
        %v3079 = vadd.f32 %v2831, %v2983
        %v3080 = vadd.f32 %v2832, %v2988
        %v3081 = vadd.f32 %v2833, %v2993
        %v3082 = vadd.f32 %v2834, %v2998
        %v3083 = vadd.f32 %v2835, %v3003
        %v3084 = vadd.f32 %v2836, %v3008
        %v3085 = vadd.f32 %v2837, %v3013
        %v3086 = vadd.f32 %v2838, %v3018
        %v3087 = vadd.f32 %v2839, %v3023
        %v3088 = vadd.f32 %v2840, %v3028
        %v3089 = vadd.f32 %v2841, %v3033
        %v3090 = vadd.f32 %v2842, %v3038
        %v3091 = vadd.f32 %v2843, %v3043
        %v3092 = vadd.f32 %v2844, %v3048
        %v3093 = vadd.f32 %v2845, %v3053
        %v3094 = vadd.f32 %v2846, %v3058
        %v3095 = vadd.f32 %v2847, %v3063
        %3096 = vst.msk [vmem:[#allocation2] sm:$0xff] %vm841, %v3066
        %3097 = vst.msk [vmem:[#allocation2 + $0x8] sm:$0xff] %vm841, %v3067
        %3098 = vst.msk [vmem:[#allocation2 + $0x10] sm:$0xff] %vm841, %v3068
        %3099 = vst.msk [vmem:[#allocation2 + $0x18] sm:$0xff] %vm841, %v3069
        %3100 = vst.msk [vmem:[#allocation2 + $0x20] sm:$0xff] %vm841, %v3070
        %3101 = vst.msk [vmem:[#allocation2 + $0x28] sm:$0xff] %vm841, %v3071
        %3102 = vst.msk [vmem:[#allocation2 + $0x30] sm:$0xff] %vm841, %v3072
        %3103 = vst.msk [vmem:[#allocation2 + $0x38] sm:$0xff] %vm841, %v3073
        %3104 = vst.msk [vmem:[#allocation2 + $0x40] sm:$0xff] %vm841, %v3074
        %3105 = vst.msk [vmem:[#allocation2 + $0x48] sm:$0xff] %vm841, %v3075
        %3106 = vst.msk [vmem:[#allocation2 + $0x50] sm:$0xff] %vm841, %v3076
        %3107 = vst.msk [vmem:[#allocation2 + $0x58] sm:$0xff] %vm841, %v3077
        %3108 = vst.msk [vmem:[#allocation2 + $0x60] sm:$0xff] %vm841, %v3078
        %3109 = vst.msk [vmem:[#allocation2 + $0x68] sm:$0xff] %vm841, %v3079
        %3110 = vst.msk [vmem:[#allocation2 + $0x70] sm:$0xff] %vm841, %v3080
        %3111 = vst.msk [vmem:[#allocation2 + $0x78] sm:$0xff] %vm841, %v3081
        %3112 = vst.msk [vmem:[#allocation2 + $0x80] sm:$0xff] %vm841, %v3082
        %3113 = vst.msk [vmem:[#allocation2 + $0x88] sm:$0xff] %vm841, %v3083
        %3114 = vst.msk [vmem:[#allocation2 + $0x90] sm:$0xff] %vm841, %v3084
        %3115 = vst.msk [vmem:[#allocation2 + $0x98] sm:$0xff] %vm841, %v3085
        %3116 = vst.msk [vmem:[#allocation2 + $0xa0] sm:$0xff] %vm841, %v3086
        %3117 = vst.msk [vmem:[#allocation2 + $0xa8] sm:$0xff] %vm841, %v3087
        %3118 = vst.msk [vmem:[#allocation2 + $0xb0] sm:$0xff] %vm841, %v3088
        %3119 = vst.msk [vmem:[#allocation2 + $0xb8] sm:$0xff] %vm841, %v3089
        %3120 = vst.msk [vmem:[#allocation2 + $0xc0] sm:$0xff] %vm841, %v3090
        %3121 = vst.msk [vmem:[#allocation2 + $0xc8] sm:$0xff] %vm841, %v3091
        %3122 = vst.msk [vmem:[#allocation2 + $0xd0] sm:$0xff] %vm841, %v3092
        %3123 = vst.msk [vmem:[#allocation2 + $0xd8] sm:$0xff] %vm841, %v3093
        %3124 = vst.msk [vmem:[#allocation2 + $0xe0] sm:$0xff] %vm841, %v3094
        %3125 = vst.msk [vmem:[#allocation2 + $0xe8] sm:$0xff] %vm841, %v3095
        %v3126 = vld [vmem:[#allocation3] sm:$0xff]
        %v3127 = vld [vmem:[#allocation3 + $0x8] sm:$0xff]
        %v3128 = vld [vmem:[#allocation3 + $0x10] sm:$0xff]
        %v3129 = vld [vmem:[#allocation3 + $0x18] sm:$0xff]
        %v3130 = vld [vmem:[#allocation3 + $0x20] sm:$0xff]
        %v3131 = vld [vmem:[#allocation3 + $0x28] sm:$0xff]
        %v3132 = vld [vmem:[#allocation3 + $0x30] sm:$0xff]
        %v3133 = vld [vmem:[#allocation3 + $0x38] sm:$0xff]
        %v3134 = vld [vmem:[#allocation3 + $0x40] sm:$0xff]
        %v3135 = vld [vmem:[#allocation3 + $0x48] sm:$0xff]
        %v3136 = vld [vmem:[#allocation3 + $0x50] sm:$0xff]
        %v3137 = vld [vmem:[#allocation3 + $0x58] sm:$0xff]
        %v3138 = vld [vmem:[#allocation3 + $0x60] sm:$0xff]
        %v3139 = vld [vmem:[#allocation3 + $0x68] sm:$0xff]
        %v3140 = vld [vmem:[#allocation3 + $0x70] sm:$0xff]
        %v3141 = vld [vmem:[#allocation3 + $0x78] sm:$0xff]
        %v3142 = vld [vmem:[#allocation3 + $0x80] sm:$0xff]
        %v3143 = vld [vmem:[#allocation3 + $0x88] sm:$0xff]
        %v3144 = vld [vmem:[#allocation3 + $0x90] sm:$0xff]
        %v3145 = vld [vmem:[#allocation3 + $0x98] sm:$0xff]
        %v3146 = vld [vmem:[#allocation3 + $0xa0] sm:$0xff]
        %v3147 = vld [vmem:[#allocation3 + $0xa8] sm:$0xff]
        %v3148 = vld [vmem:[#allocation3 + $0xb0] sm:$0xff]
        %v3149 = vld [vmem:[#allocation3 + $0xb8] sm:$0xff]
        %v3150 = vld [vmem:[#allocation3 + $0xc0] sm:$0xff]
        %v3151 = vld [vmem:[#allocation3 + $0xc8] sm:$0xff]
        %v3152 = vld [vmem:[#allocation3 + $0xd0] sm:$0xff]
        %v3153 = vld [vmem:[#allocation3 + $0xd8] sm:$0xff]
        %v3154 = vld [vmem:[#allocation3 + $0xe0] sm:$0xff]
        %v3155 = vld [vmem:[#allocation3 + $0xe8] sm:$0xff]
        %v3157 = vsel %vm1565, %v2817, 0
        %3159 = vmatprep.subr.mxu0 0.0
        %3160 = vmatpush1.msra.mxu0 %v2816
        %3161 = vmatprep.subr.mxu0 0.0
        %3162 = vmatpush1.msra.mxu0 %v3157
        %3163 = vmatprep.subr.mxu0 0.0
        %3164 = vmatpush1.msra.mxu0 0.0
        %3165 = vmatprep.subr.mxu0 0.0
        %3166 = vmatpush1.msra.mxu0 0.0
        %3167 = vmatprep.subr.mxu0 0.0
        %3168 = vmatpush1.msra.mxu0 0.0
        %3169 = vmatprep.subr.mxu0 0.0
        %3170 = vmatpush1.msra.mxu0 0.0
        %3171 = vmatprep.subr.mxu0 0.0
        %3172 = vmatpush1.msra.mxu0 0.0
        %3173 = vmatprep.subr.mxu0 0.0
        %3174 = vmatpush1.msra.mxu0 0.0
        %3175 = vmatprep.subr.mxu0 0.0
        %3176 = vmatpush1.msra.mxu0 0.0
        %3177 = vmatprep.subr.mxu0 0.0
        %3178 = vmatpush1.msra.mxu0 0.0
        %3179 = vmatprep.subr.mxu0 0.0
        %3180 = vmatpush1.msra.mxu0 0.0
        %3181 = vmatprep.subr.mxu0 0.0
        %3182 = vmatpush1.msra.mxu0 0.0
        %3183 = vmatprep.subr.mxu0 0.0
        %3184 = vmatpush1.msra.mxu0 0.0
        %3185 = vmatprep.subr.mxu0 0.0
        %3186 = vmatpush1.msra.mxu0 0.0
        %3187 = vmatprep.subr.mxu0 0.0
        %3188 = vmatpush1.msra.mxu0 0.0
        %3189 = vmatprep.subr.mxu0 0.0
        %3190 = vmatpush1.msra.mxu0 0.0
        %3191 = vmatprep.subr.mxu0 0.0
        %3192 = vmatpush1.msra.mxu0 0.0
        %3193 = vmatprep.subr.mxu0 0.0
        %3194 = vmatpush1.msra.mxu0 0.0
        %3195 = vmatprep.subr.mxu0 0.0
        %3196 = vmatpush1.msra.mxu0 0.0
        %3197 = vmatprep.subr.mxu0 0.0
        %3198 = vmatpush1.msra.mxu0 0.0
        %3199 = vmatprep.subr.mxu0 0.0
        %3200 = vmatpush1.msra.mxu0 0.0
        %3201 = vmatprep.subr.mxu0 0.0
        %3202 = vmatpush1.msra.mxu0 0.0
        %3203 = vmatprep.subr.mxu0 0.0
        %3204 = vmatpush1.msra.mxu0 0.0
        %3205 = vmatprep.subr.mxu0 0.0
        %3206 = vmatpush1.msra.mxu0 0.0
        %3207 = vmatprep.subr.mxu0 0.0
        %3208 = vmatpush1.msra.mxu0 0.0
        %3209 = vmatprep.subr.mxu0 0.0
        %3210 = vmatpush1.msra.mxu0 0.0
        %3211 = vmatprep.subr.mxu0 0.0
        %3212 = vmatpush1.msra.mxu0 0.0
        %3213 = vmatprep.subr.mxu0 0.0
        %3214 = vmatpush1.msra.mxu0 0.0
        %3215 = vmatprep.subr.mxu0 0.0
        %3216 = vmatpush1.msra.mxu0 0.0
        %3217 = vmatprep.subr.mxu0 0.0
        %3218 = vmatpush1.msra.mxu0 0.0
        %3219 = vmatprep.subr.mxu0 0.0
        %3220 = vmatpush1.msra.mxu0 0.0
        %3221 = vmatprep.subr.mxu0 0.0
        %3222 = vmatpush1.msra.mxu0 0.0
        %3223 = vmatprep.mubr.f32.mxu0 0.0
        %3224 = vmatmul.mubr.f32.gmra.mrb[0].mxu0 %v1482
        %v3225 = vpop.f32.mrb[0].mxu0
        %v3226 = vadd.f32 0.0, %v3225
        %v3227 = vpop.f32.mrb[0].mxu0
        %3228 = vmatprep.mubr.f32.mxu0 0.0
        %3229 = vmatmul.mubr.f32.gmra.mrb[0].mxu0 %v1485
        %v3230 = vpop.f32.mrb[0].mxu0
        %v3231 = vadd.f32 0.0, %v3230
        %v3232 = vpop.f32.mrb[0].mxu0
        %3233 = vmatprep.mubr.f32.mxu0 0.0
        %3234 = vmatmul.mubr.f32.gmra.mrb[0].mxu0 %v1488
        %v3235 = vpop.f32.mrb[0].mxu0
        %v3236 = vadd.f32 0.0, %v3235
        %v3237 = vpop.f32.mrb[0].mxu0
        %3238 = vmatprep.mubr.f32.mxu0 0.0
        %3239 = vmatmul.mubr.f32.gmra.mrb[0].mxu0 %v1491
        %v3240 = vpop.f32.mrb[0].mxu0
        %v3241 = vadd.f32 0.0, %v3240
        %v3242 = vpop.f32.mrb[0].mxu0
        %3243 = vmatprep.mubr.f32.mxu0 0.0
        %3244 = vmatmul.mubr.f32.gmra.mrb[0].mxu0 %v1494
        %v3245 = vpop.f32.mrb[0].mxu0
        %v3246 = vadd.f32 0.0, %v3245
        %v3247 = vpop.f32.mrb[0].mxu0
        %3248 = vmatprep.mubr.f32.mxu0 0.0
        %3249 = vmatmul.mubr.f32.gmra.mrb[0].mxu0 %v1497
        %v3250 = vpop.f32.mrb[0].mxu0
        %v3251 = vadd.f32 0.0, %v3250
        %v3252 = vpop.f32.mrb[0].mxu0
        %3253 = vmatprep.mubr.f32.mxu0 0.0
        %3254 = vmatmul.mubr.f32.gmra.mrb[0].mxu0 %v1500
        %v3255 = vpop.f32.mrb[0].mxu0
        %v3256 = vadd.f32 0.0, %v3255
        %v3257 = vpop.f32.mrb[0].mxu0
        %3258 = vmatprep.mubr.f32.mxu0 0.0
        %3259 = vmatmul.mubr.f32.gmra.mrb[0].mxu0 %v1503
        %v3260 = vpop.f32.mrb[0].mxu0
        %v3261 = vadd.f32 0.0, %v3260
        %v3262 = vpop.f32.mrb[0].mxu0
        %3263 = vmatprep.mubr.f32.mxu0 0.0
        %3264 = vmatmul.mubr.f32.gmra.mrb[0].mxu0 %v1506
        %v3265 = vpop.f32.mrb[0].mxu0
        %v3266 = vadd.f32 0.0, %v3265
        %v3267 = vpop.f32.mrb[0].mxu0
        %3268 = vmatprep.mubr.f32.mxu0 0.0
        %3269 = vmatmul.mubr.f32.gmra.mrb[0].mxu0 %v1509
        %v3270 = vpop.f32.mrb[0].mxu0
        %v3271 = vadd.f32 0.0, %v3270
        %v3272 = vpop.f32.mrb[0].mxu0
        %3273 = vmatprep.mubr.f32.mxu0 0.0
        %3274 = vmatmul.mubr.f32.gmra.mrb[0].mxu0 %v1512
        %v3275 = vpop.f32.mrb[0].mxu0
        %v3276 = vadd.f32 0.0, %v3275
        %v3277 = vpop.f32.mrb[0].mxu0
        %3278 = vmatprep.mubr.f32.mxu0 0.0
        %3279 = vmatmul.mubr.f32.gmra.mrb[0].mxu0 %v1515
        %v3280 = vpop.f32.mrb[0].mxu0
        %v3281 = vadd.f32 0.0, %v3280
        %v3282 = vpop.f32.mrb[0].mxu0
        %3283 = vmatprep.mubr.f32.mxu0 0.0
        %3284 = vmatmul.mubr.f32.gmra.mrb[0].mxu0 %v1518
        %v3285 = vpop.f32.mrb[0].mxu0
        %v3286 = vadd.f32 0.0, %v3285
        %v3287 = vpop.f32.mrb[0].mxu0
        %3288 = vmatprep.mubr.f32.mxu0 0.0
        %3289 = vmatmul.mubr.f32.gmra.mrb[0].mxu0 %v1521
        %v3290 = vpop.f32.mrb[0].mxu0
        %v3291 = vadd.f32 0.0, %v3290
        %v3292 = vpop.f32.mrb[0].mxu0
        %3293 = vmatprep.mubr.f32.mxu0 0.0
        %3294 = vmatmul.mubr.f32.gmra.mrb[0].mxu0 %v1524
        %v3295 = vpop.f32.mrb[0].mxu0
        %v3296 = vadd.f32 0.0, %v3295
        %v3297 = vpop.f32.mrb[0].mxu0
        %3298 = vmatprep.mubr.f32.mxu0 0.0
        %3299 = vmatmul.mubr.f32.gmra.mrb[0].mxu0 %v1527
        %v3300 = vpop.f32.mrb[0].mxu0
        %v3301 = vadd.f32 0.0, %v3300
        %v3302 = vpop.f32.mrb[0].mxu0
        %3303 = vmatprep.mubr.f32.mxu0 0.0
        %3304 = vmatmul.mubr.f32.gmra.mrb[0].mxu0 %v1530
        %v3305 = vpop.f32.mrb[0].mxu0
        %v3306 = vadd.f32 0.0, %v3305
        %v3307 = vpop.f32.mrb[0].mxu0
        %3308 = vmatprep.mubr.f32.mxu0 0.0
        %3309 = vmatmul.mubr.f32.gmra.mrb[0].mxu0 %v1533
        %v3310 = vpop.f32.mrb[0].mxu0
        %v3311 = vadd.f32 0.0, %v3310
        %v3312 = vpop.f32.mrb[0].mxu0
        %3313 = vmatprep.mubr.f32.mxu0 0.0
        %3314 = vmatmul.mubr.f32.gmra.mrb[0].mxu0 %v1536
        %v3315 = vpop.f32.mrb[0].mxu0
        %v3316 = vadd.f32 0.0, %v3315
        %v3317 = vpop.f32.mrb[0].mxu0
        %3318 = vmatprep.mubr.f32.mxu0 0.0
        %3319 = vmatmul.mubr.f32.gmra.mrb[0].mxu0 %v1539
        %v3320 = vpop.f32.mrb[0].mxu0
        %v3321 = vadd.f32 0.0, %v3320
        %v3322 = vpop.f32.mrb[0].mxu0
        %3323 = vmatprep.mubr.f32.mxu0 0.0
        %3324 = vmatmul.mubr.f32.gmra.mrb[0].mxu0 %v1542
        %v3325 = vpop.f32.mrb[0].mxu0
        %v3326 = vadd.f32 0.0, %v3325
        %v3327 = vpop.f32.mrb[0].mxu0
        %3328 = vmatprep.mubr.f32.mxu0 0.0
        %3329 = vmatmul.mubr.f32.gmra.mrb[0].mxu0 %v1545
        %v3330 = vpop.f32.mrb[0].mxu0
        %v3331 = vadd.f32 0.0, %v3330
        %v3332 = vpop.f32.mrb[0].mxu0
        %3333 = vmatprep.mubr.f32.mxu0 0.0
        %3334 = vmatmul.mubr.f32.gmra.mrb[0].mxu0 %v1548
        %v3335 = vpop.f32.mrb[0].mxu0
        %v3336 = vadd.f32 0.0, %v3335
        %v3337 = vpop.f32.mrb[0].mxu0
        %3338 = vmatprep.mubr.f32.mxu0 0.0
        %3339 = vmatmul.mubr.f32.gmra.mrb[0].mxu0 %v1551
        %v3340 = vpop.f32.mrb[0].mxu0
        %v3341 = vadd.f32 0.0, %v3340
        %v3342 = vpop.f32.mrb[0].mxu0
        %3343 = vmatprep.mubr.f32.mxu0 0.0
        %3344 = vmatmul.mubr.f32.gmra.mrb[0].mxu0 %v1554
        %v3345 = vpop.f32.mrb[0].mxu0
        %v3346 = vadd.f32 0.0, %v3345
        %v3347 = vpop.f32.mrb[0].mxu0
        %3348 = vmatprep.mubr.f32.mxu0 0.0
        %3349 = vmatmul.mubr.f32.gmra.mrb[0].mxu0 %v1557
        %v3350 = vpop.f32.mrb[0].mxu0
        %v3351 = vadd.f32 0.0, %v3350
        %v3352 = vpop.f32.mrb[0].mxu0
        %3353 = vmatprep.mubr.f32.mxu0 0.0
        %3354 = vmatmul.mubr.f32.gmra.mrb[0].mxu0 %v1560
        %v3355 = vpop.f32.mrb[0].mxu0
        %v3356 = vadd.f32 0.0, %v3355
        %v3357 = vpop.f32.mrb[0].mxu0
        %3358 = vmatprep.mubr.f32.mxu0 0.0
        %3359 = vmatmul.mubr.f32.gmra.mrb[0].mxu0 %v1563
        %v3360 = vpop.f32.mrb[0].mxu0
        %v3361 = vadd.f32 0.0, %v3360
        %v3362 = vpop.f32.mrb[0].mxu0
        %3363 = vmatprep.mubr.f32.mxu0 0.0
        %3364 = vmatmul.mubr.f32.gmra.mrb[0].mxu0 %v2191
        %v3365 = vpop.f32.mrb[0].mxu0
        %v3366 = vadd.f32 0.0, %v3365
        %v3367 = vpop.f32.mrb[0].mxu0
        %3368 = vmatprep.mubr.f32.mxu0 0.0
        %3369 = vmatmul.mubr.f32.gmra.mrb[0].mxu0 %v2194
        %v3370 = vpop.f32.mrb[0].mxu0
        %v3371 = vadd.f32 0.0, %v3370
        %v3372 = vpop.f32.mrb[0].mxu0
        %3373 = vdwg.mxu0
        %v3374 = vadd.f32 %v3126, %v3226
        %v3375 = vadd.f32 %v3127, %v3231
        %v3376 = vadd.f32 %v3128, %v3236
        %v3377 = vadd.f32 %v3129, %v3241
        %v3378 = vadd.f32 %v3130, %v3246
        %v3379 = vadd.f32 %v3131, %v3251
        %v3380 = vadd.f32 %v3132, %v3256
        %v3381 = vadd.f32 %v3133, %v3261
        %v3382 = vadd.f32 %v3134, %v3266
        %v3383 = vadd.f32 %v3135, %v3271
        %v3384 = vadd.f32 %v3136, %v3276
        %v3385 = vadd.f32 %v3137, %v3281
        %v3386 = vadd.f32 %v3138, %v3286
        %v3387 = vadd.f32 %v3139, %v3291
        %v3388 = vadd.f32 %v3140, %v3296
        %v3389 = vadd.f32 %v3141, %v3301
        %v3390 = vadd.f32 %v3142, %v3306
        %v3391 = vadd.f32 %v3143, %v3311
        %v3392 = vadd.f32 %v3144, %v3316
        %v3393 = vadd.f32 %v3145, %v3321
        %v3394 = vadd.f32 %v3146, %v3326
        %v3395 = vadd.f32 %v3147, %v3331
        %v3396 = vadd.f32 %v3148, %v3336
        %v3397 = vadd.f32 %v3149, %v3341
        %v3398 = vadd.f32 %v3150, %v3346
        %v3399 = vadd.f32 %v3151, %v3351
        %v3400 = vadd.f32 %v3152, %v3356
        %v3401 = vadd.f32 %v3153, %v3361
        %v3402 = vadd.f32 %v3154, %v3366
        %v3403 = vadd.f32 %v3155, %v3371
        %3404 = vst.msk [vmem:[#allocation3] sm:$0xff] %vm841, %v3374
        %3405 = vst.msk [vmem:[#allocation3 + $0x8] sm:$0xff] %vm841, %v3375
        %3406 = vst.msk [vmem:[#allocation3 + $0x10] sm:$0xff] %vm841, %v3376
        %3407 = vst.msk [vmem:[#allocation3 + $0x18] sm:$0xff] %vm841, %v3377
        %3408 = vst.msk [vmem:[#allocation3 + $0x20] sm:$0xff] %vm841, %v3378
        %3409 = vst.msk [vmem:[#allocation3 + $0x28] sm:$0xff] %vm841, %v3379
        %3410 = vst.msk [vmem:[#allocation3 + $0x30] sm:$0xff] %vm841, %v3380
        %3411 = vst.msk [vmem:[#allocation3 + $0x38] sm:$0xff] %vm841, %v3381
        %3412 = vst.msk [vmem:[#allocation3 + $0x40] sm:$0xff] %vm841, %v3382
        %3413 = vst.msk [vmem:[#allocation3 + $0x48] sm:$0xff] %vm841, %v3383
        %3414 = vst.msk [vmem:[#allocation3 + $0x50] sm:$0xff] %vm841, %v3384
        %3415 = vst.msk [vmem:[#allocation3 + $0x58] sm:$0xff] %vm841, %v3385
        %3416 = vst.msk [vmem:[#allocation3 + $0x60] sm:$0xff] %vm841, %v3386
        %3417 = vst.msk [vmem:[#allocation3 + $0x68] sm:$0xff] %vm841, %v3387
        %3418 = vst.msk [vmem:[#allocation3 + $0x70] sm:$0xff] %vm841, %v3388
        %3419 = vst.msk [vmem:[#allocation3 + $0x78] sm:$0xff] %vm841, %v3389
        %3420 = vst.msk [vmem:[#allocation3 + $0x80] sm:$0xff] %vm841, %v3390
        %3421 = vst.msk [vmem:[#allocation3 + $0x88] sm:$0xff] %vm841, %v3391
        %3422 = vst.msk [vmem:[#allocation3 + $0x90] sm:$0xff] %vm841, %v3392
        %3423 = vst.msk [vmem:[#allocation3 + $0x98] sm:$0xff] %vm841, %v3393
        %3424 = vst.msk [vmem:[#allocation3 + $0xa0] sm:$0xff] %vm841, %v3394
        %3425 = vst.msk [vmem:[#allocation3 + $0xa8] sm:$0xff] %vm841, %v3395
        %3426 = vst.msk [vmem:[#allocation3 + $0xb0] sm:$0xff] %vm841, %v3396
        %3427 = vst.msk [vmem:[#allocation3 + $0xb8] sm:$0xff] %vm841, %v3397
        %3428 = vst.msk [vmem:[#allocation3 + $0xc0] sm:$0xff] %vm841, %v3398
        %3429 = vst.msk [vmem:[#allocation3 + $0xc8] sm:$0xff] %vm841, %v3399
        %3430 = vst.msk [vmem:[#allocation3 + $0xd0] sm:$0xff] %vm841, %v3400
        %3431 = vst.msk [vmem:[#allocation3 + $0xd8] sm:$0xff] %vm841, %v3401
        %3432 = vst.msk [vmem:[#allocation3 + $0xe0] sm:$0xff] %vm841, %v3402
        %3433 = vst.msk [vmem:[#allocation3 + $0xe8] sm:$0xff] %vm841, %v3403
        %p3434 = scmp.ge.s32.totalorder %s26, 0
        %p3435 = scmp.lt.s32.totalorder %s26, 8
        %p3436 = pnand %p3434, %p3435
        %p3437 = pneg %p3436
        %p3438 = scmp.gt.s32.totalorder %s26, 0
        %s3439 = scalar_select %p3438, %s26, 0
        %p3440 = scmp.lt.s32.totalorder %s3439, 7
        %s3441 = scalar_select %p3440, %s3439, 7
        %s3442 = scalar_select %p3437, 1.0, 0.0
        %s3443 = smul.u32 %s3441, 256
        %s3444 = scalar_lea.vmem %s201, %s3443 [#allocation5]
        %v3445 = vld [vmem:[%s3444] sm:$0xff]
        %v3446 = vld [vmem:[%s3444 + $0x8] sm:$0xff]
        %v3447 = vld [vmem:[%s3444 + $0x10] sm:$0xff]
        %v3448 = vld [vmem:[%s3444 + $0x18] sm:$0xff]
        %v3449 = vld [vmem:[%s3444 + $0x20] sm:$0xff]
        %v3450 = vld [vmem:[%s3444 + $0x28] sm:$0xff]
        %v3451 = vld [vmem:[%s3444 + $0x30] sm:$0xff]
        %v3452 = vld [vmem:[%s3444 + $0x38] sm:$0xff]
        %v3453 = vld [vmem:[%s3444 + $0x40] sm:$0xff]
        %v3454 = vld [vmem:[%s3444 + $0x48] sm:$0xff]
        %v3455 = vld [vmem:[%s3444 + $0x50] sm:$0xff]
        %v3456 = vld [vmem:[%s3444 + $0x58] sm:$0xff]
        %v3457 = vld [vmem:[%s3444 + $0x60] sm:$0xff]
        %v3458 = vld [vmem:[%s3444 + $0x68] sm:$0xff]
        %v3459 = vld [vmem:[%s3444 + $0x70] sm:$0xff]
        %v3460 = vld [vmem:[%s3444 + $0x78] sm:$0xff]
        %v3461 = vld [vmem:[%s3444 + $0x80] sm:$0xff]
        %v3462 = vld [vmem:[%s3444 + $0x88] sm:$0xff]
        %v3463 = vld [vmem:[%s3444 + $0x90] sm:$0xff]
        %v3464 = vld [vmem:[%s3444 + $0x98] sm:$0xff]
        %v3465 = vld [vmem:[%s3444 + $0xa0] sm:$0xff]
        %v3466 = vld [vmem:[%s3444 + $0xa8] sm:$0xff]
        %v3467 = vld [vmem:[%s3444 + $0xb0] sm:$0xff]
        %v3468 = vld [vmem:[%s3444 + $0xb8] sm:$0xff]
        %v3469 = vld [vmem:[%s3444 + $0xc0] sm:$0xff]
        %v3470 = vld [vmem:[%s3444 + $0xc8] sm:$0xff]
        %v3471 = vld [vmem:[%s3444 + $0xd0] sm:$0xff]
        %v3472 = vld [vmem:[%s3444 + $0xd8] sm:$0xff]
        %v3473 = vld [vmem:[%s3444 + $0xe0] sm:$0xff]
        %v3474 = vld [vmem:[%s3444 + $0xe8] sm:$0xff]
        %v3475 = vld [vmem:[%s3444 + $0xf0] sm:$0xff]
        %v3476 = vld [vmem:[%s3444 + $0xf8] sm:$0xff]
        %v3477 = vstv %s3442
        %v3478 = vmul.f32 %v3445, %v3477
        %v3479 = vmul.f32 %v3446, %v3477
        %v3480 = vmul.f32 %v3447, %v3477
        %v3481 = vmul.f32 %v3448, %v3477
        %v3482 = vmul.f32 %v3449, %v3477
        %v3483 = vmul.f32 %v3450, %v3477
        %v3484 = vmul.f32 %v3451, %v3477
        %v3485 = vmul.f32 %v3452, %v3477
        %v3486 = vmul.f32 %v3453, %v3477
        %v3487 = vmul.f32 %v3454, %v3477
        %v3488 = vmul.f32 %v3455, %v3477
        %v3489 = vmul.f32 %v3456, %v3477
        %v3490 = vmul.f32 %v3457, %v3477
        %v3491 = vmul.f32 %v3458, %v3477
        %v3492 = vmul.f32 %v3459, %v3477
        %v3493 = vmul.f32 %v3460, %v3477
        %v3494 = vmul.f32 %v3461, %v3477
        %v3495 = vmul.f32 %v3462, %v3477
        %v3496 = vmul.f32 %v3463, %v3477
        %v3497 = vmul.f32 %v3464, %v3477
        %v3498 = vmul.f32 %v3465, %v3477
        %v3499 = vmul.f32 %v3466, %v3477
        %v3500 = vmul.f32 %v3467, %v3477
        %v3501 = vmul.f32 %v3468, %v3477
        %v3502 = vmul.f32 %v3469, %v3477
        %v3503 = vmul.f32 %v3470, %v3477
        %v3504 = vmul.f32 %v3471, %v3477
        %v3505 = vmul.f32 %v3472, %v3477
        %v3506 = vmul.f32 %v3473, %v3477
        %v3507 = vmul.f32 %v3474, %v3477
        %v3508 = vmul.f32 %v3475, %v3477
        %v3509 = vmul.f32 %v3476, %v3477
        %3542 = vrot.lane.b32.xlu0 %v3478, 4
        %v3543 = vpop.permute.xlu0 %3542
        %3544 = vrot.lane.b32.xlu0 %v3479, 4
        %v3545 = vpop.permute.xlu0 %3544
        %3546 = vrot.lane.b32.xlu0 %v3480, 4
        %v3547 = vpop.permute.xlu0 %3546
        %3548 = vrot.lane.b32.xlu0 %v3481, 4
        %v3549 = vpop.permute.xlu0 %3548
        %3550 = vrot.lane.b32.xlu0 %v3482, 4
        %v3551 = vpop.permute.xlu0 %3550
        %3552 = vrot.lane.b32.xlu0 %v3483, 4
        %v3553 = vpop.permute.xlu0 %3552
        %3554 = vrot.lane.b32.xlu0 %v3484, 4
        %v3555 = vpop.permute.xlu0 %3554
        %3556 = vrot.lane.b32.xlu0 %v3485, 4
        %v3557 = vpop.permute.xlu0 %3556
        %3558 = vrot.lane.b32.xlu0 %v3486, 4
        %v3559 = vpop.permute.xlu0 %3558
        %3560 = vrot.lane.b32.xlu0 %v3487, 4
        %v3561 = vpop.permute.xlu0 %3560
        %3562 = vrot.lane.b32.xlu0 %v3488, 4
        %v3563 = vpop.permute.xlu0 %3562
        %3564 = vrot.lane.b32.xlu0 %v3489, 4
        %v3565 = vpop.permute.xlu0 %3564
        %3566 = vrot.lane.b32.xlu0 %v3490, 4
        %v3567 = vpop.permute.xlu0 %3566
        %3568 = vrot.lane.b32.xlu0 %v3491, 4
        %v3569 = vpop.permute.xlu0 %3568
        %3570 = vrot.lane.b32.xlu0 %v3492, 4
        %v3571 = vpop.permute.xlu0 %3570
        %3572 = vrot.lane.b32.xlu0 %v3493, 4
        %v3573 = vpop.permute.xlu0 %3572
        %3574 = vrot.lane.b32.xlu0 %v3494, 4
        %v3575 = vpop.permute.xlu0 %3574
        %3576 = vrot.lane.b32.xlu0 %v3495, 4
        %v3577 = vpop.permute.xlu0 %3576
        %3578 = vrot.lane.b32.xlu0 %v3496, 4
        %v3579 = vpop.permute.xlu0 %3578
        %3580 = vrot.lane.b32.xlu0 %v3497, 4
        %v3581 = vpop.permute.xlu0 %3580
        %3582 = vrot.lane.b32.xlu0 %v3498, 4
        %v3583 = vpop.permute.xlu0 %3582
        %3584 = vrot.lane.b32.xlu0 %v3499, 4
        %v3585 = vpop.permute.xlu0 %3584
        %3586 = vrot.lane.b32.xlu0 %v3500, 4
        %v3587 = vpop.permute.xlu0 %3586
        %3588 = vrot.lane.b32.xlu0 %v3501, 4
        %v3589 = vpop.permute.xlu0 %3588
        %3590 = vrot.lane.b32.xlu0 %v3502, 4
        %v3591 = vpop.permute.xlu0 %3590
        %3592 = vrot.lane.b32.xlu0 %v3503, 4
        %v3593 = vpop.permute.xlu0 %3592
        %3594 = vrot.lane.b32.xlu0 %v3504, 4
        %v3595 = vpop.permute.xlu0 %3594
        %3596 = vrot.lane.b32.xlu0 %v3505, 4
        %v3597 = vpop.permute.xlu0 %3596
        %3598 = vrot.lane.b32.xlu0 %v3506, 4
        %v3599 = vpop.permute.xlu0 %3598
        %3600 = vrot.lane.b32.xlu0 %v3507, 4
        %v3601 = vpop.permute.xlu0 %3600
        %3602 = vrot.lane.b32.xlu0 %v3508, 4
        %v3603 = vpop.permute.xlu0 %3602
        %3604 = vrot.lane.b32.xlu0 %v3509, 4
        %v3605 = vpop.permute.xlu0 %3604
        %3638 = vst.msk [vmem:[#allocation4] sm:$0xff] %vm1115, %v3543
        %3639 = vst.msk [vmem:[#allocation4 + $0x8] sm:$0xff] %vm1115, %v3545
        %3640 = vst.msk [vmem:[#allocation4 + $0x10] sm:$0xff] %vm1115, %v3547
        %3641 = vst.msk [vmem:[#allocation4 + $0x18] sm:$0xff] %vm1115, %v3549
        %3642 = vst.msk [vmem:[#allocation4 + $0x20] sm:$0xff] %vm1115, %v3551
        %3643 = vst.msk [vmem:[#allocation4 + $0x28] sm:$0xff] %vm1115, %v3553
        %3644 = vst.msk [vmem:[#allocation4 + $0x30] sm:$0xff] %vm1115, %v3555
        %3645 = vst.msk [vmem:[#allocation4 + $0x38] sm:$0xff] %vm1115, %v3557
        %3646 = vst.msk [vmem:[#allocation4 + $0x40] sm:$0xff] %vm1115, %v3559
        %3647 = vst.msk [vmem:[#allocation4 + $0x48] sm:$0xff] %vm1115, %v3561
        %3648 = vst.msk [vmem:[#allocation4 + $0x50] sm:$0xff] %vm1115, %v3563
        %3649 = vst.msk [vmem:[#allocation4 + $0x58] sm:$0xff] %vm1115, %v3565
        %3650 = vst.msk [vmem:[#allocation4 + $0x60] sm:$0xff] %vm1115, %v3567
        %3651 = vst.msk [vmem:[#allocation4 + $0x68] sm:$0xff] %vm1115, %v3569
        %3652 = vst.msk [vmem:[#allocation4 + $0x70] sm:$0xff] %vm1115, %v3571
        %3653 = vst.msk [vmem:[#allocation4 + $0x78] sm:$0xff] %vm1115, %v3573
        %3654 = vst.msk [vmem:[#allocation4 + $0x80] sm:$0xff] %vm1115, %v3575
        %3655 = vst.msk [vmem:[#allocation4 + $0x88] sm:$0xff] %vm1115, %v3577
        %3656 = vst.msk [vmem:[#allocation4 + $0x90] sm:$0xff] %vm1115, %v3579
        %3657 = vst.msk [vmem:[#allocation4 + $0x98] sm:$0xff] %vm1115, %v3581
        %3658 = vst.msk [vmem:[#allocation4 + $0xa0] sm:$0xff] %vm1115, %v3583
        %3659 = vst.msk [vmem:[#allocation4 + $0xa8] sm:$0xff] %vm1115, %v3585
        %3660 = vst.msk [vmem:[#allocation4 + $0xb0] sm:$0xff] %vm1115, %v3587
        %3661 = vst.msk [vmem:[#allocation4 + $0xb8] sm:$0xff] %vm1115, %v3589
        %3662 = vst.msk [vmem:[#allocation4 + $0xc0] sm:$0xff] %vm1115, %v3591
        %3663 = vst.msk [vmem:[#allocation4 + $0xc8] sm:$0xff] %vm1115, %v3593
        %3664 = vst.msk [vmem:[#allocation4 + $0xd0] sm:$0xff] %vm1115, %v3595
        %3665 = vst.msk [vmem:[#allocation4 + $0xd8] sm:$0xff] %vm1115, %v3597
        %3666 = vst.msk [vmem:[#allocation4 + $0xe0] sm:$0xff] %vm1115, %v3599
        %3667 = vst.msk [vmem:[#allocation4 + $0xe8] sm:$0xff] %vm1115, %v3601
        %3668 = vst.msk [vmem:[#allocation4 + $0xf0] sm:$0xff] %vm1115, %v3603
        %3669 = vst.msk [vmem:[#allocation4 + $0xf8] sm:$0xff] %vm1115, %v3605
        %v3670 = vmul.f32 %v3478, %v713
        %v3671 = vmul.f32 %v3479, %v714
        %v3672 = vmul.f32 %v3480, %v715
        %v3673 = vmul.f32 %v3481, %v716
        %v3674 = vmul.f32 %v3482, %v717
        %v3675 = vmul.f32 %v3483, %v718
        %v3676 = vmul.f32 %v3484, %v719
        %v3677 = vmul.f32 %v3485, %v720
        %v3678 = vmul.f32 %v3486, %v721
        %v3679 = vmul.f32 %v3487, %v722
        %v3680 = vmul.f32 %v3488, %v723
        %v3681 = vmul.f32 %v3489, %v724
        %v3682 = vmul.f32 %v3490, %v725
        %v3683 = vmul.f32 %v3491, %v726
        %v3684 = vmul.f32 %v3492, %v727
        %v3685 = vmul.f32 %v3493, %v728
        %v3686 = vmul.f32 %v3494, %v729
        %v3687 = vmul.f32 %v3495, %v730
        %v3688 = vmul.f32 %v3496, %v731
        %v3689 = vmul.f32 %v3497, %v732
        %v3690 = vmul.f32 %v3498, %v733
        %v3691 = vmul.f32 %v3499, %v734
        %v3692 = vmul.f32 %v3500, %v735
        %v3693 = vmul.f32 %v3501, %v736
        %v3694 = vmul.f32 %v3502, %v737
        %v3695 = vmul.f32 %v3503, %v738
        %v3696 = vmul.f32 %v3504, %v739
        %v3697 = vmul.f32 %v3505, %v740
        %v3698 = vmul.f32 %v3506, %v741
        %v3699 = vmul.f32 %v3507, %v742
        %v3700 = vmul.f32 %v3508, %v743
        %v3701 = vmul.f32 %v3509, %v744
        %3702 = vst.msk [vmem:[#allocation4 + $0x1] sm:$0xff] %vm1180, %v3670
        %3703 = vst.msk [vmem:[#allocation4 + $0x9] sm:$0xff] %vm1180, %v3671
        %3704 = vst.msk [vmem:[#allocation4 + $0x11] sm:$0xff] %vm1180, %v3672
        %3705 = vst.msk [vmem:[#allocation4 + $0x19] sm:$0xff] %vm1180, %v3673
        %3706 = vst.msk [vmem:[#allocation4 + $0x21] sm:$0xff] %vm1180, %v3674
        %3707 = vst.msk [vmem:[#allocation4 + $0x29] sm:$0xff] %vm1180, %v3675
        %3708 = vst.msk [vmem:[#allocation4 + $0x31] sm:$0xff] %vm1180, %v3676
        %3709 = vst.msk [vmem:[#allocation4 + $0x39] sm:$0xff] %vm1180, %v3677
        %3710 = vst.msk [vmem:[#allocation4 + $0x41] sm:$0xff] %vm1180, %v3678
        %3711 = vst.msk [vmem:[#allocation4 + $0x49] sm:$0xff] %vm1180, %v3679
        %3712 = vst.msk [vmem:[#allocation4 + $0x51] sm:$0xff] %vm1180, %v3680
        %3713 = vst.msk [vmem:[#allocation4 + $0x59] sm:$0xff] %vm1180, %v3681
        %3714 = vst.msk [vmem:[#allocation4 + $0x61] sm:$0xff] %vm1180, %v3682
        %3715 = vst.msk [vmem:[#allocation4 + $0x69] sm:$0xff] %vm1180, %v3683
        %3716 = vst.msk [vmem:[#allocation4 + $0x71] sm:$0xff] %vm1180, %v3684
        %3717 = vst.msk [vmem:[#allocation4 + $0x79] sm:$0xff] %vm1180, %v3685
        %3718 = vst.msk [vmem:[#allocation4 + $0x81] sm:$0xff] %vm1180, %v3686
        %3719 = vst.msk [vmem:[#allocation4 + $0x89] sm:$0xff] %vm1180, %v3687
        %3720 = vst.msk [vmem:[#allocation4 + $0x91] sm:$0xff] %vm1180, %v3688
        %3721 = vst.msk [vmem:[#allocation4 + $0x99] sm:$0xff] %vm1180, %v3689
        %3722 = vst.msk [vmem:[#allocation4 + $0xa1] sm:$0xff] %vm1180, %v3690
        %3723 = vst.msk [vmem:[#allocation4 + $0xa9] sm:$0xff] %vm1180, %v3691
        %3724 = vst.msk [vmem:[#allocation4 + $0xb1] sm:$0xff] %vm1180, %v3692
        %3725 = vst.msk [vmem:[#allocation4 + $0xb9] sm:$0xff] %vm1180, %v3693
        %3726 = vst.msk [vmem:[#allocation4 + $0xc1] sm:$0xff] %vm1180, %v3694
        %3727 = vst.msk [vmem:[#allocation4 + $0xc9] sm:$0xff] %vm1180, %v3695
        %3728 = vst.msk [vmem:[#allocation4 + $0xd1] sm:$0xff] %vm1180, %v3696
        %3729 = vst.msk [vmem:[#allocation4 + $0xd9] sm:$0xff] %vm1180, %v3697
        %3730 = vst.msk [vmem:[#allocation4 + $0xe1] sm:$0xff] %vm1180, %v3698
        %3731 = vst.msk [vmem:[#allocation4 + $0xe9] sm:$0xff] %vm1180, %v3699
        %3732 = vst.msk [vmem:[#allocation4 + $0xf1] sm:$0xff] %vm1180, %v3700
        %3733 = vst.msk [vmem:[#allocation4 + $0xf9] sm:$0x7f] %vm1212, %v3701
        %v3734 = vmul.f32 %v3478, %v809
        %v3735 = vmul.f32 %v3479, %v810
        %v3736 = vmul.f32 %v3480, %v811
        %v3737 = vmul.f32 %v3481, %v812
        %v3738 = vmul.f32 %v3482, %v813
        %v3739 = vmul.f32 %v3483, %v814
        %v3740 = vmul.f32 %v3484, %v815
        %v3741 = vmul.f32 %v3485, %v816
        %v3742 = vmul.f32 %v3486, %v817
        %v3743 = vmul.f32 %v3487, %v818
        %v3744 = vmul.f32 %v3488, %v819
        %v3745 = vmul.f32 %v3489, %v820
        %v3746 = vmul.f32 %v3490, %v821
        %v3747 = vmul.f32 %v3491, %v822
        %v3748 = vmul.f32 %v3492, %v823
        %v3749 = vmul.f32 %v3493, %v824
        %v3750 = vmul.f32 %v3494, %v825
        %v3751 = vmul.f32 %v3495, %v826
        %v3752 = vmul.f32 %v3496, %v827
        %v3753 = vmul.f32 %v3497, %v828
        %v3754 = vmul.f32 %v3498, %v829
        %v3755 = vmul.f32 %v3499, %v830
        %v3756 = vmul.f32 %v3500, %v831
        %v3757 = vmul.f32 %v3501, %v832
        %v3758 = vmul.f32 %v3502, %v833
        %v3759 = vmul.f32 %v3503, %v834
        %v3760 = vmul.f32 %v3504, %v835
        %v3761 = vmul.f32 %v3505, %v836
        %v3762 = vmul.f32 %v3506, %v837
        %v3763 = vmul.f32 %v3507, %v838
        %v3764 = vmul.f32 %v3508, %v839
        %v3765 = vmul.f32 %v3509, %v840
        %3798 = vrot.lane.b32.xlu0 %v3734, 8
        %v3799 = vpop.permute.xlu0 %3798
        %3800 = vrot.lane.b32.xlu0 %v3735, 8
        %v3801 = vpop.permute.xlu0 %3800
        %3802 = vrot.lane.b32.xlu0 %v3736, 8
        %v3803 = vpop.permute.xlu0 %3802
        %3804 = vrot.lane.b32.xlu0 %v3737, 8
        %v3805 = vpop.permute.xlu0 %3804
        %3806 = vrot.lane.b32.xlu0 %v3738, 8
        %v3807 = vpop.permute.xlu0 %3806
        %3808 = vrot.lane.b32.xlu0 %v3739, 8
        %v3809 = vpop.permute.xlu0 %3808
        %3810 = vrot.lane.b32.xlu0 %v3740, 8
        %v3811 = vpop.permute.xlu0 %3810
        %3812 = vrot.lane.b32.xlu0 %v3741, 8
        %v3813 = vpop.permute.xlu0 %3812
        %3814 = vrot.lane.b32.xlu0 %v3742, 8
        %v3815 = vpop.permute.xlu0 %3814
        %3816 = vrot.lane.b32.xlu0 %v3743, 8
        %v3817 = vpop.permute.xlu0 %3816
        %3818 = vrot.lane.b32.xlu0 %v3744, 8
        %v3819 = vpop.permute.xlu0 %3818
        %3820 = vrot.lane.b32.xlu0 %v3745, 8
        %v3821 = vpop.permute.xlu0 %3820
        %3822 = vrot.lane.b32.xlu0 %v3746, 8
        %v3823 = vpop.permute.xlu0 %3822
        %3824 = vrot.lane.b32.xlu0 %v3747, 8
        %v3825 = vpop.permute.xlu0 %3824
        %3826 = vrot.lane.b32.xlu0 %v3748, 8
        %v3827 = vpop.permute.xlu0 %3826
        %3828 = vrot.lane.b32.xlu0 %v3749, 8
        %v3829 = vpop.permute.xlu0 %3828
        %3830 = vrot.lane.b32.xlu0 %v3750, 8
        %v3831 = vpop.permute.xlu0 %3830
        %3832 = vrot.lane.b32.xlu0 %v3751, 8
        %v3833 = vpop.permute.xlu0 %3832
        %3834 = vrot.lane.b32.xlu0 %v3752, 8
        %v3835 = vpop.permute.xlu0 %3834
        %3836 = vrot.lane.b32.xlu0 %v3753, 8
        %v3837 = vpop.permute.xlu0 %3836
        %3838 = vrot.lane.b32.xlu0 %v3754, 8
        %v3839 = vpop.permute.xlu0 %3838
        %3840 = vrot.lane.b32.xlu0 %v3755, 8
        %v3841 = vpop.permute.xlu0 %3840
        %3842 = vrot.lane.b32.xlu0 %v3756, 8
        %v3843 = vpop.permute.xlu0 %3842
        %3844 = vrot.lane.b32.xlu0 %v3757, 8
        %v3845 = vpop.permute.xlu0 %3844
        %3846 = vrot.lane.b32.xlu0 %v3758, 8
        %v3847 = vpop.permute.xlu0 %3846
        %3848 = vrot.lane.b32.xlu0 %v3759, 8
        %v3849 = vpop.permute.xlu0 %3848
        %3850 = vrot.lane.b32.xlu0 %v3760, 8
        %v3851 = vpop.permute.xlu0 %3850
        %3852 = vrot.lane.b32.xlu0 %v3761, 8
        %v3853 = vpop.permute.xlu0 %3852
        %3854 = vrot.lane.b32.xlu0 %v3762, 8
        %v3855 = vpop.permute.xlu0 %3854
        %3856 = vrot.lane.b32.xlu0 %v3763, 8
        %v3857 = vpop.permute.xlu0 %3856
        %3858 = vrot.lane.b32.xlu0 %v3764, 8
        %v3859 = vpop.permute.xlu0 %3858
        %3860 = vrot.lane.b32.xlu0 %v3765, 8
        %v3861 = vpop.permute.xlu0 %3860
        %3894 = vst.msk [vmem:[#allocation4 - $0x1] sm:$0xfe] %vm1374, %v3799
        %3895 = vst.msk [vmem:[#allocation4 + $0x7] sm:$0xff] %vm1376, %v3801
        %3896 = vst.msk [vmem:[#allocation4 + $0xf] sm:$0xff] %vm1376, %v3803
        %3897 = vst.msk [vmem:[#allocation4 + $0x17] sm:$0xff] %vm1376, %v3805
        %3898 = vst.msk [vmem:[#allocation4 + $0x1f] sm:$0xff] %vm1376, %v3807
        %3899 = vst.msk [vmem:[#allocation4 + $0x27] sm:$0xff] %vm1376, %v3809
        %3900 = vst.msk [vmem:[#allocation4 + $0x2f] sm:$0xff] %vm1376, %v3811
        %3901 = vst.msk [vmem:[#allocation4 + $0x37] sm:$0xff] %vm1376, %v3813
        %3902 = vst.msk [vmem:[#allocation4 + $0x3f] sm:$0xff] %vm1376, %v3815
        %3903 = vst.msk [vmem:[#allocation4 + $0x47] sm:$0xff] %vm1376, %v3817
        %3904 = vst.msk [vmem:[#allocation4 + $0x4f] sm:$0xff] %vm1376, %v3819
        %3905 = vst.msk [vmem:[#allocation4 + $0x57] sm:$0xff] %vm1376, %v3821
        %3906 = vst.msk [vmem:[#allocation4 + $0x5f] sm:$0xff] %vm1376, %v3823
        %3907 = vst.msk [vmem:[#allocation4 + $0x67] sm:$0xff] %vm1376, %v3825
        %3908 = vst.msk [vmem:[#allocation4 + $0x6f] sm:$0xff] %vm1376, %v3827
        %3909 = vst.msk [vmem:[#allocation4 + $0x77] sm:$0xff] %vm1376, %v3829
        %3910 = vst.msk [vmem:[#allocation4 + $0x7f] sm:$0xff] %vm1376, %v3831
        %3911 = vst.msk [vmem:[#allocation4 + $0x87] sm:$0xff] %vm1376, %v3833
        %3912 = vst.msk [vmem:[#allocation4 + $0x8f] sm:$0xff] %vm1376, %v3835
        %3913 = vst.msk [vmem:[#allocation4 + $0x97] sm:$0xff] %vm1376, %v3837
        %3914 = vst.msk [vmem:[#allocation4 + $0x9f] sm:$0xff] %vm1376, %v3839
        %3915 = vst.msk [vmem:[#allocation4 + $0xa7] sm:$0xff] %vm1376, %v3841
        %3916 = vst.msk [vmem:[#allocation4 + $0xaf] sm:$0xff] %vm1376, %v3843
        %3917 = vst.msk [vmem:[#allocation4 + $0xb7] sm:$0xff] %vm1376, %v3845
        %3918 = vst.msk [vmem:[#allocation4 + $0xbf] sm:$0xff] %vm1376, %v3847
        %3919 = vst.msk [vmem:[#allocation4 + $0xc7] sm:$0xff] %vm1376, %v3849
        %3920 = vst.msk [vmem:[#allocation4 + $0xcf] sm:$0xff] %vm1376, %v3851
        %3921 = vst.msk [vmem:[#allocation4 + $0xd7] sm:$0xff] %vm1376, %v3853
        %3922 = vst.msk [vmem:[#allocation4 + $0xdf] sm:$0xff] %vm1376, %v3855
        %3923 = vst.msk [vmem:[#allocation4 + $0xe7] sm:$0xff] %vm1376, %v3857
        %3924 = vst.msk [vmem:[#allocation4 + $0xef] sm:$0xff] %vm1376, %v3859
        %3925 = vst.msk [vmem:[#allocation4 + $0xf7] sm:$0xff] %vm1376, %v3861
        %v3926 = vld [vmem:[#allocation4] sm:$0xff]
        %v3927 = vld [vmem:[#allocation4 + $0x8] sm:$0xff]
        %v3928 = vld [vmem:[#allocation4 + $0x10] sm:$0xff]
        %v3929 = vld [vmem:[#allocation4 + $0x18] sm:$0xff]
        %v3930 = vld [vmem:[#allocation4 + $0x20] sm:$0xff]
        %v3931 = vld [vmem:[#allocation4 + $0x28] sm:$0xff]
        %v3932 = vld [vmem:[#allocation4 + $0x30] sm:$0xff]
        %v3933 = vld [vmem:[#allocation4 + $0x38] sm:$0xff]
        %v3934 = vld [vmem:[#allocation4 + $0x40] sm:$0xff]
        %v3935 = vld [vmem:[#allocation4 + $0x48] sm:$0xff]
        %v3936 = vld [vmem:[#allocation4 + $0x50] sm:$0xff]
        %v3937 = vld [vmem:[#allocation4 + $0x58] sm:$0xff]
        %v3938 = vld [vmem:[#allocation4 + $0x60] sm:$0xff]
        %v3939 = vld [vmem:[#allocation4 + $0x68] sm:$0xff]
        %v3940 = vld [vmem:[#allocation4 + $0x70] sm:$0xff]
        %v3941 = vld [vmem:[#allocation4 + $0x78] sm:$0xff]
        %v3942 = vld [vmem:[#allocation4 + $0x80] sm:$0xff]
        %v3943 = vld [vmem:[#allocation4 + $0x88] sm:$0xff]
        %v3944 = vld [vmem:[#allocation4 + $0x90] sm:$0xff]
        %v3945 = vld [vmem:[#allocation4 + $0x98] sm:$0xff]
        %v3946 = vld [vmem:[#allocation4 + $0xa0] sm:$0xff]
        %v3947 = vld [vmem:[#allocation4 + $0xa8] sm:$0xff]
        %v3948 = vld [vmem:[#allocation4 + $0xb0] sm:$0xff]
        %v3949 = vld [vmem:[#allocation4 + $0xb8] sm:$0xff]
        %v3950 = vld [vmem:[#allocation4 + $0xc0] sm:$0xff]
        %v3951 = vld [vmem:[#allocation4 + $0xc8] sm:$0xff]
        %v3952 = vld [vmem:[#allocation4 + $0xd0] sm:$0xff]
        %v3953 = vld [vmem:[#allocation4 + $0xd8] sm:$0xff]
        %v3954 = vld [vmem:[#allocation4 + $0xe0] sm:$0xff]
        %v3955 = vld [vmem:[#allocation4 + $0xe8] sm:$0xff]
        %v3956 = vld [vmem:[#allocation4 + $0xf0] sm:$0xff]
        %v3957 = vld [vmem:[#allocation4 + $0xf8] sm:$0xff]
        %s3958 = scalar_lea.vmem [#allocation8], 48
        %v3959 = vld [vmem:[%s3958] sm:$0xff]
        %v3960 = vld [vmem:[%s3958 + $0x8] sm:$0xf]
        %s3961 = scalar_lea.vmem [#allocation10], 48
        %v3962 = vld [vmem:[%s3961] sm:$0xff]
        %v3963 = vld [vmem:[%s3961 + $0x8] sm:$0xf]
        %v3964 = vld [vmem:[#allocation2 + $0x10] sm:$0xff]
        %v3965 = vld [vmem:[#allocation2 + $0x18] sm:$0xff]
        %v3966 = vld [vmem:[#allocation2 + $0x20] sm:$0xff]
        %v3967 = vld [vmem:[#allocation2 + $0x28] sm:$0xff]
        %v3968 = vld [vmem:[#allocation2 + $0x30] sm:$0xff]
        %v3969 = vld [vmem:[#allocation2 + $0x38] sm:$0xff]
        %v3970 = vld [vmem:[#allocation2 + $0x40] sm:$0xff]
        %v3971 = vld [vmem:[#allocation2 + $0x48] sm:$0xff]
        %v3972 = vld [vmem:[#allocation2 + $0x50] sm:$0xff]
        %v3973 = vld [vmem:[#allocation2 + $0x58] sm:$0xff]
        %v3974 = vld [vmem:[#allocation2 + $0x60] sm:$0xff]
        %v3975 = vld [vmem:[#allocation2 + $0x68] sm:$0xff]
        %v3976 = vld [vmem:[#allocation2 + $0x70] sm:$0xff]
        %v3977 = vld [vmem:[#allocation2 + $0x78] sm:$0xff]
        %v3978 = vld [vmem:[#allocation2 + $0x80] sm:$0xff]
        %v3979 = vld [vmem:[#allocation2 + $0x88] sm:$0xff]
        %v3980 = vld [vmem:[#allocation2 + $0x90] sm:$0xff]
        %v3981 = vld [vmem:[#allocation2 + $0x98] sm:$0xff]
        %v3982 = vld [vmem:[#allocation2 + $0xa0] sm:$0xff]
        %v3983 = vld [vmem:[#allocation2 + $0xa8] sm:$0xff]
        %v3984 = vld [vmem:[#allocation2 + $0xb0] sm:$0xff]
        %v3985 = vld [vmem:[#allocation2 + $0xb8] sm:$0xff]
        %v3986 = vld [vmem:[#allocation2 + $0xc0] sm:$0xff]
        %v3987 = vld [vmem:[#allocation2 + $0xc8] sm:$0xff]
        %v3988 = vld [vmem:[#allocation2 + $0xd0] sm:$0xff]
        %v3989 = vld [vmem:[#allocation2 + $0xd8] sm:$0xff]
        %v3990 = vld [vmem:[#allocation2 + $0xe0] sm:$0xff]
        %v3991 = vld [vmem:[#allocation2 + $0xe8] sm:$0xff]
        %v3992 = vld [vmem:[#allocation2 + $0xf0] sm:$0xff]
        %v3993 = vld [vmem:[#allocation2 + $0xf8] sm:$0xff]
        %v3995 = vsel %vm1474, %v3926, 0
        %v3998 = vsel %vm1474, %v3927, 0
        %v4001 = vsel %vm1474, %v3928, 0
        %v4004 = vsel %vm1474, %v3929, 0
        %v4007 = vsel %vm1474, %v3930, 0
        %v4010 = vsel %vm1474, %v3931, 0
        %v4013 = vsel %vm1474, %v3932, 0
        %v4016 = vsel %vm1474, %v3933, 0
        %v4019 = vsel %vm1474, %v3934, 0
        %v4022 = vsel %vm1474, %v3935, 0
        %v4025 = vsel %vm1474, %v3936, 0
        %v4028 = vsel %vm1474, %v3937, 0
        %v4031 = vsel %vm1474, %v3938, 0
        %v4034 = vsel %vm1474, %v3939, 0
        %v4037 = vsel %vm1474, %v3940, 0
        %v4040 = vsel %vm1474, %v3941, 0
        %v4043 = vsel %vm1474, %v3942, 0
        %v4046 = vsel %vm1474, %v3943, 0
        %v4049 = vsel %vm1474, %v3944, 0
        %v4052 = vsel %vm1474, %v3945, 0
        %v4055 = vsel %vm1474, %v3946, 0
        %v4058 = vsel %vm1474, %v3947, 0
        %v4061 = vsel %vm1474, %v3948, 0
        %v4064 = vsel %vm1474, %v3949, 0
        %v4067 = vsel %vm1474, %v3950, 0
        %v4070 = vsel %vm1474, %v3951, 0
        %v4073 = vsel %vm1474, %v3952, 0
        %v4076 = vsel %vm1474, %v3953, 0
        %v4079 = vsel %vm1474, %v3954, 0
        %v4082 = vsel %vm1474, %v3955, 0
        %v4085 = vsel %vm1565, %v3960, 0
        %4087 = vmatprep.subr.mxu0 0.0
        %4088 = vmatpush1.msra.mxu0 %v3959
        %4089 = vmatprep.subr.mxu0 0.0
        %4090 = vmatpush1.msra.mxu0 %v4085
        %4091 = vmatprep.subr.mxu0 0.0
        %4092 = vmatpush1.msra.mxu0 0.0
        %4093 = vmatprep.subr.mxu0 0.0
        %4094 = vmatpush1.msra.mxu0 0.0
        %4095 = vmatprep.subr.mxu0 0.0
        %4096 = vmatpush1.msra.mxu0 0.0
        %4097 = vmatprep.subr.mxu0 0.0
        %4098 = vmatpush1.msra.mxu0 0.0
        %4099 = vmatprep.subr.mxu0 0.0
        %4100 = vmatpush1.msra.mxu0 0.0
        %4101 = vmatprep.subr.mxu0 0.0
        %4102 = vmatpush1.msra.mxu0 0.0
        %4103 = vmatprep.subr.mxu0 0.0
        %4104 = vmatpush1.msra.mxu0 0.0
        %4105 = vmatprep.subr.mxu0 0.0
        %4106 = vmatpush1.msra.mxu0 0.0
        %4107 = vmatprep.subr.mxu0 0.0
        %4108 = vmatpush1.msra.mxu0 0.0
        %4109 = vmatprep.subr.mxu0 0.0
        %4110 = vmatpush1.msra.mxu0 0.0
        %4111 = vmatprep.subr.mxu0 0.0
        %4112 = vmatpush1.msra.mxu0 0.0
        %4113 = vmatprep.subr.mxu0 0.0
        %4114 = vmatpush1.msra.mxu0 0.0
        %4115 = vmatprep.subr.mxu0 0.0
        %4116 = vmatpush1.msra.mxu0 0.0
        %4117 = vmatprep.subr.mxu0 0.0
        %4118 = vmatpush1.msra.mxu0 0.0
        %4119 = vmatprep.subr.mxu0 0.0
        %4120 = vmatpush1.msra.mxu0 0.0
        %4121 = vmatprep.subr.mxu0 0.0
        %4122 = vmatpush1.msra.mxu0 0.0
        %4123 = vmatprep.subr.mxu0 0.0
        %4124 = vmatpush1.msra.mxu0 0.0
        %4125 = vmatprep.subr.mxu0 0.0
        %4126 = vmatpush1.msra.mxu0 0.0
        %4127 = vmatprep.subr.mxu0 0.0
        %4128 = vmatpush1.msra.mxu0 0.0
        %4129 = vmatprep.subr.mxu0 0.0
        %4130 = vmatpush1.msra.mxu0 0.0
        %4131 = vmatprep.subr.mxu0 0.0
        %4132 = vmatpush1.msra.mxu0 0.0
        %4133 = vmatprep.subr.mxu0 0.0
        %4134 = vmatpush1.msra.mxu0 0.0
        %4135 = vmatprep.subr.mxu0 0.0
        %4136 = vmatpush1.msra.mxu0 0.0
        %4137 = vmatprep.subr.mxu0 0.0
        %4138 = vmatpush1.msra.mxu0 0.0
        %4139 = vmatprep.subr.mxu0 0.0
        %4140 = vmatpush1.msra.mxu0 0.0
        %4141 = vmatprep.subr.mxu0 0.0
        %4142 = vmatpush1.msra.mxu0 0.0
        %4143 = vmatprep.subr.mxu0 0.0
        %4144 = vmatpush1.msra.mxu0 0.0
        %4145 = vmatprep.subr.mxu0 0.0
        %4146 = vmatpush1.msra.mxu0 0.0
        %4147 = vmatprep.subr.mxu0 0.0
        %4148 = vmatpush1.msra.mxu0 0.0
        %4149 = vmatprep.subr.mxu0 0.0
        %4150 = vmatpush1.msra.mxu0 0.0
        %4151 = vmatprep.mubr.f32.mxu0 0.0
        %4152 = vmatmul.mubr.f32.gmra.mrb[0].mxu0 %v3995
        %v4153 = vpop.f32.mrb[0].mxu0
        %v4154 = vadd.f32 0.0, %v4153
        %v4155 = vpop.f32.mrb[0].mxu0
        %4156 = vmatprep.mubr.f32.mxu0 0.0
        %4157 = vmatmul.mubr.f32.gmra.mrb[0].mxu0 %v3998
        %v4158 = vpop.f32.mrb[0].mxu0
        %v4159 = vadd.f32 0.0, %v4158
        %v4160 = vpop.f32.mrb[0].mxu0
        %4161 = vmatprep.mubr.f32.mxu0 0.0
        %4162 = vmatmul.mubr.f32.gmra.mrb[0].mxu0 %v4001
        %v4163 = vpop.f32.mrb[0].mxu0
        %v4164 = vadd.f32 0.0, %v4163
        %v4165 = vpop.f32.mrb[0].mxu0
        %4166 = vmatprep.mubr.f32.mxu0 0.0
        %4167 = vmatmul.mubr.f32.gmra.mrb[0].mxu0 %v4004
        %v4168 = vpop.f32.mrb[0].mxu0
        %v4169 = vadd.f32 0.0, %v4168
        %v4170 = vpop.f32.mrb[0].mxu0
        %4171 = vmatprep.mubr.f32.mxu0 0.0
        %4172 = vmatmul.mubr.f32.gmra.mrb[0].mxu0 %v4007
        %v4173 = vpop.f32.mrb[0].mxu0
        %v4174 = vadd.f32 0.0, %v4173
        %v4175 = vpop.f32.mrb[0].mxu0
        %4176 = vmatprep.mubr.f32.mxu0 0.0
        %4177 = vmatmul.mubr.f32.gmra.mrb[0].mxu0 %v4010
        %v4178 = vpop.f32.mrb[0].mxu0
        %v4179 = vadd.f32 0.0, %v4178
        %v4180 = vpop.f32.mrb[0].mxu0
        %4181 = vmatprep.mubr.f32.mxu0 0.0
        %4182 = vmatmul.mubr.f32.gmra.mrb[0].mxu0 %v4013
        %v4183 = vpop.f32.mrb[0].mxu0
        %v4184 = vadd.f32 0.0, %v4183
        %v4185 = vpop.f32.mrb[0].mxu0
        %4186 = vmatprep.mubr.f32.mxu0 0.0
        %4187 = vmatmul.mubr.f32.gmra.mrb[0].mxu0 %v4016
        %v4188 = vpop.f32.mrb[0].mxu0
        %v4189 = vadd.f32 0.0, %v4188
        %v4190 = vpop.f32.mrb[0].mxu0
        %4191 = vmatprep.mubr.f32.mxu0 0.0
        %4192 = vmatmul.mubr.f32.gmra.mrb[0].mxu0 %v4019
        %v4193 = vpop.f32.mrb[0].mxu0
        %v4194 = vadd.f32 0.0, %v4193
        %v4195 = vpop.f32.mrb[0].mxu0
        %4196 = vmatprep.mubr.f32.mxu0 0.0
        %4197 = vmatmul.mubr.f32.gmra.mrb[0].mxu0 %v4022
        %v4198 = vpop.f32.mrb[0].mxu0
        %v4199 = vadd.f32 0.0, %v4198
        %v4200 = vpop.f32.mrb[0].mxu0
        %4201 = vmatprep.mubr.f32.mxu0 0.0
        %4202 = vmatmul.mubr.f32.gmra.mrb[0].mxu0 %v4025
        %v4203 = vpop.f32.mrb[0].mxu0
        %v4204 = vadd.f32 0.0, %v4203
        %v4205 = vpop.f32.mrb[0].mxu0
        %4206 = vmatprep.mubr.f32.mxu0 0.0
        %4207 = vmatmul.mubr.f32.gmra.mrb[0].mxu0 %v4028
        %v4208 = vpop.f32.mrb[0].mxu0
        %v4209 = vadd.f32 0.0, %v4208
        %v4210 = vpop.f32.mrb[0].mxu0
        %4211 = vmatprep.mubr.f32.mxu0 0.0
        %4212 = vmatmul.mubr.f32.gmra.mrb[0].mxu0 %v4031
        %v4213 = vpop.f32.mrb[0].mxu0
        %v4214 = vadd.f32 0.0, %v4213
        %v4215 = vpop.f32.mrb[0].mxu0
        %4216 = vmatprep.mubr.f32.mxu0 0.0
        %4217 = vmatmul.mubr.f32.gmra.mrb[0].mxu0 %v4034
        %v4218 = vpop.f32.mrb[0].mxu0
        %v4219 = vadd.f32 0.0, %v4218
        %v4220 = vpop.f32.mrb[0].mxu0
        %4221 = vmatprep.mubr.f32.mxu0 0.0
        %4222 = vmatmul.mubr.f32.gmra.mrb[0].mxu0 %v4037
        %v4223 = vpop.f32.mrb[0].mxu0
        %v4224 = vadd.f32 0.0, %v4223
        %v4225 = vpop.f32.mrb[0].mxu0
        %4226 = vmatprep.mubr.f32.mxu0 0.0
        %4227 = vmatmul.mubr.f32.gmra.mrb[0].mxu0 %v4040
        %v4228 = vpop.f32.mrb[0].mxu0
        %v4229 = vadd.f32 0.0, %v4228
        %v4230 = vpop.f32.mrb[0].mxu0
        %4231 = vmatprep.mubr.f32.mxu0 0.0
        %4232 = vmatmul.mubr.f32.gmra.mrb[0].mxu0 %v4043
        %v4233 = vpop.f32.mrb[0].mxu0
        %v4234 = vadd.f32 0.0, %v4233
        %v4235 = vpop.f32.mrb[0].mxu0
        %4236 = vmatprep.mubr.f32.mxu0 0.0
        %4237 = vmatmul.mubr.f32.gmra.mrb[0].mxu0 %v4046
        %v4238 = vpop.f32.mrb[0].mxu0
        %v4239 = vadd.f32 0.0, %v4238
        %v4240 = vpop.f32.mrb[0].mxu0
        %4241 = vmatprep.mubr.f32.mxu0 0.0
        %4242 = vmatmul.mubr.f32.gmra.mrb[0].mxu0 %v4049
        %v4243 = vpop.f32.mrb[0].mxu0
        %v4244 = vadd.f32 0.0, %v4243
        %v4245 = vpop.f32.mrb[0].mxu0
        %4246 = vmatprep.mubr.f32.mxu0 0.0
        %4247 = vmatmul.mubr.f32.gmra.mrb[0].mxu0 %v4052
        %v4248 = vpop.f32.mrb[0].mxu0
        %v4249 = vadd.f32 0.0, %v4248
        %v4250 = vpop.f32.mrb[0].mxu0
        %4251 = vmatprep.mubr.f32.mxu0 0.0
        %4252 = vmatmul.mubr.f32.gmra.mrb[0].mxu0 %v4055
        %v4253 = vpop.f32.mrb[0].mxu0
        %v4254 = vadd.f32 0.0, %v4253
        %v4255 = vpop.f32.mrb[0].mxu0
        %4256 = vmatprep.mubr.f32.mxu0 0.0
        %4257 = vmatmul.mubr.f32.gmra.mrb[0].mxu0 %v4058
        %v4258 = vpop.f32.mrb[0].mxu0
        %v4259 = vadd.f32 0.0, %v4258
        %v4260 = vpop.f32.mrb[0].mxu0
        %4261 = vmatprep.mubr.f32.mxu0 0.0
        %4262 = vmatmul.mubr.f32.gmra.mrb[0].mxu0 %v4061
        %v4263 = vpop.f32.mrb[0].mxu0
        %v4264 = vadd.f32 0.0, %v4263
        %v4265 = vpop.f32.mrb[0].mxu0
        %4266 = vmatprep.mubr.f32.mxu0 0.0
        %4267 = vmatmul.mubr.f32.gmra.mrb[0].mxu0 %v4064
        %v4268 = vpop.f32.mrb[0].mxu0
        %v4269 = vadd.f32 0.0, %v4268
        %v4270 = vpop.f32.mrb[0].mxu0
        %4271 = vmatprep.mubr.f32.mxu0 0.0
        %4272 = vmatmul.mubr.f32.gmra.mrb[0].mxu0 %v4067
        %v4273 = vpop.f32.mrb[0].mxu0
        %v4274 = vadd.f32 0.0, %v4273
        %v4275 = vpop.f32.mrb[0].mxu0
        %4276 = vmatprep.mubr.f32.mxu0 0.0
        %4277 = vmatmul.mubr.f32.gmra.mrb[0].mxu0 %v4070
        %v4278 = vpop.f32.mrb[0].mxu0
        %v4279 = vadd.f32 0.0, %v4278
        %v4280 = vpop.f32.mrb[0].mxu0
        %4281 = vmatprep.mubr.f32.mxu0 0.0
        %4282 = vmatmul.mubr.f32.gmra.mrb[0].mxu0 %v4073
        %v4283 = vpop.f32.mrb[0].mxu0
        %v4284 = vadd.f32 0.0, %v4283
        %v4285 = vpop.f32.mrb[0].mxu0
        %4286 = vmatprep.mubr.f32.mxu0 0.0
        %4287 = vmatmul.mubr.f32.gmra.mrb[0].mxu0 %v4076
        %v4288 = vpop.f32.mrb[0].mxu0
        %v4289 = vadd.f32 0.0, %v4288
        %v4290 = vpop.f32.mrb[0].mxu0
        %4291 = vmatprep.mubr.f32.mxu0 0.0
        %4292 = vmatmul.mubr.f32.gmra.mrb[0].mxu0 %v4079
        %v4293 = vpop.f32.mrb[0].mxu0
        %v4294 = vadd.f32 0.0, %v4293
        %v4295 = vpop.f32.mrb[0].mxu0
        %4296 = vmatprep.mubr.f32.mxu0 0.0
        %4297 = vmatmul.mubr.f32.gmra.mrb[0].mxu0 %v4082
        %v4298 = vpop.f32.mrb[0].mxu0
        %v4299 = vadd.f32 0.0, %v4298
        %v4300 = vpop.f32.mrb[0].mxu0
        %4301 = vdwg.mxu0
        %v4302 = vadd.f32 %v3964, %v4154
        %v4303 = vadd.f32 %v3965, %v4159
        %v4304 = vadd.f32 %v3966, %v4164
        %v4305 = vadd.f32 %v3967, %v4169
        %v4306 = vadd.f32 %v3968, %v4174
        %v4307 = vadd.f32 %v3969, %v4179
        %v4308 = vadd.f32 %v3970, %v4184
        %v4309 = vadd.f32 %v3971, %v4189
        %v4310 = vadd.f32 %v3972, %v4194
        %v4311 = vadd.f32 %v3973, %v4199
        %v4312 = vadd.f32 %v3974, %v4204
        %v4313 = vadd.f32 %v3975, %v4209
        %v4314 = vadd.f32 %v3976, %v4214
        %v4315 = vadd.f32 %v3977, %v4219
        %v4316 = vadd.f32 %v3978, %v4224
        %v4317 = vadd.f32 %v3979, %v4229
        %v4318 = vadd.f32 %v3980, %v4234
        %v4319 = vadd.f32 %v3981, %v4239
        %v4320 = vadd.f32 %v3982, %v4244
        %v4321 = vadd.f32 %v3983, %v4249
        %v4322 = vadd.f32 %v3984, %v4254
        %v4323 = vadd.f32 %v3985, %v4259
        %v4324 = vadd.f32 %v3986, %v4264
        %v4325 = vadd.f32 %v3987, %v4269
        %v4326 = vadd.f32 %v3988, %v4274
        %v4327 = vadd.f32 %v3989, %v4279
        %v4328 = vadd.f32 %v3990, %v4284
        %v4329 = vadd.f32 %v3991, %v4289
        %v4330 = vadd.f32 %v3992, %v4294
        %v4331 = vadd.f32 %v3993, %v4299
        %4332 = vst.msk [vmem:[#allocation2 + $0x10] sm:$0xff] %vm841, %v4302
        %4333 = vst.msk [vmem:[#allocation2 + $0x18] sm:$0xff] %vm841, %v4303
        %4334 = vst.msk [vmem:[#allocation2 + $0x20] sm:$0xff] %vm841, %v4304
        %4335 = vst.msk [vmem:[#allocation2 + $0x28] sm:$0xff] %vm841, %v4305
        %4336 = vst.msk [vmem:[#allocation2 + $0x30] sm:$0xff] %vm841, %v4306
        %4337 = vst.msk [vmem:[#allocation2 + $0x38] sm:$0xff] %vm841, %v4307
        %4338 = vst.msk [vmem:[#allocation2 + $0x40] sm:$0xff] %vm841, %v4308
        %4339 = vst.msk [vmem:[#allocation2 + $0x48] sm:$0xff] %vm841, %v4309
        %4340 = vst.msk [vmem:[#allocation2 + $0x50] sm:$0xff] %vm841, %v4310
        %4341 = vst.msk [vmem:[#allocation2 + $0x58] sm:$0xff] %vm841, %v4311
        %4342 = vst.msk [vmem:[#allocation2 + $0x60] sm:$0xff] %vm841, %v4312
        %4343 = vst.msk [vmem:[#allocation2 + $0x68] sm:$0xff] %vm841, %v4313
        %4344 = vst.msk [vmem:[#allocation2 + $0x70] sm:$0xff] %vm841, %v4314
        %4345 = vst.msk [vmem:[#allocation2 + $0x78] sm:$0xff] %vm841, %v4315
        %4346 = vst.msk [vmem:[#allocation2 + $0x80] sm:$0xff] %vm841, %v4316
        %4347 = vst.msk [vmem:[#allocation2 + $0x88] sm:$0xff] %vm841, %v4317
        %4348 = vst.msk [vmem:[#allocation2 + $0x90] sm:$0xff] %vm841, %v4318
        %4349 = vst.msk [vmem:[#allocation2 + $0x98] sm:$0xff] %vm841, %v4319
        %4350 = vst.msk [vmem:[#allocation2 + $0xa0] sm:$0xff] %vm841, %v4320
        %4351 = vst.msk [vmem:[#allocation2 + $0xa8] sm:$0xff] %vm841, %v4321
        %4352 = vst.msk [vmem:[#allocation2 + $0xb0] sm:$0xff] %vm841, %v4322
        %4353 = vst.msk [vmem:[#allocation2 + $0xb8] sm:$0xff] %vm841, %v4323
        %4354 = vst.msk [vmem:[#allocation2 + $0xc0] sm:$0xff] %vm841, %v4324
        %4355 = vst.msk [vmem:[#allocation2 + $0xc8] sm:$0xff] %vm841, %v4325
        %4356 = vst.msk [vmem:[#allocation2 + $0xd0] sm:$0xff] %vm841, %v4326
        %4357 = vst.msk [vmem:[#allocation2 + $0xd8] sm:$0xff] %vm841, %v4327
        %4358 = vst.msk [vmem:[#allocation2 + $0xe0] sm:$0xff] %vm841, %v4328
        %4359 = vst.msk [vmem:[#allocation2 + $0xe8] sm:$0xff] %vm841, %v4329
        %4360 = vst.msk [vmem:[#allocation2 + $0xf0] sm:$0xff] %vm841, %v4330
        %4361 = vst.msk [vmem:[#allocation2 + $0xf8] sm:$0xff] %vm841, %v4331
        %v4362 = vld [vmem:[#allocation3 + $0x10] sm:$0xff]
        %v4363 = vld [vmem:[#allocation3 + $0x18] sm:$0xff]
        %v4364 = vld [vmem:[#allocation3 + $0x20] sm:$0xff]
        %v4365 = vld [vmem:[#allocation3 + $0x28] sm:$0xff]
        %v4366 = vld [vmem:[#allocation3 + $0x30] sm:$0xff]
        %v4367 = vld [vmem:[#allocation3 + $0x38] sm:$0xff]
        %v4368 = vld [vmem:[#allocation3 + $0x40] sm:$0xff]
        %v4369 = vld [vmem:[#allocation3 + $0x48] sm:$0xff]
        %v4370 = vld [vmem:[#allocation3 + $0x50] sm:$0xff]
        %v4371 = vld [vmem:[#allocation3 + $0x58] sm:$0xff]
        %v4372 = vld [vmem:[#allocation3 + $0x60] sm:$0xff]
        %v4373 = vld [vmem:[#allocation3 + $0x68] sm:$0xff]
        %v4374 = vld [vmem:[#allocation3 + $0x70] sm:$0xff]
        %v4375 = vld [vmem:[#allocation3 + $0x78] sm:$0xff]
        %v4376 = vld [vmem:[#allocation3 + $0x80] sm:$0xff]
        %v4377 = vld [vmem:[#allocation3 + $0x88] sm:$0xff]
        %v4378 = vld [vmem:[#allocation3 + $0x90] sm:$0xff]
        %v4379 = vld [vmem:[#allocation3 + $0x98] sm:$0xff]
        %v4380 = vld [vmem:[#allocation3 + $0xa0] sm:$0xff]
        %v4381 = vld [vmem:[#allocation3 + $0xa8] sm:$0xff]
        %v4382 = vld [vmem:[#allocation3 + $0xb0] sm:$0xff]
        %v4383 = vld [vmem:[#allocation3 + $0xb8] sm:$0xff]
        %v4384 = vld [vmem:[#allocation3 + $0xc0] sm:$0xff]
        %v4385 = vld [vmem:[#allocation3 + $0xc8] sm:$0xff]
        %v4386 = vld [vmem:[#allocation3 + $0xd0] sm:$0xff]
        %v4387 = vld [vmem:[#allocation3 + $0xd8] sm:$0xff]
        %v4388 = vld [vmem:[#allocation3 + $0xe0] sm:$0xff]
        %v4389 = vld [vmem:[#allocation3 + $0xe8] sm:$0xff]
        %v4390 = vld [vmem:[#allocation3 + $0xf0] sm:$0xff]
        %v4391 = vld [vmem:[#allocation3 + $0xf8] sm:$0xff]
        %v4393 = vsel %vm1565, %v3963, 0
        %4395 = vmatprep.subr.mxu0 0.0
        %4396 = vmatpush1.msra.mxu0 %v3962
        %4397 = vmatprep.subr.mxu0 0.0
        %4398 = vmatpush1.msra.mxu0 %v4393
        %4399 = vmatprep.subr.mxu0 0.0
        %4400 = vmatpush1.msra.mxu0 0.0
        %4401 = vmatprep.subr.mxu0 0.0
        %4402 = vmatpush1.msra.mxu0 0.0
        %4403 = vmatprep.subr.mxu0 0.0
        %4404 = vmatpush1.msra.mxu0 0.0
        %4405 = vmatprep.subr.mxu0 0.0
        %4406 = vmatpush1.msra.mxu0 0.0
        %4407 = vmatprep.subr.mxu0 0.0
        %4408 = vmatpush1.msra.mxu0 0.0
        %4409 = vmatprep.subr.mxu0 0.0
        %4410 = vmatpush1.msra.mxu0 0.0
        %4411 = vmatprep.subr.mxu0 0.0
        %4412 = vmatpush1.msra.mxu0 0.0
        %4413 = vmatprep.subr.mxu0 0.0
        %4414 = vmatpush1.msra.mxu0 0.0
        %4415 = vmatprep.subr.mxu0 0.0
        %4416 = vmatpush1.msra.mxu0 0.0
        %4417 = vmatprep.subr.mxu0 0.0
        %4418 = vmatpush1.msra.mxu0 0.0
        %4419 = vmatprep.subr.mxu0 0.0
        %4420 = vmatpush1.msra.mxu0 0.0
        %4421 = vmatprep.subr.mxu0 0.0
        %4422 = vmatpush1.msra.mxu0 0.0
        %4423 = vmatprep.subr.mxu0 0.0
        %4424 = vmatpush1.msra.mxu0 0.0
        %4425 = vmatprep.subr.mxu0 0.0
        %4426 = vmatpush1.msra.mxu0 0.0
        %4427 = vmatprep.subr.mxu0 0.0
        %4428 = vmatpush1.msra.mxu0 0.0
        %4429 = vmatprep.subr.mxu0 0.0
        %4430 = vmatpush1.msra.mxu0 0.0
        %4431 = vmatprep.subr.mxu0 0.0
        %4432 = vmatpush1.msra.mxu0 0.0
        %4433 = vmatprep.subr.mxu0 0.0
        %4434 = vmatpush1.msra.mxu0 0.0
        %4435 = vmatprep.subr.mxu0 0.0
        %4436 = vmatpush1.msra.mxu0 0.0
        %4437 = vmatprep.subr.mxu0 0.0
        %4438 = vmatpush1.msra.mxu0 0.0
        %4439 = vmatprep.subr.mxu0 0.0
        %4440 = vmatpush1.msra.mxu0 0.0
        %4441 = vmatprep.subr.mxu0 0.0
        %4442 = vmatpush1.msra.mxu0 0.0
        %4443 = vmatprep.subr.mxu0 0.0
        %4444 = vmatpush1.msra.mxu0 0.0
        %4445 = vmatprep.subr.mxu0 0.0
        %4446 = vmatpush1.msra.mxu0 0.0
        %4447 = vmatprep.subr.mxu0 0.0
        %4448 = vmatpush1.msra.mxu0 0.0
        %4449 = vmatprep.subr.mxu0 0.0
        %4450 = vmatpush1.msra.mxu0 0.0
        %4451 = vmatprep.subr.mxu0 0.0
        %4452 = vmatpush1.msra.mxu0 0.0
        %4453 = vmatprep.subr.mxu0 0.0
        %4454 = vmatpush1.msra.mxu0 0.0
        %4455 = vmatprep.subr.mxu0 0.0
        %4456 = vmatpush1.msra.mxu0 0.0
        %4457 = vmatprep.subr.mxu0 0.0
        %4458 = vmatpush1.msra.mxu0 0.0
        %4459 = vmatprep.mubr.f32.mxu0 0.0
        %4460 = vmatmul.mubr.f32.gmra.mrb[0].mxu0 %v3995
        %v4461 = vpop.f32.mrb[0].mxu0
        %v4462 = vadd.f32 0.0, %v4461
        %v4463 = vpop.f32.mrb[0].mxu0
        %4464 = vmatprep.mubr.f32.mxu0 0.0
        %4465 = vmatmul.mubr.f32.gmra.mrb[0].mxu0 %v3998
        %v4466 = vpop.f32.mrb[0].mxu0
        %v4467 = vadd.f32 0.0, %v4466
        %v4468 = vpop.f32.mrb[0].mxu0
        %4469 = vmatprep.mubr.f32.mxu0 0.0
        %4470 = vmatmul.mubr.f32.gmra.mrb[0].mxu0 %v4001
        %v4471 = vpop.f32.mrb[0].mxu0
        %v4472 = vadd.f32 0.0, %v4471
        %v4473 = vpop.f32.mrb[0].mxu0
        %4474 = vmatprep.mubr.f32.mxu0 0.0
        %4475 = vmatmul.mubr.f32.gmra.mrb[0].mxu0 %v4004
        %v4476 = vpop.f32.mrb[0].mxu0
        %v4477 = vadd.f32 0.0, %v4476
        %v4478 = vpop.f32.mrb[0].mxu0
        %4479 = vmatprep.mubr.f32.mxu0 0.0
        %4480 = vmatmul.mubr.f32.gmra.mrb[0].mxu0 %v4007
        %v4481 = vpop.f32.mrb[0].mxu0
        %v4482 = vadd.f32 0.0, %v4481
        %v4483 = vpop.f32.mrb[0].mxu0
        %4484 = vmatprep.mubr.f32.mxu0 0.0
        %4485 = vmatmul.mubr.f32.gmra.mrb[0].mxu0 %v4010
        %v4486 = vpop.f32.mrb[0].mxu0
        %v4487 = vadd.f32 0.0, %v4486
        %v4488 = vpop.f32.mrb[0].mxu0
        %4489 = vmatprep.mubr.f32.mxu0 0.0
        %4490 = vmatmul.mubr.f32.gmra.mrb[0].mxu0 %v4013
        %v4491 = vpop.f32.mrb[0].mxu0
        %v4492 = vadd.f32 0.0, %v4491
        %v4493 = vpop.f32.mrb[0].mxu0
        %4494 = vmatprep.mubr.f32.mxu0 0.0
        %4495 = vmatmul.mubr.f32.gmra.mrb[0].mxu0 %v4016
        %v4496 = vpop.f32.mrb[0].mxu0
        %v4497 = vadd.f32 0.0, %v4496
        %v4498 = vpop.f32.mrb[0].mxu0
        %4499 = vmatprep.mubr.f32.mxu0 0.0
        %4500 = vmatmul.mubr.f32.gmra.mrb[0].mxu0 %v4019
        %v4501 = vpop.f32.mrb[0].mxu0
        %v4502 = vadd.f32 0.0, %v4501
        %v4503 = vpop.f32.mrb[0].mxu0
        %4504 = vmatprep.mubr.f32.mxu0 0.0
        %4505 = vmatmul.mubr.f32.gmra.mrb[0].mxu0 %v4022
        %v4506 = vpop.f32.mrb[0].mxu0
        %v4507 = vadd.f32 0.0, %v4506
        %v4508 = vpop.f32.mrb[0].mxu0
        %4509 = vmatprep.mubr.f32.mxu0 0.0
        %4510 = vmatmul.mubr.f32.gmra.mrb[0].mxu0 %v4025
        %v4511 = vpop.f32.mrb[0].mxu0
        %v4512 = vadd.f32 0.0, %v4511
        %v4513 = vpop.f32.mrb[0].mxu0
        %4514 = vmatprep.mubr.f32.mxu0 0.0
        %4515 = vmatmul.mubr.f32.gmra.mrb[0].mxu0 %v4028
        %v4516 = vpop.f32.mrb[0].mxu0
        %v4517 = vadd.f32 0.0, %v4516
        %v4518 = vpop.f32.mrb[0].mxu0
        %4519 = vmatprep.mubr.f32.mxu0 0.0
        %4520 = vmatmul.mubr.f32.gmra.mrb[0].mxu0 %v4031
        %v4521 = vpop.f32.mrb[0].mxu0
        %v4522 = vadd.f32 0.0, %v4521
        %v4523 = vpop.f32.mrb[0].mxu0
        %4524 = vmatprep.mubr.f32.mxu0 0.0
        %4525 = vmatmul.mubr.f32.gmra.mrb[0].mxu0 %v4034
        %v4526 = vpop.f32.mrb[0].mxu0
        %v4527 = vadd.f32 0.0, %v4526
        %v4528 = vpop.f32.mrb[0].mxu0
        %4529 = vmatprep.mubr.f32.mxu0 0.0
        %4530 = vmatmul.mubr.f32.gmra.mrb[0].mxu0 %v4037
        %v4531 = vpop.f32.mrb[0].mxu0
        %v4532 = vadd.f32 0.0, %v4531
        %v4533 = vpop.f32.mrb[0].mxu0
        %4534 = vmatprep.mubr.f32.mxu0 0.0
        %4535 = vmatmul.mubr.f32.gmra.mrb[0].mxu0 %v4040
        %v4536 = vpop.f32.mrb[0].mxu0
        %v4537 = vadd.f32 0.0, %v4536
        %v4538 = vpop.f32.mrb[0].mxu0
        %4539 = vmatprep.mubr.f32.mxu0 0.0
        %4540 = vmatmul.mubr.f32.gmra.mrb[0].mxu0 %v4043
        %v4541 = vpop.f32.mrb[0].mxu0
        %v4542 = vadd.f32 0.0, %v4541
        %v4543 = vpop.f32.mrb[0].mxu0
        %4544 = vmatprep.mubr.f32.mxu0 0.0
        %4545 = vmatmul.mubr.f32.gmra.mrb[0].mxu0 %v4046
        %v4546 = vpop.f32.mrb[0].mxu0
        %v4547 = vadd.f32 0.0, %v4546
        %v4548 = vpop.f32.mrb[0].mxu0
        %4549 = vmatprep.mubr.f32.mxu0 0.0
        %4550 = vmatmul.mubr.f32.gmra.mrb[0].mxu0 %v4049
        %v4551 = vpop.f32.mrb[0].mxu0
        %v4552 = vadd.f32 0.0, %v4551
        %v4553 = vpop.f32.mrb[0].mxu0
        %4554 = vmatprep.mubr.f32.mxu0 0.0
        %4555 = vmatmul.mubr.f32.gmra.mrb[0].mxu0 %v4052
        %v4556 = vpop.f32.mrb[0].mxu0
        %v4557 = vadd.f32 0.0, %v4556
        %v4558 = vpop.f32.mrb[0].mxu0
        %4559 = vmatprep.mubr.f32.mxu0 0.0
        %4560 = vmatmul.mubr.f32.gmra.mrb[0].mxu0 %v4055
        %v4561 = vpop.f32.mrb[0].mxu0
        %v4562 = vadd.f32 0.0, %v4561
        %v4563 = vpop.f32.mrb[0].mxu0
        %4564 = vmatprep.mubr.f32.mxu0 0.0
        %4565 = vmatmul.mubr.f32.gmra.mrb[0].mxu0 %v4058
        %v4566 = vpop.f32.mrb[0].mxu0
        %v4567 = vadd.f32 0.0, %v4566
        %v4568 = vpop.f32.mrb[0].mxu0
        %4569 = vmatprep.mubr.f32.mxu0 0.0
        %4570 = vmatmul.mubr.f32.gmra.mrb[0].mxu0 %v4061
        %v4571 = vpop.f32.mrb[0].mxu0
        %v4572 = vadd.f32 0.0, %v4571
        %v4573 = vpop.f32.mrb[0].mxu0
        %4574 = vmatprep.mubr.f32.mxu0 0.0
        %4575 = vmatmul.mubr.f32.gmra.mrb[0].mxu0 %v4064
        %v4576 = vpop.f32.mrb[0].mxu0
        %v4577 = vadd.f32 0.0, %v4576
        %v4578 = vpop.f32.mrb[0].mxu0
        %4579 = vmatprep.mubr.f32.mxu0 0.0
        %4580 = vmatmul.mubr.f32.gmra.mrb[0].mxu0 %v4067
        %v4581 = vpop.f32.mrb[0].mxu0
        %v4582 = vadd.f32 0.0, %v4581
        %v4583 = vpop.f32.mrb[0].mxu0
        %4584 = vmatprep.mubr.f32.mxu0 0.0
        %4585 = vmatmul.mubr.f32.gmra.mrb[0].mxu0 %v4070
        %v4586 = vpop.f32.mrb[0].mxu0
        %v4587 = vadd.f32 0.0, %v4586
        %v4588 = vpop.f32.mrb[0].mxu0
        %4589 = vmatprep.mubr.f32.mxu0 0.0
        %4590 = vmatmul.mubr.f32.gmra.mrb[0].mxu0 %v4073
        %v4591 = vpop.f32.mrb[0].mxu0
        %v4592 = vadd.f32 0.0, %v4591
        %v4593 = vpop.f32.mrb[0].mxu0
        %4594 = vmatprep.mubr.f32.mxu0 0.0
        %4595 = vmatmul.mubr.f32.gmra.mrb[0].mxu0 %v4076
        %v4596 = vpop.f32.mrb[0].mxu0
        %v4597 = vadd.f32 0.0, %v4596
        %v4598 = vpop.f32.mrb[0].mxu0
        %4599 = vmatprep.mubr.f32.mxu0 0.0
        %4600 = vmatmul.mubr.f32.gmra.mrb[0].mxu0 %v4079
        %v4601 = vpop.f32.mrb[0].mxu0
        %v4602 = vadd.f32 0.0, %v4601
        %v4603 = vpop.f32.mrb[0].mxu0
        %4604 = vmatprep.mubr.f32.mxu0 0.0
        %4605 = vmatmul.mubr.f32.gmra.mrb[0].mxu0 %v4082
        %v4606 = vpop.f32.mrb[0].mxu0
        %v4607 = vadd.f32 0.0, %v4606
        %v4608 = vpop.f32.mrb[0].mxu0
        %4609 = vdwg.mxu0
        %v4610 = vadd.f32 %v4362, %v4462
        %v4611 = vadd.f32 %v4363, %v4467
        %v4612 = vadd.f32 %v4364, %v4472
        %v4613 = vadd.f32 %v4365, %v4477
        %v4614 = vadd.f32 %v4366, %v4482
        %v4615 = vadd.f32 %v4367, %v4487
        %v4616 = vadd.f32 %v4368, %v4492
        %v4617 = vadd.f32 %v4369, %v4497
        %v4618 = vadd.f32 %v4370, %v4502
        %v4619 = vadd.f32 %v4371, %v4507
        %v4620 = vadd.f32 %v4372, %v4512
        %v4621 = vadd.f32 %v4373, %v4517
        %v4622 = vadd.f32 %v4374, %v4522
        %v4623 = vadd.f32 %v4375, %v4527
        %v4624 = vadd.f32 %v4376, %v4532
        %v4625 = vadd.f32 %v4377, %v4537
        %v4626 = vadd.f32 %v4378, %v4542
        %v4627 = vadd.f32 %v4379, %v4547
        %v4628 = vadd.f32 %v4380, %v4552
        %v4629 = vadd.f32 %v4381, %v4557
        %v4630 = vadd.f32 %v4382, %v4562
        %v4631 = vadd.f32 %v4383, %v4567
        %v4632 = vadd.f32 %v4384, %v4572
        %v4633 = vadd.f32 %v4385, %v4577
        %v4634 = vadd.f32 %v4386, %v4582
        %v4635 = vadd.f32 %v4387, %v4587
        %v4636 = vadd.f32 %v4388, %v4592
        %v4637 = vadd.f32 %v4389, %v4597
        %v4638 = vadd.f32 %v4390, %v4602
        %v4639 = vadd.f32 %v4391, %v4607
        %4640 = vst.msk [vmem:[#allocation3 + $0x10] sm:$0xff] %vm841, %v4610
        %4641 = vst.msk [vmem:[#allocation3 + $0x18] sm:$0xff] %vm841, %v4611
        %4642 = vst.msk [vmem:[#allocation3 + $0x20] sm:$0xff] %vm841, %v4612
        %4643 = vst.msk [vmem:[#allocation3 + $0x28] sm:$0xff] %vm841, %v4613
        %4644 = vst.msk [vmem:[#allocation3 + $0x30] sm:$0xff] %vm841, %v4614
        %4645 = vst.msk [vmem:[#allocation3 + $0x38] sm:$0xff] %vm841, %v4615
        %4646 = vst.msk [vmem:[#allocation3 + $0x40] sm:$0xff] %vm841, %v4616
        %4647 = vst.msk [vmem:[#allocation3 + $0x48] sm:$0xff] %vm841, %v4617
        %4648 = vst.msk [vmem:[#allocation3 + $0x50] sm:$0xff] %vm841, %v4618
        %4649 = vst.msk [vmem:[#allocation3 + $0x58] sm:$0xff] %vm841, %v4619
        %4650 = vst.msk [vmem:[#allocation3 + $0x60] sm:$0xff] %vm841, %v4620
        %4651 = vst.msk [vmem:[#allocation3 + $0x68] sm:$0xff] %vm841, %v4621
        %4652 = vst.msk [vmem:[#allocation3 + $0x70] sm:$0xff] %vm841, %v4622
        %4653 = vst.msk [vmem:[#allocation3 + $0x78] sm:$0xff] %vm841, %v4623
        %4654 = vst.msk [vmem:[#allocation3 + $0x80] sm:$0xff] %vm841, %v4624
        %4655 = vst.msk [vmem:[#allocation3 + $0x88] sm:$0xff] %vm841, %v4625
        %4656 = vst.msk [vmem:[#allocation3 + $0x90] sm:$0xff] %vm841, %v4626
        %4657 = vst.msk [vmem:[#allocation3 + $0x98] sm:$0xff] %vm841, %v4627
        %4658 = vst.msk [vmem:[#allocation3 + $0xa0] sm:$0xff] %vm841, %v4628
        %4659 = vst.msk [vmem:[#allocation3 + $0xa8] sm:$0xff] %vm841, %v4629
        %4660 = vst.msk [vmem:[#allocation3 + $0xb0] sm:$0xff] %vm841, %v4630
        %4661 = vst.msk [vmem:[#allocation3 + $0xb8] sm:$0xff] %vm841, %v4631
        %4662 = vst.msk [vmem:[#allocation3 + $0xc0] sm:$0xff] %vm841, %v4632
        %4663 = vst.msk [vmem:[#allocation3 + $0xc8] sm:$0xff] %vm841, %v4633
        %4664 = vst.msk [vmem:[#allocation3 + $0xd0] sm:$0xff] %vm841, %v4634
        %4665 = vst.msk [vmem:[#allocation3 + $0xd8] sm:$0xff] %vm841, %v4635
        %4666 = vst.msk [vmem:[#allocation3 + $0xe0] sm:$0xff] %vm841, %v4636
        %4667 = vst.msk [vmem:[#allocation3 + $0xe8] sm:$0xff] %vm841, %v4637
        %4668 = vst.msk [vmem:[#allocation3 + $0xf0] sm:$0xff] %vm841, %v4638
        %4669 = vst.msk [vmem:[#allocation3 + $0xf8] sm:$0xff] %vm841, %v4639
        %s4670 = scalar_lea.vmem [#allocation8], 64
        %v4671 = vld [vmem:[%s4670] sm:$0xff]
        %v4672 = vld [vmem:[%s4670 + $0x8] sm:$0xf]
        %s4673 = scalar_lea.vmem [#allocation10], 64
        %v4674 = vld [vmem:[%s4673] sm:$0xff]
        %v4675 = vld [vmem:[%s4673 + $0x8] sm:$0xf]
        %v4676 = vld [vmem:[#allocation2] sm:$0xff]
        %v4677 = vld [vmem:[#allocation2 + $0x8] sm:$0xff]
        %v4678 = vld [vmem:[#allocation2 + $0x10] sm:$0xff]
        %v4679 = vld [vmem:[#allocation2 + $0x18] sm:$0xff]
        %v4680 = vld [vmem:[#allocation2 + $0x20] sm:$0xff]
        %v4681 = vld [vmem:[#allocation2 + $0x28] sm:$0xff]
        %v4682 = vld [vmem:[#allocation2 + $0x30] sm:$0xff]
        %v4683 = vld [vmem:[#allocation2 + $0x38] sm:$0xff]
        %v4684 = vld [vmem:[#allocation2 + $0x40] sm:$0xff]
        %v4685 = vld [vmem:[#allocation2 + $0x48] sm:$0xff]
        %v4686 = vld [vmem:[#allocation2 + $0x50] sm:$0xff]
        %v4687 = vld [vmem:[#allocation2 + $0x58] sm:$0xff]
        %v4688 = vld [vmem:[#allocation2 + $0x60] sm:$0xff]
        %v4689 = vld [vmem:[#allocation2 + $0x68] sm:$0xff]
        %v4690 = vld [vmem:[#allocation2 + $0x70] sm:$0xff]
        %v4691 = vld [vmem:[#allocation2 + $0x78] sm:$0xff]
        %v4692 = vld [vmem:[#allocation2 + $0x80] sm:$0xff]
        %v4693 = vld [vmem:[#allocation2 + $0x88] sm:$0xff]
        %v4694 = vld [vmem:[#allocation2 + $0x90] sm:$0xff]
        %v4695 = vld [vmem:[#allocation2 + $0x98] sm:$0xff]
        %v4696 = vld [vmem:[#allocation2 + $0xa0] sm:$0xff]
        %v4697 = vld [vmem:[#allocation2 + $0xa8] sm:$0xff]
        %v4698 = vld [vmem:[#allocation2 + $0xb0] sm:$0xff]
        %v4699 = vld [vmem:[#allocation2 + $0xb8] sm:$0xff]
        %v4700 = vld [vmem:[#allocation2 + $0xc0] sm:$0xff]
        %v4701 = vld [vmem:[#allocation2 + $0xc8] sm:$0xff]
        %v4702 = vld [vmem:[#allocation2 + $0xd0] sm:$0xff]
        %v4703 = vld [vmem:[#allocation2 + $0xd8] sm:$0xff]
        %v4704 = vld [vmem:[#allocation2 + $0xe0] sm:$0xff]
        %v4705 = vld [vmem:[#allocation2 + $0xe8] sm:$0xff]
        %v4706 = vld [vmem:[#allocation2 + $0xf0] sm:$0xff]
        %v4707 = vld [vmem:[#allocation2 + $0xf8] sm:$0xff]
        %v4709 = vsel %vm1474, %v3956, 0
        %v4712 = vsel %vm1474, %v3957, 0
        %v4715 = vsel %vm1565, %v4672, 0
        %4717 = vmatprep.subr.mxu0 0.0
        %4718 = vmatpush1.msra.mxu0 %v4671
        %4719 = vmatprep.subr.mxu0 0.0
        %4720 = vmatpush1.msra.mxu0 %v4715
        %4721 = vmatprep.subr.mxu0 0.0
        %4722 = vmatpush1.msra.mxu0 0.0
        %4723 = vmatprep.subr.mxu0 0.0
        %4724 = vmatpush1.msra.mxu0 0.0
        %4725 = vmatprep.subr.mxu0 0.0
        %4726 = vmatpush1.msra.mxu0 0.0
        %4727 = vmatprep.subr.mxu0 0.0
        %4728 = vmatpush1.msra.mxu0 0.0
        %4729 = vmatprep.subr.mxu0 0.0
        %4730 = vmatpush1.msra.mxu0 0.0
        %4731 = vmatprep.subr.mxu0 0.0
        %4732 = vmatpush1.msra.mxu0 0.0
        %4733 = vmatprep.subr.mxu0 0.0
        %4734 = vmatpush1.msra.mxu0 0.0
        %4735 = vmatprep.subr.mxu0 0.0
        %4736 = vmatpush1.msra.mxu0 0.0
        %4737 = vmatprep.subr.mxu0 0.0
        %4738 = vmatpush1.msra.mxu0 0.0
        %4739 = vmatprep.subr.mxu0 0.0
        %4740 = vmatpush1.msra.mxu0 0.0
        %4741 = vmatprep.subr.mxu0 0.0
        %4742 = vmatpush1.msra.mxu0 0.0
        %4743 = vmatprep.subr.mxu0 0.0
        %4744 = vmatpush1.msra.mxu0 0.0
        %4745 = vmatprep.subr.mxu0 0.0
        %4746 = vmatpush1.msra.mxu0 0.0
        %4747 = vmatprep.subr.mxu0 0.0
        %4748 = vmatpush1.msra.mxu0 0.0
        %4749 = vmatprep.subr.mxu0 0.0
        %4750 = vmatpush1.msra.mxu0 0.0
        %4751 = vmatprep.subr.mxu0 0.0
        %4752 = vmatpush1.msra.mxu0 0.0
        %4753 = vmatprep.subr.mxu0 0.0
        %4754 = vmatpush1.msra.mxu0 0.0
        %4755 = vmatprep.subr.mxu0 0.0
        %4756 = vmatpush1.msra.mxu0 0.0
        %4757 = vmatprep.subr.mxu0 0.0
        %4758 = vmatpush1.msra.mxu0 0.0
        %4759 = vmatprep.subr.mxu0 0.0
        %4760 = vmatpush1.msra.mxu0 0.0
        %4761 = vmatprep.subr.mxu0 0.0
        %4762 = vmatpush1.msra.mxu0 0.0
        %4763 = vmatprep.subr.mxu0 0.0
        %4764 = vmatpush1.msra.mxu0 0.0
        %4765 = vmatprep.subr.mxu0 0.0
        %4766 = vmatpush1.msra.mxu0 0.0
        %4767 = vmatprep.subr.mxu0 0.0
        %4768 = vmatpush1.msra.mxu0 0.0
        %4769 = vmatprep.subr.mxu0 0.0
        %4770 = vmatpush1.msra.mxu0 0.0
        %4771 = vmatprep.subr.mxu0 0.0
        %4772 = vmatpush1.msra.mxu0 0.0
        %4773 = vmatprep.subr.mxu0 0.0
        %4774 = vmatpush1.msra.mxu0 0.0
        %4775 = vmatprep.subr.mxu0 0.0
        %4776 = vmatpush1.msra.mxu0 0.0
        %4777 = vmatprep.subr.mxu0 0.0
        %4778 = vmatpush1.msra.mxu0 0.0
        %4779 = vmatprep.subr.mxu0 0.0
        %4780 = vmatpush1.msra.mxu0 0.0
        %4781 = vmatprep.mubr.f32.mxu0 0.0
        %4782 = vmatmul.mubr.f32.gmra.mrb[0].mxu0 %v3995
        %v4783 = vpop.f32.mrb[0].mxu0
        %v4784 = vadd.f32 0.0, %v4783
        %v4785 = vpop.f32.mrb[0].mxu0
        %4786 = vmatprep.mubr.f32.mxu0 0.0
        %4787 = vmatmul.mubr.f32.gmra.mrb[0].mxu0 %v3998
        %v4788 = vpop.f32.mrb[0].mxu0
        %v4789 = vadd.f32 0.0, %v4788
        %v4790 = vpop.f32.mrb[0].mxu0
        %4791 = vmatprep.mubr.f32.mxu0 0.0
        %4792 = vmatmul.mubr.f32.gmra.mrb[0].mxu0 %v4001
        %v4793 = vpop.f32.mrb[0].mxu0
        %v4794 = vadd.f32 0.0, %v4793
        %v4795 = vpop.f32.mrb[0].mxu0
        %4796 = vmatprep.mubr.f32.mxu0 0.0
        %4797 = vmatmul.mubr.f32.gmra.mrb[0].mxu0 %v4004
        %v4798 = vpop.f32.mrb[0].mxu0
        %v4799 = vadd.f32 0.0, %v4798
        %v4800 = vpop.f32.mrb[0].mxu0
        %4801 = vmatprep.mubr.f32.mxu0 0.0
        %4802 = vmatmul.mubr.f32.gmra.mrb[0].mxu0 %v4007
        %v4803 = vpop.f32.mrb[0].mxu0
        %v4804 = vadd.f32 0.0, %v4803
        %v4805 = vpop.f32.mrb[0].mxu0
        %4806 = vmatprep.mubr.f32.mxu0 0.0
        %4807 = vmatmul.mubr.f32.gmra.mrb[0].mxu0 %v4010
        %v4808 = vpop.f32.mrb[0].mxu0
        %v4809 = vadd.f32 0.0, %v4808
        %v4810 = vpop.f32.mrb[0].mxu0
        %4811 = vmatprep.mubr.f32.mxu0 0.0
        %4812 = vmatmul.mubr.f32.gmra.mrb[0].mxu0 %v4013
        %v4813 = vpop.f32.mrb[0].mxu0
        %v4814 = vadd.f32 0.0, %v4813
        %v4815 = vpop.f32.mrb[0].mxu0
        %4816 = vmatprep.mubr.f32.mxu0 0.0
        %4817 = vmatmul.mubr.f32.gmra.mrb[0].mxu0 %v4016
        %v4818 = vpop.f32.mrb[0].mxu0
        %v4819 = vadd.f32 0.0, %v4818
        %v4820 = vpop.f32.mrb[0].mxu0
        %4821 = vmatprep.mubr.f32.mxu0 0.0
        %4822 = vmatmul.mubr.f32.gmra.mrb[0].mxu0 %v4019
        %v4823 = vpop.f32.mrb[0].mxu0
        %v4824 = vadd.f32 0.0, %v4823
        %v4825 = vpop.f32.mrb[0].mxu0
        %4826 = vmatprep.mubr.f32.mxu0 0.0
        %4827 = vmatmul.mubr.f32.gmra.mrb[0].mxu0 %v4022
        %v4828 = vpop.f32.mrb[0].mxu0
        %v4829 = vadd.f32 0.0, %v4828
        %v4830 = vpop.f32.mrb[0].mxu0
        %4831 = vmatprep.mubr.f32.mxu0 0.0
        %4832 = vmatmul.mubr.f32.gmra.mrb[0].mxu0 %v4025
        %v4833 = vpop.f32.mrb[0].mxu0
        %v4834 = vadd.f32 0.0, %v4833
        %v4835 = vpop.f32.mrb[0].mxu0
        %4836 = vmatprep.mubr.f32.mxu0 0.0
        %4837 = vmatmul.mubr.f32.gmra.mrb[0].mxu0 %v4028
        %v4838 = vpop.f32.mrb[0].mxu0
        %v4839 = vadd.f32 0.0, %v4838
        %v4840 = vpop.f32.mrb[0].mxu0
        %4841 = vmatprep.mubr.f32.mxu0 0.0
        %4842 = vmatmul.mubr.f32.gmra.mrb[0].mxu0 %v4031
        %v4843 = vpop.f32.mrb[0].mxu0
        %v4844 = vadd.f32 0.0, %v4843
        %v4845 = vpop.f32.mrb[0].mxu0
        %4846 = vmatprep.mubr.f32.mxu0 0.0
        %4847 = vmatmul.mubr.f32.gmra.mrb[0].mxu0 %v4034
        %v4848 = vpop.f32.mrb[0].mxu0
        %v4849 = vadd.f32 0.0, %v4848
        %v4850 = vpop.f32.mrb[0].mxu0
        %4851 = vmatprep.mubr.f32.mxu0 0.0
        %4852 = vmatmul.mubr.f32.gmra.mrb[0].mxu0 %v4037
        %v4853 = vpop.f32.mrb[0].mxu0
        %v4854 = vadd.f32 0.0, %v4853
        %v4855 = vpop.f32.mrb[0].mxu0
        %4856 = vmatprep.mubr.f32.mxu0 0.0
        %4857 = vmatmul.mubr.f32.gmra.mrb[0].mxu0 %v4040
        %v4858 = vpop.f32.mrb[0].mxu0
        %v4859 = vadd.f32 0.0, %v4858
        %v4860 = vpop.f32.mrb[0].mxu0
        %4861 = vmatprep.mubr.f32.mxu0 0.0
        %4862 = vmatmul.mubr.f32.gmra.mrb[0].mxu0 %v4043
        %v4863 = vpop.f32.mrb[0].mxu0
        %v4864 = vadd.f32 0.0, %v4863
        %v4865 = vpop.f32.mrb[0].mxu0
        %4866 = vmatprep.mubr.f32.mxu0 0.0
        %4867 = vmatmul.mubr.f32.gmra.mrb[0].mxu0 %v4046
        %v4868 = vpop.f32.mrb[0].mxu0
        %v4869 = vadd.f32 0.0, %v4868
        %v4870 = vpop.f32.mrb[0].mxu0
        %4871 = vmatprep.mubr.f32.mxu0 0.0
        %4872 = vmatmul.mubr.f32.gmra.mrb[0].mxu0 %v4049
        %v4873 = vpop.f32.mrb[0].mxu0
        %v4874 = vadd.f32 0.0, %v4873
        %v4875 = vpop.f32.mrb[0].mxu0
        %4876 = vmatprep.mubr.f32.mxu0 0.0
        %4877 = vmatmul.mubr.f32.gmra.mrb[0].mxu0 %v4052
        %v4878 = vpop.f32.mrb[0].mxu0
        %v4879 = vadd.f32 0.0, %v4878
        %v4880 = vpop.f32.mrb[0].mxu0
        %4881 = vmatprep.mubr.f32.mxu0 0.0
        %4882 = vmatmul.mubr.f32.gmra.mrb[0].mxu0 %v4055
        %v4883 = vpop.f32.mrb[0].mxu0
        %v4884 = vadd.f32 0.0, %v4883
        %v4885 = vpop.f32.mrb[0].mxu0
        %4886 = vmatprep.mubr.f32.mxu0 0.0
        %4887 = vmatmul.mubr.f32.gmra.mrb[0].mxu0 %v4058
        %v4888 = vpop.f32.mrb[0].mxu0
        %v4889 = vadd.f32 0.0, %v4888
        %v4890 = vpop.f32.mrb[0].mxu0
        %4891 = vmatprep.mubr.f32.mxu0 0.0
        %4892 = vmatmul.mubr.f32.gmra.mrb[0].mxu0 %v4061
        %v4893 = vpop.f32.mrb[0].mxu0
        %v4894 = vadd.f32 0.0, %v4893
        %v4895 = vpop.f32.mrb[0].mxu0
        %4896 = vmatprep.mubr.f32.mxu0 0.0
        %4897 = vmatmul.mubr.f32.gmra.mrb[0].mxu0 %v4064
        %v4898 = vpop.f32.mrb[0].mxu0
        %v4899 = vadd.f32 0.0, %v4898
        %v4900 = vpop.f32.mrb[0].mxu0
        %4901 = vmatprep.mubr.f32.mxu0 0.0
        %4902 = vmatmul.mubr.f32.gmra.mrb[0].mxu0 %v4067
        %v4903 = vpop.f32.mrb[0].mxu0
        %v4904 = vadd.f32 0.0, %v4903
        %v4905 = vpop.f32.mrb[0].mxu0
        %4906 = vmatprep.mubr.f32.mxu0 0.0
        %4907 = vmatmul.mubr.f32.gmra.mrb[0].mxu0 %v4070
        %v4908 = vpop.f32.mrb[0].mxu0
        %v4909 = vadd.f32 0.0, %v4908
        %v4910 = vpop.f32.mrb[0].mxu0
        %4911 = vmatprep.mubr.f32.mxu0 0.0
        %4912 = vmatmul.mubr.f32.gmra.mrb[0].mxu0 %v4073
        %v4913 = vpop.f32.mrb[0].mxu0
        %v4914 = vadd.f32 0.0, %v4913
        %v4915 = vpop.f32.mrb[0].mxu0
        %4916 = vmatprep.mubr.f32.mxu0 0.0
        %4917 = vmatmul.mubr.f32.gmra.mrb[0].mxu0 %v4076
        %v4918 = vpop.f32.mrb[0].mxu0
        %v4919 = vadd.f32 0.0, %v4918
        %v4920 = vpop.f32.mrb[0].mxu0
        %4921 = vmatprep.mubr.f32.mxu0 0.0
        %4922 = vmatmul.mubr.f32.gmra.mrb[0].mxu0 %v4079
        %v4923 = vpop.f32.mrb[0].mxu0
        %v4924 = vadd.f32 0.0, %v4923
        %v4925 = vpop.f32.mrb[0].mxu0
        %4926 = vmatprep.mubr.f32.mxu0 0.0
        %4927 = vmatmul.mubr.f32.gmra.mrb[0].mxu0 %v4082
        %v4928 = vpop.f32.mrb[0].mxu0
        %v4929 = vadd.f32 0.0, %v4928
        %v4930 = vpop.f32.mrb[0].mxu0
        %4931 = vmatprep.mubr.f32.mxu0 0.0
        %4932 = vmatmul.mubr.f32.gmra.mrb[0].mxu0 %v4709
        %v4933 = vpop.f32.mrb[0].mxu0
        %v4934 = vadd.f32 0.0, %v4933
        %v4935 = vpop.f32.mrb[0].mxu0
        %4936 = vmatprep.mubr.f32.mxu0 0.0
        %4937 = vmatmul.mubr.f32.gmra.mrb[0].mxu0 %v4712
        %v4938 = vpop.f32.mrb[0].mxu0
        %v4939 = vadd.f32 0.0, %v4938
        %v4940 = vpop.f32.mrb[0].mxu0
        %4941 = vdwg.mxu0
        %v4942 = vadd.f32 %v4676, %v4784
        %v4943 = vadd.f32 %v4677, %v4789
        %v4944 = vadd.f32 %v4678, %v4794
        %v4945 = vadd.f32 %v4679, %v4799
        %v4946 = vadd.f32 %v4680, %v4804
        %v4947 = vadd.f32 %v4681, %v4809
        %v4948 = vadd.f32 %v4682, %v4814
        %v4949 = vadd.f32 %v4683, %v4819
        %v4950 = vadd.f32 %v4684, %v4824
        %v4951 = vadd.f32 %v4685, %v4829
        %v4952 = vadd.f32 %v4686, %v4834
        %v4953 = vadd.f32 %v4687, %v4839
        %v4954 = vadd.f32 %v4688, %v4844
        %v4955 = vadd.f32 %v4689, %v4849
        %v4956 = vadd.f32 %v4690, %v4854
        %v4957 = vadd.f32 %v4691, %v4859
        %v4958 = vadd.f32 %v4692, %v4864
        %v4959 = vadd.f32 %v4693, %v4869
        %v4960 = vadd.f32 %v4694, %v4874
        %v4961 = vadd.f32 %v4695, %v4879
        %v4962 = vadd.f32 %v4696, %v4884
        %v4963 = vadd.f32 %v4697, %v4889
        %v4964 = vadd.f32 %v4698, %v4894
        %v4965 = vadd.f32 %v4699, %v4899
        %v4966 = vadd.f32 %v4700, %v4904
        %v4967 = vadd.f32 %v4701, %v4909
        %v4968 = vadd.f32 %v4702, %v4914
        %v4969 = vadd.f32 %v4703, %v4919
        %v4970 = vadd.f32 %v4704, %v4924
        %v4971 = vadd.f32 %v4705, %v4929
        %v4972 = vadd.f32 %v4706, %v4934
        %v4973 = vadd.f32 %v4707, %v4939
        %4974 = vst.msk [vmem:[#allocation2] sm:$0xff] %vm841, %v4942
        %4975 = vst.msk [vmem:[#allocation2 + $0x8] sm:$0xff] %vm841, %v4943
        %4976 = vst.msk [vmem:[#allocation2 + $0x10] sm:$0xff] %vm841, %v4944
        %4977 = vst.msk [vmem:[#allocation2 + $0x18] sm:$0xff] %vm841, %v4945
        %4978 = vst.msk [vmem:[#allocation2 + $0x20] sm:$0xff] %vm841, %v4946
        %4979 = vst.msk [vmem:[#allocation2 + $0x28] sm:$0xff] %vm841, %v4947
        %4980 = vst.msk [vmem:[#allocation2 + $0x30] sm:$0xff] %vm841, %v4948
        %4981 = vst.msk [vmem:[#allocation2 + $0x38] sm:$0xff] %vm841, %v4949
        %4982 = vst.msk [vmem:[#allocation2 + $0x40] sm:$0xff] %vm841, %v4950
        %4983 = vst.msk [vmem:[#allocation2 + $0x48] sm:$0xff] %vm841, %v4951
        %4984 = vst.msk [vmem:[#allocation2 + $0x50] sm:$0xff] %vm841, %v4952
        %4985 = vst.msk [vmem:[#allocation2 + $0x58] sm:$0xff] %vm841, %v4953
        %4986 = vst.msk [vmem:[#allocation2 + $0x60] sm:$0xff] %vm841, %v4954
        %4987 = vst.msk [vmem:[#allocation2 + $0x68] sm:$0xff] %vm841, %v4955
        %4988 = vst.msk [vmem:[#allocation2 + $0x70] sm:$0xff] %vm841, %v4956
        %4989 = vst.msk [vmem:[#allocation2 + $0x78] sm:$0xff] %vm841, %v4957
        %4990 = vst.msk [vmem:[#allocation2 + $0x80] sm:$0xff] %vm841, %v4958
        %4991 = vst.msk [vmem:[#allocation2 + $0x88] sm:$0xff] %vm841, %v4959
        %4992 = vst.msk [vmem:[#allocation2 + $0x90] sm:$0xff] %vm841, %v4960
        %4993 = vst.msk [vmem:[#allocation2 + $0x98] sm:$0xff] %vm841, %v4961
        %4994 = vst.msk [vmem:[#allocation2 + $0xa0] sm:$0xff] %vm841, %v4962
        %4995 = vst.msk [vmem:[#allocation2 + $0xa8] sm:$0xff] %vm841, %v4963
        %4996 = vst.msk [vmem:[#allocation2 + $0xb0] sm:$0xff] %vm841, %v4964
        %4997 = vst.msk [vmem:[#allocation2 + $0xb8] sm:$0xff] %vm841, %v4965
        %4998 = vst.msk [vmem:[#allocation2 + $0xc0] sm:$0xff] %vm841, %v4966
        %4999 = vst.msk [vmem:[#allocation2 + $0xc8] sm:$0xff] %vm841, %v4967
        %5000 = vst.msk [vmem:[#allocation2 + $0xd0] sm:$0xff] %vm841, %v4968
        %5001 = vst.msk [vmem:[#allocation2 + $0xd8] sm:$0xff] %vm841, %v4969
        %5002 = vst.msk [vmem:[#allocation2 + $0xe0] sm:$0xff] %vm841, %v4970
        %5003 = vst.msk [vmem:[#allocation2 + $0xe8] sm:$0xff] %vm841, %v4971
        %5004 = vst.msk [vmem:[#allocation2 + $0xf0] sm:$0xff] %vm841, %v4972
        %5005 = vst.msk [vmem:[#allocation2 + $0xf8] sm:$0xff] %vm841, %v4973
        %v5006 = vld [vmem:[#allocation3] sm:$0xff]
        %v5007 = vld [vmem:[#allocation3 + $0x8] sm:$0xff]
        %v5008 = vld [vmem:[#allocation3 + $0x10] sm:$0xff]
        %v5009 = vld [vmem:[#allocation3 + $0x18] sm:$0xff]
        %v5010 = vld [vmem:[#allocation3 + $0x20] sm:$0xff]
        %v5011 = vld [vmem:[#allocation3 + $0x28] sm:$0xff]
        %v5012 = vld [vmem:[#allocation3 + $0x30] sm:$0xff]
        %v5013 = vld [vmem:[#allocation3 + $0x38] sm:$0xff]
        %v5014 = vld [vmem:[#allocation3 + $0x40] sm:$0xff]
        %v5015 = vld [vmem:[#allocation3 + $0x48] sm:$0xff]
        %v5016 = vld [vmem:[#allocation3 + $0x50] sm:$0xff]
        %v5017 = vld [vmem:[#allocation3 + $0x58] sm:$0xff]
        %v5018 = vld [vmem:[#allocation3 + $0x60] sm:$0xff]
        %v5019 = vld [vmem:[#allocation3 + $0x68] sm:$0xff]
        %v5020 = vld [vmem:[#allocation3 + $0x70] sm:$0xff]
        %v5021 = vld [vmem:[#allocation3 + $0x78] sm:$0xff]
        %v5022 = vld [vmem:[#allocation3 + $0x80] sm:$0xff]
        %v5023 = vld [vmem:[#allocation3 + $0x88] sm:$0xff]
        %v5024 = vld [vmem:[#allocation3 + $0x90] sm:$0xff]
        %v5025 = vld [vmem:[#allocation3 + $0x98] sm:$0xff]
        %v5026 = vld [vmem:[#allocation3 + $0xa0] sm:$0xff]
        %v5027 = vld [vmem:[#allocation3 + $0xa8] sm:$0xff]
        %v5028 = vld [vmem:[#allocation3 + $0xb0] sm:$0xff]
        %v5029 = vld [vmem:[#allocation3 + $0xb8] sm:$0xff]
        %v5030 = vld [vmem:[#allocation3 + $0xc0] sm:$0xff]
        %v5031 = vld [vmem:[#allocation3 + $0xc8] sm:$0xff]
        %v5032 = vld [vmem:[#allocation3 + $0xd0] sm:$0xff]
        %v5033 = vld [vmem:[#allocation3 + $0xd8] sm:$0xff]
        %v5034 = vld [vmem:[#allocation3 + $0xe0] sm:$0xff]
        %v5035 = vld [vmem:[#allocation3 + $0xe8] sm:$0xff]
        %v5036 = vld [vmem:[#allocation3 + $0xf0] sm:$0xff]
        %v5037 = vld [vmem:[#allocation3 + $0xf8] sm:$0xff]
        %v5039 = vsel %vm1565, %v4675, 0
        %5041 = vmatprep.subr.mxu0 0.0
        %5042 = vmatpush1.msra.mxu0 %v4674
        %5043 = vmatprep.subr.mxu0 0.0
        %5044 = vmatpush1.msra.mxu0 %v5039
        %5045 = vmatprep.subr.mxu0 0.0
        %5046 = vmatpush1.msra.mxu0 0.0
        %5047 = vmatprep.subr.mxu0 0.0
        %5048 = vmatpush1.msra.mxu0 0.0
        %5049 = vmatprep.subr.mxu0 0.0
        %5050 = vmatpush1.msra.mxu0 0.0
        %5051 = vmatprep.subr.mxu0 0.0
        %5052 = vmatpush1.msra.mxu0 0.0
        %5053 = vmatprep.subr.mxu0 0.0
        %5054 = vmatpush1.msra.mxu0 0.0
        %5055 = vmatprep.subr.mxu0 0.0
        %5056 = vmatpush1.msra.mxu0 0.0
        %5057 = vmatprep.subr.mxu0 0.0
        %5058 = vmatpush1.msra.mxu0 0.0
        %5059 = vmatprep.subr.mxu0 0.0
        %5060 = vmatpush1.msra.mxu0 0.0
        %5061 = vmatprep.subr.mxu0 0.0
        %5062 = vmatpush1.msra.mxu0 0.0
        %5063 = vmatprep.subr.mxu0 0.0
        %5064 = vmatpush1.msra.mxu0 0.0
        %5065 = vmatprep.subr.mxu0 0.0
        %5066 = vmatpush1.msra.mxu0 0.0
        %5067 = vmatprep.subr.mxu0 0.0
        %5068 = vmatpush1.msra.mxu0 0.0
        %5069 = vmatprep.subr.mxu0 0.0
        %5070 = vmatpush1.msra.mxu0 0.0
        %5071 = vmatprep.subr.mxu0 0.0
        %5072 = vmatpush1.msra.mxu0 0.0
        %5073 = vmatprep.subr.mxu0 0.0
        %5074 = vmatpush1.msra.mxu0 0.0
        %5075 = vmatprep.subr.mxu0 0.0
        %5076 = vmatpush1.msra.mxu0 0.0
        %5077 = vmatprep.subr.mxu0 0.0
        %5078 = vmatpush1.msra.mxu0 0.0
        %5079 = vmatprep.subr.mxu0 0.0
        %5080 = vmatpush1.msra.mxu0 0.0
        %5081 = vmatprep.subr.mxu0 0.0
        %5082 = vmatpush1.msra.mxu0 0.0
        %5083 = vmatprep.subr.mxu0 0.0
        %5084 = vmatpush1.msra.mxu0 0.0
        %5085 = vmatprep.subr.mxu0 0.0
        %5086 = vmatpush1.msra.mxu0 0.0
        %5087 = vmatprep.subr.mxu0 0.0
        %5088 = vmatpush1.msra.mxu0 0.0
        %5089 = vmatprep.subr.mxu0 0.0
        %5090 = vmatpush1.msra.mxu0 0.0
        %5091 = vmatprep.subr.mxu0 0.0
        %5092 = vmatpush1.msra.mxu0 0.0
        %5093 = vmatprep.subr.mxu0 0.0
        %5094 = vmatpush1.msra.mxu0 0.0
        %5095 = vmatprep.subr.mxu0 0.0
        %5096 = vmatpush1.msra.mxu0 0.0
        %5097 = vmatprep.subr.mxu0 0.0
        %5098 = vmatpush1.msra.mxu0 0.0
        %5099 = vmatprep.subr.mxu0 0.0
        %5100 = vmatpush1.msra.mxu0 0.0
        %5101 = vmatprep.subr.mxu0 0.0
        %5102 = vmatpush1.msra.mxu0 0.0
        %5103 = vmatprep.subr.mxu0 0.0
        %5104 = vmatpush1.msra.mxu0 0.0
        %5105 = vmatprep.mubr.f32.mxu0 0.0
        %5106 = vmatmul.mubr.f32.gmra.mrb[0].mxu0 %v3995
        %v5107 = vpop.f32.mrb[0].mxu0
        %v5108 = vadd.f32 0.0, %v5107
        %v5109 = vpop.f32.mrb[0].mxu0
        %5110 = vmatprep.mubr.f32.mxu0 0.0
        %5111 = vmatmul.mubr.f32.gmra.mrb[0].mxu0 %v3998
        %v5112 = vpop.f32.mrb[0].mxu0
        %v5113 = vadd.f32 0.0, %v5112
        %v5114 = vpop.f32.mrb[0].mxu0
        %5115 = vmatprep.mubr.f32.mxu0 0.0
        %5116 = vmatmul.mubr.f32.gmra.mrb[0].mxu0 %v4001
        %v5117 = vpop.f32.mrb[0].mxu0
        %v5118 = vadd.f32 0.0, %v5117
        %v5119 = vpop.f32.mrb[0].mxu0
        %5120 = vmatprep.mubr.f32.mxu0 0.0
        %5121 = vmatmul.mubr.f32.gmra.mrb[0].mxu0 %v4004
        %v5122 = vpop.f32.mrb[0].mxu0
        %v5123 = vadd.f32 0.0, %v5122
        %v5124 = vpop.f32.mrb[0].mxu0
        %5125 = vmatprep.mubr.f32.mxu0 0.0
        %5126 = vmatmul.mubr.f32.gmra.mrb[0].mxu0 %v4007
        %v5127 = vpop.f32.mrb[0].mxu0
        %v5128 = vadd.f32 0.0, %v5127
        %v5129 = vpop.f32.mrb[0].mxu0
        %5130 = vmatprep.mubr.f32.mxu0 0.0
        %5131 = vmatmul.mubr.f32.gmra.mrb[0].mxu0 %v4010
        %v5132 = vpop.f32.mrb[0].mxu0
        %v5133 = vadd.f32 0.0, %v5132
        %v5134 = vpop.f32.mrb[0].mxu0
        %5135 = vmatprep.mubr.f32.mxu0 0.0
        %5136 = vmatmul.mubr.f32.gmra.mrb[0].mxu0 %v4013
        %v5137 = vpop.f32.mrb[0].mxu0
        %v5138 = vadd.f32 0.0, %v5137
        %v5139 = vpop.f32.mrb[0].mxu0
        %5140 = vmatprep.mubr.f32.mxu0 0.0
        %5141 = vmatmul.mubr.f32.gmra.mrb[0].mxu0 %v4016
        %v5142 = vpop.f32.mrb[0].mxu0
        %v5143 = vadd.f32 0.0, %v5142
        %v5144 = vpop.f32.mrb[0].mxu0
        %5145 = vmatprep.mubr.f32.mxu0 0.0
        %5146 = vmatmul.mubr.f32.gmra.mrb[0].mxu0 %v4019
        %v5147 = vpop.f32.mrb[0].mxu0
        %v5148 = vadd.f32 0.0, %v5147
        %v5149 = vpop.f32.mrb[0].mxu0
        %5150 = vmatprep.mubr.f32.mxu0 0.0
        %5151 = vmatmul.mubr.f32.gmra.mrb[0].mxu0 %v4022
        %v5152 = vpop.f32.mrb[0].mxu0
        %v5153 = vadd.f32 0.0, %v5152
        %v5154 = vpop.f32.mrb[0].mxu0
        %5155 = vmatprep.mubr.f32.mxu0 0.0
        %5156 = vmatmul.mubr.f32.gmra.mrb[0].mxu0 %v4025
        %v5157 = vpop.f32.mrb[0].mxu0
        %v5158 = vadd.f32 0.0, %v5157
        %v5159 = vpop.f32.mrb[0].mxu0
        %5160 = vmatprep.mubr.f32.mxu0 0.0
        %5161 = vmatmul.mubr.f32.gmra.mrb[0].mxu0 %v4028
        %v5162 = vpop.f32.mrb[0].mxu0
        %v5163 = vadd.f32 0.0, %v5162
        %v5164 = vpop.f32.mrb[0].mxu0
        %5165 = vmatprep.mubr.f32.mxu0 0.0
        %5166 = vmatmul.mubr.f32.gmra.mrb[0].mxu0 %v4031
        %v5167 = vpop.f32.mrb[0].mxu0
        %v5168 = vadd.f32 0.0, %v5167
        %v5169 = vpop.f32.mrb[0].mxu0
        %5170 = vmatprep.mubr.f32.mxu0 0.0
        %5171 = vmatmul.mubr.f32.gmra.mrb[0].mxu0 %v4034
        %v5172 = vpop.f32.mrb[0].mxu0
        %v5173 = vadd.f32 0.0, %v5172
        %v5174 = vpop.f32.mrb[0].mxu0
        %5175 = vmatprep.mubr.f32.mxu0 0.0
        %5176 = vmatmul.mubr.f32.gmra.mrb[0].mxu0 %v4037
        %v5177 = vpop.f32.mrb[0].mxu0
        %v5178 = vadd.f32 0.0, %v5177
        %v5179 = vpop.f32.mrb[0].mxu0
        %5180 = vmatprep.mubr.f32.mxu0 0.0
        %5181 = vmatmul.mubr.f32.gmra.mrb[0].mxu0 %v4040
        %v5182 = vpop.f32.mrb[0].mxu0
        %v5183 = vadd.f32 0.0, %v5182
        %v5184 = vpop.f32.mrb[0].mxu0
        %5185 = vmatprep.mubr.f32.mxu0 0.0
        %5186 = vmatmul.mubr.f32.gmra.mrb[0].mxu0 %v4043
        %v5187 = vpop.f32.mrb[0].mxu0
        %v5188 = vadd.f32 0.0, %v5187
        %v5189 = vpop.f32.mrb[0].mxu0
        %5190 = vmatprep.mubr.f32.mxu0 0.0
        %5191 = vmatmul.mubr.f32.gmra.mrb[0].mxu0 %v4046
        %v5192 = vpop.f32.mrb[0].mxu0
        %v5193 = vadd.f32 0.0, %v5192
        %v5194 = vpop.f32.mrb[0].mxu0
        %5195 = vmatprep.mubr.f32.mxu0 0.0
        %5196 = vmatmul.mubr.f32.gmra.mrb[0].mxu0 %v4049
        %v5197 = vpop.f32.mrb[0].mxu0
        %v5198 = vadd.f32 0.0, %v5197
        %v5199 = vpop.f32.mrb[0].mxu0
        %5200 = vmatprep.mubr.f32.mxu0 0.0
        %5201 = vmatmul.mubr.f32.gmra.mrb[0].mxu0 %v4052
        %v5202 = vpop.f32.mrb[0].mxu0
        %v5203 = vadd.f32 0.0, %v5202
        %v5204 = vpop.f32.mrb[0].mxu0
        %5205 = vmatprep.mubr.f32.mxu0 0.0
        %5206 = vmatmul.mubr.f32.gmra.mrb[0].mxu0 %v4055
        %v5207 = vpop.f32.mrb[0].mxu0
        %v5208 = vadd.f32 0.0, %v5207
        %v5209 = vpop.f32.mrb[0].mxu0
        %5210 = vmatprep.mubr.f32.mxu0 0.0
        %5211 = vmatmul.mubr.f32.gmra.mrb[0].mxu0 %v4058
        %v5212 = vpop.f32.mrb[0].mxu0
        %v5213 = vadd.f32 0.0, %v5212
        %v5214 = vpop.f32.mrb[0].mxu0
        %5215 = vmatprep.mubr.f32.mxu0 0.0
        %5216 = vmatmul.mubr.f32.gmra.mrb[0].mxu0 %v4061
        %v5217 = vpop.f32.mrb[0].mxu0
        %v5218 = vadd.f32 0.0, %v5217
        %v5219 = vpop.f32.mrb[0].mxu0
        %5220 = vmatprep.mubr.f32.mxu0 0.0
        %5221 = vmatmul.mubr.f32.gmra.mrb[0].mxu0 %v4064
        %v5222 = vpop.f32.mrb[0].mxu0
        %v5223 = vadd.f32 0.0, %v5222
        %v5224 = vpop.f32.mrb[0].mxu0
        %5225 = vmatprep.mubr.f32.mxu0 0.0
        %5226 = vmatmul.mubr.f32.gmra.mrb[0].mxu0 %v4067
        %v5227 = vpop.f32.mrb[0].mxu0
        %v5228 = vadd.f32 0.0, %v5227
        %v5229 = vpop.f32.mrb[0].mxu0
        %5230 = vmatprep.mubr.f32.mxu0 0.0
        %5231 = vmatmul.mubr.f32.gmra.mrb[0].mxu0 %v4070
        %v5232 = vpop.f32.mrb[0].mxu0
        %v5233 = vadd.f32 0.0, %v5232
        %v5234 = vpop.f32.mrb[0].mxu0
        %5235 = vmatprep.mubr.f32.mxu0 0.0
        %5236 = vmatmul.mubr.f32.gmra.mrb[0].mxu0 %v4073
        %v5237 = vpop.f32.mrb[0].mxu0
        %v5238 = vadd.f32 0.0, %v5237
        %v5239 = vpop.f32.mrb[0].mxu0
        %5240 = vmatprep.mubr.f32.mxu0 0.0
        %5241 = vmatmul.mubr.f32.gmra.mrb[0].mxu0 %v4076
        %v5242 = vpop.f32.mrb[0].mxu0
        %v5243 = vadd.f32 0.0, %v5242
        %v5244 = vpop.f32.mrb[0].mxu0
        %5245 = vmatprep.mubr.f32.mxu0 0.0
        %5246 = vmatmul.mubr.f32.gmra.mrb[0].mxu0 %v4079
        %v5247 = vpop.f32.mrb[0].mxu0
        %v5248 = vadd.f32 0.0, %v5247
        %v5249 = vpop.f32.mrb[0].mxu0
        %5250 = vmatprep.mubr.f32.mxu0 0.0
        %5251 = vmatmul.mubr.f32.gmra.mrb[0].mxu0 %v4082
        %v5252 = vpop.f32.mrb[0].mxu0
        %v5253 = vadd.f32 0.0, %v5252
        %v5254 = vpop.f32.mrb[0].mxu0
        %5255 = vmatprep.mubr.f32.mxu0 0.0
        %5256 = vmatmul.mubr.f32.gmra.mrb[0].mxu0 %v4709
        %v5257 = vpop.f32.mrb[0].mxu0
        %v5258 = vadd.f32 0.0, %v5257
        %v5259 = vpop.f32.mrb[0].mxu0
        %5260 = vmatprep.mubr.f32.mxu0 0.0
        %5261 = vmatmul.mubr.f32.gmra.mrb[0].mxu0 %v4712
        %v5262 = vpop.f32.mrb[0].mxu0
        %v5263 = vadd.f32 0.0, %v5262
        %v5264 = vpop.f32.mrb[0].mxu0
        %5265 = vdwg.mxu0
        %v5266 = vadd.f32 %v5006, %v5108
        %v5267 = vadd.f32 %v5007, %v5113
        %v5268 = vadd.f32 %v5008, %v5118
        %v5269 = vadd.f32 %v5009, %v5123
        %v5270 = vadd.f32 %v5010, %v5128
        %v5271 = vadd.f32 %v5011, %v5133
        %v5272 = vadd.f32 %v5012, %v5138
        %v5273 = vadd.f32 %v5013, %v5143
        %v5274 = vadd.f32 %v5014, %v5148
        %v5275 = vadd.f32 %v5015, %v5153
        %v5276 = vadd.f32 %v5016, %v5158
        %v5277 = vadd.f32 %v5017, %v5163
        %v5278 = vadd.f32 %v5018, %v5168
        %v5279 = vadd.f32 %v5019, %v5173
        %v5280 = vadd.f32 %v5020, %v5178
        %v5281 = vadd.f32 %v5021, %v5183
        %v5282 = vadd.f32 %v5022, %v5188
        %v5283 = vadd.f32 %v5023, %v5193
        %v5284 = vadd.f32 %v5024, %v5198
        %v5285 = vadd.f32 %v5025, %v5203
        %v5286 = vadd.f32 %v5026, %v5208
        %v5287 = vadd.f32 %v5027, %v5213
        %v5288 = vadd.f32 %v5028, %v5218
        %v5289 = vadd.f32 %v5029, %v5223
        %v5290 = vadd.f32 %v5030, %v5228
        %v5291 = vadd.f32 %v5031, %v5233
        %v5292 = vadd.f32 %v5032, %v5238
        %v5293 = vadd.f32 %v5033, %v5243
        %v5294 = vadd.f32 %v5034, %v5248
        %v5295 = vadd.f32 %v5035, %v5253
        %v5296 = vadd.f32 %v5036, %v5258
        %v5297 = vadd.f32 %v5037, %v5263
        %5298 = vst.msk [vmem:[#allocation3] sm:$0xff] %vm841, %v5266
        %5299 = vst.msk [vmem:[#allocation3 + $0x8] sm:$0xff] %vm841, %v5267
        %5300 = vst.msk [vmem:[#allocation3 + $0x10] sm:$0xff] %vm841, %v5268
        %5301 = vst.msk [vmem:[#allocation3 + $0x18] sm:$0xff] %vm841, %v5269
        %5302 = vst.msk [vmem:[#allocation3 + $0x20] sm:$0xff] %vm841, %v5270
        %5303 = vst.msk [vmem:[#allocation3 + $0x28] sm:$0xff] %vm841, %v5271
        %5304 = vst.msk [vmem:[#allocation3 + $0x30] sm:$0xff] %vm841, %v5272
        %5305 = vst.msk [vmem:[#allocation3 + $0x38] sm:$0xff] %vm841, %v5273
        %5306 = vst.msk [vmem:[#allocation3 + $0x40] sm:$0xff] %vm841, %v5274
        %5307 = vst.msk [vmem:[#allocation3 + $0x48] sm:$0xff] %vm841, %v5275
        %5308 = vst.msk [vmem:[#allocation3 + $0x50] sm:$0xff] %vm841, %v5276
        %5309 = vst.msk [vmem:[#allocation3 + $0x58] sm:$0xff] %vm841, %v5277
        %5310 = vst.msk [vmem:[#allocation3 + $0x60] sm:$0xff] %vm841, %v5278
        %5311 = vst.msk [vmem:[#allocation3 + $0x68] sm:$0xff] %vm841, %v5279
        %5312 = vst.msk [vmem:[#allocation3 + $0x70] sm:$0xff] %vm841, %v5280
        %5313 = vst.msk [vmem:[#allocation3 + $0x78] sm:$0xff] %vm841, %v5281
        %5314 = vst.msk [vmem:[#allocation3 + $0x80] sm:$0xff] %vm841, %v5282
        %5315 = vst.msk [vmem:[#allocation3 + $0x88] sm:$0xff] %vm841, %v5283
        %5316 = vst.msk [vmem:[#allocation3 + $0x90] sm:$0xff] %vm841, %v5284
        %5317 = vst.msk [vmem:[#allocation3 + $0x98] sm:$0xff] %vm841, %v5285
        %5318 = vst.msk [vmem:[#allocation3 + $0xa0] sm:$0xff] %vm841, %v5286
        %5319 = vst.msk [vmem:[#allocation3 + $0xa8] sm:$0xff] %vm841, %v5287
        %5320 = vst.msk [vmem:[#allocation3 + $0xb0] sm:$0xff] %vm841, %v5288
        %5321 = vst.msk [vmem:[#allocation3 + $0xb8] sm:$0xff] %vm841, %v5289
        %5322 = vst.msk [vmem:[#allocation3 + $0xc0] sm:$0xff] %vm841, %v5290
        %5323 = vst.msk [vmem:[#allocation3 + $0xc8] sm:$0xff] %vm841, %v5291
        %5324 = vst.msk [vmem:[#allocation3 + $0xd0] sm:$0xff] %vm841, %v5292
        %5325 = vst.msk [vmem:[#allocation3 + $0xd8] sm:$0xff] %vm841, %v5293
        %5326 = vst.msk [vmem:[#allocation3 + $0xe0] sm:$0xff] %vm841, %v5294
        %5327 = vst.msk [vmem:[#allocation3 + $0xe8] sm:$0xff] %vm841, %v5295
        %5328 = vst.msk [vmem:[#allocation3 + $0xf0] sm:$0xff] %vm841, %v5296
        %5329 = vst.msk [vmem:[#allocation3 + $0xf8] sm:$0xff] %vm841, %v5297
        %s5330 = scalar_lea.vmem [#allocation8], 80
        %v5331 = vld [vmem:[%s5330] sm:$0xff]
        %v5332 = vld [vmem:[%s5330 + $0x8] sm:$0xf]
        %s5333 = scalar_lea.vmem [#allocation10], 80
        %v5334 = vld [vmem:[%s5333] sm:$0xff]
        %v5335 = vld [vmem:[%s5333 + $0x8] sm:$0xf]
        %v5336 = vld [vmem:[#allocation2] sm:$0xff]
        %v5337 = vld [vmem:[#allocation2 + $0x8] sm:$0xff]
        %v5338 = vld [vmem:[#allocation2 + $0x10] sm:$0xff]
        %v5339 = vld [vmem:[#allocation2 + $0x18] sm:$0xff]
        %v5340 = vld [vmem:[#allocation2 + $0x20] sm:$0xff]
        %v5341 = vld [vmem:[#allocation2 + $0x28] sm:$0xff]
        %v5342 = vld [vmem:[#allocation2 + $0x30] sm:$0xff]
        %v5343 = vld [vmem:[#allocation2 + $0x38] sm:$0xff]
        %v5344 = vld [vmem:[#allocation2 + $0x40] sm:$0xff]
        %v5345 = vld [vmem:[#allocation2 + $0x48] sm:$0xff]
        %v5346 = vld [vmem:[#allocation2 + $0x50] sm:$0xff]
        %v5347 = vld [vmem:[#allocation2 + $0x58] sm:$0xff]
        %v5348 = vld [vmem:[#allocation2 + $0x60] sm:$0xff]
        %v5349 = vld [vmem:[#allocation2 + $0x68] sm:$0xff]
        %v5350 = vld [vmem:[#allocation2 + $0x70] sm:$0xff]
        %v5351 = vld [vmem:[#allocation2 + $0x78] sm:$0xff]
        %v5352 = vld [vmem:[#allocation2 + $0x80] sm:$0xff]
        %v5353 = vld [vmem:[#allocation2 + $0x88] sm:$0xff]
        %v5354 = vld [vmem:[#allocation2 + $0x90] sm:$0xff]
        %v5355 = vld [vmem:[#allocation2 + $0x98] sm:$0xff]
        %v5356 = vld [vmem:[#allocation2 + $0xa0] sm:$0xff]
        %v5357 = vld [vmem:[#allocation2 + $0xa8] sm:$0xff]
        %v5358 = vld [vmem:[#allocation2 + $0xb0] sm:$0xff]
        %v5359 = vld [vmem:[#allocation2 + $0xb8] sm:$0xff]
        %v5360 = vld [vmem:[#allocation2 + $0xc0] sm:$0xff]
        %v5361 = vld [vmem:[#allocation2 + $0xc8] sm:$0xff]
        %v5362 = vld [vmem:[#allocation2 + $0xd0] sm:$0xff]
        %v5363 = vld [vmem:[#allocation2 + $0xd8] sm:$0xff]
        %v5364 = vld [vmem:[#allocation2 + $0xe0] sm:$0xff]
        %v5365 = vld [vmem:[#allocation2 + $0xe8] sm:$0xff]
        %v5367 = vsel %vm1565, %v5332, 0
        %5369 = vmatprep.subr.mxu0 0.0
        %5370 = vmatpush1.msra.mxu0 %v5331
        %5371 = vmatprep.subr.mxu0 0.0
        %5372 = vmatpush1.msra.mxu0 %v5367
        %5373 = vmatprep.subr.mxu0 0.0
        %5374 = vmatpush1.msra.mxu0 0.0
        %5375 = vmatprep.subr.mxu0 0.0
        %5376 = vmatpush1.msra.mxu0 0.0
        %5377 = vmatprep.subr.mxu0 0.0
        %5378 = vmatpush1.msra.mxu0 0.0
        %5379 = vmatprep.subr.mxu0 0.0
        %5380 = vmatpush1.msra.mxu0 0.0
        %5381 = vmatprep.subr.mxu0 0.0
        %5382 = vmatpush1.msra.mxu0 0.0
        %5383 = vmatprep.subr.mxu0 0.0
        %5384 = vmatpush1.msra.mxu0 0.0
        %5385 = vmatprep.subr.mxu0 0.0
        %5386 = vmatpush1.msra.mxu0 0.0
        %5387 = vmatprep.subr.mxu0 0.0
        %5388 = vmatpush1.msra.mxu0 0.0
        %5389 = vmatprep.subr.mxu0 0.0
        %5390 = vmatpush1.msra.mxu0 0.0
        %5391 = vmatprep.subr.mxu0 0.0
        %5392 = vmatpush1.msra.mxu0 0.0
        %5393 = vmatprep.subr.mxu0 0.0
        %5394 = vmatpush1.msra.mxu0 0.0
        %5395 = vmatprep.subr.mxu0 0.0
        %5396 = vmatpush1.msra.mxu0 0.0
        %5397 = vmatprep.subr.mxu0 0.0
        %5398 = vmatpush1.msra.mxu0 0.0
        %5399 = vmatprep.subr.mxu0 0.0
        %5400 = vmatpush1.msra.mxu0 0.0
        %5401 = vmatprep.subr.mxu0 0.0
        %5402 = vmatpush1.msra.mxu0 0.0
        %5403 = vmatprep.subr.mxu0 0.0
        %5404 = vmatpush1.msra.mxu0 0.0
        %5405 = vmatprep.subr.mxu0 0.0
        %5406 = vmatpush1.msra.mxu0 0.0
        %5407 = vmatprep.subr.mxu0 0.0
        %5408 = vmatpush1.msra.mxu0 0.0
        %5409 = vmatprep.subr.mxu0 0.0
        %5410 = vmatpush1.msra.mxu0 0.0
        %5411 = vmatprep.subr.mxu0 0.0
        %5412 = vmatpush1.msra.mxu0 0.0
        %5413 = vmatprep.subr.mxu0 0.0
        %5414 = vmatpush1.msra.mxu0 0.0
        %5415 = vmatprep.subr.mxu0 0.0
        %5416 = vmatpush1.msra.mxu0 0.0
        %5417 = vmatprep.subr.mxu0 0.0
        %5418 = vmatpush1.msra.mxu0 0.0
        %5419 = vmatprep.subr.mxu0 0.0
        %5420 = vmatpush1.msra.mxu0 0.0
        %5421 = vmatprep.subr.mxu0 0.0
        %5422 = vmatpush1.msra.mxu0 0.0
        %5423 = vmatprep.subr.mxu0 0.0
        %5424 = vmatpush1.msra.mxu0 0.0
        %5425 = vmatprep.subr.mxu0 0.0
        %5426 = vmatpush1.msra.mxu0 0.0
        %5427 = vmatprep.subr.mxu0 0.0
        %5428 = vmatpush1.msra.mxu0 0.0
        %5429 = vmatprep.subr.mxu0 0.0
        %5430 = vmatpush1.msra.mxu0 0.0
        %5431 = vmatprep.subr.mxu0 0.0
        %5432 = vmatpush1.msra.mxu0 0.0
        %5433 = vmatprep.mubr.f32.mxu0 0.0
        %5434 = vmatmul.mubr.f32.gmra.mrb[0].mxu0 %v4001
        %v5435 = vpop.f32.mrb[0].mxu0
        %v5436 = vadd.f32 0.0, %v5435
        %v5437 = vpop.f32.mrb[0].mxu0
        %5438 = vmatprep.mubr.f32.mxu0 0.0
        %5439 = vmatmul.mubr.f32.gmra.mrb[0].mxu0 %v4004
        %v5440 = vpop.f32.mrb[0].mxu0
        %v5441 = vadd.f32 0.0, %v5440
        %v5442 = vpop.f32.mrb[0].mxu0
        %5443 = vmatprep.mubr.f32.mxu0 0.0
        %5444 = vmatmul.mubr.f32.gmra.mrb[0].mxu0 %v4007
        %v5445 = vpop.f32.mrb[0].mxu0
        %v5446 = vadd.f32 0.0, %v5445
        %v5447 = vpop.f32.mrb[0].mxu0
        %5448 = vmatprep.mubr.f32.mxu0 0.0
        %5449 = vmatmul.mubr.f32.gmra.mrb[0].mxu0 %v4010
        %v5450 = vpop.f32.mrb[0].mxu0
        %v5451 = vadd.f32 0.0, %v5450
        %v5452 = vpop.f32.mrb[0].mxu0
        %5453 = vmatprep.mubr.f32.mxu0 0.0
        %5454 = vmatmul.mubr.f32.gmra.mrb[0].mxu0 %v4013
        %v5455 = vpop.f32.mrb[0].mxu0
        %v5456 = vadd.f32 0.0, %v5455
        %v5457 = vpop.f32.mrb[0].mxu0
        %5458 = vmatprep.mubr.f32.mxu0 0.0
        %5459 = vmatmul.mubr.f32.gmra.mrb[0].mxu0 %v4016
        %v5460 = vpop.f32.mrb[0].mxu0
        %v5461 = vadd.f32 0.0, %v5460
        %v5462 = vpop.f32.mrb[0].mxu0
        %5463 = vmatprep.mubr.f32.mxu0 0.0
        %5464 = vmatmul.mubr.f32.gmra.mrb[0].mxu0 %v4019
        %v5465 = vpop.f32.mrb[0].mxu0
        %v5466 = vadd.f32 0.0, %v5465
        %v5467 = vpop.f32.mrb[0].mxu0
        %5468 = vmatprep.mubr.f32.mxu0 0.0
        %5469 = vmatmul.mubr.f32.gmra.mrb[0].mxu0 %v4022
        %v5470 = vpop.f32.mrb[0].mxu0
        %v5471 = vadd.f32 0.0, %v5470
        %v5472 = vpop.f32.mrb[0].mxu0
        %5473 = vmatprep.mubr.f32.mxu0 0.0
        %5474 = vmatmul.mubr.f32.gmra.mrb[0].mxu0 %v4025
        %v5475 = vpop.f32.mrb[0].mxu0
        %v5476 = vadd.f32 0.0, %v5475
        %v5477 = vpop.f32.mrb[0].mxu0
        %5478 = vmatprep.mubr.f32.mxu0 0.0
        %5479 = vmatmul.mubr.f32.gmra.mrb[0].mxu0 %v4028
        %v5480 = vpop.f32.mrb[0].mxu0
        %v5481 = vadd.f32 0.0, %v5480
        %v5482 = vpop.f32.mrb[0].mxu0
        %5483 = vmatprep.mubr.f32.mxu0 0.0
        %5484 = vmatmul.mubr.f32.gmra.mrb[0].mxu0 %v4031
        %v5485 = vpop.f32.mrb[0].mxu0
        %v5486 = vadd.f32 0.0, %v5485
        %v5487 = vpop.f32.mrb[0].mxu0
        %5488 = vmatprep.mubr.f32.mxu0 0.0
        %5489 = vmatmul.mubr.f32.gmra.mrb[0].mxu0 %v4034
        %v5490 = vpop.f32.mrb[0].mxu0
        %v5491 = vadd.f32 0.0, %v5490
        %v5492 = vpop.f32.mrb[0].mxu0
        %5493 = vmatprep.mubr.f32.mxu0 0.0
        %5494 = vmatmul.mubr.f32.gmra.mrb[0].mxu0 %v4037
        %v5495 = vpop.f32.mrb[0].mxu0
        %v5496 = vadd.f32 0.0, %v5495
        %v5497 = vpop.f32.mrb[0].mxu0
        %5498 = vmatprep.mubr.f32.mxu0 0.0
        %5499 = vmatmul.mubr.f32.gmra.mrb[0].mxu0 %v4040
        %v5500 = vpop.f32.mrb[0].mxu0
        %v5501 = vadd.f32 0.0, %v5500
        %v5502 = vpop.f32.mrb[0].mxu0
        %5503 = vmatprep.mubr.f32.mxu0 0.0
        %5504 = vmatmul.mubr.f32.gmra.mrb[0].mxu0 %v4043
        %v5505 = vpop.f32.mrb[0].mxu0
        %v5506 = vadd.f32 0.0, %v5505
        %v5507 = vpop.f32.mrb[0].mxu0
        %5508 = vmatprep.mubr.f32.mxu0 0.0
        %5509 = vmatmul.mubr.f32.gmra.mrb[0].mxu0 %v4046
        %v5510 = vpop.f32.mrb[0].mxu0
        %v5511 = vadd.f32 0.0, %v5510
        %v5512 = vpop.f32.mrb[0].mxu0
        %5513 = vmatprep.mubr.f32.mxu0 0.0
        %5514 = vmatmul.mubr.f32.gmra.mrb[0].mxu0 %v4049
        %v5515 = vpop.f32.mrb[0].mxu0
        %v5516 = vadd.f32 0.0, %v5515
        %v5517 = vpop.f32.mrb[0].mxu0
        %5518 = vmatprep.mubr.f32.mxu0 0.0
        %5519 = vmatmul.mubr.f32.gmra.mrb[0].mxu0 %v4052
        %v5520 = vpop.f32.mrb[0].mxu0
        %v5521 = vadd.f32 0.0, %v5520
        %v5522 = vpop.f32.mrb[0].mxu0
        %5523 = vmatprep.mubr.f32.mxu0 0.0
        %5524 = vmatmul.mubr.f32.gmra.mrb[0].mxu0 %v4055
        %v5525 = vpop.f32.mrb[0].mxu0
        %v5526 = vadd.f32 0.0, %v5525
        %v5527 = vpop.f32.mrb[0].mxu0
        %5528 = vmatprep.mubr.f32.mxu0 0.0
        %5529 = vmatmul.mubr.f32.gmra.mrb[0].mxu0 %v4058
        %v5530 = vpop.f32.mrb[0].mxu0
        %v5531 = vadd.f32 0.0, %v5530
        %v5532 = vpop.f32.mrb[0].mxu0
        %5533 = vmatprep.mubr.f32.mxu0 0.0
        %5534 = vmatmul.mubr.f32.gmra.mrb[0].mxu0 %v4061
        %v5535 = vpop.f32.mrb[0].mxu0
        %v5536 = vadd.f32 0.0, %v5535
        %v5537 = vpop.f32.mrb[0].mxu0
        %5538 = vmatprep.mubr.f32.mxu0 0.0
        %5539 = vmatmul.mubr.f32.gmra.mrb[0].mxu0 %v4064
        %v5540 = vpop.f32.mrb[0].mxu0
        %v5541 = vadd.f32 0.0, %v5540
        %v5542 = vpop.f32.mrb[0].mxu0
        %5543 = vmatprep.mubr.f32.mxu0 0.0
        %5544 = vmatmul.mubr.f32.gmra.mrb[0].mxu0 %v4067
        %v5545 = vpop.f32.mrb[0].mxu0
        %v5546 = vadd.f32 0.0, %v5545
        %v5547 = vpop.f32.mrb[0].mxu0
        %5548 = vmatprep.mubr.f32.mxu0 0.0
        %5549 = vmatmul.mubr.f32.gmra.mrb[0].mxu0 %v4070
        %v5550 = vpop.f32.mrb[0].mxu0
        %v5551 = vadd.f32 0.0, %v5550
        %v5552 = vpop.f32.mrb[0].mxu0
        %5553 = vmatprep.mubr.f32.mxu0 0.0
        %5554 = vmatmul.mubr.f32.gmra.mrb[0].mxu0 %v4073
        %v5555 = vpop.f32.mrb[0].mxu0
        %v5556 = vadd.f32 0.0, %v5555
        %v5557 = vpop.f32.mrb[0].mxu0
        %5558 = vmatprep.mubr.f32.mxu0 0.0
        %5559 = vmatmul.mubr.f32.gmra.mrb[0].mxu0 %v4076
        %v5560 = vpop.f32.mrb[0].mxu0
        %v5561 = vadd.f32 0.0, %v5560
        %v5562 = vpop.f32.mrb[0].mxu0
        %5563 = vmatprep.mubr.f32.mxu0 0.0
        %5564 = vmatmul.mubr.f32.gmra.mrb[0].mxu0 %v4079
        %v5565 = vpop.f32.mrb[0].mxu0
        %v5566 = vadd.f32 0.0, %v5565
        %v5567 = vpop.f32.mrb[0].mxu0
        %5568 = vmatprep.mubr.f32.mxu0 0.0
        %5569 = vmatmul.mubr.f32.gmra.mrb[0].mxu0 %v4082
        %v5570 = vpop.f32.mrb[0].mxu0
        %v5571 = vadd.f32 0.0, %v5570
        %v5572 = vpop.f32.mrb[0].mxu0
        %5573 = vmatprep.mubr.f32.mxu0 0.0
        %5574 = vmatmul.mubr.f32.gmra.mrb[0].mxu0 %v4709
        %v5575 = vpop.f32.mrb[0].mxu0
        %v5576 = vadd.f32 0.0, %v5575
        %v5577 = vpop.f32.mrb[0].mxu0
        %5578 = vmatprep.mubr.f32.mxu0 0.0
        %5579 = vmatmul.mubr.f32.gmra.mrb[0].mxu0 %v4712
        %v5580 = vpop.f32.mrb[0].mxu0
        %v5581 = vadd.f32 0.0, %v5580
        %v5582 = vpop.f32.mrb[0].mxu0
        %5583 = vdwg.mxu0
        %v5584 = vadd.f32 %v5336, %v5436
        %v5585 = vadd.f32 %v5337, %v5441
        %v5586 = vadd.f32 %v5338, %v5446
        %v5587 = vadd.f32 %v5339, %v5451
        %v5588 = vadd.f32 %v5340, %v5456
        %v5589 = vadd.f32 %v5341, %v5461
        %v5590 = vadd.f32 %v5342, %v5466
        %v5591 = vadd.f32 %v5343, %v5471
        %v5592 = vadd.f32 %v5344, %v5476
        %v5593 = vadd.f32 %v5345, %v5481
        %v5594 = vadd.f32 %v5346, %v5486
        %v5595 = vadd.f32 %v5347, %v5491
        %v5596 = vadd.f32 %v5348, %v5496
        %v5597 = vadd.f32 %v5349, %v5501
        %v5598 = vadd.f32 %v5350, %v5506
        %v5599 = vadd.f32 %v5351, %v5511
        %v5600 = vadd.f32 %v5352, %v5516
        %v5601 = vadd.f32 %v5353, %v5521
        %v5602 = vadd.f32 %v5354, %v5526
        %v5603 = vadd.f32 %v5355, %v5531
        %v5604 = vadd.f32 %v5356, %v5536
        %v5605 = vadd.f32 %v5357, %v5541
        %v5606 = vadd.f32 %v5358, %v5546
        %v5607 = vadd.f32 %v5359, %v5551
        %v5608 = vadd.f32 %v5360, %v5556
        %v5609 = vadd.f32 %v5361, %v5561
        %v5610 = vadd.f32 %v5362, %v5566
        %v5611 = vadd.f32 %v5363, %v5571
        %v5612 = vadd.f32 %v5364, %v5576
        %v5613 = vadd.f32 %v5365, %v5581
        %5614 = vst.msk [vmem:[#allocation2] sm:$0xff] %vm841, %v5584
        %5615 = vst.msk [vmem:[#allocation2 + $0x8] sm:$0xff] %vm841, %v5585
        %5616 = vst.msk [vmem:[#allocation2 + $0x10] sm:$0xff] %vm841, %v5586
        %5617 = vst.msk [vmem:[#allocation2 + $0x18] sm:$0xff] %vm841, %v5587
        %5618 = vst.msk [vmem:[#allocation2 + $0x20] sm:$0xff] %vm841, %v5588
        %5619 = vst.msk [vmem:[#allocation2 + $0x28] sm:$0xff] %vm841, %v5589
        %5620 = vst.msk [vmem:[#allocation2 + $0x30] sm:$0xff] %vm841, %v5590
        %5621 = vst.msk [vmem:[#allocation2 + $0x38] sm:$0xff] %vm841, %v5591
        %5622 = vst.msk [vmem:[#allocation2 + $0x40] sm:$0xff] %vm841, %v5592
        %5623 = vst.msk [vmem:[#allocation2 + $0x48] sm:$0xff] %vm841, %v5593
        %5624 = vst.msk [vmem:[#allocation2 + $0x50] sm:$0xff] %vm841, %v5594
        %5625 = vst.msk [vmem:[#allocation2 + $0x58] sm:$0xff] %vm841, %v5595
        %5626 = vst.msk [vmem:[#allocation2 + $0x60] sm:$0xff] %vm841, %v5596
        %5627 = vst.msk [vmem:[#allocation2 + $0x68] sm:$0xff] %vm841, %v5597
        %5628 = vst.msk [vmem:[#allocation2 + $0x70] sm:$0xff] %vm841, %v5598
        %5629 = vst.msk [vmem:[#allocation2 + $0x78] sm:$0xff] %vm841, %v5599
        %5630 = vst.msk [vmem:[#allocation2 + $0x80] sm:$0xff] %vm841, %v5600
        %5631 = vst.msk [vmem:[#allocation2 + $0x88] sm:$0xff] %vm841, %v5601
        %5632 = vst.msk [vmem:[#allocation2 + $0x90] sm:$0xff] %vm841, %v5602
        %5633 = vst.msk [vmem:[#allocation2 + $0x98] sm:$0xff] %vm841, %v5603
        %5634 = vst.msk [vmem:[#allocation2 + $0xa0] sm:$0xff] %vm841, %v5604
        %5635 = vst.msk [vmem:[#allocation2 + $0xa8] sm:$0xff] %vm841, %v5605
        %5636 = vst.msk [vmem:[#allocation2 + $0xb0] sm:$0xff] %vm841, %v5606
        %5637 = vst.msk [vmem:[#allocation2 + $0xb8] sm:$0xff] %vm841, %v5607
        %5638 = vst.msk [vmem:[#allocation2 + $0xc0] sm:$0xff] %vm841, %v5608
        %5639 = vst.msk [vmem:[#allocation2 + $0xc8] sm:$0xff] %vm841, %v5609
        %5640 = vst.msk [vmem:[#allocation2 + $0xd0] sm:$0xff] %vm841, %v5610
        %5641 = vst.msk [vmem:[#allocation2 + $0xd8] sm:$0xff] %vm841, %v5611
        %5642 = vst.msk [vmem:[#allocation2 + $0xe0] sm:$0xff] %vm841, %v5612
        %5643 = vst.msk [vmem:[#allocation2 + $0xe8] sm:$0xff] %vm841, %v5613
        %v5644 = vld [vmem:[#allocation3] sm:$0xff]
        %v5645 = vld [vmem:[#allocation3 + $0x8] sm:$0xff]
        %v5646 = vld [vmem:[#allocation3 + $0x10] sm:$0xff]
        %v5647 = vld [vmem:[#allocation3 + $0x18] sm:$0xff]
        %v5648 = vld [vmem:[#allocation3 + $0x20] sm:$0xff]
        %v5649 = vld [vmem:[#allocation3 + $0x28] sm:$0xff]
        %v5650 = vld [vmem:[#allocation3 + $0x30] sm:$0xff]
        %v5651 = vld [vmem:[#allocation3 + $0x38] sm:$0xff]
        %v5652 = vld [vmem:[#allocation3 + $0x40] sm:$0xff]
        %v5653 = vld [vmem:[#allocation3 + $0x48] sm:$0xff]
        %v5654 = vld [vmem:[#allocation3 + $0x50] sm:$0xff]
        %v5655 = vld [vmem:[#allocation3 + $0x58] sm:$0xff]
        %v5656 = vld [vmem:[#allocation3 + $0x60] sm:$0xff]
        %v5657 = vld [vmem:[#allocation3 + $0x68] sm:$0xff]
        %v5658 = vld [vmem:[#allocation3 + $0x70] sm:$0xff]
        %v5659 = vld [vmem:[#allocation3 + $0x78] sm:$0xff]
        %v5660 = vld [vmem:[#allocation3 + $0x80] sm:$0xff]
        %v5661 = vld [vmem:[#allocation3 + $0x88] sm:$0xff]
        %v5662 = vld [vmem:[#allocation3 + $0x90] sm:$0xff]
        %v5663 = vld [vmem:[#allocation3 + $0x98] sm:$0xff]
        %v5664 = vld [vmem:[#allocation3 + $0xa0] sm:$0xff]
        %v5665 = vld [vmem:[#allocation3 + $0xa8] sm:$0xff]
        %v5666 = vld [vmem:[#allocation3 + $0xb0] sm:$0xff]
        %v5667 = vld [vmem:[#allocation3 + $0xb8] sm:$0xff]
        %v5668 = vld [vmem:[#allocation3 + $0xc0] sm:$0xff]
        %v5669 = vld [vmem:[#allocation3 + $0xc8] sm:$0xff]
        %v5670 = vld [vmem:[#allocation3 + $0xd0] sm:$0xff]
        %v5671 = vld [vmem:[#allocation3 + $0xd8] sm:$0xff]
        %v5672 = vld [vmem:[#allocation3 + $0xe0] sm:$0xff]
        %v5673 = vld [vmem:[#allocation3 + $0xe8] sm:$0xff]
        %v5675 = vsel %vm1565, %v5335, 0
        %5677 = vmatprep.subr.mxu0 0.0
        %5678 = vmatpush1.msra.mxu0 %v5334
        %5679 = vmatprep.subr.mxu0 0.0
        %5680 = vmatpush1.msra.mxu0 %v5675
        %5681 = vmatprep.subr.mxu0 0.0
        %5682 = vmatpush1.msra.mxu0 0.0
        %5683 = vmatprep.subr.mxu0 0.0
        %5684 = vmatpush1.msra.mxu0 0.0
        %5685 = vmatprep.subr.mxu0 0.0
        %5686 = vmatpush1.msra.mxu0 0.0
        %5687 = vmatprep.subr.mxu0 0.0
        %5688 = vmatpush1.msra.mxu0 0.0
        %5689 = vmatprep.subr.mxu0 0.0
        %5690 = vmatpush1.msra.mxu0 0.0
        %5691 = vmatprep.subr.mxu0 0.0
        %5692 = vmatpush1.msra.mxu0 0.0
        %5693 = vmatprep.subr.mxu0 0.0
        %5694 = vmatpush1.msra.mxu0 0.0
        %5695 = vmatprep.subr.mxu0 0.0
        %5696 = vmatpush1.msra.mxu0 0.0
        %5697 = vmatprep.subr.mxu0 0.0
        %5698 = vmatpush1.msra.mxu0 0.0
        %5699 = vmatprep.subr.mxu0 0.0
        %5700 = vmatpush1.msra.mxu0 0.0
        %5701 = vmatprep.subr.mxu0 0.0
        %5702 = vmatpush1.msra.mxu0 0.0
        %5703 = vmatprep.subr.mxu0 0.0
        %5704 = vmatpush1.msra.mxu0 0.0
        %5705 = vmatprep.subr.mxu0 0.0
        %5706 = vmatpush1.msra.mxu0 0.0
        %5707 = vmatprep.subr.mxu0 0.0
        %5708 = vmatpush1.msra.mxu0 0.0
        %5709 = vmatprep.subr.mxu0 0.0
        %5710 = vmatpush1.msra.mxu0 0.0
        %5711 = vmatprep.subr.mxu0 0.0
        %5712 = vmatpush1.msra.mxu0 0.0
        %5713 = vmatprep.subr.mxu0 0.0
        %5714 = vmatpush1.msra.mxu0 0.0
        %5715 = vmatprep.subr.mxu0 0.0
        %5716 = vmatpush1.msra.mxu0 0.0
        %5717 = vmatprep.subr.mxu0 0.0
        %5718 = vmatpush1.msra.mxu0 0.0
        %5719 = vmatprep.subr.mxu0 0.0
        %5720 = vmatpush1.msra.mxu0 0.0
        %5721 = vmatprep.subr.mxu0 0.0
        %5722 = vmatpush1.msra.mxu0 0.0
        %5723 = vmatprep.subr.mxu0 0.0
        %5724 = vmatpush1.msra.mxu0 0.0
        %5725 = vmatprep.subr.mxu0 0.0
        %5726 = vmatpush1.msra.mxu0 0.0
        %5727 = vmatprep.subr.mxu0 0.0
        %5728 = vmatpush1.msra.mxu0 0.0
        %5729 = vmatprep.subr.mxu0 0.0
        %5730 = vmatpush1.msra.mxu0 0.0
        %5731 = vmatprep.subr.mxu0 0.0
        %5732 = vmatpush1.msra.mxu0 0.0
        %5733 = vmatprep.subr.mxu0 0.0
        %5734 = vmatpush1.msra.mxu0 0.0
        %5735 = vmatprep.subr.mxu0 0.0
        %5736 = vmatpush1.msra.mxu0 0.0
        %5737 = vmatprep.subr.mxu0 0.0
        %5738 = vmatpush1.msra.mxu0 0.0
        %5739 = vmatprep.subr.mxu0 0.0
        %5740 = vmatpush1.msra.mxu0 0.0
        %5741 = vmatprep.mubr.f32.mxu0 0.0
        %5742 = vmatmul.mubr.f32.gmra.mrb[0].mxu0 %v4001
        %v5743 = vpop.f32.mrb[0].mxu0
        %v5744 = vadd.f32 0.0, %v5743
        %v5745 = vpop.f32.mrb[0].mxu0
        %5746 = vmatprep.mubr.f32.mxu0 0.0
        %5747 = vmatmul.mubr.f32.gmra.mrb[0].mxu0 %v4004
        %v5748 = vpop.f32.mrb[0].mxu0
        %v5749 = vadd.f32 0.0, %v5748
        %v5750 = vpop.f32.mrb[0].mxu0
        %5751 = vmatprep.mubr.f32.mxu0 0.0
        %5752 = vmatmul.mubr.f32.gmra.mrb[0].mxu0 %v4007
        %v5753 = vpop.f32.mrb[0].mxu0
        %v5754 = vadd.f32 0.0, %v5753
        %v5755 = vpop.f32.mrb[0].mxu0
        %5756 = vmatprep.mubr.f32.mxu0 0.0
        %5757 = vmatmul.mubr.f32.gmra.mrb[0].mxu0 %v4010
        %v5758 = vpop.f32.mrb[0].mxu0
        %v5759 = vadd.f32 0.0, %v5758
        %v5760 = vpop.f32.mrb[0].mxu0
        %5761 = vmatprep.mubr.f32.mxu0 0.0
        %5762 = vmatmul.mubr.f32.gmra.mrb[0].mxu0 %v4013
        %v5763 = vpop.f32.mrb[0].mxu0
        %v5764 = vadd.f32 0.0, %v5763
        %v5765 = vpop.f32.mrb[0].mxu0
        %5766 = vmatprep.mubr.f32.mxu0 0.0
        %5767 = vmatmul.mubr.f32.gmra.mrb[0].mxu0 %v4016
        %v5768 = vpop.f32.mrb[0].mxu0
        %v5769 = vadd.f32 0.0, %v5768
        %v5770 = vpop.f32.mrb[0].mxu0
        %5771 = vmatprep.mubr.f32.mxu0 0.0
        %5772 = vmatmul.mubr.f32.gmra.mrb[0].mxu0 %v4019
        %v5773 = vpop.f32.mrb[0].mxu0
        %v5774 = vadd.f32 0.0, %v5773
        %v5775 = vpop.f32.mrb[0].mxu0
        %5776 = vmatprep.mubr.f32.mxu0 0.0
        %5777 = vmatmul.mubr.f32.gmra.mrb[0].mxu0 %v4022
        %v5778 = vpop.f32.mrb[0].mxu0
        %v5779 = vadd.f32 0.0, %v5778
        %v5780 = vpop.f32.mrb[0].mxu0
        %5781 = vmatprep.mubr.f32.mxu0 0.0
        %5782 = vmatmul.mubr.f32.gmra.mrb[0].mxu0 %v4025
        %v5783 = vpop.f32.mrb[0].mxu0
        %v5784 = vadd.f32 0.0, %v5783
        %v5785 = vpop.f32.mrb[0].mxu0
        %5786 = vmatprep.mubr.f32.mxu0 0.0
        %5787 = vmatmul.mubr.f32.gmra.mrb[0].mxu0 %v4028
        %v5788 = vpop.f32.mrb[0].mxu0
        %v5789 = vadd.f32 0.0, %v5788
        %v5790 = vpop.f32.mrb[0].mxu0
        %5791 = vmatprep.mubr.f32.mxu0 0.0
        %5792 = vmatmul.mubr.f32.gmra.mrb[0].mxu0 %v4031
        %v5793 = vpop.f32.mrb[0].mxu0
        %v5794 = vadd.f32 0.0, %v5793
        %v5795 = vpop.f32.mrb[0].mxu0
        %5796 = vmatprep.mubr.f32.mxu0 0.0
        %5797 = vmatmul.mubr.f32.gmra.mrb[0].mxu0 %v4034
        %v5798 = vpop.f32.mrb[0].mxu0
        %v5799 = vadd.f32 0.0, %v5798
        %v5800 = vpop.f32.mrb[0].mxu0
        %5801 = vmatprep.mubr.f32.mxu0 0.0
        %5802 = vmatmul.mubr.f32.gmra.mrb[0].mxu0 %v4037
        %v5803 = vpop.f32.mrb[0].mxu0
        %v5804 = vadd.f32 0.0, %v5803
        %v5805 = vpop.f32.mrb[0].mxu0
        %5806 = vmatprep.mubr.f32.mxu0 0.0
        %5807 = vmatmul.mubr.f32.gmra.mrb[0].mxu0 %v4040
        %v5808 = vpop.f32.mrb[0].mxu0
        %v5809 = vadd.f32 0.0, %v5808
        %v5810 = vpop.f32.mrb[0].mxu0
        %5811 = vmatprep.mubr.f32.mxu0 0.0
        %5812 = vmatmul.mubr.f32.gmra.mrb[0].mxu0 %v4043
        %v5813 = vpop.f32.mrb[0].mxu0
        %v5814 = vadd.f32 0.0, %v5813
        %v5815 = vpop.f32.mrb[0].mxu0
        %5816 = vmatprep.mubr.f32.mxu0 0.0
        %5817 = vmatmul.mubr.f32.gmra.mrb[0].mxu0 %v4046
        %v5818 = vpop.f32.mrb[0].mxu0
        %v5819 = vadd.f32 0.0, %v5818
        %v5820 = vpop.f32.mrb[0].mxu0
        %5821 = vmatprep.mubr.f32.mxu0 0.0
        %5822 = vmatmul.mubr.f32.gmra.mrb[0].mxu0 %v4049
        %v5823 = vpop.f32.mrb[0].mxu0
        %v5824 = vadd.f32 0.0, %v5823
        %v5825 = vpop.f32.mrb[0].mxu0
        %5826 = vmatprep.mubr.f32.mxu0 0.0
        %5827 = vmatmul.mubr.f32.gmra.mrb[0].mxu0 %v4052
        %v5828 = vpop.f32.mrb[0].mxu0
        %v5829 = vadd.f32 0.0, %v5828
        %v5830 = vpop.f32.mrb[0].mxu0
        %5831 = vmatprep.mubr.f32.mxu0 0.0
        %5832 = vmatmul.mubr.f32.gmra.mrb[0].mxu0 %v4055
        %v5833 = vpop.f32.mrb[0].mxu0
        %v5834 = vadd.f32 0.0, %v5833
        %v5835 = vpop.f32.mrb[0].mxu0
        %5836 = vmatprep.mubr.f32.mxu0 0.0
        %5837 = vmatmul.mubr.f32.gmra.mrb[0].mxu0 %v4058
        %v5838 = vpop.f32.mrb[0].mxu0
        %v5839 = vadd.f32 0.0, %v5838
        %v5840 = vpop.f32.mrb[0].mxu0
        %5841 = vmatprep.mubr.f32.mxu0 0.0
        %5842 = vmatmul.mubr.f32.gmra.mrb[0].mxu0 %v4061
        %v5843 = vpop.f32.mrb[0].mxu0
        %v5844 = vadd.f32 0.0, %v5843
        %v5845 = vpop.f32.mrb[0].mxu0
        %5846 = vmatprep.mubr.f32.mxu0 0.0
        %5847 = vmatmul.mubr.f32.gmra.mrb[0].mxu0 %v4064
        %v5848 = vpop.f32.mrb[0].mxu0
        %v5849 = vadd.f32 0.0, %v5848
        %v5850 = vpop.f32.mrb[0].mxu0
        %5851 = vmatprep.mubr.f32.mxu0 0.0
        %5852 = vmatmul.mubr.f32.gmra.mrb[0].mxu0 %v4067
        %v5853 = vpop.f32.mrb[0].mxu0
        %v5854 = vadd.f32 0.0, %v5853
        %v5855 = vpop.f32.mrb[0].mxu0
        %5856 = vmatprep.mubr.f32.mxu0 0.0
        %5857 = vmatmul.mubr.f32.gmra.mrb[0].mxu0 %v4070
        %v5858 = vpop.f32.mrb[0].mxu0
        %v5859 = vadd.f32 0.0, %v5858
        %v5860 = vpop.f32.mrb[0].mxu0
        %5861 = vmatprep.mubr.f32.mxu0 0.0
        %5862 = vmatmul.mubr.f32.gmra.mrb[0].mxu0 %v4073
        %v5863 = vpop.f32.mrb[0].mxu0
        %v5864 = vadd.f32 0.0, %v5863
        %v5865 = vpop.f32.mrb[0].mxu0
        %5866 = vmatprep.mubr.f32.mxu0 0.0
        %5867 = vmatmul.mubr.f32.gmra.mrb[0].mxu0 %v4076
        %v5868 = vpop.f32.mrb[0].mxu0
        %v5869 = vadd.f32 0.0, %v5868
        %v5870 = vpop.f32.mrb[0].mxu0
        %5871 = vmatprep.mubr.f32.mxu0 0.0
        %5872 = vmatmul.mubr.f32.gmra.mrb[0].mxu0 %v4079
        %v5873 = vpop.f32.mrb[0].mxu0
        %v5874 = vadd.f32 0.0, %v5873
        %v5875 = vpop.f32.mrb[0].mxu0
        %5876 = vmatprep.mubr.f32.mxu0 0.0
        %5877 = vmatmul.mubr.f32.gmra.mrb[0].mxu0 %v4082
        %v5878 = vpop.f32.mrb[0].mxu0
        %v5879 = vadd.f32 0.0, %v5878
        %v5880 = vpop.f32.mrb[0].mxu0
        %5881 = vmatprep.mubr.f32.mxu0 0.0
        %5882 = vmatmul.mubr.f32.gmra.mrb[0].mxu0 %v4709
        %v5883 = vpop.f32.mrb[0].mxu0
        %v5884 = vadd.f32 0.0, %v5883
        %v5885 = vpop.f32.mrb[0].mxu0
        %5886 = vmatprep.mubr.f32.mxu0 0.0
        %5887 = vmatmul.mubr.f32.gmra.mrb[0].mxu0 %v4712
        %v5888 = vpop.f32.mrb[0].mxu0
        %v5889 = vadd.f32 0.0, %v5888
        %v5890 = vpop.f32.mrb[0].mxu0
        %5891 = vdwg.mxu0
        %v5892 = vadd.f32 %v5644, %v5744
        %v5893 = vadd.f32 %v5645, %v5749
        %v5894 = vadd.f32 %v5646, %v5754
        %v5895 = vadd.f32 %v5647, %v5759
        %v5896 = vadd.f32 %v5648, %v5764
        %v5897 = vadd.f32 %v5649, %v5769
        %v5898 = vadd.f32 %v5650, %v5774
        %v5899 = vadd.f32 %v5651, %v5779
        %v5900 = vadd.f32 %v5652, %v5784
        %v5901 = vadd.f32 %v5653, %v5789
        %v5902 = vadd.f32 %v5654, %v5794
        %v5903 = vadd.f32 %v5655, %v5799
        %v5904 = vadd.f32 %v5656, %v5804
        %v5905 = vadd.f32 %v5657, %v5809
        %v5906 = vadd.f32 %v5658, %v5814
        %v5907 = vadd.f32 %v5659, %v5819
        %v5908 = vadd.f32 %v5660, %v5824
        %v5909 = vadd.f32 %v5661, %v5829
        %v5910 = vadd.f32 %v5662, %v5834
        %v5911 = vadd.f32 %v5663, %v5839
        %v5912 = vadd.f32 %v5664, %v5844
        %v5913 = vadd.f32 %v5665, %v5849
        %v5914 = vadd.f32 %v5666, %v5854
        %v5915 = vadd.f32 %v5667, %v5859
        %v5916 = vadd.f32 %v5668, %v5864
        %v5917 = vadd.f32 %v5669, %v5869
        %v5918 = vadd.f32 %v5670, %v5874
        %v5919 = vadd.f32 %v5671, %v5879
        %v5920 = vadd.f32 %v5672, %v5884
        %v5921 = vadd.f32 %v5673, %v5889
        %5922 = vst.msk [vmem:[#allocation3] sm:$0xff] %vm841, %v5892
        %5923 = vst.msk [vmem:[#allocation3 + $0x8] sm:$0xff] %vm841, %v5893
        %5924 = vst.msk [vmem:[#allocation3 + $0x10] sm:$0xff] %vm841, %v5894
        %5925 = vst.msk [vmem:[#allocation3 + $0x18] sm:$0xff] %vm841, %v5895
        %5926 = vst.msk [vmem:[#allocation3 + $0x20] sm:$0xff] %vm841, %v5896
        %5927 = vst.msk [vmem:[#allocation3 + $0x28] sm:$0xff] %vm841, %v5897
        %5928 = vst.msk [vmem:[#allocation3 + $0x30] sm:$0xff] %vm841, %v5898
        %5929 = vst.msk [vmem:[#allocation3 + $0x38] sm:$0xff] %vm841, %v5899
        %5930 = vst.msk [vmem:[#allocation3 + $0x40] sm:$0xff] %vm841, %v5900
        %5931 = vst.msk [vmem:[#allocation3 + $0x48] sm:$0xff] %vm841, %v5901
        %5932 = vst.msk [vmem:[#allocation3 + $0x50] sm:$0xff] %vm841, %v5902
        %5933 = vst.msk [vmem:[#allocation3 + $0x58] sm:$0xff] %vm841, %v5903
        %5934 = vst.msk [vmem:[#allocation3 + $0x60] sm:$0xff] %vm841, %v5904
        %5935 = vst.msk [vmem:[#allocation3 + $0x68] sm:$0xff] %vm841, %v5905
        %5936 = vst.msk [vmem:[#allocation3 + $0x70] sm:$0xff] %vm841, %v5906
        %5937 = vst.msk [vmem:[#allocation3 + $0x78] sm:$0xff] %vm841, %v5907
        %5938 = vst.msk [vmem:[#allocation3 + $0x80] sm:$0xff] %vm841, %v5908
        %5939 = vst.msk [vmem:[#allocation3 + $0x88] sm:$0xff] %vm841, %v5909
        %5940 = vst.msk [vmem:[#allocation3 + $0x90] sm:$0xff] %vm841, %v5910
        %5941 = vst.msk [vmem:[#allocation3 + $0x98] sm:$0xff] %vm841, %v5911
        %5942 = vst.msk [vmem:[#allocation3 + $0xa0] sm:$0xff] %vm841, %v5912
        %5943 = vst.msk [vmem:[#allocation3 + $0xa8] sm:$0xff] %vm841, %v5913
        %5944 = vst.msk [vmem:[#allocation3 + $0xb0] sm:$0xff] %vm841, %v5914
        %5945 = vst.msk [vmem:[#allocation3 + $0xb8] sm:$0xff] %vm841, %v5915
        %5946 = vst.msk [vmem:[#allocation3 + $0xc0] sm:$0xff] %vm841, %v5916
        %5947 = vst.msk [vmem:[#allocation3 + $0xc8] sm:$0xff] %vm841, %v5917
        %5948 = vst.msk [vmem:[#allocation3 + $0xd0] sm:$0xff] %vm841, %v5918
        %5949 = vst.msk [vmem:[#allocation3 + $0xd8] sm:$0xff] %vm841, %v5919
        %5950 = vst.msk [vmem:[#allocation3 + $0xe0] sm:$0xff] %vm841, %v5920
        %5951 = vst.msk [vmem:[#allocation3 + $0xe8] sm:$0xff] %vm841, %v5921
        %s5952 = sadd.s32 %s26, 1
        %p5953 = scmp.ge.s32.totalorder %s5952, 0
        %p5954 = scmp.lt.s32.totalorder %s5952, 8
        %p5955 = pnand %p5953, %p5954
        %p5956 = pneg %p5955
        %p5957 = scmp.gt.s32.totalorder %s5952, 0
        %s5958 = scalar_select %p5957, %s5952, 0
        %p5959 = scmp.lt.s32.totalorder %s5958, 7
        %s5960 = scalar_select %p5959, %s5958, 7
        %s5961 = scalar_select %p5956, 1.0, 0.0
        %s5962 = smul.u32 %s5960, 256
        %s5963 = scalar_lea.vmem %s201, %s5962 [#allocation5]
        %v5964 = vld [vmem:[%s5963] sm:$0xff]
        %v5965 = vld [vmem:[%s5963 + $0x8] sm:$0xff]
        %v5966 = vld [vmem:[%s5963 + $0x10] sm:$0xff]
        %v5967 = vld [vmem:[%s5963 + $0x18] sm:$0xff]
        %v5968 = vld [vmem:[%s5963 + $0x20] sm:$0xff]
        %v5969 = vld [vmem:[%s5963 + $0x28] sm:$0xff]
        %v5970 = vld [vmem:[%s5963 + $0x30] sm:$0xff]
        %v5971 = vld [vmem:[%s5963 + $0x38] sm:$0xff]
        %v5972 = vld [vmem:[%s5963 + $0x40] sm:$0xff]
        %v5973 = vld [vmem:[%s5963 + $0x48] sm:$0xff]
        %v5974 = vld [vmem:[%s5963 + $0x50] sm:$0xff]
        %v5975 = vld [vmem:[%s5963 + $0x58] sm:$0xff]
        %v5976 = vld [vmem:[%s5963 + $0x60] sm:$0xff]
        %v5977 = vld [vmem:[%s5963 + $0x68] sm:$0xff]
        %v5978 = vld [vmem:[%s5963 + $0x70] sm:$0xff]
        %v5979 = vld [vmem:[%s5963 + $0x78] sm:$0xff]
        %v5980 = vld [vmem:[%s5963 + $0x80] sm:$0xff]
        %v5981 = vld [vmem:[%s5963 + $0x88] sm:$0xff]
        %v5982 = vld [vmem:[%s5963 + $0x90] sm:$0xff]
        %v5983 = vld [vmem:[%s5963 + $0x98] sm:$0xff]
        %v5984 = vld [vmem:[%s5963 + $0xa0] sm:$0xff]
        %v5985 = vld [vmem:[%s5963 + $0xa8] sm:$0xff]
        %v5986 = vld [vmem:[%s5963 + $0xb0] sm:$0xff]
        %v5987 = vld [vmem:[%s5963 + $0xb8] sm:$0xff]
        %v5988 = vld [vmem:[%s5963 + $0xc0] sm:$0xff]
        %v5989 = vld [vmem:[%s5963 + $0xc8] sm:$0xff]
        %v5990 = vld [vmem:[%s5963 + $0xd0] sm:$0xff]
        %v5991 = vld [vmem:[%s5963 + $0xd8] sm:$0xff]
        %v5992 = vld [vmem:[%s5963 + $0xe0] sm:$0xff]
        %v5993 = vld [vmem:[%s5963 + $0xe8] sm:$0xff]
        %v5994 = vld [vmem:[%s5963 + $0xf0] sm:$0xff]
        %v5995 = vld [vmem:[%s5963 + $0xf8] sm:$0xff]
        %v5996 = vstv %s5961
        %v5997 = vmul.f32 %v5964, %v5996
        %v5998 = vmul.f32 %v5965, %v5996
        %v5999 = vmul.f32 %v5966, %v5996
        %v6000 = vmul.f32 %v5967, %v5996
        %v6001 = vmul.f32 %v5968, %v5996
        %v6002 = vmul.f32 %v5969, %v5996
        %v6003 = vmul.f32 %v5970, %v5996
        %v6004 = vmul.f32 %v5971, %v5996
        %v6005 = vmul.f32 %v5972, %v5996
        %v6006 = vmul.f32 %v5973, %v5996
        %v6007 = vmul.f32 %v5974, %v5996
        %v6008 = vmul.f32 %v5975, %v5996
        %v6009 = vmul.f32 %v5976, %v5996
        %v6010 = vmul.f32 %v5977, %v5996
        %v6011 = vmul.f32 %v5978, %v5996
        %v6012 = vmul.f32 %v5979, %v5996
        %v6013 = vmul.f32 %v5980, %v5996
        %v6014 = vmul.f32 %v5981, %v5996
        %v6015 = vmul.f32 %v5982, %v5996
        %v6016 = vmul.f32 %v5983, %v5996
        %v6017 = vmul.f32 %v5984, %v5996
        %v6018 = vmul.f32 %v5985, %v5996
        %v6019 = vmul.f32 %v5986, %v5996
        %v6020 = vmul.f32 %v5987, %v5996
        %v6021 = vmul.f32 %v5988, %v5996
        %v6022 = vmul.f32 %v5989, %v5996
        %v6023 = vmul.f32 %v5990, %v5996
        %v6024 = vmul.f32 %v5991, %v5996
        %v6025 = vmul.f32 %v5992, %v5996
        %v6026 = vmul.f32 %v5993, %v5996
        %v6027 = vmul.f32 %v5994, %v5996
        %v6028 = vmul.f32 %v5995, %v5996
        %6061 = vrot.lane.b32.xlu0 %v5997, 4
        %v6062 = vpop.permute.xlu0 %6061
        %6063 = vrot.lane.b32.xlu0 %v5998, 4
        %v6064 = vpop.permute.xlu0 %6063
        %6065 = vrot.lane.b32.xlu0 %v5999, 4
        %v6066 = vpop.permute.xlu0 %6065
        %6067 = vrot.lane.b32.xlu0 %v6000, 4
        %v6068 = vpop.permute.xlu0 %6067
        %6069 = vrot.lane.b32.xlu0 %v6001, 4
        %v6070 = vpop.permute.xlu0 %6069
        %6071 = vrot.lane.b32.xlu0 %v6002, 4
        %v6072 = vpop.permute.xlu0 %6071
        %6073 = vrot.lane.b32.xlu0 %v6003, 4
        %v6074 = vpop.permute.xlu0 %6073
        %6075 = vrot.lane.b32.xlu0 %v6004, 4
        %v6076 = vpop.permute.xlu0 %6075
        %6077 = vrot.lane.b32.xlu0 %v6005, 4
        %v6078 = vpop.permute.xlu0 %6077
        %6079 = vrot.lane.b32.xlu0 %v6006, 4
        %v6080 = vpop.permute.xlu0 %6079
        %6081 = vrot.lane.b32.xlu0 %v6007, 4
        %v6082 = vpop.permute.xlu0 %6081
        %6083 = vrot.lane.b32.xlu0 %v6008, 4
        %v6084 = vpop.permute.xlu0 %6083
        %6085 = vrot.lane.b32.xlu0 %v6009, 4
        %v6086 = vpop.permute.xlu0 %6085
        %6087 = vrot.lane.b32.xlu0 %v6010, 4
        %v6088 = vpop.permute.xlu0 %6087
        %6089 = vrot.lane.b32.xlu0 %v6011, 4
        %v6090 = vpop.permute.xlu0 %6089
        %6091 = vrot.lane.b32.xlu0 %v6012, 4
        %v6092 = vpop.permute.xlu0 %6091
        %6093 = vrot.lane.b32.xlu0 %v6013, 4
        %v6094 = vpop.permute.xlu0 %6093
        %6095 = vrot.lane.b32.xlu0 %v6014, 4
        %v6096 = vpop.permute.xlu0 %6095
        %6097 = vrot.lane.b32.xlu0 %v6015, 4
        %v6098 = vpop.permute.xlu0 %6097
        %6099 = vrot.lane.b32.xlu0 %v6016, 4
        %v6100 = vpop.permute.xlu0 %6099
        %6101 = vrot.lane.b32.xlu0 %v6017, 4
        %v6102 = vpop.permute.xlu0 %6101
        %6103 = vrot.lane.b32.xlu0 %v6018, 4
        %v6104 = vpop.permute.xlu0 %6103
        %6105 = vrot.lane.b32.xlu0 %v6019, 4
        %v6106 = vpop.permute.xlu0 %6105
        %6107 = vrot.lane.b32.xlu0 %v6020, 4
        %v6108 = vpop.permute.xlu0 %6107
        %6109 = vrot.lane.b32.xlu0 %v6021, 4
        %v6110 = vpop.permute.xlu0 %6109
        %6111 = vrot.lane.b32.xlu0 %v6022, 4
        %v6112 = vpop.permute.xlu0 %6111
        %6113 = vrot.lane.b32.xlu0 %v6023, 4
        %v6114 = vpop.permute.xlu0 %6113
        %6115 = vrot.lane.b32.xlu0 %v6024, 4
        %v6116 = vpop.permute.xlu0 %6115
        %6117 = vrot.lane.b32.xlu0 %v6025, 4
        %v6118 = vpop.permute.xlu0 %6117
        %6119 = vrot.lane.b32.xlu0 %v6026, 4
        %v6120 = vpop.permute.xlu0 %6119
        %6121 = vrot.lane.b32.xlu0 %v6027, 4
        %v6122 = vpop.permute.xlu0 %6121
        %6123 = vrot.lane.b32.xlu0 %v6028, 4
        %v6124 = vpop.permute.xlu0 %6123
        %6157 = vst.msk [vmem:[#allocation4] sm:$0xff] %vm1115, %v6062
        %6158 = vst.msk [vmem:[#allocation4 + $0x8] sm:$0xff] %vm1115, %v6064
        %6159 = vst.msk [vmem:[#allocation4 + $0x10] sm:$0xff] %vm1115, %v6066
        %6160 = vst.msk [vmem:[#allocation4 + $0x18] sm:$0xff] %vm1115, %v6068
        %6161 = vst.msk [vmem:[#allocation4 + $0x20] sm:$0xff] %vm1115, %v6070
        %6162 = vst.msk [vmem:[#allocation4 + $0x28] sm:$0xff] %vm1115, %v6072
        %6163 = vst.msk [vmem:[#allocation4 + $0x30] sm:$0xff] %vm1115, %v6074
        %6164 = vst.msk [vmem:[#allocation4 + $0x38] sm:$0xff] %vm1115, %v6076
        %6165 = vst.msk [vmem:[#allocation4 + $0x40] sm:$0xff] %vm1115, %v6078
        %6166 = vst.msk [vmem:[#allocation4 + $0x48] sm:$0xff] %vm1115, %v6080
        %6167 = vst.msk [vmem:[#allocation4 + $0x50] sm:$0xff] %vm1115, %v6082
        %6168 = vst.msk [vmem:[#allocation4 + $0x58] sm:$0xff] %vm1115, %v6084
        %6169 = vst.msk [vmem:[#allocation4 + $0x60] sm:$0xff] %vm1115, %v6086
        %6170 = vst.msk [vmem:[#allocation4 + $0x68] sm:$0xff] %vm1115, %v6088
        %6171 = vst.msk [vmem:[#allocation4 + $0x70] sm:$0xff] %vm1115, %v6090
        %6172 = vst.msk [vmem:[#allocation4 + $0x78] sm:$0xff] %vm1115, %v6092
        %6173 = vst.msk [vmem:[#allocation4 + $0x80] sm:$0xff] %vm1115, %v6094
        %6174 = vst.msk [vmem:[#allocation4 + $0x88] sm:$0xff] %vm1115, %v6096
        %6175 = vst.msk [vmem:[#allocation4 + $0x90] sm:$0xff] %vm1115, %v6098
        %6176 = vst.msk [vmem:[#allocation4 + $0x98] sm:$0xff] %vm1115, %v6100
        %6177 = vst.msk [vmem:[#allocation4 + $0xa0] sm:$0xff] %vm1115, %v6102
        %6178 = vst.msk [vmem:[#allocation4 + $0xa8] sm:$0xff] %vm1115, %v6104
        %6179 = vst.msk [vmem:[#allocation4 + $0xb0] sm:$0xff] %vm1115, %v6106
        %6180 = vst.msk [vmem:[#allocation4 + $0xb8] sm:$0xff] %vm1115, %v6108
        %6181 = vst.msk [vmem:[#allocation4 + $0xc0] sm:$0xff] %vm1115, %v6110
        %6182 = vst.msk [vmem:[#allocation4 + $0xc8] sm:$0xff] %vm1115, %v6112
        %6183 = vst.msk [vmem:[#allocation4 + $0xd0] sm:$0xff] %vm1115, %v6114
        %6184 = vst.msk [vmem:[#allocation4 + $0xd8] sm:$0xff] %vm1115, %v6116
        %6185 = vst.msk [vmem:[#allocation4 + $0xe0] sm:$0xff] %vm1115, %v6118
        %6186 = vst.msk [vmem:[#allocation4 + $0xe8] sm:$0xff] %vm1115, %v6120
        %6187 = vst.msk [vmem:[#allocation4 + $0xf0] sm:$0xff] %vm1115, %v6122
        %6188 = vst.msk [vmem:[#allocation4 + $0xf8] sm:$0xff] %vm1115, %v6124
        %v6189 = vmul.f32 %v5997, %v713
        %v6190 = vmul.f32 %v5998, %v714
        %v6191 = vmul.f32 %v5999, %v715
        %v6192 = vmul.f32 %v6000, %v716
        %v6193 = vmul.f32 %v6001, %v717
        %v6194 = vmul.f32 %v6002, %v718
        %v6195 = vmul.f32 %v6003, %v719
        %v6196 = vmul.f32 %v6004, %v720
        %v6197 = vmul.f32 %v6005, %v721
        %v6198 = vmul.f32 %v6006, %v722
        %v6199 = vmul.f32 %v6007, %v723
        %v6200 = vmul.f32 %v6008, %v724
        %v6201 = vmul.f32 %v6009, %v725
        %v6202 = vmul.f32 %v6010, %v726
        %v6203 = vmul.f32 %v6011, %v727
        %v6204 = vmul.f32 %v6012, %v728
        %v6205 = vmul.f32 %v6013, %v729
        %v6206 = vmul.f32 %v6014, %v730
        %v6207 = vmul.f32 %v6015, %v731
        %v6208 = vmul.f32 %v6016, %v732
        %v6209 = vmul.f32 %v6017, %v733
        %v6210 = vmul.f32 %v6018, %v734
        %v6211 = vmul.f32 %v6019, %v735
        %v6212 = vmul.f32 %v6020, %v736
        %v6213 = vmul.f32 %v6021, %v737
        %v6214 = vmul.f32 %v6022, %v738
        %v6215 = vmul.f32 %v6023, %v739
        %v6216 = vmul.f32 %v6024, %v740
        %v6217 = vmul.f32 %v6025, %v741
        %v6218 = vmul.f32 %v6026, %v742
        %v6219 = vmul.f32 %v6027, %v743
        %v6220 = vmul.f32 %v6028, %v744
        %6221 = vst.msk [vmem:[#allocation4 + $0x1] sm:$0xff] %vm1180, %v6189
        %6222 = vst.msk [vmem:[#allocation4 + $0x9] sm:$0xff] %vm1180, %v6190
        %6223 = vst.msk [vmem:[#allocation4 + $0x11] sm:$0xff] %vm1180, %v6191
        %6224 = vst.msk [vmem:[#allocation4 + $0x19] sm:$0xff] %vm1180, %v6192
        %6225 = vst.msk [vmem:[#allocation4 + $0x21] sm:$0xff] %vm1180, %v6193
        %6226 = vst.msk [vmem:[#allocation4 + $0x29] sm:$0xff] %vm1180, %v6194
        %6227 = vst.msk [vmem:[#allocation4 + $0x31] sm:$0xff] %vm1180, %v6195
        %6228 = vst.msk [vmem:[#allocation4 + $0x39] sm:$0xff] %vm1180, %v6196
        %6229 = vst.msk [vmem:[#allocation4 + $0x41] sm:$0xff] %vm1180, %v6197
        %6230 = vst.msk [vmem:[#allocation4 + $0x49] sm:$0xff] %vm1180, %v6198
        %6231 = vst.msk [vmem:[#allocation4 + $0x51] sm:$0xff] %vm1180, %v6199
        %6232 = vst.msk [vmem:[#allocation4 + $0x59] sm:$0xff] %vm1180, %v6200
        %6233 = vst.msk [vmem:[#allocation4 + $0x61] sm:$0xff] %vm1180, %v6201
        %6234 = vst.msk [vmem:[#allocation4 + $0x69] sm:$0xff] %vm1180, %v6202
        %6235 = vst.msk [vmem:[#allocation4 + $0x71] sm:$0xff] %vm1180, %v6203
        %6236 = vst.msk [vmem:[#allocation4 + $0x79] sm:$0xff] %vm1180, %v6204
        %6237 = vst.msk [vmem:[#allocation4 + $0x81] sm:$0xff] %vm1180, %v6205
        %6238 = vst.msk [vmem:[#allocation4 + $0x89] sm:$0xff] %vm1180, %v6206
        %6239 = vst.msk [vmem:[#allocation4 + $0x91] sm:$0xff] %vm1180, %v6207
        %6240 = vst.msk [vmem:[#allocation4 + $0x99] sm:$0xff] %vm1180, %v6208
        %6241 = vst.msk [vmem:[#allocation4 + $0xa1] sm:$0xff] %vm1180, %v6209
        %6242 = vst.msk [vmem:[#allocation4 + $0xa9] sm:$0xff] %vm1180, %v6210
        %6243 = vst.msk [vmem:[#allocation4 + $0xb1] sm:$0xff] %vm1180, %v6211
        %6244 = vst.msk [vmem:[#allocation4 + $0xb9] sm:$0xff] %vm1180, %v6212
        %6245 = vst.msk [vmem:[#allocation4 + $0xc1] sm:$0xff] %vm1180, %v6213
        %6246 = vst.msk [vmem:[#allocation4 + $0xc9] sm:$0xff] %vm1180, %v6214
        %6247 = vst.msk [vmem:[#allocation4 + $0xd1] sm:$0xff] %vm1180, %v6215
        %6248 = vst.msk [vmem:[#allocation4 + $0xd9] sm:$0xff] %vm1180, %v6216
        %6249 = vst.msk [vmem:[#allocation4 + $0xe1] sm:$0xff] %vm1180, %v6217
        %6250 = vst.msk [vmem:[#allocation4 + $0xe9] sm:$0xff] %vm1180, %v6218
        %6251 = vst.msk [vmem:[#allocation4 + $0xf1] sm:$0xff] %vm1180, %v6219
        %6252 = vst.msk [vmem:[#allocation4 + $0xf9] sm:$0x7f] %vm1212, %v6220
        %v6253 = vmul.f32 %v5997, %v809
        %v6254 = vmul.f32 %v5998, %v810
        %v6255 = vmul.f32 %v5999, %v811
        %v6256 = vmul.f32 %v6000, %v812
        %v6257 = vmul.f32 %v6001, %v813
        %v6258 = vmul.f32 %v6002, %v814
        %v6259 = vmul.f32 %v6003, %v815
        %v6260 = vmul.f32 %v6004, %v816
        %v6261 = vmul.f32 %v6005, %v817
        %v6262 = vmul.f32 %v6006, %v818
        %v6263 = vmul.f32 %v6007, %v819
        %v6264 = vmul.f32 %v6008, %v820
        %v6265 = vmul.f32 %v6009, %v821
        %v6266 = vmul.f32 %v6010, %v822
        %v6267 = vmul.f32 %v6011, %v823
        %v6268 = vmul.f32 %v6012, %v824
        %v6269 = vmul.f32 %v6013, %v825
        %v6270 = vmul.f32 %v6014, %v826
        %v6271 = vmul.f32 %v6015, %v827
        %v6272 = vmul.f32 %v6016, %v828
        %v6273 = vmul.f32 %v6017, %v829
        %v6274 = vmul.f32 %v6018, %v830
        %v6275 = vmul.f32 %v6019, %v831
        %v6276 = vmul.f32 %v6020, %v832
        %v6277 = vmul.f32 %v6021, %v833
        %v6278 = vmul.f32 %v6022, %v834
        %v6279 = vmul.f32 %v6023, %v835
        %v6280 = vmul.f32 %v6024, %v836
        %v6281 = vmul.f32 %v6025, %v837
        %v6282 = vmul.f32 %v6026, %v838
        %v6283 = vmul.f32 %v6027, %v839
        %v6284 = vmul.f32 %v6028, %v840
        %6317 = vrot.lane.b32.xlu0 %v6253, 8
        %v6318 = vpop.permute.xlu0 %6317
        %6319 = vrot.lane.b32.xlu0 %v6254, 8
        %v6320 = vpop.permute.xlu0 %6319
        %6321 = vrot.lane.b32.xlu0 %v6255, 8
        %v6322 = vpop.permute.xlu0 %6321
        %6323 = vrot.lane.b32.xlu0 %v6256, 8
        %v6324 = vpop.permute.xlu0 %6323
        %6325 = vrot.lane.b32.xlu0 %v6257, 8
        %v6326 = vpop.permute.xlu0 %6325
        %6327 = vrot.lane.b32.xlu0 %v6258, 8
        %v6328 = vpop.permute.xlu0 %6327
        %6329 = vrot.lane.b32.xlu0 %v6259, 8
        %v6330 = vpop.permute.xlu0 %6329
        %6331 = vrot.lane.b32.xlu0 %v6260, 8
        %v6332 = vpop.permute.xlu0 %6331
        %6333 = vrot.lane.b32.xlu0 %v6261, 8
        %v6334 = vpop.permute.xlu0 %6333
        %6335 = vrot.lane.b32.xlu0 %v6262, 8
        %v6336 = vpop.permute.xlu0 %6335
        %6337 = vrot.lane.b32.xlu0 %v6263, 8
        %v6338 = vpop.permute.xlu0 %6337
        %6339 = vrot.lane.b32.xlu0 %v6264, 8
        %v6340 = vpop.permute.xlu0 %6339
        %6341 = vrot.lane.b32.xlu0 %v6265, 8
        %v6342 = vpop.permute.xlu0 %6341
        %6343 = vrot.lane.b32.xlu0 %v6266, 8
        %v6344 = vpop.permute.xlu0 %6343
        %6345 = vrot.lane.b32.xlu0 %v6267, 8
        %v6346 = vpop.permute.xlu0 %6345
        %6347 = vrot.lane.b32.xlu0 %v6268, 8
        %v6348 = vpop.permute.xlu0 %6347
        %6349 = vrot.lane.b32.xlu0 %v6269, 8
        %v6350 = vpop.permute.xlu0 %6349
        %6351 = vrot.lane.b32.xlu0 %v6270, 8
        %v6352 = vpop.permute.xlu0 %6351
        %6353 = vrot.lane.b32.xlu0 %v6271, 8
        %v6354 = vpop.permute.xlu0 %6353
        %6355 = vrot.lane.b32.xlu0 %v6272, 8
        %v6356 = vpop.permute.xlu0 %6355
        %6357 = vrot.lane.b32.xlu0 %v6273, 8
        %v6358 = vpop.permute.xlu0 %6357
        %6359 = vrot.lane.b32.xlu0 %v6274, 8
        %v6360 = vpop.permute.xlu0 %6359
        %6361 = vrot.lane.b32.xlu0 %v6275, 8
        %v6362 = vpop.permute.xlu0 %6361
        %6363 = vrot.lane.b32.xlu0 %v6276, 8
        %v6364 = vpop.permute.xlu0 %6363
        %6365 = vrot.lane.b32.xlu0 %v6277, 8
        %v6366 = vpop.permute.xlu0 %6365
        %6367 = vrot.lane.b32.xlu0 %v6278, 8
        %v6368 = vpop.permute.xlu0 %6367
        %6369 = vrot.lane.b32.xlu0 %v6279, 8
        %v6370 = vpop.permute.xlu0 %6369
        %6371 = vrot.lane.b32.xlu0 %v6280, 8
        %v6372 = vpop.permute.xlu0 %6371
        %6373 = vrot.lane.b32.xlu0 %v6281, 8
        %v6374 = vpop.permute.xlu0 %6373
        %6375 = vrot.lane.b32.xlu0 %v6282, 8
        %v6376 = vpop.permute.xlu0 %6375
        %6377 = vrot.lane.b32.xlu0 %v6283, 8
        %v6378 = vpop.permute.xlu0 %6377
        %6379 = vrot.lane.b32.xlu0 %v6284, 8
        %v6380 = vpop.permute.xlu0 %6379
        %6413 = vst.msk [vmem:[#allocation4 - $0x1] sm:$0xfe] %vm1374, %v6318
        %6414 = vst.msk [vmem:[#allocation4 + $0x7] sm:$0xff] %vm1376, %v6320
        %6415 = vst.msk [vmem:[#allocation4 + $0xf] sm:$0xff] %vm1376, %v6322
        %6416 = vst.msk [vmem:[#allocation4 + $0x17] sm:$0xff] %vm1376, %v6324
        %6417 = vst.msk [vmem:[#allocation4 + $0x1f] sm:$0xff] %vm1376, %v6326
        %6418 = vst.msk [vmem:[#allocation4 + $0x27] sm:$0xff] %vm1376, %v6328
        %6419 = vst.msk [vmem:[#allocation4 + $0x2f] sm:$0xff] %vm1376, %v6330
        %6420 = vst.msk [vmem:[#allocation4 + $0x37] sm:$0xff] %vm1376, %v6332
        %6421 = vst.msk [vmem:[#allocation4 + $0x3f] sm:$0xff] %vm1376, %v6334
        %6422 = vst.msk [vmem:[#allocation4 + $0x47] sm:$0xff] %vm1376, %v6336
        %6423 = vst.msk [vmem:[#allocation4 + $0x4f] sm:$0xff] %vm1376, %v6338
        %6424 = vst.msk [vmem:[#allocation4 + $0x57] sm:$0xff] %vm1376, %v6340
        %6425 = vst.msk [vmem:[#allocation4 + $0x5f] sm:$0xff] %vm1376, %v6342
        %6426 = vst.msk [vmem:[#allocation4 + $0x67] sm:$0xff] %vm1376, %v6344
        %6427 = vst.msk [vmem:[#allocation4 + $0x6f] sm:$0xff] %vm1376, %v6346
        %6428 = vst.msk [vmem:[#allocation4 + $0x77] sm:$0xff] %vm1376, %v6348
        %6429 = vst.msk [vmem:[#allocation4 + $0x7f] sm:$0xff] %vm1376, %v6350
        %6430 = vst.msk [vmem:[#allocation4 + $0x87] sm:$0xff] %vm1376, %v6352
        %6431 = vst.msk [vmem:[#allocation4 + $0x8f] sm:$0xff] %vm1376, %v6354
        %6432 = vst.msk [vmem:[#allocation4 + $0x97] sm:$0xff] %vm1376, %v6356
        %6433 = vst.msk [vmem:[#allocation4 + $0x9f] sm:$0xff] %vm1376, %v6358
        %6434 = vst.msk [vmem:[#allocation4 + $0xa7] sm:$0xff] %vm1376, %v6360
        %6435 = vst.msk [vmem:[#allocation4 + $0xaf] sm:$0xff] %vm1376, %v6362
        %6436 = vst.msk [vmem:[#allocation4 + $0xb7] sm:$0xff] %vm1376, %v6364
        %6437 = vst.msk [vmem:[#allocation4 + $0xbf] sm:$0xff] %vm1376, %v6366
        %6438 = vst.msk [vmem:[#allocation4 + $0xc7] sm:$0xff] %vm1376, %v6368
        %6439 = vst.msk [vmem:[#allocation4 + $0xcf] sm:$0xff] %vm1376, %v6370
        %6440 = vst.msk [vmem:[#allocation4 + $0xd7] sm:$0xff] %vm1376, %v6372
        %6441 = vst.msk [vmem:[#allocation4 + $0xdf] sm:$0xff] %vm1376, %v6374
        %6442 = vst.msk [vmem:[#allocation4 + $0xe7] sm:$0xff] %vm1376, %v6376
        %6443 = vst.msk [vmem:[#allocation4 + $0xef] sm:$0xff] %vm1376, %v6378
        %6444 = vst.msk [vmem:[#allocation4 + $0xf7] sm:$0xff] %vm1376, %v6380
        %v6445 = vld [vmem:[#allocation4] sm:$0xff]
        %v6446 = vld [vmem:[#allocation4 + $0x8] sm:$0xff]
        %v6447 = vld [vmem:[#allocation4 + $0x10] sm:$0xff]
        %v6448 = vld [vmem:[#allocation4 + $0x18] sm:$0xff]
        %v6449 = vld [vmem:[#allocation4 + $0x20] sm:$0xff]
        %v6450 = vld [vmem:[#allocation4 + $0x28] sm:$0xff]
        %v6451 = vld [vmem:[#allocation4 + $0x30] sm:$0xff]
        %v6452 = vld [vmem:[#allocation4 + $0x38] sm:$0xff]
        %v6453 = vld [vmem:[#allocation4 + $0x40] sm:$0xff]
        %v6454 = vld [vmem:[#allocation4 + $0x48] sm:$0xff]
        %v6455 = vld [vmem:[#allocation4 + $0x50] sm:$0xff]
        %v6456 = vld [vmem:[#allocation4 + $0x58] sm:$0xff]
        %v6457 = vld [vmem:[#allocation4 + $0x60] sm:$0xff]
        %v6458 = vld [vmem:[#allocation4 + $0x68] sm:$0xff]
        %v6459 = vld [vmem:[#allocation4 + $0x70] sm:$0xff]
        %v6460 = vld [vmem:[#allocation4 + $0x78] sm:$0xff]
        %v6461 = vld [vmem:[#allocation4 + $0x80] sm:$0xff]
        %v6462 = vld [vmem:[#allocation4 + $0x88] sm:$0xff]
        %v6463 = vld [vmem:[#allocation4 + $0x90] sm:$0xff]
        %v6464 = vld [vmem:[#allocation4 + $0x98] sm:$0xff]
        %v6465 = vld [vmem:[#allocation4 + $0xa0] sm:$0xff]
        %v6466 = vld [vmem:[#allocation4 + $0xa8] sm:$0xff]
        %v6467 = vld [vmem:[#allocation4 + $0xb0] sm:$0xff]
        %v6468 = vld [vmem:[#allocation4 + $0xb8] sm:$0xff]
        %v6469 = vld [vmem:[#allocation4 + $0xc0] sm:$0xff]
        %v6470 = vld [vmem:[#allocation4 + $0xc8] sm:$0xff]
        %v6471 = vld [vmem:[#allocation4 + $0xd0] sm:$0xff]
        %v6472 = vld [vmem:[#allocation4 + $0xd8] sm:$0xff]
        %v6473 = vld [vmem:[#allocation4 + $0xe0] sm:$0xff]
        %v6474 = vld [vmem:[#allocation4 + $0xe8] sm:$0xff]
        %v6475 = vld [vmem:[#allocation4 + $0xf0] sm:$0xff]
        %v6476 = vld [vmem:[#allocation4 + $0xf8] sm:$0xff]
        %s6477 = scalar_lea.vmem [#allocation8], 96
        %v6478 = vld [vmem:[%s6477] sm:$0xff]
        %v6479 = vld [vmem:[%s6477 + $0x8] sm:$0xf]
        %s6480 = scalar_lea.vmem [#allocation10], 96
        %v6481 = vld [vmem:[%s6480] sm:$0xff]
        %v6482 = vld [vmem:[%s6480 + $0x8] sm:$0xf]
        %v6483 = vld [vmem:[#allocation2 + $0x10] sm:$0xff]
        %v6484 = vld [vmem:[#allocation2 + $0x18] sm:$0xff]
        %v6485 = vld [vmem:[#allocation2 + $0x20] sm:$0xff]
        %v6486 = vld [vmem:[#allocation2 + $0x28] sm:$0xff]
        %v6487 = vld [vmem:[#allocation2 + $0x30] sm:$0xff]
        %v6488 = vld [vmem:[#allocation2 + $0x38] sm:$0xff]
        %v6489 = vld [vmem:[#allocation2 + $0x40] sm:$0xff]
        %v6490 = vld [vmem:[#allocation2 + $0x48] sm:$0xff]
        %v6491 = vld [vmem:[#allocation2 + $0x50] sm:$0xff]
        %v6492 = vld [vmem:[#allocation2 + $0x58] sm:$0xff]
        %v6493 = vld [vmem:[#allocation2 + $0x60] sm:$0xff]
        %v6494 = vld [vmem:[#allocation2 + $0x68] sm:$0xff]
        %v6495 = vld [vmem:[#allocation2 + $0x70] sm:$0xff]
        %v6496 = vld [vmem:[#allocation2 + $0x78] sm:$0xff]
        %v6497 = vld [vmem:[#allocation2 + $0x80] sm:$0xff]
        %v6498 = vld [vmem:[#allocation2 + $0x88] sm:$0xff]
        %v6499 = vld [vmem:[#allocation2 + $0x90] sm:$0xff]
        %v6500 = vld [vmem:[#allocation2 + $0x98] sm:$0xff]
        %v6501 = vld [vmem:[#allocation2 + $0xa0] sm:$0xff]
        %v6502 = vld [vmem:[#allocation2 + $0xa8] sm:$0xff]
        %v6503 = vld [vmem:[#allocation2 + $0xb0] sm:$0xff]
        %v6504 = vld [vmem:[#allocation2 + $0xb8] sm:$0xff]
        %v6505 = vld [vmem:[#allocation2 + $0xc0] sm:$0xff]
        %v6506 = vld [vmem:[#allocation2 + $0xc8] sm:$0xff]
        %v6507 = vld [vmem:[#allocation2 + $0xd0] sm:$0xff]
        %v6508 = vld [vmem:[#allocation2 + $0xd8] sm:$0xff]
        %v6509 = vld [vmem:[#allocation2 + $0xe0] sm:$0xff]
        %v6510 = vld [vmem:[#allocation2 + $0xe8] sm:$0xff]
        %v6511 = vld [vmem:[#allocation2 + $0xf0] sm:$0xff]
        %v6512 = vld [vmem:[#allocation2 + $0xf8] sm:$0xff]
        %v6514 = vsel %vm1474, %v6445, 0
        %v6517 = vsel %vm1474, %v6446, 0
        %v6520 = vsel %vm1474, %v6447, 0
        %v6523 = vsel %vm1474, %v6448, 0
        %v6526 = vsel %vm1474, %v6449, 0
        %v6529 = vsel %vm1474, %v6450, 0
        %v6532 = vsel %vm1474, %v6451, 0
        %v6535 = vsel %vm1474, %v6452, 0
        %v6538 = vsel %vm1474, %v6453, 0
        %v6541 = vsel %vm1474, %v6454, 0
        %v6544 = vsel %vm1474, %v6455, 0
        %v6547 = vsel %vm1474, %v6456, 0
        %v6550 = vsel %vm1474, %v6457, 0
        %v6553 = vsel %vm1474, %v6458, 0
        %v6556 = vsel %vm1474, %v6459, 0
        %v6559 = vsel %vm1474, %v6460, 0
        %v6562 = vsel %vm1474, %v6461, 0
        %v6565 = vsel %vm1474, %v6462, 0
        %v6568 = vsel %vm1474, %v6463, 0
        %v6571 = vsel %vm1474, %v6464, 0
        %v6574 = vsel %vm1474, %v6465, 0
        %v6577 = vsel %vm1474, %v6466, 0
        %v6580 = vsel %vm1474, %v6467, 0
        %v6583 = vsel %vm1474, %v6468, 0
        %v6586 = vsel %vm1474, %v6469, 0
        %v6589 = vsel %vm1474, %v6470, 0
        %v6592 = vsel %vm1474, %v6471, 0
        %v6595 = vsel %vm1474, %v6472, 0
        %v6598 = vsel %vm1474, %v6473, 0
        %v6601 = vsel %vm1474, %v6474, 0
        %v6604 = vsel %vm1565, %v6479, 0
        %6606 = vmatprep.subr.mxu0 0.0
        %6607 = vmatpush1.msra.mxu0 %v6478
        %6608 = vmatprep.subr.mxu0 0.0
        %6609 = vmatpush1.msra.mxu0 %v6604
        %6610 = vmatprep.subr.mxu0 0.0
        %6611 = vmatpush1.msra.mxu0 0.0
        %6612 = vmatprep.subr.mxu0 0.0
        %6613 = vmatpush1.msra.mxu0 0.0
        %6614 = vmatprep.subr.mxu0 0.0
        %6615 = vmatpush1.msra.mxu0 0.0
        %6616 = vmatprep.subr.mxu0 0.0
        %6617 = vmatpush1.msra.mxu0 0.0
        %6618 = vmatprep.subr.mxu0 0.0
        %6619 = vmatpush1.msra.mxu0 0.0
        %6620 = vmatprep.subr.mxu0 0.0
        %6621 = vmatpush1.msra.mxu0 0.0
        %6622 = vmatprep.subr.mxu0 0.0
        %6623 = vmatpush1.msra.mxu0 0.0
        %6624 = vmatprep.subr.mxu0 0.0
        %6625 = vmatpush1.msra.mxu0 0.0
        %6626 = vmatprep.subr.mxu0 0.0
        %6627 = vmatpush1.msra.mxu0 0.0
        %6628 = vmatprep.subr.mxu0 0.0
        %6629 = vmatpush1.msra.mxu0 0.0
        %6630 = vmatprep.subr.mxu0 0.0
        %6631 = vmatpush1.msra.mxu0 0.0
        %6632 = vmatprep.subr.mxu0 0.0
        %6633 = vmatpush1.msra.mxu0 0.0
        %6634 = vmatprep.subr.mxu0 0.0
        %6635 = vmatpush1.msra.mxu0 0.0
        %6636 = vmatprep.subr.mxu0 0.0
        %6637 = vmatpush1.msra.mxu0 0.0
        %6638 = vmatprep.subr.mxu0 0.0
        %6639 = vmatpush1.msra.mxu0 0.0
        %6640 = vmatprep.subr.mxu0 0.0
        %6641 = vmatpush1.msra.mxu0 0.0
        %6642 = vmatprep.subr.mxu0 0.0
        %6643 = vmatpush1.msra.mxu0 0.0
        %6644 = vmatprep.subr.mxu0 0.0
        %6645 = vmatpush1.msra.mxu0 0.0
        %6646 = vmatprep.subr.mxu0 0.0
        %6647 = vmatpush1.msra.mxu0 0.0
        %6648 = vmatprep.subr.mxu0 0.0
        %6649 = vmatpush1.msra.mxu0 0.0
        %6650 = vmatprep.subr.mxu0 0.0
        %6651 = vmatpush1.msra.mxu0 0.0
        %6652 = vmatprep.subr.mxu0 0.0
        %6653 = vmatpush1.msra.mxu0 0.0
        %6654 = vmatprep.subr.mxu0 0.0
        %6655 = vmatpush1.msra.mxu0 0.0
        %6656 = vmatprep.subr.mxu0 0.0
        %6657 = vmatpush1.msra.mxu0 0.0
        %6658 = vmatprep.subr.mxu0 0.0
        %6659 = vmatpush1.msra.mxu0 0.0
        %6660 = vmatprep.subr.mxu0 0.0
        %6661 = vmatpush1.msra.mxu0 0.0
        %6662 = vmatprep.subr.mxu0 0.0
        %6663 = vmatpush1.msra.mxu0 0.0
        %6664 = vmatprep.subr.mxu0 0.0
        %6665 = vmatpush1.msra.mxu0 0.0
        %6666 = vmatprep.subr.mxu0 0.0
        %6667 = vmatpush1.msra.mxu0 0.0
        %6668 = vmatprep.subr.mxu0 0.0
        %6669 = vmatpush1.msra.mxu0 0.0
        %6670 = vmatprep.mubr.f32.mxu0 0.0
        %6671 = vmatmul.mubr.f32.gmra.mrb[0].mxu0 %v6514
        %v6672 = vpop.f32.mrb[0].mxu0
        %v6673 = vadd.f32 0.0, %v6672
        %v6674 = vpop.f32.mrb[0].mxu0
        %6675 = vmatprep.mubr.f32.mxu0 0.0
        %6676 = vmatmul.mubr.f32.gmra.mrb[0].mxu0 %v6517
        %v6677 = vpop.f32.mrb[0].mxu0
        %v6678 = vadd.f32 0.0, %v6677
        %v6679 = vpop.f32.mrb[0].mxu0
        %6680 = vmatprep.mubr.f32.mxu0 0.0
        %6681 = vmatmul.mubr.f32.gmra.mrb[0].mxu0 %v6520
        %v6682 = vpop.f32.mrb[0].mxu0
        %v6683 = vadd.f32 0.0, %v6682
        %v6684 = vpop.f32.mrb[0].mxu0
        %6685 = vmatprep.mubr.f32.mxu0 0.0
        %6686 = vmatmul.mubr.f32.gmra.mrb[0].mxu0 %v6523
        %v6687 = vpop.f32.mrb[0].mxu0
        %v6688 = vadd.f32 0.0, %v6687
        %v6689 = vpop.f32.mrb[0].mxu0
        %6690 = vmatprep.mubr.f32.mxu0 0.0
        %6691 = vmatmul.mubr.f32.gmra.mrb[0].mxu0 %v6526
        %v6692 = vpop.f32.mrb[0].mxu0
        %v6693 = vadd.f32 0.0, %v6692
        %v6694 = vpop.f32.mrb[0].mxu0
        %6695 = vmatprep.mubr.f32.mxu0 0.0
        %6696 = vmatmul.mubr.f32.gmra.mrb[0].mxu0 %v6529
        %v6697 = vpop.f32.mrb[0].mxu0
        %v6698 = vadd.f32 0.0, %v6697
        %v6699 = vpop.f32.mrb[0].mxu0
        %6700 = vmatprep.mubr.f32.mxu0 0.0
        %6701 = vmatmul.mubr.f32.gmra.mrb[0].mxu0 %v6532
        %v6702 = vpop.f32.mrb[0].mxu0
        %v6703 = vadd.f32 0.0, %v6702
        %v6704 = vpop.f32.mrb[0].mxu0
        %6705 = vmatprep.mubr.f32.mxu0 0.0
        %6706 = vmatmul.mubr.f32.gmra.mrb[0].mxu0 %v6535
        %v6707 = vpop.f32.mrb[0].mxu0
        %v6708 = vadd.f32 0.0, %v6707
        %v6709 = vpop.f32.mrb[0].mxu0
        %6710 = vmatprep.mubr.f32.mxu0 0.0
        %6711 = vmatmul.mubr.f32.gmra.mrb[0].mxu0 %v6538
        %v6712 = vpop.f32.mrb[0].mxu0
        %v6713 = vadd.f32 0.0, %v6712
        %v6714 = vpop.f32.mrb[0].mxu0
        %6715 = vmatprep.mubr.f32.mxu0 0.0
        %6716 = vmatmul.mubr.f32.gmra.mrb[0].mxu0 %v6541
        %v6717 = vpop.f32.mrb[0].mxu0
        %v6718 = vadd.f32 0.0, %v6717
        %v6719 = vpop.f32.mrb[0].mxu0
        %6720 = vmatprep.mubr.f32.mxu0 0.0
        %6721 = vmatmul.mubr.f32.gmra.mrb[0].mxu0 %v6544
        %v6722 = vpop.f32.mrb[0].mxu0
        %v6723 = vadd.f32 0.0, %v6722
        %v6724 = vpop.f32.mrb[0].mxu0
        %6725 = vmatprep.mubr.f32.mxu0 0.0
        %6726 = vmatmul.mubr.f32.gmra.mrb[0].mxu0 %v6547
        %v6727 = vpop.f32.mrb[0].mxu0
        %v6728 = vadd.f32 0.0, %v6727
        %v6729 = vpop.f32.mrb[0].mxu0
        %6730 = vmatprep.mubr.f32.mxu0 0.0
        %6731 = vmatmul.mubr.f32.gmra.mrb[0].mxu0 %v6550
        %v6732 = vpop.f32.mrb[0].mxu0
        %v6733 = vadd.f32 0.0, %v6732
        %v6734 = vpop.f32.mrb[0].mxu0
        %6735 = vmatprep.mubr.f32.mxu0 0.0
        %6736 = vmatmul.mubr.f32.gmra.mrb[0].mxu0 %v6553
        %v6737 = vpop.f32.mrb[0].mxu0
        %v6738 = vadd.f32 0.0, %v6737
        %v6739 = vpop.f32.mrb[0].mxu0
        %6740 = vmatprep.mubr.f32.mxu0 0.0
        %6741 = vmatmul.mubr.f32.gmra.mrb[0].mxu0 %v6556
        %v6742 = vpop.f32.mrb[0].mxu0
        %v6743 = vadd.f32 0.0, %v6742
        %v6744 = vpop.f32.mrb[0].mxu0
        %6745 = vmatprep.mubr.f32.mxu0 0.0
        %6746 = vmatmul.mubr.f32.gmra.mrb[0].mxu0 %v6559
        %v6747 = vpop.f32.mrb[0].mxu0
        %v6748 = vadd.f32 0.0, %v6747
        %v6749 = vpop.f32.mrb[0].mxu0
        %6750 = vmatprep.mubr.f32.mxu0 0.0
        %6751 = vmatmul.mubr.f32.gmra.mrb[0].mxu0 %v6562
        %v6752 = vpop.f32.mrb[0].mxu0
        %v6753 = vadd.f32 0.0, %v6752
        %v6754 = vpop.f32.mrb[0].mxu0
        %6755 = vmatprep.mubr.f32.mxu0 0.0
        %6756 = vmatmul.mubr.f32.gmra.mrb[0].mxu0 %v6565
        %v6757 = vpop.f32.mrb[0].mxu0
        %v6758 = vadd.f32 0.0, %v6757
        %v6759 = vpop.f32.mrb[0].mxu0
        %6760 = vmatprep.mubr.f32.mxu0 0.0
        %6761 = vmatmul.mubr.f32.gmra.mrb[0].mxu0 %v6568
        %v6762 = vpop.f32.mrb[0].mxu0
        %v6763 = vadd.f32 0.0, %v6762
        %v6764 = vpop.f32.mrb[0].mxu0
        %6765 = vmatprep.mubr.f32.mxu0 0.0
        %6766 = vmatmul.mubr.f32.gmra.mrb[0].mxu0 %v6571
        %v6767 = vpop.f32.mrb[0].mxu0
        %v6768 = vadd.f32 0.0, %v6767
        %v6769 = vpop.f32.mrb[0].mxu0
        %6770 = vmatprep.mubr.f32.mxu0 0.0
        %6771 = vmatmul.mubr.f32.gmra.mrb[0].mxu0 %v6574
        %v6772 = vpop.f32.mrb[0].mxu0
        %v6773 = vadd.f32 0.0, %v6772
        %v6774 = vpop.f32.mrb[0].mxu0
        %6775 = vmatprep.mubr.f32.mxu0 0.0
        %6776 = vmatmul.mubr.f32.gmra.mrb[0].mxu0 %v6577
        %v6777 = vpop.f32.mrb[0].mxu0
        %v6778 = vadd.f32 0.0, %v6777
        %v6779 = vpop.f32.mrb[0].mxu0
        %6780 = vmatprep.mubr.f32.mxu0 0.0
        %6781 = vmatmul.mubr.f32.gmra.mrb[0].mxu0 %v6580
        %v6782 = vpop.f32.mrb[0].mxu0
        %v6783 = vadd.f32 0.0, %v6782
        %v6784 = vpop.f32.mrb[0].mxu0
        %6785 = vmatprep.mubr.f32.mxu0 0.0
        %6786 = vmatmul.mubr.f32.gmra.mrb[0].mxu0 %v6583
        %v6787 = vpop.f32.mrb[0].mxu0
        %v6788 = vadd.f32 0.0, %v6787
        %v6789 = vpop.f32.mrb[0].mxu0
        %6790 = vmatprep.mubr.f32.mxu0 0.0
        %6791 = vmatmul.mubr.f32.gmra.mrb[0].mxu0 %v6586
        %v6792 = vpop.f32.mrb[0].mxu0
        %v6793 = vadd.f32 0.0, %v6792
        %v6794 = vpop.f32.mrb[0].mxu0
        %6795 = vmatprep.mubr.f32.mxu0 0.0
        %6796 = vmatmul.mubr.f32.gmra.mrb[0].mxu0 %v6589
        %v6797 = vpop.f32.mrb[0].mxu0
        %v6798 = vadd.f32 0.0, %v6797
        %v6799 = vpop.f32.mrb[0].mxu0
        %6800 = vmatprep.mubr.f32.mxu0 0.0
        %6801 = vmatmul.mubr.f32.gmra.mrb[0].mxu0 %v6592
        %v6802 = vpop.f32.mrb[0].mxu0
        %v6803 = vadd.f32 0.0, %v6802
        %v6804 = vpop.f32.mrb[0].mxu0
        %6805 = vmatprep.mubr.f32.mxu0 0.0
        %6806 = vmatmul.mubr.f32.gmra.mrb[0].mxu0 %v6595
        %v6807 = vpop.f32.mrb[0].mxu0
        %v6808 = vadd.f32 0.0, %v6807
        %v6809 = vpop.f32.mrb[0].mxu0
        %6810 = vmatprep.mubr.f32.mxu0 0.0
        %6811 = vmatmul.mubr.f32.gmra.mrb[0].mxu0 %v6598
        %v6812 = vpop.f32.mrb[0].mxu0
        %v6813 = vadd.f32 0.0, %v6812
        %v6814 = vpop.f32.mrb[0].mxu0
        %6815 = vmatprep.mubr.f32.mxu0 0.0
        %6816 = vmatmul.mubr.f32.gmra.mrb[0].mxu0 %v6601
        %v6817 = vpop.f32.mrb[0].mxu0
        %v6818 = vadd.f32 0.0, %v6817
        %v6819 = vpop.f32.mrb[0].mxu0
        %6820 = vdwg.mxu0
        %v6821 = vadd.f32 %v6483, %v6673
        %v6822 = vadd.f32 %v6484, %v6678
        %v6823 = vadd.f32 %v6485, %v6683
        %v6824 = vadd.f32 %v6486, %v6688
        %v6825 = vadd.f32 %v6487, %v6693
        %v6826 = vadd.f32 %v6488, %v6698
        %v6827 = vadd.f32 %v6489, %v6703
        %v6828 = vadd.f32 %v6490, %v6708
        %v6829 = vadd.f32 %v6491, %v6713
        %v6830 = vadd.f32 %v6492, %v6718
        %v6831 = vadd.f32 %v6493, %v6723
        %v6832 = vadd.f32 %v6494, %v6728
        %v6833 = vadd.f32 %v6495, %v6733
        %v6834 = vadd.f32 %v6496, %v6738
        %v6835 = vadd.f32 %v6497, %v6743
        %v6836 = vadd.f32 %v6498, %v6748
        %v6837 = vadd.f32 %v6499, %v6753
        %v6838 = vadd.f32 %v6500, %v6758
        %v6839 = vadd.f32 %v6501, %v6763
        %v6840 = vadd.f32 %v6502, %v6768
        %v6841 = vadd.f32 %v6503, %v6773
        %v6842 = vadd.f32 %v6504, %v6778
        %v6843 = vadd.f32 %v6505, %v6783
        %v6844 = vadd.f32 %v6506, %v6788
        %v6845 = vadd.f32 %v6507, %v6793
        %v6846 = vadd.f32 %v6508, %v6798
        %v6847 = vadd.f32 %v6509, %v6803
        %v6848 = vadd.f32 %v6510, %v6808
        %v6849 = vadd.f32 %v6511, %v6813
        %v6850 = vadd.f32 %v6512, %v6818
        %6851 = vst.msk [vmem:[#allocation2 + $0x10] sm:$0xff] %vm841, %v6821
        %6852 = vst.msk [vmem:[#allocation2 + $0x18] sm:$0xff] %vm841, %v6822
        %6853 = vst.msk [vmem:[#allocation2 + $0x20] sm:$0xff] %vm841, %v6823
        %6854 = vst.msk [vmem:[#allocation2 + $0x28] sm:$0xff] %vm841, %v6824
        %6855 = vst.msk [vmem:[#allocation2 + $0x30] sm:$0xff] %vm841, %v6825
        %6856 = vst.msk [vmem:[#allocation2 + $0x38] sm:$0xff] %vm841, %v6826
        %6857 = vst.msk [vmem:[#allocation2 + $0x40] sm:$0xff] %vm841, %v6827
        %6858 = vst.msk [vmem:[#allocation2 + $0x48] sm:$0xff] %vm841, %v6828
        %6859 = vst.msk [vmem:[#allocation2 + $0x50] sm:$0xff] %vm841, %v6829
        %6860 = vst.msk [vmem:[#allocation2 + $0x58] sm:$0xff] %vm841, %v6830
        %6861 = vst.msk [vmem:[#allocation2 + $0x60] sm:$0xff] %vm841, %v6831
        %6862 = vst.msk [vmem:[#allocation2 + $0x68] sm:$0xff] %vm841, %v6832
        %6863 = vst.msk [vmem:[#allocation2 + $0x70] sm:$0xff] %vm841, %v6833
        %6864 = vst.msk [vmem:[#allocation2 + $0x78] sm:$0xff] %vm841, %v6834
        %6865 = vst.msk [vmem:[#allocation2 + $0x80] sm:$0xff] %vm841, %v6835
        %6866 = vst.msk [vmem:[#allocation2 + $0x88] sm:$0xff] %vm841, %v6836
        %6867 = vst.msk [vmem:[#allocation2 + $0x90] sm:$0xff] %vm841, %v6837
        %6868 = vst.msk [vmem:[#allocation2 + $0x98] sm:$0xff] %vm841, %v6838
        %6869 = vst.msk [vmem:[#allocation2 + $0xa0] sm:$0xff] %vm841, %v6839
        %6870 = vst.msk [vmem:[#allocation2 + $0xa8] sm:$0xff] %vm841, %v6840
        %6871 = vst.msk [vmem:[#allocation2 + $0xb0] sm:$0xff] %vm841, %v6841
        %6872 = vst.msk [vmem:[#allocation2 + $0xb8] sm:$0xff] %vm841, %v6842
        %6873 = vst.msk [vmem:[#allocation2 + $0xc0] sm:$0xff] %vm841, %v6843
        %6874 = vst.msk [vmem:[#allocation2 + $0xc8] sm:$0xff] %vm841, %v6844
        %6875 = vst.msk [vmem:[#allocation2 + $0xd0] sm:$0xff] %vm841, %v6845
        %6876 = vst.msk [vmem:[#allocation2 + $0xd8] sm:$0xff] %vm841, %v6846
        %6877 = vst.msk [vmem:[#allocation2 + $0xe0] sm:$0xff] %vm841, %v6847
        %6878 = vst.msk [vmem:[#allocation2 + $0xe8] sm:$0xff] %vm841, %v6848
        %6879 = vst.msk [vmem:[#allocation2 + $0xf0] sm:$0xff] %vm841, %v6849
        %6880 = vst.msk [vmem:[#allocation2 + $0xf8] sm:$0xff] %vm841, %v6850
        %v6881 = vld [vmem:[#allocation3 + $0x10] sm:$0xff]
        %v6882 = vld [vmem:[#allocation3 + $0x18] sm:$0xff]
        %v6883 = vld [vmem:[#allocation3 + $0x20] sm:$0xff]
        %v6884 = vld [vmem:[#allocation3 + $0x28] sm:$0xff]
        %v6885 = vld [vmem:[#allocation3 + $0x30] sm:$0xff]
        %v6886 = vld [vmem:[#allocation3 + $0x38] sm:$0xff]
        %v6887 = vld [vmem:[#allocation3 + $0x40] sm:$0xff]
        %v6888 = vld [vmem:[#allocation3 + $0x48] sm:$0xff]
        %v6889 = vld [vmem:[#allocation3 + $0x50] sm:$0xff]
        %v6890 = vld [vmem:[#allocation3 + $0x58] sm:$0xff]
        %v6891 = vld [vmem:[#allocation3 + $0x60] sm:$0xff]
        %v6892 = vld [vmem:[#allocation3 + $0x68] sm:$0xff]
        %v6893 = vld [vmem:[#allocation3 + $0x70] sm:$0xff]
        %v6894 = vld [vmem:[#allocation3 + $0x78] sm:$0xff]
        %v6895 = vld [vmem:[#allocation3 + $0x80] sm:$0xff]
        %v6896 = vld [vmem:[#allocation3 + $0x88] sm:$0xff]
        %v6897 = vld [vmem:[#allocation3 + $0x90] sm:$0xff]
        %v6898 = vld [vmem:[#allocation3 + $0x98] sm:$0xff]
        %v6899 = vld [vmem:[#allocation3 + $0xa0] sm:$0xff]
        %v6900 = vld [vmem:[#allocation3 + $0xa8] sm:$0xff]
        %v6901 = vld [vmem:[#allocation3 + $0xb0] sm:$0xff]
        %v6902 = vld [vmem:[#allocation3 + $0xb8] sm:$0xff]
        %v6903 = vld [vmem:[#allocation3 + $0xc0] sm:$0xff]
        %v6904 = vld [vmem:[#allocation3 + $0xc8] sm:$0xff]
        %v6905 = vld [vmem:[#allocation3 + $0xd0] sm:$0xff]
        %v6906 = vld [vmem:[#allocation3 + $0xd8] sm:$0xff]
        %v6907 = vld [vmem:[#allocation3 + $0xe0] sm:$0xff]
        %v6908 = vld [vmem:[#allocation3 + $0xe8] sm:$0xff]
        %v6909 = vld [vmem:[#allocation3 + $0xf0] sm:$0xff]
        %v6910 = vld [vmem:[#allocation3 + $0xf8] sm:$0xff]
        %v6912 = vsel %vm1565, %v6482, 0
        %6914 = vmatprep.subr.mxu0 0.0
        %6915 = vmatpush1.msra.mxu0 %v6481
        %6916 = vmatprep.subr.mxu0 0.0
        %6917 = vmatpush1.msra.mxu0 %v6912
        %6918 = vmatprep.subr.mxu0 0.0
        %6919 = vmatpush1.msra.mxu0 0.0
        %6920 = vmatprep.subr.mxu0 0.0
        %6921 = vmatpush1.msra.mxu0 0.0
        %6922 = vmatprep.subr.mxu0 0.0
        %6923 = vmatpush1.msra.mxu0 0.0
        %6924 = vmatprep.subr.mxu0 0.0
        %6925 = vmatpush1.msra.mxu0 0.0
        %6926 = vmatprep.subr.mxu0 0.0
        %6927 = vmatpush1.msra.mxu0 0.0
        %6928 = vmatprep.subr.mxu0 0.0
        %6929 = vmatpush1.msra.mxu0 0.0
        %6930 = vmatprep.subr.mxu0 0.0
        %6931 = vmatpush1.msra.mxu0 0.0
        %6932 = vmatprep.subr.mxu0 0.0
        %6933 = vmatpush1.msra.mxu0 0.0
        %6934 = vmatprep.subr.mxu0 0.0
        %6935 = vmatpush1.msra.mxu0 0.0
        %6936 = vmatprep.subr.mxu0 0.0
        %6937 = vmatpush1.msra.mxu0 0.0
        %6938 = vmatprep.subr.mxu0 0.0
        %6939 = vmatpush1.msra.mxu0 0.0
        %6940 = vmatprep.subr.mxu0 0.0
        %6941 = vmatpush1.msra.mxu0 0.0
        %6942 = vmatprep.subr.mxu0 0.0
        %6943 = vmatpush1.msra.mxu0 0.0
        %6944 = vmatprep.subr.mxu0 0.0
        %6945 = vmatpush1.msra.mxu0 0.0
        %6946 = vmatprep.subr.mxu0 0.0
        %6947 = vmatpush1.msra.mxu0 0.0
        %6948 = vmatprep.subr.mxu0 0.0
        %6949 = vmatpush1.msra.mxu0 0.0
        %6950 = vmatprep.subr.mxu0 0.0
        %6951 = vmatpush1.msra.mxu0 0.0
        %6952 = vmatprep.subr.mxu0 0.0
        %6953 = vmatpush1.msra.mxu0 0.0
        %6954 = vmatprep.subr.mxu0 0.0
        %6955 = vmatpush1.msra.mxu0 0.0
        %6956 = vmatprep.subr.mxu0 0.0
        %6957 = vmatpush1.msra.mxu0 0.0
        %6958 = vmatprep.subr.mxu0 0.0
        %6959 = vmatpush1.msra.mxu0 0.0
        %6960 = vmatprep.subr.mxu0 0.0
        %6961 = vmatpush1.msra.mxu0 0.0
        %6962 = vmatprep.subr.mxu0 0.0
        %6963 = vmatpush1.msra.mxu0 0.0
        %6964 = vmatprep.subr.mxu0 0.0
        %6965 = vmatpush1.msra.mxu0 0.0
        %6966 = vmatprep.subr.mxu0 0.0
        %6967 = vmatpush1.msra.mxu0 0.0
        %6968 = vmatprep.subr.mxu0 0.0
        %6969 = vmatpush1.msra.mxu0 0.0
        %6970 = vmatprep.subr.mxu0 0.0
        %6971 = vmatpush1.msra.mxu0 0.0
        %6972 = vmatprep.subr.mxu0 0.0
        %6973 = vmatpush1.msra.mxu0 0.0
        %6974 = vmatprep.subr.mxu0 0.0
        %6975 = vmatpush1.msra.mxu0 0.0
        %6976 = vmatprep.subr.mxu0 0.0
        %6977 = vmatpush1.msra.mxu0 0.0
        %6978 = vmatprep.mubr.f32.mxu0 0.0
        %6979 = vmatmul.mubr.f32.gmra.mrb[0].mxu0 %v6514
        %v6980 = vpop.f32.mrb[0].mxu0
        %v6981 = vadd.f32 0.0, %v6980
        %v6982 = vpop.f32.mrb[0].mxu0
        %6983 = vmatprep.mubr.f32.mxu0 0.0
        %6984 = vmatmul.mubr.f32.gmra.mrb[0].mxu0 %v6517
        %v6985 = vpop.f32.mrb[0].mxu0
        %v6986 = vadd.f32 0.0, %v6985
        %v6987 = vpop.f32.mrb[0].mxu0
        %6988 = vmatprep.mubr.f32.mxu0 0.0
        %6989 = vmatmul.mubr.f32.gmra.mrb[0].mxu0 %v6520
        %v6990 = vpop.f32.mrb[0].mxu0
        %v6991 = vadd.f32 0.0, %v6990
        %v6992 = vpop.f32.mrb[0].mxu0
        %6993 = vmatprep.mubr.f32.mxu0 0.0
        %6994 = vmatmul.mubr.f32.gmra.mrb[0].mxu0 %v6523
        %v6995 = vpop.f32.mrb[0].mxu0
        %v6996 = vadd.f32 0.0, %v6995
        %v6997 = vpop.f32.mrb[0].mxu0
        %6998 = vmatprep.mubr.f32.mxu0 0.0
        %6999 = vmatmul.mubr.f32.gmra.mrb[0].mxu0 %v6526
        %v7000 = vpop.f32.mrb[0].mxu0
        %v7001 = vadd.f32 0.0, %v7000
        %v7002 = vpop.f32.mrb[0].mxu0
        %7003 = vmatprep.mubr.f32.mxu0 0.0
        %7004 = vmatmul.mubr.f32.gmra.mrb[0].mxu0 %v6529
        %v7005 = vpop.f32.mrb[0].mxu0
        %v7006 = vadd.f32 0.0, %v7005
        %v7007 = vpop.f32.mrb[0].mxu0
        %7008 = vmatprep.mubr.f32.mxu0 0.0
        %7009 = vmatmul.mubr.f32.gmra.mrb[0].mxu0 %v6532
        %v7010 = vpop.f32.mrb[0].mxu0
        %v7011 = vadd.f32 0.0, %v7010
        %v7012 = vpop.f32.mrb[0].mxu0
        %7013 = vmatprep.mubr.f32.mxu0 0.0
        %7014 = vmatmul.mubr.f32.gmra.mrb[0].mxu0 %v6535
        %v7015 = vpop.f32.mrb[0].mxu0
        %v7016 = vadd.f32 0.0, %v7015
        %v7017 = vpop.f32.mrb[0].mxu0
        %7018 = vmatprep.mubr.f32.mxu0 0.0
        %7019 = vmatmul.mubr.f32.gmra.mrb[0].mxu0 %v6538
        %v7020 = vpop.f32.mrb[0].mxu0
        %v7021 = vadd.f32 0.0, %v7020
        %v7022 = vpop.f32.mrb[0].mxu0
        %7023 = vmatprep.mubr.f32.mxu0 0.0
        %7024 = vmatmul.mubr.f32.gmra.mrb[0].mxu0 %v6541
        %v7025 = vpop.f32.mrb[0].mxu0
        %v7026 = vadd.f32 0.0, %v7025
        %v7027 = vpop.f32.mrb[0].mxu0
        %7028 = vmatprep.mubr.f32.mxu0 0.0
        %7029 = vmatmul.mubr.f32.gmra.mrb[0].mxu0 %v6544
        %v7030 = vpop.f32.mrb[0].mxu0
        %v7031 = vadd.f32 0.0, %v7030
        %v7032 = vpop.f32.mrb[0].mxu0
        %7033 = vmatprep.mubr.f32.mxu0 0.0
        %7034 = vmatmul.mubr.f32.gmra.mrb[0].mxu0 %v6547
        %v7035 = vpop.f32.mrb[0].mxu0
        %v7036 = vadd.f32 0.0, %v7035
        %v7037 = vpop.f32.mrb[0].mxu0
        %7038 = vmatprep.mubr.f32.mxu0 0.0
        %7039 = vmatmul.mubr.f32.gmra.mrb[0].mxu0 %v6550
        %v7040 = vpop.f32.mrb[0].mxu0
        %v7041 = vadd.f32 0.0, %v7040
        %v7042 = vpop.f32.mrb[0].mxu0
        %7043 = vmatprep.mubr.f32.mxu0 0.0
        %7044 = vmatmul.mubr.f32.gmra.mrb[0].mxu0 %v6553
        %v7045 = vpop.f32.mrb[0].mxu0
        %v7046 = vadd.f32 0.0, %v7045
        %v7047 = vpop.f32.mrb[0].mxu0
        %7048 = vmatprep.mubr.f32.mxu0 0.0
        %7049 = vmatmul.mubr.f32.gmra.mrb[0].mxu0 %v6556
        %v7050 = vpop.f32.mrb[0].mxu0
        %v7051 = vadd.f32 0.0, %v7050
        %v7052 = vpop.f32.mrb[0].mxu0
        %7053 = vmatprep.mubr.f32.mxu0 0.0
        %7054 = vmatmul.mubr.f32.gmra.mrb[0].mxu0 %v6559
        %v7055 = vpop.f32.mrb[0].mxu0
        %v7056 = vadd.f32 0.0, %v7055
        %v7057 = vpop.f32.mrb[0].mxu0
        %7058 = vmatprep.mubr.f32.mxu0 0.0
        %7059 = vmatmul.mubr.f32.gmra.mrb[0].mxu0 %v6562
        %v7060 = vpop.f32.mrb[0].mxu0
        %v7061 = vadd.f32 0.0, %v7060
        %v7062 = vpop.f32.mrb[0].mxu0
        %7063 = vmatprep.mubr.f32.mxu0 0.0
        %7064 = vmatmul.mubr.f32.gmra.mrb[0].mxu0 %v6565
        %v7065 = vpop.f32.mrb[0].mxu0
        %v7066 = vadd.f32 0.0, %v7065
        %v7067 = vpop.f32.mrb[0].mxu0
        %7068 = vmatprep.mubr.f32.mxu0 0.0
        %7069 = vmatmul.mubr.f32.gmra.mrb[0].mxu0 %v6568
        %v7070 = vpop.f32.mrb[0].mxu0
        %v7071 = vadd.f32 0.0, %v7070
        %v7072 = vpop.f32.mrb[0].mxu0
        %7073 = vmatprep.mubr.f32.mxu0 0.0
        %7074 = vmatmul.mubr.f32.gmra.mrb[0].mxu0 %v6571
        %v7075 = vpop.f32.mrb[0].mxu0
        %v7076 = vadd.f32 0.0, %v7075
        %v7077 = vpop.f32.mrb[0].mxu0
        %7078 = vmatprep.mubr.f32.mxu0 0.0
        %7079 = vmatmul.mubr.f32.gmra.mrb[0].mxu0 %v6574
        %v7080 = vpop.f32.mrb[0].mxu0
        %v7081 = vadd.f32 0.0, %v7080
        %v7082 = vpop.f32.mrb[0].mxu0
        %7083 = vmatprep.mubr.f32.mxu0 0.0
        %7084 = vmatmul.mubr.f32.gmra.mrb[0].mxu0 %v6577
        %v7085 = vpop.f32.mrb[0].mxu0
        %v7086 = vadd.f32 0.0, %v7085
        %v7087 = vpop.f32.mrb[0].mxu0
        %7088 = vmatprep.mubr.f32.mxu0 0.0
        %7089 = vmatmul.mubr.f32.gmra.mrb[0].mxu0 %v6580
        %v7090 = vpop.f32.mrb[0].mxu0
        %v7091 = vadd.f32 0.0, %v7090
        %v7092 = vpop.f32.mrb[0].mxu0
        %7093 = vmatprep.mubr.f32.mxu0 0.0
        %7094 = vmatmul.mubr.f32.gmra.mrb[0].mxu0 %v6583
        %v7095 = vpop.f32.mrb[0].mxu0
        %v7096 = vadd.f32 0.0, %v7095
        %v7097 = vpop.f32.mrb[0].mxu0
        %7098 = vmatprep.mubr.f32.mxu0 0.0
        %7099 = vmatmul.mubr.f32.gmra.mrb[0].mxu0 %v6586
        %v7100 = vpop.f32.mrb[0].mxu0
        %v7101 = vadd.f32 0.0, %v7100
        %v7102 = vpop.f32.mrb[0].mxu0
        %7103 = vmatprep.mubr.f32.mxu0 0.0
        %7104 = vmatmul.mubr.f32.gmra.mrb[0].mxu0 %v6589
        %v7105 = vpop.f32.mrb[0].mxu0
        %v7106 = vadd.f32 0.0, %v7105
        %v7107 = vpop.f32.mrb[0].mxu0
        %7108 = vmatprep.mubr.f32.mxu0 0.0
        %7109 = vmatmul.mubr.f32.gmra.mrb[0].mxu0 %v6592
        %v7110 = vpop.f32.mrb[0].mxu0
        %v7111 = vadd.f32 0.0, %v7110
        %v7112 = vpop.f32.mrb[0].mxu0
        %7113 = vmatprep.mubr.f32.mxu0 0.0
        %7114 = vmatmul.mubr.f32.gmra.mrb[0].mxu0 %v6595
        %v7115 = vpop.f32.mrb[0].mxu0
        %v7116 = vadd.f32 0.0, %v7115
        %v7117 = vpop.f32.mrb[0].mxu0
        %7118 = vmatprep.mubr.f32.mxu0 0.0
        %7119 = vmatmul.mubr.f32.gmra.mrb[0].mxu0 %v6598
        %v7120 = vpop.f32.mrb[0].mxu0
        %v7121 = vadd.f32 0.0, %v7120
        %v7122 = vpop.f32.mrb[0].mxu0
        %7123 = vmatprep.mubr.f32.mxu0 0.0
        %7124 = vmatmul.mubr.f32.gmra.mrb[0].mxu0 %v6601
        %v7125 = vpop.f32.mrb[0].mxu0
        %v7126 = vadd.f32 0.0, %v7125
        %v7127 = vpop.f32.mrb[0].mxu0
        %7128 = vdwg.mxu0
        %v7129 = vadd.f32 %v6881, %v6981
        %v7130 = vadd.f32 %v6882, %v6986
        %v7131 = vadd.f32 %v6883, %v6991
        %v7132 = vadd.f32 %v6884, %v6996
        %v7133 = vadd.f32 %v6885, %v7001
        %v7134 = vadd.f32 %v6886, %v7006
        %v7135 = vadd.f32 %v6887, %v7011
        %v7136 = vadd.f32 %v6888, %v7016
        %v7137 = vadd.f32 %v6889, %v7021
        %v7138 = vadd.f32 %v6890, %v7026
        %v7139 = vadd.f32 %v6891, %v7031
        %v7140 = vadd.f32 %v6892, %v7036
        %v7141 = vadd.f32 %v6893, %v7041
        %v7142 = vadd.f32 %v6894, %v7046
        %v7143 = vadd.f32 %v6895, %v7051
        %v7144 = vadd.f32 %v6896, %v7056
        %v7145 = vadd.f32 %v6897, %v7061
        %v7146 = vadd.f32 %v6898, %v7066
        %v7147 = vadd.f32 %v6899, %v7071
        %v7148 = vadd.f32 %v6900, %v7076
        %v7149 = vadd.f32 %v6901, %v7081
        %v7150 = vadd.f32 %v6902, %v7086
        %v7151 = vadd.f32 %v6903, %v7091
        %v7152 = vadd.f32 %v6904, %v7096
        %v7153 = vadd.f32 %v6905, %v7101
        %v7154 = vadd.f32 %v6906, %v7106
        %v7155 = vadd.f32 %v6907, %v7111
        %v7156 = vadd.f32 %v6908, %v7116
        %v7157 = vadd.f32 %v6909, %v7121
        %v7158 = vadd.f32 %v6910, %v7126
        %7159 = vst.msk [vmem:[#allocation3 + $0x10] sm:$0xff] %vm841, %v7129
        %7160 = vst.msk [vmem:[#allocation3 + $0x18] sm:$0xff] %vm841, %v7130
        %7161 = vst.msk [vmem:[#allocation3 + $0x20] sm:$0xff] %vm841, %v7131
        %7162 = vst.msk [vmem:[#allocation3 + $0x28] sm:$0xff] %vm841, %v7132
        %7163 = vst.msk [vmem:[#allocation3 + $0x30] sm:$0xff] %vm841, %v7133
        %7164 = vst.msk [vmem:[#allocation3 + $0x38] sm:$0xff] %vm841, %v7134
        %7165 = vst.msk [vmem:[#allocation3 + $0x40] sm:$0xff] %vm841, %v7135
        %7166 = vst.msk [vmem:[#allocation3 + $0x48] sm:$0xff] %vm841, %v7136
        %7167 = vst.msk [vmem:[#allocation3 + $0x50] sm:$0xff] %vm841, %v7137
        %7168 = vst.msk [vmem:[#allocation3 + $0x58] sm:$0xff] %vm841, %v7138
        %7169 = vst.msk [vmem:[#allocation3 + $0x60] sm:$0xff] %vm841, %v7139
        %7170 = vst.msk [vmem:[#allocation3 + $0x68] sm:$0xff] %vm841, %v7140
        %7171 = vst.msk [vmem:[#allocation3 + $0x70] sm:$0xff] %vm841, %v7141
        %7172 = vst.msk [vmem:[#allocation3 + $0x78] sm:$0xff] %vm841, %v7142
        %7173 = vst.msk [vmem:[#allocation3 + $0x80] sm:$0xff] %vm841, %v7143
        %7174 = vst.msk [vmem:[#allocation3 + $0x88] sm:$0xff] %vm841, %v7144
        %7175 = vst.msk [vmem:[#allocation3 + $0x90] sm:$0xff] %vm841, %v7145
        %7176 = vst.msk [vmem:[#allocation3 + $0x98] sm:$0xff] %vm841, %v7146
        %7177 = vst.msk [vmem:[#allocation3 + $0xa0] sm:$0xff] %vm841, %v7147
        %7178 = vst.msk [vmem:[#allocation3 + $0xa8] sm:$0xff] %vm841, %v7148
        %7179 = vst.msk [vmem:[#allocation3 + $0xb0] sm:$0xff] %vm841, %v7149
        %7180 = vst.msk [vmem:[#allocation3 + $0xb8] sm:$0xff] %vm841, %v7150
        %7181 = vst.msk [vmem:[#allocation3 + $0xc0] sm:$0xff] %vm841, %v7151
        %7182 = vst.msk [vmem:[#allocation3 + $0xc8] sm:$0xff] %vm841, %v7152
        %7183 = vst.msk [vmem:[#allocation3 + $0xd0] sm:$0xff] %vm841, %v7153
        %7184 = vst.msk [vmem:[#allocation3 + $0xd8] sm:$0xff] %vm841, %v7154
        %7185 = vst.msk [vmem:[#allocation3 + $0xe0] sm:$0xff] %vm841, %v7155
        %7186 = vst.msk [vmem:[#allocation3 + $0xe8] sm:$0xff] %vm841, %v7156
        %7187 = vst.msk [vmem:[#allocation3 + $0xf0] sm:$0xff] %vm841, %v7157
        %7188 = vst.msk [vmem:[#allocation3 + $0xf8] sm:$0xff] %vm841, %v7158
        %s7189 = scalar_lea.vmem [#allocation8], 112
        %v7190 = vld [vmem:[%s7189] sm:$0xff]
        %v7191 = vld [vmem:[%s7189 + $0x8] sm:$0xf]
        %s7192 = scalar_lea.vmem [#allocation10], 112
        %v7193 = vld [vmem:[%s7192] sm:$0xff]
        %v7194 = vld [vmem:[%s7192 + $0x8] sm:$0xf]
        %v7195 = vld [vmem:[#allocation2] sm:$0xff]
        %v7196 = vld [vmem:[#allocation2 + $0x8] sm:$0xff]
        %v7197 = vld [vmem:[#allocation2 + $0x10] sm:$0xff]
        %v7198 = vld [vmem:[#allocation2 + $0x18] sm:$0xff]
        %v7199 = vld [vmem:[#allocation2 + $0x20] sm:$0xff]
        %v7200 = vld [vmem:[#allocation2 + $0x28] sm:$0xff]
        %v7201 = vld [vmem:[#allocation2 + $0x30] sm:$0xff]
        %v7202 = vld [vmem:[#allocation2 + $0x38] sm:$0xff]
        %v7203 = vld [vmem:[#allocation2 + $0x40] sm:$0xff]
        %v7204 = vld [vmem:[#allocation2 + $0x48] sm:$0xff]
        %v7205 = vld [vmem:[#allocation2 + $0x50] sm:$0xff]
        %v7206 = vld [vmem:[#allocation2 + $0x58] sm:$0xff]
        %v7207 = vld [vmem:[#allocation2 + $0x60] sm:$0xff]
        %v7208 = vld [vmem:[#allocation2 + $0x68] sm:$0xff]
        %v7209 = vld [vmem:[#allocation2 + $0x70] sm:$0xff]
        %v7210 = vld [vmem:[#allocation2 + $0x78] sm:$0xff]
        %v7211 = vld [vmem:[#allocation2 + $0x80] sm:$0xff]
        %v7212 = vld [vmem:[#allocation2 + $0x88] sm:$0xff]
        %v7213 = vld [vmem:[#allocation2 + $0x90] sm:$0xff]
        %v7214 = vld [vmem:[#allocation2 + $0x98] sm:$0xff]
        %v7215 = vld [vmem:[#allocation2 + $0xa0] sm:$0xff]
        %v7216 = vld [vmem:[#allocation2 + $0xa8] sm:$0xff]
        %v7217 = vld [vmem:[#allocation2 + $0xb0] sm:$0xff]
        %v7218 = vld [vmem:[#allocation2 + $0xb8] sm:$0xff]
        %v7219 = vld [vmem:[#allocation2 + $0xc0] sm:$0xff]
        %v7220 = vld [vmem:[#allocation2 + $0xc8] sm:$0xff]
        %v7221 = vld [vmem:[#allocation2 + $0xd0] sm:$0xff]
        %v7222 = vld [vmem:[#allocation2 + $0xd8] sm:$0xff]
        %v7223 = vld [vmem:[#allocation2 + $0xe0] sm:$0xff]
        %v7224 = vld [vmem:[#allocation2 + $0xe8] sm:$0xff]
        %v7225 = vld [vmem:[#allocation2 + $0xf0] sm:$0xff]
        %v7226 = vld [vmem:[#allocation2 + $0xf8] sm:$0xff]
        %v7228 = vsel %vm1474, %v6475, 0
        %v7231 = vsel %vm1474, %v6476, 0
        %v7234 = vsel %vm1565, %v7191, 0
        %7236 = vmatprep.subr.mxu0 0.0
        %7237 = vmatpush1.msra.mxu0 %v7190
        %7238 = vmatprep.subr.mxu0 0.0
        %7239 = vmatpush1.msra.mxu0 %v7234
        %7240 = vmatprep.subr.mxu0 0.0
        %7241 = vmatpush1.msra.mxu0 0.0
        %7242 = vmatprep.subr.mxu0 0.0
        %7243 = vmatpush1.msra.mxu0 0.0
        %7244 = vmatprep.subr.mxu0 0.0
        %7245 = vmatpush1.msra.mxu0 0.0
        %7246 = vmatprep.subr.mxu0 0.0
        %7247 = vmatpush1.msra.mxu0 0.0
        %7248 = vmatprep.subr.mxu0 0.0
        %7249 = vmatpush1.msra.mxu0 0.0
        %7250 = vmatprep.subr.mxu0 0.0
        %7251 = vmatpush1.msra.mxu0 0.0
        %7252 = vmatprep.subr.mxu0 0.0
        %7253 = vmatpush1.msra.mxu0 0.0
        %7254 = vmatprep.subr.mxu0 0.0
        %7255 = vmatpush1.msra.mxu0 0.0
        %7256 = vmatprep.subr.mxu0 0.0
        %7257 = vmatpush1.msra.mxu0 0.0
        %7258 = vmatprep.subr.mxu0 0.0
        %7259 = vmatpush1.msra.mxu0 0.0
        %7260 = vmatprep.subr.mxu0 0.0
        %7261 = vmatpush1.msra.mxu0 0.0
        %7262 = vmatprep.subr.mxu0 0.0
        %7263 = vmatpush1.msra.mxu0 0.0
        %7264 = vmatprep.subr.mxu0 0.0
        %7265 = vmatpush1.msra.mxu0 0.0
        %7266 = vmatprep.subr.mxu0 0.0
        %7267 = vmatpush1.msra.mxu0 0.0
        %7268 = vmatprep.subr.mxu0 0.0
        %7269 = vmatpush1.msra.mxu0 0.0
        %7270 = vmatprep.subr.mxu0 0.0
        %7271 = vmatpush1.msra.mxu0 0.0
        %7272 = vmatprep.subr.mxu0 0.0
        %7273 = vmatpush1.msra.mxu0 0.0
        %7274 = vmatprep.subr.mxu0 0.0
        %7275 = vmatpush1.msra.mxu0 0.0
        %7276 = vmatprep.subr.mxu0 0.0
        %7277 = vmatpush1.msra.mxu0 0.0
        %7278 = vmatprep.subr.mxu0 0.0
        %7279 = vmatpush1.msra.mxu0 0.0
        %7280 = vmatprep.subr.mxu0 0.0
        %7281 = vmatpush1.msra.mxu0 0.0
        %7282 = vmatprep.subr.mxu0 0.0
        %7283 = vmatpush1.msra.mxu0 0.0
        %7284 = vmatprep.subr.mxu0 0.0
        %7285 = vmatpush1.msra.mxu0 0.0
        %7286 = vmatprep.subr.mxu0 0.0
        %7287 = vmatpush1.msra.mxu0 0.0
        %7288 = vmatprep.subr.mxu0 0.0
        %7289 = vmatpush1.msra.mxu0 0.0
        %7290 = vmatprep.subr.mxu0 0.0
        %7291 = vmatpush1.msra.mxu0 0.0
        %7292 = vmatprep.subr.mxu0 0.0
        %7293 = vmatpush1.msra.mxu0 0.0
        %7294 = vmatprep.subr.mxu0 0.0
        %7295 = vmatpush1.msra.mxu0 0.0
        %7296 = vmatprep.subr.mxu0 0.0
        %7297 = vmatpush1.msra.mxu0 0.0
        %7298 = vmatprep.subr.mxu0 0.0
        %7299 = vmatpush1.msra.mxu0 0.0
        %7300 = vmatprep.mubr.f32.mxu0 0.0
        %7301 = vmatmul.mubr.f32.gmra.mrb[0].mxu0 %v6514
        %v7302 = vpop.f32.mrb[0].mxu0
        %v7303 = vadd.f32 0.0, %v7302
        %v7304 = vpop.f32.mrb[0].mxu0
        %7305 = vmatprep.mubr.f32.mxu0 0.0
        %7306 = vmatmul.mubr.f32.gmra.mrb[0].mxu0 %v6517
        %v7307 = vpop.f32.mrb[0].mxu0
        %v7308 = vadd.f32 0.0, %v7307
        %v7309 = vpop.f32.mrb[0].mxu0
        %7310 = vmatprep.mubr.f32.mxu0 0.0
        %7311 = vmatmul.mubr.f32.gmra.mrb[0].mxu0 %v6520
        %v7312 = vpop.f32.mrb[0].mxu0
        %v7313 = vadd.f32 0.0, %v7312
        %v7314 = vpop.f32.mrb[0].mxu0
        %7315 = vmatprep.mubr.f32.mxu0 0.0
        %7316 = vmatmul.mubr.f32.gmra.mrb[0].mxu0 %v6523
        %v7317 = vpop.f32.mrb[0].mxu0
        %v7318 = vadd.f32 0.0, %v7317
        %v7319 = vpop.f32.mrb[0].mxu0
        %7320 = vmatprep.mubr.f32.mxu0 0.0
        %7321 = vmatmul.mubr.f32.gmra.mrb[0].mxu0 %v6526
        %v7322 = vpop.f32.mrb[0].mxu0
        %v7323 = vadd.f32 0.0, %v7322
        %v7324 = vpop.f32.mrb[0].mxu0
        %7325 = vmatprep.mubr.f32.mxu0 0.0
        %7326 = vmatmul.mubr.f32.gmra.mrb[0].mxu0 %v6529
        %v7327 = vpop.f32.mrb[0].mxu0
        %v7328 = vadd.f32 0.0, %v7327
        %v7329 = vpop.f32.mrb[0].mxu0
        %7330 = vmatprep.mubr.f32.mxu0 0.0
        %7331 = vmatmul.mubr.f32.gmra.mrb[0].mxu0 %v6532
        %v7332 = vpop.f32.mrb[0].mxu0
        %v7333 = vadd.f32 0.0, %v7332
        %v7334 = vpop.f32.mrb[0].mxu0
        %7335 = vmatprep.mubr.f32.mxu0 0.0
        %7336 = vmatmul.mubr.f32.gmra.mrb[0].mxu0 %v6535
        %v7337 = vpop.f32.mrb[0].mxu0
        %v7338 = vadd.f32 0.0, %v7337
        %v7339 = vpop.f32.mrb[0].mxu0
        %7340 = vmatprep.mubr.f32.mxu0 0.0
        %7341 = vmatmul.mubr.f32.gmra.mrb[0].mxu0 %v6538
        %v7342 = vpop.f32.mrb[0].mxu0
        %v7343 = vadd.f32 0.0, %v7342
        %v7344 = vpop.f32.mrb[0].mxu0
        %7345 = vmatprep.mubr.f32.mxu0 0.0
        %7346 = vmatmul.mubr.f32.gmra.mrb[0].mxu0 %v6541
        %v7347 = vpop.f32.mrb[0].mxu0
        %v7348 = vadd.f32 0.0, %v7347
        %v7349 = vpop.f32.mrb[0].mxu0
        %7350 = vmatprep.mubr.f32.mxu0 0.0
        %7351 = vmatmul.mubr.f32.gmra.mrb[0].mxu0 %v6544
        %v7352 = vpop.f32.mrb[0].mxu0
        %v7353 = vadd.f32 0.0, %v7352
        %v7354 = vpop.f32.mrb[0].mxu0
        %7355 = vmatprep.mubr.f32.mxu0 0.0
        %7356 = vmatmul.mubr.f32.gmra.mrb[0].mxu0 %v6547
        %v7357 = vpop.f32.mrb[0].mxu0
        %v7358 = vadd.f32 0.0, %v7357
        %v7359 = vpop.f32.mrb[0].mxu0
        %7360 = vmatprep.mubr.f32.mxu0 0.0
        %7361 = vmatmul.mubr.f32.gmra.mrb[0].mxu0 %v6550
        %v7362 = vpop.f32.mrb[0].mxu0
        %v7363 = vadd.f32 0.0, %v7362
        %v7364 = vpop.f32.mrb[0].mxu0
        %7365 = vmatprep.mubr.f32.mxu0 0.0
        %7366 = vmatmul.mubr.f32.gmra.mrb[0].mxu0 %v6553
        %v7367 = vpop.f32.mrb[0].mxu0
        %v7368 = vadd.f32 0.0, %v7367
        %v7369 = vpop.f32.mrb[0].mxu0
        %7370 = vmatprep.mubr.f32.mxu0 0.0
        %7371 = vmatmul.mubr.f32.gmra.mrb[0].mxu0 %v6556
        %v7372 = vpop.f32.mrb[0].mxu0
        %v7373 = vadd.f32 0.0, %v7372
        %v7374 = vpop.f32.mrb[0].mxu0
        %7375 = vmatprep.mubr.f32.mxu0 0.0
        %7376 = vmatmul.mubr.f32.gmra.mrb[0].mxu0 %v6559
        %v7377 = vpop.f32.mrb[0].mxu0
        %v7378 = vadd.f32 0.0, %v7377
        %v7379 = vpop.f32.mrb[0].mxu0
        %7380 = vmatprep.mubr.f32.mxu0 0.0
        %7381 = vmatmul.mubr.f32.gmra.mrb[0].mxu0 %v6562
        %v7382 = vpop.f32.mrb[0].mxu0
        %v7383 = vadd.f32 0.0, %v7382
        %v7384 = vpop.f32.mrb[0].mxu0
        %7385 = vmatprep.mubr.f32.mxu0 0.0
        %7386 = vmatmul.mubr.f32.gmra.mrb[0].mxu0 %v6565
        %v7387 = vpop.f32.mrb[0].mxu0
        %v7388 = vadd.f32 0.0, %v7387
        %v7389 = vpop.f32.mrb[0].mxu0
        %7390 = vmatprep.mubr.f32.mxu0 0.0
        %7391 = vmatmul.mubr.f32.gmra.mrb[0].mxu0 %v6568
        %v7392 = vpop.f32.mrb[0].mxu0
        %v7393 = vadd.f32 0.0, %v7392
        %v7394 = vpop.f32.mrb[0].mxu0
        %7395 = vmatprep.mubr.f32.mxu0 0.0
        %7396 = vmatmul.mubr.f32.gmra.mrb[0].mxu0 %v6571
        %v7397 = vpop.f32.mrb[0].mxu0
        %v7398 = vadd.f32 0.0, %v7397
        %v7399 = vpop.f32.mrb[0].mxu0
        %7400 = vmatprep.mubr.f32.mxu0 0.0
        %7401 = vmatmul.mubr.f32.gmra.mrb[0].mxu0 %v6574
        %v7402 = vpop.f32.mrb[0].mxu0
        %v7403 = vadd.f32 0.0, %v7402
        %v7404 = vpop.f32.mrb[0].mxu0
        %7405 = vmatprep.mubr.f32.mxu0 0.0
        %7406 = vmatmul.mubr.f32.gmra.mrb[0].mxu0 %v6577
        %v7407 = vpop.f32.mrb[0].mxu0
        %v7408 = vadd.f32 0.0, %v7407
        %v7409 = vpop.f32.mrb[0].mxu0
        %7410 = vmatprep.mubr.f32.mxu0 0.0
        %7411 = vmatmul.mubr.f32.gmra.mrb[0].mxu0 %v6580
        %v7412 = vpop.f32.mrb[0].mxu0
        %v7413 = vadd.f32 0.0, %v7412
        %v7414 = vpop.f32.mrb[0].mxu0
        %7415 = vmatprep.mubr.f32.mxu0 0.0
        %7416 = vmatmul.mubr.f32.gmra.mrb[0].mxu0 %v6583
        %v7417 = vpop.f32.mrb[0].mxu0
        %v7418 = vadd.f32 0.0, %v7417
        %v7419 = vpop.f32.mrb[0].mxu0
        %7420 = vmatprep.mubr.f32.mxu0 0.0
        %7421 = vmatmul.mubr.f32.gmra.mrb[0].mxu0 %v6586
        %v7422 = vpop.f32.mrb[0].mxu0
        %v7423 = vadd.f32 0.0, %v7422
        %v7424 = vpop.f32.mrb[0].mxu0
        %7425 = vmatprep.mubr.f32.mxu0 0.0
        %7426 = vmatmul.mubr.f32.gmra.mrb[0].mxu0 %v6589
        %v7427 = vpop.f32.mrb[0].mxu0
        %v7428 = vadd.f32 0.0, %v7427
        %v7429 = vpop.f32.mrb[0].mxu0
        %7430 = vmatprep.mubr.f32.mxu0 0.0
        %7431 = vmatmul.mubr.f32.gmra.mrb[0].mxu0 %v6592
        %v7432 = vpop.f32.mrb[0].mxu0
        %v7433 = vadd.f32 0.0, %v7432
        %v7434 = vpop.f32.mrb[0].mxu0
        %7435 = vmatprep.mubr.f32.mxu0 0.0
        %7436 = vmatmul.mubr.f32.gmra.mrb[0].mxu0 %v6595
        %v7437 = vpop.f32.mrb[0].mxu0
        %v7438 = vadd.f32 0.0, %v7437
        %v7439 = vpop.f32.mrb[0].mxu0
        %7440 = vmatprep.mubr.f32.mxu0 0.0
        %7441 = vmatmul.mubr.f32.gmra.mrb[0].mxu0 %v6598
        %v7442 = vpop.f32.mrb[0].mxu0
        %v7443 = vadd.f32 0.0, %v7442
        %v7444 = vpop.f32.mrb[0].mxu0
        %7445 = vmatprep.mubr.f32.mxu0 0.0
        %7446 = vmatmul.mubr.f32.gmra.mrb[0].mxu0 %v6601
        %v7447 = vpop.f32.mrb[0].mxu0
        %v7448 = vadd.f32 0.0, %v7447
        %v7449 = vpop.f32.mrb[0].mxu0
        %7450 = vmatprep.mubr.f32.mxu0 0.0
        %7451 = vmatmul.mubr.f32.gmra.mrb[0].mxu0 %v7228
        %v7452 = vpop.f32.mrb[0].mxu0
        %v7453 = vadd.f32 0.0, %v7452
        %v7454 = vpop.f32.mrb[0].mxu0
        %7455 = vmatprep.mubr.f32.mxu0 0.0
        %7456 = vmatmul.mubr.f32.gmra.mrb[0].mxu0 %v7231
        %v7457 = vpop.f32.mrb[0].mxu0
        %v7458 = vadd.f32 0.0, %v7457
        %v7459 = vpop.f32.mrb[0].mxu0
        %7460 = vdwg.mxu0
        %v7461 = vadd.f32 %v7195, %v7303
        %v7462 = vadd.f32 %v7196, %v7308
        %v7463 = vadd.f32 %v7197, %v7313
        %v7464 = vadd.f32 %v7198, %v7318
        %v7465 = vadd.f32 %v7199, %v7323
        %v7466 = vadd.f32 %v7200, %v7328
        %v7467 = vadd.f32 %v7201, %v7333
        %v7468 = vadd.f32 %v7202, %v7338
        %v7469 = vadd.f32 %v7203, %v7343
        %v7470 = vadd.f32 %v7204, %v7348
        %v7471 = vadd.f32 %v7205, %v7353
        %v7472 = vadd.f32 %v7206, %v7358
        %v7473 = vadd.f32 %v7207, %v7363
        %v7474 = vadd.f32 %v7208, %v7368
        %v7475 = vadd.f32 %v7209, %v7373
        %v7476 = vadd.f32 %v7210, %v7378
        %v7477 = vadd.f32 %v7211, %v7383
        %v7478 = vadd.f32 %v7212, %v7388
        %v7479 = vadd.f32 %v7213, %v7393
        %v7480 = vadd.f32 %v7214, %v7398
        %v7481 = vadd.f32 %v7215, %v7403
        %v7482 = vadd.f32 %v7216, %v7408
        %v7483 = vadd.f32 %v7217, %v7413
        %v7484 = vadd.f32 %v7218, %v7418
        %v7485 = vadd.f32 %v7219, %v7423
        %v7486 = vadd.f32 %v7220, %v7428
        %v7487 = vadd.f32 %v7221, %v7433
        %v7488 = vadd.f32 %v7222, %v7438
        %v7489 = vadd.f32 %v7223, %v7443
        %v7490 = vadd.f32 %v7224, %v7448
        %v7491 = vadd.f32 %v7225, %v7453
        %v7492 = vadd.f32 %v7226, %v7458
        %7493 = vst.msk [vmem:[#allocation2] sm:$0xff] %vm841, %v7461
        %7494 = vst.msk [vmem:[#allocation2 + $0x8] sm:$0xff] %vm841, %v7462
        %7495 = vst.msk [vmem:[#allocation2 + $0x10] sm:$0xff] %vm841, %v7463
        %7496 = vst.msk [vmem:[#allocation2 + $0x18] sm:$0xff] %vm841, %v7464
        %7497 = vst.msk [vmem:[#allocation2 + $0x20] sm:$0xff] %vm841, %v7465
        %7498 = vst.msk [vmem:[#allocation2 + $0x28] sm:$0xff] %vm841, %v7466
        %7499 = vst.msk [vmem:[#allocation2 + $0x30] sm:$0xff] %vm841, %v7467
        %7500 = vst.msk [vmem:[#allocation2 + $0x38] sm:$0xff] %vm841, %v7468
        %7501 = vst.msk [vmem:[#allocation2 + $0x40] sm:$0xff] %vm841, %v7469
        %7502 = vst.msk [vmem:[#allocation2 + $0x48] sm:$0xff] %vm841, %v7470
        %7503 = vst.msk [vmem:[#allocation2 + $0x50] sm:$0xff] %vm841, %v7471
        %7504 = vst.msk [vmem:[#allocation2 + $0x58] sm:$0xff] %vm841, %v7472
        %7505 = vst.msk [vmem:[#allocation2 + $0x60] sm:$0xff] %vm841, %v7473
        %7506 = vst.msk [vmem:[#allocation2 + $0x68] sm:$0xff] %vm841, %v7474
        %7507 = vst.msk [vmem:[#allocation2 + $0x70] sm:$0xff] %vm841, %v7475
        %7508 = vst.msk [vmem:[#allocation2 + $0x78] sm:$0xff] %vm841, %v7476
        %7509 = vst.msk [vmem:[#allocation2 + $0x80] sm:$0xff] %vm841, %v7477
        %7510 = vst.msk [vmem:[#allocation2 + $0x88] sm:$0xff] %vm841, %v7478
        %7511 = vst.msk [vmem:[#allocation2 + $0x90] sm:$0xff] %vm841, %v7479
        %7512 = vst.msk [vmem:[#allocation2 + $0x98] sm:$0xff] %vm841, %v7480
        %7513 = vst.msk [vmem:[#allocation2 + $0xa0] sm:$0xff] %vm841, %v7481
        %7514 = vst.msk [vmem:[#allocation2 + $0xa8] sm:$0xff] %vm841, %v7482
        %7515 = vst.msk [vmem:[#allocation2 + $0xb0] sm:$0xff] %vm841, %v7483
        %7516 = vst.msk [vmem:[#allocation2 + $0xb8] sm:$0xff] %vm841, %v7484
        %7517 = vst.msk [vmem:[#allocation2 + $0xc0] sm:$0xff] %vm841, %v7485
        %7518 = vst.msk [vmem:[#allocation2 + $0xc8] sm:$0xff] %vm841, %v7486
        %7519 = vst.msk [vmem:[#allocation2 + $0xd0] sm:$0xff] %vm841, %v7487
        %7520 = vst.msk [vmem:[#allocation2 + $0xd8] sm:$0xff] %vm841, %v7488
        %7521 = vst.msk [vmem:[#allocation2 + $0xe0] sm:$0xff] %vm841, %v7489
        %7522 = vst.msk [vmem:[#allocation2 + $0xe8] sm:$0xff] %vm841, %v7490
        %7523 = vst.msk [vmem:[#allocation2 + $0xf0] sm:$0xff] %vm841, %v7491
        %7524 = vst.msk [vmem:[#allocation2 + $0xf8] sm:$0xff] %vm841, %v7492
        %v7525 = vld [vmem:[#allocation3] sm:$0xff]
        %v7526 = vld [vmem:[#allocation3 + $0x8] sm:$0xff]
        %v7527 = vld [vmem:[#allocation3 + $0x10] sm:$0xff]
        %v7528 = vld [vmem:[#allocation3 + $0x18] sm:$0xff]
        %v7529 = vld [vmem:[#allocation3 + $0x20] sm:$0xff]
        %v7530 = vld [vmem:[#allocation3 + $0x28] sm:$0xff]
        %v7531 = vld [vmem:[#allocation3 + $0x30] sm:$0xff]
        %v7532 = vld [vmem:[#allocation3 + $0x38] sm:$0xff]
        %v7533 = vld [vmem:[#allocation3 + $0x40] sm:$0xff]
        %v7534 = vld [vmem:[#allocation3 + $0x48] sm:$0xff]
        %v7535 = vld [vmem:[#allocation3 + $0x50] sm:$0xff]
        %v7536 = vld [vmem:[#allocation3 + $0x58] sm:$0xff]
        %v7537 = vld [vmem:[#allocation3 + $0x60] sm:$0xff]
        %v7538 = vld [vmem:[#allocation3 + $0x68] sm:$0xff]
        %v7539 = vld [vmem:[#allocation3 + $0x70] sm:$0xff]
        %v7540 = vld [vmem:[#allocation3 + $0x78] sm:$0xff]
        %v7541 = vld [vmem:[#allocation3 + $0x80] sm:$0xff]
        %v7542 = vld [vmem:[#allocation3 + $0x88] sm:$0xff]
        %v7543 = vld [vmem:[#allocation3 + $0x90] sm:$0xff]
        %v7544 = vld [vmem:[#allocation3 + $0x98] sm:$0xff]
        %v7545 = vld [vmem:[#allocation3 + $0xa0] sm:$0xff]
        %v7546 = vld [vmem:[#allocation3 + $0xa8] sm:$0xff]
        %v7547 = vld [vmem:[#allocation3 + $0xb0] sm:$0xff]
        %v7548 = vld [vmem:[#allocation3 + $0xb8] sm:$0xff]
        %v7549 = vld [vmem:[#allocation3 + $0xc0] sm:$0xff]
        %v7550 = vld [vmem:[#allocation3 + $0xc8] sm:$0xff]
        %v7551 = vld [vmem:[#allocation3 + $0xd0] sm:$0xff]
        %v7552 = vld [vmem:[#allocation3 + $0xd8] sm:$0xff]
        %v7553 = vld [vmem:[#allocation3 + $0xe0] sm:$0xff]
        %v7554 = vld [vmem:[#allocation3 + $0xe8] sm:$0xff]
        %v7555 = vld [vmem:[#allocation3 + $0xf0] sm:$0xff]
        %v7556 = vld [vmem:[#allocation3 + $0xf8] sm:$0xff]
        %v7558 = vsel %vm1565, %v7194, 0
        %7560 = vmatprep.subr.mxu0 0.0
        %7561 = vmatpush1.msra.mxu0 %v7193
        %7562 = vmatprep.subr.mxu0 0.0
        %7563 = vmatpush1.msra.mxu0 %v7558
        %7564 = vmatprep.subr.mxu0 0.0
        %7565 = vmatpush1.msra.mxu0 0.0
        %7566 = vmatprep.subr.mxu0 0.0
        %7567 = vmatpush1.msra.mxu0 0.0
        %7568 = vmatprep.subr.mxu0 0.0
        %7569 = vmatpush1.msra.mxu0 0.0
        %7570 = vmatprep.subr.mxu0 0.0
        %7571 = vmatpush1.msra.mxu0 0.0
        %7572 = vmatprep.subr.mxu0 0.0
        %7573 = vmatpush1.msra.mxu0 0.0
        %7574 = vmatprep.subr.mxu0 0.0
        %7575 = vmatpush1.msra.mxu0 0.0
        %7576 = vmatprep.subr.mxu0 0.0
        %7577 = vmatpush1.msra.mxu0 0.0
        %7578 = vmatprep.subr.mxu0 0.0
        %7579 = vmatpush1.msra.mxu0 0.0
        %7580 = vmatprep.subr.mxu0 0.0
        %7581 = vmatpush1.msra.mxu0 0.0
        %7582 = vmatprep.subr.mxu0 0.0
        %7583 = vmatpush1.msra.mxu0 0.0
        %7584 = vmatprep.subr.mxu0 0.0
        %7585 = vmatpush1.msra.mxu0 0.0
        %7586 = vmatprep.subr.mxu0 0.0
        %7587 = vmatpush1.msra.mxu0 0.0
        %7588 = vmatprep.subr.mxu0 0.0
        %7589 = vmatpush1.msra.mxu0 0.0
        %7590 = vmatprep.subr.mxu0 0.0
        %7591 = vmatpush1.msra.mxu0 0.0
        %7592 = vmatprep.subr.mxu0 0.0
        %7593 = vmatpush1.msra.mxu0 0.0
        %7594 = vmatprep.subr.mxu0 0.0
        %7595 = vmatpush1.msra.mxu0 0.0
        %7596 = vmatprep.subr.mxu0 0.0
        %7597 = vmatpush1.msra.mxu0 0.0
        %7598 = vmatprep.subr.mxu0 0.0
        %7599 = vmatpush1.msra.mxu0 0.0
        %7600 = vmatprep.subr.mxu0 0.0
        %7601 = vmatpush1.msra.mxu0 0.0
        %7602 = vmatprep.subr.mxu0 0.0
        %7603 = vmatpush1.msra.mxu0 0.0
        %7604 = vmatprep.subr.mxu0 0.0
        %7605 = vmatpush1.msra.mxu0 0.0
        %7606 = vmatprep.subr.mxu0 0.0
        %7607 = vmatpush1.msra.mxu0 0.0
        %7608 = vmatprep.subr.mxu0 0.0
        %7609 = vmatpush1.msra.mxu0 0.0
        %7610 = vmatprep.subr.mxu0 0.0
        %7611 = vmatpush1.msra.mxu0 0.0
        %7612 = vmatprep.subr.mxu0 0.0
        %7613 = vmatpush1.msra.mxu0 0.0
        %7614 = vmatprep.subr.mxu0 0.0
        %7615 = vmatpush1.msra.mxu0 0.0
        %7616 = vmatprep.subr.mxu0 0.0
        %7617 = vmatpush1.msra.mxu0 0.0
        %7618 = vmatprep.subr.mxu0 0.0
        %7619 = vmatpush1.msra.mxu0 0.0
        %7620 = vmatprep.subr.mxu0 0.0
        %7621 = vmatpush1.msra.mxu0 0.0
        %7622 = vmatprep.subr.mxu0 0.0
        %7623 = vmatpush1.msra.mxu0 0.0
        %7624 = vmatprep.mubr.f32.mxu0 0.0
        %7625 = vmatmul.mubr.f32.gmra.mrb[0].mxu0 %v6514
        %v7626 = vpop.f32.mrb[0].mxu0
        %v7627 = vadd.f32 0.0, %v7626
        %v7628 = vpop.f32.mrb[0].mxu0
        %7629 = vmatprep.mubr.f32.mxu0 0.0
        %7630 = vmatmul.mubr.f32.gmra.mrb[0].mxu0 %v6517
        %v7631 = vpop.f32.mrb[0].mxu0
        %v7632 = vadd.f32 0.0, %v7631
        %v7633 = vpop.f32.mrb[0].mxu0
        %7634 = vmatprep.mubr.f32.mxu0 0.0
        %7635 = vmatmul.mubr.f32.gmra.mrb[0].mxu0 %v6520
        %v7636 = vpop.f32.mrb[0].mxu0
        %v7637 = vadd.f32 0.0, %v7636
        %v7638 = vpop.f32.mrb[0].mxu0
        %7639 = vmatprep.mubr.f32.mxu0 0.0
        %7640 = vmatmul.mubr.f32.gmra.mrb[0].mxu0 %v6523
        %v7641 = vpop.f32.mrb[0].mxu0
        %v7642 = vadd.f32 0.0, %v7641
        %v7643 = vpop.f32.mrb[0].mxu0
        %7644 = vmatprep.mubr.f32.mxu0 0.0
        %7645 = vmatmul.mubr.f32.gmra.mrb[0].mxu0 %v6526
        %v7646 = vpop.f32.mrb[0].mxu0
        %v7647 = vadd.f32 0.0, %v7646
        %v7648 = vpop.f32.mrb[0].mxu0
        %7649 = vmatprep.mubr.f32.mxu0 0.0
        %7650 = vmatmul.mubr.f32.gmra.mrb[0].mxu0 %v6529
        %v7651 = vpop.f32.mrb[0].mxu0
        %v7652 = vadd.f32 0.0, %v7651
        %v7653 = vpop.f32.mrb[0].mxu0
        %7654 = vmatprep.mubr.f32.mxu0 0.0
        %7655 = vmatmul.mubr.f32.gmra.mrb[0].mxu0 %v6532
        %v7656 = vpop.f32.mrb[0].mxu0
        %v7657 = vadd.f32 0.0, %v7656
        %v7658 = vpop.f32.mrb[0].mxu0
        %7659 = vmatprep.mubr.f32.mxu0 0.0
        %7660 = vmatmul.mubr.f32.gmra.mrb[0].mxu0 %v6535
        %v7661 = vpop.f32.mrb[0].mxu0
        %v7662 = vadd.f32 0.0, %v7661
        %v7663 = vpop.f32.mrb[0].mxu0
        %7664 = vmatprep.mubr.f32.mxu0 0.0
        %7665 = vmatmul.mubr.f32.gmra.mrb[0].mxu0 %v6538
        %v7666 = vpop.f32.mrb[0].mxu0
        %v7667 = vadd.f32 0.0, %v7666
        %v7668 = vpop.f32.mrb[0].mxu0
        %7669 = vmatprep.mubr.f32.mxu0 0.0
        %7670 = vmatmul.mubr.f32.gmra.mrb[0].mxu0 %v6541
        %v7671 = vpop.f32.mrb[0].mxu0
        %v7672 = vadd.f32 0.0, %v7671
        %v7673 = vpop.f32.mrb[0].mxu0
        %7674 = vmatprep.mubr.f32.mxu0 0.0
        %7675 = vmatmul.mubr.f32.gmra.mrb[0].mxu0 %v6544
        %v7676 = vpop.f32.mrb[0].mxu0
        %v7677 = vadd.f32 0.0, %v7676
        %v7678 = vpop.f32.mrb[0].mxu0
        %7679 = vmatprep.mubr.f32.mxu0 0.0
        %7680 = vmatmul.mubr.f32.gmra.mrb[0].mxu0 %v6547
        %v7681 = vpop.f32.mrb[0].mxu0
        %v7682 = vadd.f32 0.0, %v7681
        %v7683 = vpop.f32.mrb[0].mxu0
        %7684 = vmatprep.mubr.f32.mxu0 0.0
        %7685 = vmatmul.mubr.f32.gmra.mrb[0].mxu0 %v6550
        %v7686 = vpop.f32.mrb[0].mxu0
        %v7687 = vadd.f32 0.0, %v7686
        %v7688 = vpop.f32.mrb[0].mxu0
        %7689 = vmatprep.mubr.f32.mxu0 0.0
        %7690 = vmatmul.mubr.f32.gmra.mrb[0].mxu0 %v6553
        %v7691 = vpop.f32.mrb[0].mxu0
        %v7692 = vadd.f32 0.0, %v7691
        %v7693 = vpop.f32.mrb[0].mxu0
        %7694 = vmatprep.mubr.f32.mxu0 0.0
        %7695 = vmatmul.mubr.f32.gmra.mrb[0].mxu0 %v6556
        %v7696 = vpop.f32.mrb[0].mxu0
        %v7697 = vadd.f32 0.0, %v7696
        %v7698 = vpop.f32.mrb[0].mxu0
        %7699 = vmatprep.mubr.f32.mxu0 0.0
        %7700 = vmatmul.mubr.f32.gmra.mrb[0].mxu0 %v6559
        %v7701 = vpop.f32.mrb[0].mxu0
        %v7702 = vadd.f32 0.0, %v7701
        %v7703 = vpop.f32.mrb[0].mxu0
        %7704 = vmatprep.mubr.f32.mxu0 0.0
        %7705 = vmatmul.mubr.f32.gmra.mrb[0].mxu0 %v6562
        %v7706 = vpop.f32.mrb[0].mxu0
        %v7707 = vadd.f32 0.0, %v7706
        %v7708 = vpop.f32.mrb[0].mxu0
        %7709 = vmatprep.mubr.f32.mxu0 0.0
        %7710 = vmatmul.mubr.f32.gmra.mrb[0].mxu0 %v6565
        %v7711 = vpop.f32.mrb[0].mxu0
        %v7712 = vadd.f32 0.0, %v7711
        %v7713 = vpop.f32.mrb[0].mxu0
        %7714 = vmatprep.mubr.f32.mxu0 0.0
        %7715 = vmatmul.mubr.f32.gmra.mrb[0].mxu0 %v6568
        %v7716 = vpop.f32.mrb[0].mxu0
        %v7717 = vadd.f32 0.0, %v7716
        %v7718 = vpop.f32.mrb[0].mxu0
        %7719 = vmatprep.mubr.f32.mxu0 0.0
        %7720 = vmatmul.mubr.f32.gmra.mrb[0].mxu0 %v6571
        %v7721 = vpop.f32.mrb[0].mxu0
        %v7722 = vadd.f32 0.0, %v7721
        %v7723 = vpop.f32.mrb[0].mxu0
        %7724 = vmatprep.mubr.f32.mxu0 0.0
        %7725 = vmatmul.mubr.f32.gmra.mrb[0].mxu0 %v6574
        %v7726 = vpop.f32.mrb[0].mxu0
        %v7727 = vadd.f32 0.0, %v7726
        %v7728 = vpop.f32.mrb[0].mxu0
        %7729 = vmatprep.mubr.f32.mxu0 0.0
        %7730 = vmatmul.mubr.f32.gmra.mrb[0].mxu0 %v6577
        %v7731 = vpop.f32.mrb[0].mxu0
        %v7732 = vadd.f32 0.0, %v7731
        %v7733 = vpop.f32.mrb[0].mxu0
        %7734 = vmatprep.mubr.f32.mxu0 0.0
        %7735 = vmatmul.mubr.f32.gmra.mrb[0].mxu0 %v6580
        %v7736 = vpop.f32.mrb[0].mxu0
        %v7737 = vadd.f32 0.0, %v7736
        %v7738 = vpop.f32.mrb[0].mxu0
        %7739 = vmatprep.mubr.f32.mxu0 0.0
        %7740 = vmatmul.mubr.f32.gmra.mrb[0].mxu0 %v6583
        %v7741 = vpop.f32.mrb[0].mxu0
        %v7742 = vadd.f32 0.0, %v7741
        %v7743 = vpop.f32.mrb[0].mxu0
        %7744 = vmatprep.mubr.f32.mxu0 0.0
        %7745 = vmatmul.mubr.f32.gmra.mrb[0].mxu0 %v6586
        %v7746 = vpop.f32.mrb[0].mxu0
        %v7747 = vadd.f32 0.0, %v7746
        %v7748 = vpop.f32.mrb[0].mxu0
        %7749 = vmatprep.mubr.f32.mxu0 0.0
        %7750 = vmatmul.mubr.f32.gmra.mrb[0].mxu0 %v6589
        %v7751 = vpop.f32.mrb[0].mxu0
        %v7752 = vadd.f32 0.0, %v7751
        %v7753 = vpop.f32.mrb[0].mxu0
        %7754 = vmatprep.mubr.f32.mxu0 0.0
        %7755 = vmatmul.mubr.f32.gmra.mrb[0].mxu0 %v6592
        %v7756 = vpop.f32.mrb[0].mxu0
        %v7757 = vadd.f32 0.0, %v7756
        %v7758 = vpop.f32.mrb[0].mxu0
        %7759 = vmatprep.mubr.f32.mxu0 0.0
        %7760 = vmatmul.mubr.f32.gmra.mrb[0].mxu0 %v6595
        %v7761 = vpop.f32.mrb[0].mxu0
        %v7762 = vadd.f32 0.0, %v7761
        %v7763 = vpop.f32.mrb[0].mxu0
        %7764 = vmatprep.mubr.f32.mxu0 0.0
        %7765 = vmatmul.mubr.f32.gmra.mrb[0].mxu0 %v6598
        %v7766 = vpop.f32.mrb[0].mxu0
        %v7767 = vadd.f32 0.0, %v7766
        %v7768 = vpop.f32.mrb[0].mxu0
        %7769 = vmatprep.mubr.f32.mxu0 0.0
        %7770 = vmatmul.mubr.f32.gmra.mrb[0].mxu0 %v6601
        %v7771 = vpop.f32.mrb[0].mxu0
        %v7772 = vadd.f32 0.0, %v7771
        %v7773 = vpop.f32.mrb[0].mxu0
        %7774 = vmatprep.mubr.f32.mxu0 0.0
        %7775 = vmatmul.mubr.f32.gmra.mrb[0].mxu0 %v7228
        %v7776 = vpop.f32.mrb[0].mxu0
        %v7777 = vadd.f32 0.0, %v7776
        %v7778 = vpop.f32.mrb[0].mxu0
        %7779 = vmatprep.mubr.f32.mxu0 0.0
        %7780 = vmatmul.mubr.f32.gmra.mrb[0].mxu0 %v7231
        %v7781 = vpop.f32.mrb[0].mxu0
        %v7782 = vadd.f32 0.0, %v7781
        %v7783 = vpop.f32.mrb[0].mxu0
        %7784 = vdwg.mxu0
        %v7785 = vadd.f32 %v7525, %v7627
        %v7786 = vadd.f32 %v7526, %v7632
        %v7787 = vadd.f32 %v7527, %v7637
        %v7788 = vadd.f32 %v7528, %v7642
        %v7789 = vadd.f32 %v7529, %v7647
        %v7790 = vadd.f32 %v7530, %v7652
        %v7791 = vadd.f32 %v7531, %v7657
        %v7792 = vadd.f32 %v7532, %v7662
        %v7793 = vadd.f32 %v7533, %v7667
        %v7794 = vadd.f32 %v7534, %v7672
        %v7795 = vadd.f32 %v7535, %v7677
        %v7796 = vadd.f32 %v7536, %v7682
        %v7797 = vadd.f32 %v7537, %v7687
        %v7798 = vadd.f32 %v7538, %v7692
        %v7799 = vadd.f32 %v7539, %v7697
        %v7800 = vadd.f32 %v7540, %v7702
        %v7801 = vadd.f32 %v7541, %v7707
        %v7802 = vadd.f32 %v7542, %v7712
        %v7803 = vadd.f32 %v7543, %v7717
        %v7804 = vadd.f32 %v7544, %v7722
        %v7805 = vadd.f32 %v7545, %v7727
        %v7806 = vadd.f32 %v7546, %v7732
        %v7807 = vadd.f32 %v7547, %v7737
        %v7808 = vadd.f32 %v7548, %v7742
        %v7809 = vadd.f32 %v7549, %v7747
        %v7810 = vadd.f32 %v7550, %v7752
        %v7811 = vadd.f32 %v7551, %v7757
        %v7812 = vadd.f32 %v7552, %v7762
        %v7813 = vadd.f32 %v7553, %v7767
        %v7814 = vadd.f32 %v7554, %v7772
        %v7815 = vadd.f32 %v7555, %v7777
        %v7816 = vadd.f32 %v7556, %v7782
        %7817 = vst.msk [vmem:[#allocation3] sm:$0xff] %vm841, %v7785
        %7818 = vst.msk [vmem:[#allocation3 + $0x8] sm:$0xff] %vm841, %v7786
        %7819 = vst.msk [vmem:[#allocation3 + $0x10] sm:$0xff] %vm841, %v7787
        %7820 = vst.msk [vmem:[#allocation3 + $0x18] sm:$0xff] %vm841, %v7788
        %7821 = vst.msk [vmem:[#allocation3 + $0x20] sm:$0xff] %vm841, %v7789
        %7822 = vst.msk [vmem:[#allocation3 + $0x28] sm:$0xff] %vm841, %v7790
        %7823 = vst.msk [vmem:[#allocation3 + $0x30] sm:$0xff] %vm841, %v7791
        %7824 = vst.msk [vmem:[#allocation3 + $0x38] sm:$0xff] %vm841, %v7792
        %7825 = vst.msk [vmem:[#allocation3 + $0x40] sm:$0xff] %vm841, %v7793
        %7826 = vst.msk [vmem:[#allocation3 + $0x48] sm:$0xff] %vm841, %v7794
        %7827 = vst.msk [vmem:[#allocation3 + $0x50] sm:$0xff] %vm841, %v7795
        %7828 = vst.msk [vmem:[#allocation3 + $0x58] sm:$0xff] %vm841, %v7796
        %7829 = vst.msk [vmem:[#allocation3 + $0x60] sm:$0xff] %vm841, %v7797
        %7830 = vst.msk [vmem:[#allocation3 + $0x68] sm:$0xff] %vm841, %v7798
        %7831 = vst.msk [vmem:[#allocation3 + $0x70] sm:$0xff] %vm841, %v7799
        %7832 = vst.msk [vmem:[#allocation3 + $0x78] sm:$0xff] %vm841, %v7800
        %7833 = vst.msk [vmem:[#allocation3 + $0x80] sm:$0xff] %vm841, %v7801
        %7834 = vst.msk [vmem:[#allocation3 + $0x88] sm:$0xff] %vm841, %v7802
        %7835 = vst.msk [vmem:[#allocation3 + $0x90] sm:$0xff] %vm841, %v7803
        %7836 = vst.msk [vmem:[#allocation3 + $0x98] sm:$0xff] %vm841, %v7804
        %7837 = vst.msk [vmem:[#allocation3 + $0xa0] sm:$0xff] %vm841, %v7805
        %7838 = vst.msk [vmem:[#allocation3 + $0xa8] sm:$0xff] %vm841, %v7806
        %7839 = vst.msk [vmem:[#allocation3 + $0xb0] sm:$0xff] %vm841, %v7807
        %7840 = vst.msk [vmem:[#allocation3 + $0xb8] sm:$0xff] %vm841, %v7808
        %7841 = vst.msk [vmem:[#allocation3 + $0xc0] sm:$0xff] %vm841, %v7809
        %7842 = vst.msk [vmem:[#allocation3 + $0xc8] sm:$0xff] %vm841, %v7810
        %7843 = vst.msk [vmem:[#allocation3 + $0xd0] sm:$0xff] %vm841, %v7811
        %7844 = vst.msk [vmem:[#allocation3 + $0xd8] sm:$0xff] %vm841, %v7812
        %7845 = vst.msk [vmem:[#allocation3 + $0xe0] sm:$0xff] %vm841, %v7813
        %7846 = vst.msk [vmem:[#allocation3 + $0xe8] sm:$0xff] %vm841, %v7814
        %7847 = vst.msk [vmem:[#allocation3 + $0xf0] sm:$0xff] %vm841, %v7815
        %7848 = vst.msk [vmem:[#allocation3 + $0xf8] sm:$0xff] %vm841, %v7816
        %s7849 = scalar_lea.vmem [#allocation8], 128
        %v7850 = vld [vmem:[%s7849] sm:$0xff]
        %v7851 = vld [vmem:[%s7849 + $0x8] sm:$0xf]
        %s7852 = scalar_lea.vmem [#allocation10], 128
        %v7853 = vld [vmem:[%s7852] sm:$0xff]
        %v7854 = vld [vmem:[%s7852 + $0x8] sm:$0xf]
        %v7855 = vld [vmem:[#allocation2] sm:$0xff]
        %v7856 = vld [vmem:[#allocation2 + $0x8] sm:$0xff]
        %v7857 = vld [vmem:[#allocation2 + $0x10] sm:$0xff]
        %v7858 = vld [vmem:[#allocation2 + $0x18] sm:$0xff]
        %v7859 = vld [vmem:[#allocation2 + $0x20] sm:$0xff]
        %v7860 = vld [vmem:[#allocation2 + $0x28] sm:$0xff]
        %v7861 = vld [vmem:[#allocation2 + $0x30] sm:$0xff]
        %v7862 = vld [vmem:[#allocation2 + $0x38] sm:$0xff]
        %v7863 = vld [vmem:[#allocation2 + $0x40] sm:$0xff]
        %v7864 = vld [vmem:[#allocation2 + $0x48] sm:$0xff]
        %v7865 = vld [vmem:[#allocation2 + $0x50] sm:$0xff]
        %v7866 = vld [vmem:[#allocation2 + $0x58] sm:$0xff]
        %v7867 = vld [vmem:[#allocation2 + $0x60] sm:$0xff]
        %v7868 = vld [vmem:[#allocation2 + $0x68] sm:$0xff]
        %v7869 = vld [vmem:[#allocation2 + $0x70] sm:$0xff]
        %v7870 = vld [vmem:[#allocation2 + $0x78] sm:$0xff]
        %v7871 = vld [vmem:[#allocation2 + $0x80] sm:$0xff]
        %v7872 = vld [vmem:[#allocation2 + $0x88] sm:$0xff]
        %v7873 = vld [vmem:[#allocation2 + $0x90] sm:$0xff]
        %v7874 = vld [vmem:[#allocation2 + $0x98] sm:$0xff]
        %v7875 = vld [vmem:[#allocation2 + $0xa0] sm:$0xff]
        %v7876 = vld [vmem:[#allocation2 + $0xa8] sm:$0xff]
        %v7877 = vld [vmem:[#allocation2 + $0xb0] sm:$0xff]
        %v7878 = vld [vmem:[#allocation2 + $0xb8] sm:$0xff]
        %v7879 = vld [vmem:[#allocation2 + $0xc0] sm:$0xff]
        %v7880 = vld [vmem:[#allocation2 + $0xc8] sm:$0xff]
        %v7881 = vld [vmem:[#allocation2 + $0xd0] sm:$0xff]
        %v7882 = vld [vmem:[#allocation2 + $0xd8] sm:$0xff]
        %v7883 = vld [vmem:[#allocation2 + $0xe0] sm:$0xff]
        %v7884 = vld [vmem:[#allocation2 + $0xe8] sm:$0xff]
        %v7886 = vsel %vm1565, %v7851, 0
        %7888 = vmatprep.subr.mxu0 0.0
        %7889 = vmatpush1.msra.mxu0 %v7850
        %7890 = vmatprep.subr.mxu0 0.0
        %7891 = vmatpush1.msra.mxu0 %v7886
        %7892 = vmatprep.subr.mxu0 0.0
        %7893 = vmatpush1.msra.mxu0 0.0
        %7894 = vmatprep.subr.mxu0 0.0
        %7895 = vmatpush1.msra.mxu0 0.0
        %7896 = vmatprep.subr.mxu0 0.0
        %7897 = vmatpush1.msra.mxu0 0.0
        %7898 = vmatprep.subr.mxu0 0.0
        %7899 = vmatpush1.msra.mxu0 0.0
        %7900 = vmatprep.subr.mxu0 0.0
        %7901 = vmatpush1.msra.mxu0 0.0
        %7902 = vmatprep.subr.mxu0 0.0
        %7903 = vmatpush1.msra.mxu0 0.0
        %7904 = vmatprep.subr.mxu0 0.0
        %7905 = vmatpush1.msra.mxu0 0.0
        %7906 = vmatprep.subr.mxu0 0.0
        %7907 = vmatpush1.msra.mxu0 0.0
        %7908 = vmatprep.subr.mxu0 0.0
        %7909 = vmatpush1.msra.mxu0 0.0
        %7910 = vmatprep.subr.mxu0 0.0
        %7911 = vmatpush1.msra.mxu0 0.0
        %7912 = vmatprep.subr.mxu0 0.0
        %7913 = vmatpush1.msra.mxu0 0.0
        %7914 = vmatprep.subr.mxu0 0.0
        %7915 = vmatpush1.msra.mxu0 0.0
        %7916 = vmatprep.subr.mxu0 0.0
        %7917 = vmatpush1.msra.mxu0 0.0
        %7918 = vmatprep.subr.mxu0 0.0
        %7919 = vmatpush1.msra.mxu0 0.0
        %7920 = vmatprep.subr.mxu0 0.0
        %7921 = vmatpush1.msra.mxu0 0.0
        %7922 = vmatprep.subr.mxu0 0.0
        %7923 = vmatpush1.msra.mxu0 0.0
        %7924 = vmatprep.subr.mxu0 0.0
        %7925 = vmatpush1.msra.mxu0 0.0
        %7926 = vmatprep.subr.mxu0 0.0
        %7927 = vmatpush1.msra.mxu0 0.0
        %7928 = vmatprep.subr.mxu0 0.0
        %7929 = vmatpush1.msra.mxu0 0.0
        %7930 = vmatprep.subr.mxu0 0.0
        %7931 = vmatpush1.msra.mxu0 0.0
        %7932 = vmatprep.subr.mxu0 0.0
        %7933 = vmatpush1.msra.mxu0 0.0
        %7934 = vmatprep.subr.mxu0 0.0
        %7935 = vmatpush1.msra.mxu0 0.0
        %7936 = vmatprep.subr.mxu0 0.0
        %7937 = vmatpush1.msra.mxu0 0.0
        %7938 = vmatprep.subr.mxu0 0.0
        %7939 = vmatpush1.msra.mxu0 0.0
        %7940 = vmatprep.subr.mxu0 0.0
        %7941 = vmatpush1.msra.mxu0 0.0
        %7942 = vmatprep.subr.mxu0 0.0
        %7943 = vmatpush1.msra.mxu0 0.0
        %7944 = vmatprep.subr.mxu0 0.0
        %7945 = vmatpush1.msra.mxu0 0.0
        %7946 = vmatprep.subr.mxu0 0.0
        %7947 = vmatpush1.msra.mxu0 0.0
        %7948 = vmatprep.subr.mxu0 0.0
        %7949 = vmatpush1.msra.mxu0 0.0
        %7950 = vmatprep.subr.mxu0 0.0
        %7951 = vmatpush1.msra.mxu0 0.0
        %7952 = vmatprep.mubr.f32.mxu0 0.0
        %7953 = vmatmul.mubr.f32.gmra.mrb[0].mxu0 %v6520
        %v7954 = vpop.f32.mrb[0].mxu0
        %v7955 = vadd.f32 0.0, %v7954
        %v7956 = vpop.f32.mrb[0].mxu0
        %7957 = vmatprep.mubr.f32.mxu0 0.0
        %7958 = vmatmul.mubr.f32.gmra.mrb[0].mxu0 %v6523
        %v7959 = vpop.f32.mrb[0].mxu0
        %v7960 = vadd.f32 0.0, %v7959
        %v7961 = vpop.f32.mrb[0].mxu0
        %7962 = vmatprep.mubr.f32.mxu0 0.0
        %7963 = vmatmul.mubr.f32.gmra.mrb[0].mxu0 %v6526
        %v7964 = vpop.f32.mrb[0].mxu0
        %v7965 = vadd.f32 0.0, %v7964
        %v7966 = vpop.f32.mrb[0].mxu0
        %7967 = vmatprep.mubr.f32.mxu0 0.0
        %7968 = vmatmul.mubr.f32.gmra.mrb[0].mxu0 %v6529
        %v7969 = vpop.f32.mrb[0].mxu0
        %v7970 = vadd.f32 0.0, %v7969
        %v7971 = vpop.f32.mrb[0].mxu0
        %7972 = vmatprep.mubr.f32.mxu0 0.0
        %7973 = vmatmul.mubr.f32.gmra.mrb[0].mxu0 %v6532
        %v7974 = vpop.f32.mrb[0].mxu0
        %v7975 = vadd.f32 0.0, %v7974
        %v7976 = vpop.f32.mrb[0].mxu0
        %7977 = vmatprep.mubr.f32.mxu0 0.0
        %7978 = vmatmul.mubr.f32.gmra.mrb[0].mxu0 %v6535
        %v7979 = vpop.f32.mrb[0].mxu0
        %v7980 = vadd.f32 0.0, %v7979
        %v7981 = vpop.f32.mrb[0].mxu0
        %7982 = vmatprep.mubr.f32.mxu0 0.0
        %7983 = vmatmul.mubr.f32.gmra.mrb[0].mxu0 %v6538
        %v7984 = vpop.f32.mrb[0].mxu0
        %v7985 = vadd.f32 0.0, %v7984
        %v7986 = vpop.f32.mrb[0].mxu0
        %7987 = vmatprep.mubr.f32.mxu0 0.0
        %7988 = vmatmul.mubr.f32.gmra.mrb[0].mxu0 %v6541
        %v7989 = vpop.f32.mrb[0].mxu0
        %v7990 = vadd.f32 0.0, %v7989
        %v7991 = vpop.f32.mrb[0].mxu0
        %7992 = vmatprep.mubr.f32.mxu0 0.0
        %7993 = vmatmul.mubr.f32.gmra.mrb[0].mxu0 %v6544
        %v7994 = vpop.f32.mrb[0].mxu0
        %v7995 = vadd.f32 0.0, %v7994
        %v7996 = vpop.f32.mrb[0].mxu0
        %7997 = vmatprep.mubr.f32.mxu0 0.0
        %7998 = vmatmul.mubr.f32.gmra.mrb[0].mxu0 %v6547
        %v7999 = vpop.f32.mrb[0].mxu0
        %v8000 = vadd.f32 0.0, %v7999
        %v8001 = vpop.f32.mrb[0].mxu0
        %8002 = vmatprep.mubr.f32.mxu0 0.0
        %8003 = vmatmul.mubr.f32.gmra.mrb[0].mxu0 %v6550
        %v8004 = vpop.f32.mrb[0].mxu0
        %v8005 = vadd.f32 0.0, %v8004
        %v8006 = vpop.f32.mrb[0].mxu0
        %8007 = vmatprep.mubr.f32.mxu0 0.0
        %8008 = vmatmul.mubr.f32.gmra.mrb[0].mxu0 %v6553
        %v8009 = vpop.f32.mrb[0].mxu0
        %v8010 = vadd.f32 0.0, %v8009
        %v8011 = vpop.f32.mrb[0].mxu0
        %8012 = vmatprep.mubr.f32.mxu0 0.0
        %8013 = vmatmul.mubr.f32.gmra.mrb[0].mxu0 %v6556
        %v8014 = vpop.f32.mrb[0].mxu0
        %v8015 = vadd.f32 0.0, %v8014
        %v8016 = vpop.f32.mrb[0].mxu0
        %8017 = vmatprep.mubr.f32.mxu0 0.0
        %8018 = vmatmul.mubr.f32.gmra.mrb[0].mxu0 %v6559
        %v8019 = vpop.f32.mrb[0].mxu0
        %v8020 = vadd.f32 0.0, %v8019
        %v8021 = vpop.f32.mrb[0].mxu0
        %8022 = vmatprep.mubr.f32.mxu0 0.0
        %8023 = vmatmul.mubr.f32.gmra.mrb[0].mxu0 %v6562
        %v8024 = vpop.f32.mrb[0].mxu0
        %v8025 = vadd.f32 0.0, %v8024
        %v8026 = vpop.f32.mrb[0].mxu0
        %8027 = vmatprep.mubr.f32.mxu0 0.0
        %8028 = vmatmul.mubr.f32.gmra.mrb[0].mxu0 %v6565
        %v8029 = vpop.f32.mrb[0].mxu0
        %v8030 = vadd.f32 0.0, %v8029
        %v8031 = vpop.f32.mrb[0].mxu0
        %8032 = vmatprep.mubr.f32.mxu0 0.0
        %8033 = vmatmul.mubr.f32.gmra.mrb[0].mxu0 %v6568
        %v8034 = vpop.f32.mrb[0].mxu0
        %v8035 = vadd.f32 0.0, %v8034
        %v8036 = vpop.f32.mrb[0].mxu0
        %8037 = vmatprep.mubr.f32.mxu0 0.0
        %8038 = vmatmul.mubr.f32.gmra.mrb[0].mxu0 %v6571
        %v8039 = vpop.f32.mrb[0].mxu0
        %v8040 = vadd.f32 0.0, %v8039
        %v8041 = vpop.f32.mrb[0].mxu0
        %8042 = vmatprep.mubr.f32.mxu0 0.0
        %8043 = vmatmul.mubr.f32.gmra.mrb[0].mxu0 %v6574
        %v8044 = vpop.f32.mrb[0].mxu0
        %v8045 = vadd.f32 0.0, %v8044
        %v8046 = vpop.f32.mrb[0].mxu0
        %8047 = vmatprep.mubr.f32.mxu0 0.0
        %8048 = vmatmul.mubr.f32.gmra.mrb[0].mxu0 %v6577
        %v8049 = vpop.f32.mrb[0].mxu0
        %v8050 = vadd.f32 0.0, %v8049
        %v8051 = vpop.f32.mrb[0].mxu0
        %8052 = vmatprep.mubr.f32.mxu0 0.0
        %8053 = vmatmul.mubr.f32.gmra.mrb[0].mxu0 %v6580
        %v8054 = vpop.f32.mrb[0].mxu0
        %v8055 = vadd.f32 0.0, %v8054
        %v8056 = vpop.f32.mrb[0].mxu0
        %8057 = vmatprep.mubr.f32.mxu0 0.0
        %8058 = vmatmul.mubr.f32.gmra.mrb[0].mxu0 %v6583
        %v8059 = vpop.f32.mrb[0].mxu0
        %v8060 = vadd.f32 0.0, %v8059
        %v8061 = vpop.f32.mrb[0].mxu0
        %8062 = vmatprep.mubr.f32.mxu0 0.0
        %8063 = vmatmul.mubr.f32.gmra.mrb[0].mxu0 %v6586
        %v8064 = vpop.f32.mrb[0].mxu0
        %v8065 = vadd.f32 0.0, %v8064
        %v8066 = vpop.f32.mrb[0].mxu0
        %8067 = vmatprep.mubr.f32.mxu0 0.0
        %8068 = vmatmul.mubr.f32.gmra.mrb[0].mxu0 %v6589
        %v8069 = vpop.f32.mrb[0].mxu0
        %v8070 = vadd.f32 0.0, %v8069
        %v8071 = vpop.f32.mrb[0].mxu0
        %8072 = vmatprep.mubr.f32.mxu0 0.0
        %8073 = vmatmul.mubr.f32.gmra.mrb[0].mxu0 %v6592
        %v8074 = vpop.f32.mrb[0].mxu0
        %v8075 = vadd.f32 0.0, %v8074
        %v8076 = vpop.f32.mrb[0].mxu0
        %8077 = vmatprep.mubr.f32.mxu0 0.0
        %8078 = vmatmul.mubr.f32.gmra.mrb[0].mxu0 %v6595
        %v8079 = vpop.f32.mrb[0].mxu0
        %v8080 = vadd.f32 0.0, %v8079
        %v8081 = vpop.f32.mrb[0].mxu0
        %8082 = vmatprep.mubr.f32.mxu0 0.0
        %8083 = vmatmul.mubr.f32.gmra.mrb[0].mxu0 %v6598
        %v8084 = vpop.f32.mrb[0].mxu0
        %v8085 = vadd.f32 0.0, %v8084
        %v8086 = vpop.f32.mrb[0].mxu0
        %8087 = vmatprep.mubr.f32.mxu0 0.0
        %8088 = vmatmul.mubr.f32.gmra.mrb[0].mxu0 %v6601
        %v8089 = vpop.f32.mrb[0].mxu0
        %v8090 = vadd.f32 0.0, %v8089
        %v8091 = vpop.f32.mrb[0].mxu0
        %8092 = vmatprep.mubr.f32.mxu0 0.0
        %8093 = vmatmul.mubr.f32.gmra.mrb[0].mxu0 %v7228
        %v8094 = vpop.f32.mrb[0].mxu0
        %v8095 = vadd.f32 0.0, %v8094
        %v8096 = vpop.f32.mrb[0].mxu0
        %8097 = vmatprep.mubr.f32.mxu0 0.0
        %8098 = vmatmul.mubr.f32.gmra.mrb[0].mxu0 %v7231
        %v8099 = vpop.f32.mrb[0].mxu0
        %v8100 = vadd.f32 0.0, %v8099
        %v8101 = vpop.f32.mrb[0].mxu0
        %8102 = vdwg.mxu0
        %v8103 = vadd.f32 %v7855, %v7955
        %v8104 = vadd.f32 %v7856, %v7960
        %v8105 = vadd.f32 %v7857, %v7965
        %v8106 = vadd.f32 %v7858, %v7970
        %v8107 = vadd.f32 %v7859, %v7975
        %v8108 = vadd.f32 %v7860, %v7980
        %v8109 = vadd.f32 %v7861, %v7985
        %v8110 = vadd.f32 %v7862, %v7990
        %v8111 = vadd.f32 %v7863, %v7995
        %v8112 = vadd.f32 %v7864, %v8000
        %v8113 = vadd.f32 %v7865, %v8005
        %v8114 = vadd.f32 %v7866, %v8010
        %v8115 = vadd.f32 %v7867, %v8015
        %v8116 = vadd.f32 %v7868, %v8020
        %v8117 = vadd.f32 %v7869, %v8025
        %v8118 = vadd.f32 %v7870, %v8030
        %v8119 = vadd.f32 %v7871, %v8035
        %v8120 = vadd.f32 %v7872, %v8040
        %v8121 = vadd.f32 %v7873, %v8045
        %v8122 = vadd.f32 %v7874, %v8050
        %v8123 = vadd.f32 %v7875, %v8055
        %v8124 = vadd.f32 %v7876, %v8060
        %v8125 = vadd.f32 %v7877, %v8065
        %v8126 = vadd.f32 %v7878, %v8070
        %v8127 = vadd.f32 %v7879, %v8075
        %v8128 = vadd.f32 %v7880, %v8080
        %v8129 = vadd.f32 %v7881, %v8085
        %v8130 = vadd.f32 %v7882, %v8090
        %v8131 = vadd.f32 %v7883, %v8095
        %v8132 = vadd.f32 %v7884, %v8100
        %8133 = vst.msk [vmem:[#allocation2] sm:$0xff] %vm841, %v8103
        %8134 = vst.msk [vmem:[#allocation2 + $0x8] sm:$0xff] %vm841, %v8104
        %8135 = vst.msk [vmem:[#allocation2 + $0x10] sm:$0xff] %vm841, %v8105
        %8136 = vst.msk [vmem:[#allocation2 + $0x18] sm:$0xff] %vm841, %v8106
        %8137 = vst.msk [vmem:[#allocation2 + $0x20] sm:$0xff] %vm841, %v8107
        %8138 = vst.msk [vmem:[#allocation2 + $0x28] sm:$0xff] %vm841, %v8108
        %8139 = vst.msk [vmem:[#allocation2 + $0x30] sm:$0xff] %vm841, %v8109
        %8140 = vst.msk [vmem:[#allocation2 + $0x38] sm:$0xff] %vm841, %v8110
        %8141 = vst.msk [vmem:[#allocation2 + $0x40] sm:$0xff] %vm841, %v8111
        %8142 = vst.msk [vmem:[#allocation2 + $0x48] sm:$0xff] %vm841, %v8112
        %8143 = vst.msk [vmem:[#allocation2 + $0x50] sm:$0xff] %vm841, %v8113
        %8144 = vst.msk [vmem:[#allocation2 + $0x58] sm:$0xff] %vm841, %v8114
        %8145 = vst.msk [vmem:[#allocation2 + $0x60] sm:$0xff] %vm841, %v8115
        %8146 = vst.msk [vmem:[#allocation2 + $0x68] sm:$0xff] %vm841, %v8116
        %8147 = vst.msk [vmem:[#allocation2 + $0x70] sm:$0xff] %vm841, %v8117
        %8148 = vst.msk [vmem:[#allocation2 + $0x78] sm:$0xff] %vm841, %v8118
        %8149 = vst.msk [vmem:[#allocation2 + $0x80] sm:$0xff] %vm841, %v8119
        %8150 = vst.msk [vmem:[#allocation2 + $0x88] sm:$0xff] %vm841, %v8120
        %8151 = vst.msk [vmem:[#allocation2 + $0x90] sm:$0xff] %vm841, %v8121
        %8152 = vst.msk [vmem:[#allocation2 + $0x98] sm:$0xff] %vm841, %v8122
        %8153 = vst.msk [vmem:[#allocation2 + $0xa0] sm:$0xff] %vm841, %v8123
        %8154 = vst.msk [vmem:[#allocation2 + $0xa8] sm:$0xff] %vm841, %v8124
        %8155 = vst.msk [vmem:[#allocation2 + $0xb0] sm:$0xff] %vm841, %v8125
        %8156 = vst.msk [vmem:[#allocation2 + $0xb8] sm:$0xff] %vm841, %v8126
        %8157 = vst.msk [vmem:[#allocation2 + $0xc0] sm:$0xff] %vm841, %v8127
        %8158 = vst.msk [vmem:[#allocation2 + $0xc8] sm:$0xff] %vm841, %v8128
        %8159 = vst.msk [vmem:[#allocation2 + $0xd0] sm:$0xff] %vm841, %v8129
        %8160 = vst.msk [vmem:[#allocation2 + $0xd8] sm:$0xff] %vm841, %v8130
        %8161 = vst.msk [vmem:[#allocation2 + $0xe0] sm:$0xff] %vm841, %v8131
        %8162 = vst.msk [vmem:[#allocation2 + $0xe8] sm:$0xff] %vm841, %v8132
        %v8163 = vld [vmem:[#allocation3] sm:$0xff]
        %v8164 = vld [vmem:[#allocation3 + $0x8] sm:$0xff]
        %v8165 = vld [vmem:[#allocation3 + $0x10] sm:$0xff]
        %v8166 = vld [vmem:[#allocation3 + $0x18] sm:$0xff]
        %v8167 = vld [vmem:[#allocation3 + $0x20] sm:$0xff]
        %v8168 = vld [vmem:[#allocation3 + $0x28] sm:$0xff]
        %v8169 = vld [vmem:[#allocation3 + $0x30] sm:$0xff]
        %v8170 = vld [vmem:[#allocation3 + $0x38] sm:$0xff]
        %v8171 = vld [vmem:[#allocation3 + $0x40] sm:$0xff]
        %v8172 = vld [vmem:[#allocation3 + $0x48] sm:$0xff]
        %v8173 = vld [vmem:[#allocation3 + $0x50] sm:$0xff]
        %v8174 = vld [vmem:[#allocation3 + $0x58] sm:$0xff]
        %v8175 = vld [vmem:[#allocation3 + $0x60] sm:$0xff]
        %v8176 = vld [vmem:[#allocation3 + $0x68] sm:$0xff]
        %v8177 = vld [vmem:[#allocation3 + $0x70] sm:$0xff]
        %v8178 = vld [vmem:[#allocation3 + $0x78] sm:$0xff]
        %v8179 = vld [vmem:[#allocation3 + $0x80] sm:$0xff]
        %v8180 = vld [vmem:[#allocation3 + $0x88] sm:$0xff]
        %v8181 = vld [vmem:[#allocation3 + $0x90] sm:$0xff]
        %v8182 = vld [vmem:[#allocation3 + $0x98] sm:$0xff]
        %v8183 = vld [vmem:[#allocation3 + $0xa0] sm:$0xff]
        %v8184 = vld [vmem:[#allocation3 + $0xa8] sm:$0xff]
        %v8185 = vld [vmem:[#allocation3 + $0xb0] sm:$0xff]
        %v8186 = vld [vmem:[#allocation3 + $0xb8] sm:$0xff]
        %v8187 = vld [vmem:[#allocation3 + $0xc0] sm:$0xff]
        %v8188 = vld [vmem:[#allocation3 + $0xc8] sm:$0xff]
        %v8189 = vld [vmem:[#allocation3 + $0xd0] sm:$0xff]
        %v8190 = vld [vmem:[#allocation3 + $0xd8] sm:$0xff]
        %v8191 = vld [vmem:[#allocation3 + $0xe0] sm:$0xff]
        %v8192 = vld [vmem:[#allocation3 + $0xe8] sm:$0xff]
        %v8194 = vsel %vm1565, %v7854, 0
        %8196 = vmatprep.subr.mxu0 0.0
        %8197 = vmatpush1.msra.mxu0 %v7853
        %8198 = vmatprep.subr.mxu0 0.0
        %8199 = vmatpush1.msra.mxu0 %v8194
        %8200 = vmatprep.subr.mxu0 0.0
        %8201 = vmatpush1.msra.mxu0 0.0
        %8202 = vmatprep.subr.mxu0 0.0
        %8203 = vmatpush1.msra.mxu0 0.0
        %8204 = vmatprep.subr.mxu0 0.0
        %8205 = vmatpush1.msra.mxu0 0.0
        %8206 = vmatprep.subr.mxu0 0.0
        %8207 = vmatpush1.msra.mxu0 0.0
        %8208 = vmatprep.subr.mxu0 0.0
        %8209 = vmatpush1.msra.mxu0 0.0
        %8210 = vmatprep.subr.mxu0 0.0
        %8211 = vmatpush1.msra.mxu0 0.0
        %8212 = vmatprep.subr.mxu0 0.0
        %8213 = vmatpush1.msra.mxu0 0.0
        %8214 = vmatprep.subr.mxu0 0.0
        %8215 = vmatpush1.msra.mxu0 0.0
        %8216 = vmatprep.subr.mxu0 0.0
        %8217 = vmatpush1.msra.mxu0 0.0
        %8218 = vmatprep.subr.mxu0 0.0
        %8219 = vmatpush1.msra.mxu0 0.0
        %8220 = vmatprep.subr.mxu0 0.0
        %8221 = vmatpush1.msra.mxu0 0.0
        %8222 = vmatprep.subr.mxu0 0.0
        %8223 = vmatpush1.msra.mxu0 0.0
        %8224 = vmatprep.subr.mxu0 0.0
        %8225 = vmatpush1.msra.mxu0 0.0
        %8226 = vmatprep.subr.mxu0 0.0
        %8227 = vmatpush1.msra.mxu0 0.0
        %8228 = vmatprep.subr.mxu0 0.0
        %8229 = vmatpush1.msra.mxu0 0.0
        %8230 = vmatprep.subr.mxu0 0.0
        %8231 = vmatpush1.msra.mxu0 0.0
        %8232 = vmatprep.subr.mxu0 0.0
        %8233 = vmatpush1.msra.mxu0 0.0
        %8234 = vmatprep.subr.mxu0 0.0
        %8235 = vmatpush1.msra.mxu0 0.0
        %8236 = vmatprep.subr.mxu0 0.0
        %8237 = vmatpush1.msra.mxu0 0.0
        %8238 = vmatprep.subr.mxu0 0.0
        %8239 = vmatpush1.msra.mxu0 0.0
        %8240 = vmatprep.subr.mxu0 0.0
        %8241 = vmatpush1.msra.mxu0 0.0
        %8242 = vmatprep.subr.mxu0 0.0
        %8243 = vmatpush1.msra.mxu0 0.0
        %8244 = vmatprep.subr.mxu0 0.0
        %8245 = vmatpush1.msra.mxu0 0.0
        %8246 = vmatprep.subr.mxu0 0.0
        %8247 = vmatpush1.msra.mxu0 0.0
        %8248 = vmatprep.subr.mxu0 0.0
        %8249 = vmatpush1.msra.mxu0 0.0
        %8250 = vmatprep.subr.mxu0 0.0
        %8251 = vmatpush1.msra.mxu0 0.0
        %8252 = vmatprep.subr.mxu0 0.0
        %8253 = vmatpush1.msra.mxu0 0.0
        %8254 = vmatprep.subr.mxu0 0.0
        %8255 = vmatpush1.msra.mxu0 0.0
        %8256 = vmatprep.subr.mxu0 0.0
        %8257 = vmatpush1.msra.mxu0 0.0
        %8258 = vmatprep.subr.mxu0 0.0
        %8259 = vmatpush1.msra.mxu0 0.0
        %8260 = vmatprep.mubr.f32.mxu0 0.0
        %8261 = vmatmul.mubr.f32.gmra.mrb[0].mxu0 %v6520
        %v8262 = vpop.f32.mrb[0].mxu0
        %v8263 = vadd.f32 0.0, %v8262
        %v8264 = vpop.f32.mrb[0].mxu0
        %8265 = vmatprep.mubr.f32.mxu0 0.0
        %8266 = vmatmul.mubr.f32.gmra.mrb[0].mxu0 %v6523
        %v8267 = vpop.f32.mrb[0].mxu0
        %v8268 = vadd.f32 0.0, %v8267
        %v8269 = vpop.f32.mrb[0].mxu0
        %8270 = vmatprep.mubr.f32.mxu0 0.0
        %8271 = vmatmul.mubr.f32.gmra.mrb[0].mxu0 %v6526
        %v8272 = vpop.f32.mrb[0].mxu0
        %v8273 = vadd.f32 0.0, %v8272
        %v8274 = vpop.f32.mrb[0].mxu0
        %8275 = vmatprep.mubr.f32.mxu0 0.0
        %8276 = vmatmul.mubr.f32.gmra.mrb[0].mxu0 %v6529
        %v8277 = vpop.f32.mrb[0].mxu0
        %v8278 = vadd.f32 0.0, %v8277
        %v8279 = vpop.f32.mrb[0].mxu0
        %8280 = vmatprep.mubr.f32.mxu0 0.0
        %8281 = vmatmul.mubr.f32.gmra.mrb[0].mxu0 %v6532
        %v8282 = vpop.f32.mrb[0].mxu0
        %v8283 = vadd.f32 0.0, %v8282
        %v8284 = vpop.f32.mrb[0].mxu0
        %8285 = vmatprep.mubr.f32.mxu0 0.0
        %8286 = vmatmul.mubr.f32.gmra.mrb[0].mxu0 %v6535
        %v8287 = vpop.f32.mrb[0].mxu0
        %v8288 = vadd.f32 0.0, %v8287
        %v8289 = vpop.f32.mrb[0].mxu0
        %8290 = vmatprep.mubr.f32.mxu0 0.0
        %8291 = vmatmul.mubr.f32.gmra.mrb[0].mxu0 %v6538
        %v8292 = vpop.f32.mrb[0].mxu0
        %v8293 = vadd.f32 0.0, %v8292
        %v8294 = vpop.f32.mrb[0].mxu0
        %8295 = vmatprep.mubr.f32.mxu0 0.0
        %8296 = vmatmul.mubr.f32.gmra.mrb[0].mxu0 %v6541
        %v8297 = vpop.f32.mrb[0].mxu0
        %v8298 = vadd.f32 0.0, %v8297
        %v8299 = vpop.f32.mrb[0].mxu0
        %8300 = vmatprep.mubr.f32.mxu0 0.0
        %8301 = vmatmul.mubr.f32.gmra.mrb[0].mxu0 %v6544
        %v8302 = vpop.f32.mrb[0].mxu0
        %v8303 = vadd.f32 0.0, %v8302
        %v8304 = vpop.f32.mrb[0].mxu0
        %8305 = vmatprep.mubr.f32.mxu0 0.0
        %8306 = vmatmul.mubr.f32.gmra.mrb[0].mxu0 %v6547
        %v8307 = vpop.f32.mrb[0].mxu0
        %v8308 = vadd.f32 0.0, %v8307
        %v8309 = vpop.f32.mrb[0].mxu0
        %8310 = vmatprep.mubr.f32.mxu0 0.0
        %8311 = vmatmul.mubr.f32.gmra.mrb[0].mxu0 %v6550
        %v8312 = vpop.f32.mrb[0].mxu0
        %v8313 = vadd.f32 0.0, %v8312
        %v8314 = vpop.f32.mrb[0].mxu0
        %8315 = vmatprep.mubr.f32.mxu0 0.0
        %8316 = vmatmul.mubr.f32.gmra.mrb[0].mxu0 %v6553
        %v8317 = vpop.f32.mrb[0].mxu0
        %v8318 = vadd.f32 0.0, %v8317
        %v8319 = vpop.f32.mrb[0].mxu0
        %8320 = vmatprep.mubr.f32.mxu0 0.0
        %8321 = vmatmul.mubr.f32.gmra.mrb[0].mxu0 %v6556
        %v8322 = vpop.f32.mrb[0].mxu0
        %v8323 = vadd.f32 0.0, %v8322
        %v8324 = vpop.f32.mrb[0].mxu0
        %8325 = vmatprep.mubr.f32.mxu0 0.0
        %8326 = vmatmul.mubr.f32.gmra.mrb[0].mxu0 %v6559
        %v8327 = vpop.f32.mrb[0].mxu0
        %v8328 = vadd.f32 0.0, %v8327
        %v8329 = vpop.f32.mrb[0].mxu0
        %8330 = vmatprep.mubr.f32.mxu0 0.0
        %8331 = vmatmul.mubr.f32.gmra.mrb[0].mxu0 %v6562
        %v8332 = vpop.f32.mrb[0].mxu0
        %v8333 = vadd.f32 0.0, %v8332
        %v8334 = vpop.f32.mrb[0].mxu0
        %8335 = vmatprep.mubr.f32.mxu0 0.0
        %8336 = vmatmul.mubr.f32.gmra.mrb[0].mxu0 %v6565
        %v8337 = vpop.f32.mrb[0].mxu0
        %v8338 = vadd.f32 0.0, %v8337
        %v8339 = vpop.f32.mrb[0].mxu0
        %8340 = vmatprep.mubr.f32.mxu0 0.0
        %8341 = vmatmul.mubr.f32.gmra.mrb[0].mxu0 %v6568
        %v8342 = vpop.f32.mrb[0].mxu0
        %v8343 = vadd.f32 0.0, %v8342
        %v8344 = vpop.f32.mrb[0].mxu0
        %8345 = vmatprep.mubr.f32.mxu0 0.0
        %8346 = vmatmul.mubr.f32.gmra.mrb[0].mxu0 %v6571
        %v8347 = vpop.f32.mrb[0].mxu0
        %v8348 = vadd.f32 0.0, %v8347
        %v8349 = vpop.f32.mrb[0].mxu0
        %8350 = vmatprep.mubr.f32.mxu0 0.0
        %8351 = vmatmul.mubr.f32.gmra.mrb[0].mxu0 %v6574
        %v8352 = vpop.f32.mrb[0].mxu0
        %v8353 = vadd.f32 0.0, %v8352
        %v8354 = vpop.f32.mrb[0].mxu0
        %8355 = vmatprep.mubr.f32.mxu0 0.0
        %8356 = vmatmul.mubr.f32.gmra.mrb[0].mxu0 %v6577
        %v8357 = vpop.f32.mrb[0].mxu0
        %v8358 = vadd.f32 0.0, %v8357
        %v8359 = vpop.f32.mrb[0].mxu0
        %8360 = vmatprep.mubr.f32.mxu0 0.0
        %8361 = vmatmul.mubr.f32.gmra.mrb[0].mxu0 %v6580
        %v8362 = vpop.f32.mrb[0].mxu0
        %v8363 = vadd.f32 0.0, %v8362
        %v8364 = vpop.f32.mrb[0].mxu0
        %8365 = vmatprep.mubr.f32.mxu0 0.0
        %8366 = vmatmul.mubr.f32.gmra.mrb[0].mxu0 %v6583
        %v8367 = vpop.f32.mrb[0].mxu0
        %v8368 = vadd.f32 0.0, %v8367
        %v8369 = vpop.f32.mrb[0].mxu0
        %8370 = vmatprep.mubr.f32.mxu0 0.0
        %8371 = vmatmul.mubr.f32.gmra.mrb[0].mxu0 %v6586
        %v8372 = vpop.f32.mrb[0].mxu0
        %v8373 = vadd.f32 0.0, %v8372
        %v8374 = vpop.f32.mrb[0].mxu0
        %8375 = vmatprep.mubr.f32.mxu0 0.0
        %8376 = vmatmul.mubr.f32.gmra.mrb[0].mxu0 %v6589
        %v8377 = vpop.f32.mrb[0].mxu0
        %v8378 = vadd.f32 0.0, %v8377
        %v8379 = vpop.f32.mrb[0].mxu0
        %8380 = vmatprep.mubr.f32.mxu0 0.0
        %8381 = vmatmul.mubr.f32.gmra.mrb[0].mxu0 %v6592
        %v8382 = vpop.f32.mrb[0].mxu0
        %v8383 = vadd.f32 0.0, %v8382
        %v8384 = vpop.f32.mrb[0].mxu0
        %8385 = vmatprep.mubr.f32.mxu0 0.0
        %8386 = vmatmul.mubr.f32.gmra.mrb[0].mxu0 %v6595
        %v8387 = vpop.f32.mrb[0].mxu0
        %v8388 = vadd.f32 0.0, %v8387
        %v8389 = vpop.f32.mrb[0].mxu0
        %8390 = vmatprep.mubr.f32.mxu0 0.0
        %8391 = vmatmul.mubr.f32.gmra.mrb[0].mxu0 %v6598
        %v8392 = vpop.f32.mrb[0].mxu0
        %v8393 = vadd.f32 0.0, %v8392
        %v8394 = vpop.f32.mrb[0].mxu0
        %8395 = vmatprep.mubr.f32.mxu0 0.0
        %8396 = vmatmul.mubr.f32.gmra.mrb[0].mxu0 %v6601
        %v8397 = vpop.f32.mrb[0].mxu0
        %v8398 = vadd.f32 0.0, %v8397
        %v8399 = vpop.f32.mrb[0].mxu0
        %8400 = vmatprep.mubr.f32.mxu0 0.0
        %8401 = vmatmul.mubr.f32.gmra.mrb[0].mxu0 %v7228
        %v8402 = vpop.f32.mrb[0].mxu0
        %v8403 = vadd.f32 0.0, %v8402
        %v8404 = vpop.f32.mrb[0].mxu0
        %8405 = vmatprep.mubr.f32.mxu0 0.0
        %8406 = vmatmul.mubr.f32.gmra.mrb[0].mxu0 %v7231
        %v8407 = vpop.f32.mrb[0].mxu0
        %v8408 = vadd.f32 0.0, %v8407
        %v8409 = vpop.f32.mrb[0].mxu0
        %8410 = vdwg.mxu0
        %v8411 = vadd.f32 %v8163, %v8263
        %v8412 = vadd.f32 %v8164, %v8268
        %v8413 = vadd.f32 %v8165, %v8273
        %v8414 = vadd.f32 %v8166, %v8278
        %v8415 = vadd.f32 %v8167, %v8283
        %v8416 = vadd.f32 %v8168, %v8288
        %v8417 = vadd.f32 %v8169, %v8293
        %v8418 = vadd.f32 %v8170, %v8298
        %v8419 = vadd.f32 %v8171, %v8303
        %v8420 = vadd.f32 %v8172, %v8308
        %v8421 = vadd.f32 %v8173, %v8313
        %v8422 = vadd.f32 %v8174, %v8318
        %v8423 = vadd.f32 %v8175, %v8323
        %v8424 = vadd.f32 %v8176, %v8328
        %v8425 = vadd.f32 %v8177, %v8333
        %v8426 = vadd.f32 %v8178, %v8338
        %v8427 = vadd.f32 %v8179, %v8343
        %v8428 = vadd.f32 %v8180, %v8348
        %v8429 = vadd.f32 %v8181, %v8353
        %v8430 = vadd.f32 %v8182, %v8358
        %v8431 = vadd.f32 %v8183, %v8363
        %v8432 = vadd.f32 %v8184, %v8368
        %v8433 = vadd.f32 %v8185, %v8373
        %v8434 = vadd.f32 %v8186, %v8378
        %v8435 = vadd.f32 %v8187, %v8383
        %v8436 = vadd.f32 %v8188, %v8388
        %v8437 = vadd.f32 %v8189, %v8393
        %v8438 = vadd.f32 %v8190, %v8398
        %v8439 = vadd.f32 %v8191, %v8403
        %v8440 = vadd.f32 %v8192, %v8408
        %8441 = vst.msk [vmem:[#allocation3] sm:$0xff] %vm841, %v8411
        %8442 = vst.msk [vmem:[#allocation3 + $0x8] sm:$0xff] %vm841, %v8412
        %8443 = vst.msk [vmem:[#allocation3 + $0x10] sm:$0xff] %vm841, %v8413
        %8444 = vst.msk [vmem:[#allocation3 + $0x18] sm:$0xff] %vm841, %v8414
        %8445 = vst.msk [vmem:[#allocation3 + $0x20] sm:$0xff] %vm841, %v8415
        %8446 = vst.msk [vmem:[#allocation3 + $0x28] sm:$0xff] %vm841, %v8416
        %8447 = vst.msk [vmem:[#allocation3 + $0x30] sm:$0xff] %vm841, %v8417
        %8448 = vst.msk [vmem:[#allocation3 + $0x38] sm:$0xff] %vm841, %v8418
        %8449 = vst.msk [vmem:[#allocation3 + $0x40] sm:$0xff] %vm841, %v8419
        %8450 = vst.msk [vmem:[#allocation3 + $0x48] sm:$0xff] %vm841, %v8420
        %8451 = vst.msk [vmem:[#allocation3 + $0x50] sm:$0xff] %vm841, %v8421
        %8452 = vst.msk [vmem:[#allocation3 + $0x58] sm:$0xff] %vm841, %v8422
        %8453 = vst.msk [vmem:[#allocation3 + $0x60] sm:$0xff] %vm841, %v8423
        %8454 = vst.msk [vmem:[#allocation3 + $0x68] sm:$0xff] %vm841, %v8424
        %8455 = vst.msk [vmem:[#allocation3 + $0x70] sm:$0xff] %vm841, %v8425
        %8456 = vst.msk [vmem:[#allocation3 + $0x78] sm:$0xff] %vm841, %v8426
        %8457 = vst.msk [vmem:[#allocation3 + $0x80] sm:$0xff] %vm841, %v8427
        %8458 = vst.msk [vmem:[#allocation3 + $0x88] sm:$0xff] %vm841, %v8428
        %8459 = vst.msk [vmem:[#allocation3 + $0x90] sm:$0xff] %vm841, %v8429
        %8460 = vst.msk [vmem:[#allocation3 + $0x98] sm:$0xff] %vm841, %v8430
        %8461 = vst.msk [vmem:[#allocation3 + $0xa0] sm:$0xff] %vm841, %v8431
        %8462 = vst.msk [vmem:[#allocation3 + $0xa8] sm:$0xff] %vm841, %v8432
        %8463 = vst.msk [vmem:[#allocation3 + $0xb0] sm:$0xff] %vm841, %v8433
        %8464 = vst.msk [vmem:[#allocation3 + $0xb8] sm:$0xff] %vm841, %v8434
        %8465 = vst.msk [vmem:[#allocation3 + $0xc0] sm:$0xff] %vm841, %v8435
        %8466 = vst.msk [vmem:[#allocation3 + $0xc8] sm:$0xff] %vm841, %v8436
        %8467 = vst.msk [vmem:[#allocation3 + $0xd0] sm:$0xff] %vm841, %v8437
        %8468 = vst.msk [vmem:[#allocation3 + $0xd8] sm:$0xff] %vm841, %v8438
        %8469 = vst.msk [vmem:[#allocation3 + $0xe0] sm:$0xff] %vm841, %v8439
        %8470 = vst.msk [vmem:[#allocation3 + $0xe8] sm:$0xff] %vm841, %v8440
        %v8471 = vld [vmem:[#allocation2] sm:$0xff]
        %v8472 = vld [vmem:[#allocation2 + $0x8] sm:$0xff]
        %v8473 = vld [vmem:[#allocation2 + $0x10] sm:$0xff]
        %v8474 = vld [vmem:[#allocation2 + $0x18] sm:$0xff]
        %v8475 = vld [vmem:[#allocation2 + $0x20] sm:$0xff]
        %v8476 = vld [vmem:[#allocation2 + $0x28] sm:$0xff]
        %v8477 = vld [vmem:[#allocation2 + $0x30] sm:$0xff]
        %v8478 = vld [vmem:[#allocation2 + $0x38] sm:$0xff]
        %v8479 = vld [vmem:[#allocation2 + $0x40] sm:$0xff]
        %v8480 = vld [vmem:[#allocation2 + $0x48] sm:$0xff]
        %v8481 = vld [vmem:[#allocation2 + $0x50] sm:$0xff]
        %v8482 = vld [vmem:[#allocation2 + $0x58] sm:$0xff]
        %v8483 = vld [vmem:[#allocation2 + $0x60] sm:$0xff]
        %v8484 = vld [vmem:[#allocation2 + $0x68] sm:$0xff]
        %v8485 = vld [vmem:[#allocation2 + $0x70] sm:$0xff]
        %v8486 = vld [vmem:[#allocation2 + $0x78] sm:$0xff]
        %v8487 = vld [vmem:[#allocation2 + $0x80] sm:$0xff]
        %v8488 = vld [vmem:[#allocation2 + $0x88] sm:$0xff]
        %v8489 = vld [vmem:[#allocation2 + $0x90] sm:$0xff]
        %v8490 = vld [vmem:[#allocation2 + $0x98] sm:$0xff]
        %v8491 = vld [vmem:[#allocation2 + $0xa0] sm:$0xff]
        %v8492 = vld [vmem:[#allocation2 + $0xa8] sm:$0xff]
        %v8493 = vld [vmem:[#allocation2 + $0xb0] sm:$0xff]
        %v8494 = vld [vmem:[#allocation2 + $0xb8] sm:$0xff]
        %v8495 = vld [vmem:[#allocation2 + $0xc0] sm:$0xff]
        %v8496 = vld [vmem:[#allocation2 + $0xc8] sm:$0xff]
        %v8497 = vld [vmem:[#allocation2 + $0xd0] sm:$0xff]
        %v8498 = vld [vmem:[#allocation2 + $0xd8] sm:$0xff]
        %v8499 = vld [vmem:[#allocation2 + $0xe0] sm:$0xff]
        %v8500 = vld [vmem:[#allocation2 + $0xe8] sm:$0xff]
        %v8501 = vld [vmem:[#allocation2 + $0xf0] sm:$0xff]
        %v8502 = vld [vmem:[#allocation2 + $0xf8] sm:$0xff]
        %vm8503 = vcmp.ge.f32.partialorder %v8471, 0.0
        %vm8504 = vcmp.ge.f32.partialorder %v8472, 0.0
        %vm8505 = vcmp.ge.f32.partialorder %v8473, 0.0
        %vm8506 = vcmp.ge.f32.partialorder %v8474, 0.0
        %vm8507 = vcmp.ge.f32.partialorder %v8475, 0.0
        %vm8508 = vcmp.ge.f32.partialorder %v8476, 0.0
        %vm8509 = vcmp.ge.f32.partialorder %v8477, 0.0
        %vm8510 = vcmp.ge.f32.partialorder %v8478, 0.0
        %vm8511 = vcmp.ge.f32.partialorder %v8479, 0.0
        %vm8512 = vcmp.ge.f32.partialorder %v8480, 0.0
        %vm8513 = vcmp.ge.f32.partialorder %v8481, 0.0
        %vm8514 = vcmp.ge.f32.partialorder %v8482, 0.0
        %vm8515 = vcmp.ge.f32.partialorder %v8483, 0.0
        %vm8516 = vcmp.ge.f32.partialorder %v8484, 0.0
        %vm8517 = vcmp.ge.f32.partialorder %v8485, 0.0
        %vm8518 = vcmp.ge.f32.partialorder %v8486, 0.0
        %vm8519 = vcmp.ge.f32.partialorder %v8487, 0.0
        %vm8520 = vcmp.ge.f32.partialorder %v8488, 0.0
        %vm8521 = vcmp.ge.f32.partialorder %v8489, 0.0
        %vm8522 = vcmp.ge.f32.partialorder %v8490, 0.0
        %vm8523 = vcmp.ge.f32.partialorder %v8491, 0.0
        %vm8524 = vcmp.ge.f32.partialorder %v8492, 0.0
        %vm8525 = vcmp.ge.f32.partialorder %v8493, 0.0
        %vm8526 = vcmp.ge.f32.partialorder %v8494, 0.0
        %vm8527 = vcmp.ge.f32.partialorder %v8495, 0.0
        %vm8528 = vcmp.ge.f32.partialorder %v8496, 0.0
        %vm8529 = vcmp.ge.f32.partialorder %v8497, 0.0
        %vm8530 = vcmp.ge.f32.partialorder %v8498, 0.0
        %vm8531 = vcmp.ge.f32.partialorder %v8499, 0.0
        %vm8532 = vcmp.ge.f32.partialorder %v8500, 0.0
        %vm8533 = vcmp.ge.f32.partialorder %v8501, 0.0
        %vm8534 = vcmp.ge.f32.partialorder %v8502, 0.0
        %v8535 = vmul.f32 %v8471, 0.01
        %v8536 = vmul.f32 %v8472, 0.01
        %v8537 = vmul.f32 %v8473, 0.01
        %v8538 = vmul.f32 %v8474, 0.01
        %v8539 = vmul.f32 %v8475, 0.01
        %v8540 = vmul.f32 %v8476, 0.01
        %v8541 = vmul.f32 %v8477, 0.01
        %v8542 = vmul.f32 %v8478, 0.01
        %v8543 = vmul.f32 %v8479, 0.01
        %v8544 = vmul.f32 %v8480, 0.01
        %v8545 = vmul.f32 %v8481, 0.01
        %v8546 = vmul.f32 %v8482, 0.01
        %v8547 = vmul.f32 %v8483, 0.01
        %v8548 = vmul.f32 %v8484, 0.01
        %v8549 = vmul.f32 %v8485, 0.01
        %v8550 = vmul.f32 %v8486, 0.01
        %v8551 = vmul.f32 %v8487, 0.01
        %v8552 = vmul.f32 %v8488, 0.01
        %v8553 = vmul.f32 %v8489, 0.01
        %v8554 = vmul.f32 %v8490, 0.01
        %v8555 = vmul.f32 %v8491, 0.01
        %v8556 = vmul.f32 %v8492, 0.01
        %v8557 = vmul.f32 %v8493, 0.01
        %v8558 = vmul.f32 %v8494, 0.01
        %v8559 = vmul.f32 %v8495, 0.01
        %v8560 = vmul.f32 %v8496, 0.01
        %v8561 = vmul.f32 %v8497, 0.01
        %v8562 = vmul.f32 %v8498, 0.01
        %v8563 = vmul.f32 %v8499, 0.01
        %v8564 = vmul.f32 %v8500, 0.01
        %v8565 = vmul.f32 %v8501, 0.01
        %v8566 = vmul.f32 %v8502, 0.01
        %v8567 = vsel %vm8503, %v8471, %v8535
        %v8568 = vsel %vm8504, %v8472, %v8536
        %v8569 = vsel %vm8505, %v8473, %v8537
        %v8570 = vsel %vm8506, %v8474, %v8538
        %v8571 = vsel %vm8507, %v8475, %v8539
        %v8572 = vsel %vm8508, %v8476, %v8540
        %v8573 = vsel %vm8509, %v8477, %v8541
        %v8574 = vsel %vm8510, %v8478, %v8542
        %v8575 = vsel %vm8511, %v8479, %v8543
        %v8576 = vsel %vm8512, %v8480, %v8544
        %v8577 = vsel %vm8513, %v8481, %v8545
        %v8578 = vsel %vm8514, %v8482, %v8546
        %v8579 = vsel %vm8515, %v8483, %v8547
        %v8580 = vsel %vm8516, %v8484, %v8548
        %v8581 = vsel %vm8517, %v8485, %v8549
        %v8582 = vsel %vm8518, %v8486, %v8550
        %v8583 = vsel %vm8519, %v8487, %v8551
        %v8584 = vsel %vm8520, %v8488, %v8552
        %v8585 = vsel %vm8521, %v8489, %v8553
        %v8586 = vsel %vm8522, %v8490, %v8554
        %v8587 = vsel %vm8523, %v8491, %v8555
        %v8588 = vsel %vm8524, %v8492, %v8556
        %v8589 = vsel %vm8525, %v8493, %v8557
        %v8590 = vsel %vm8526, %v8494, %v8558
        %v8591 = vsel %vm8527, %v8495, %v8559
        %v8592 = vsel %vm8528, %v8496, %v8560
        %v8593 = vsel %vm8529, %v8497, %v8561
        %v8594 = vsel %vm8530, %v8498, %v8562
        %v8595 = vsel %vm8531, %v8499, %v8563
        %v8596 = vsel %vm8532, %v8500, %v8564
        %v8597 = vsel %vm8533, %v8501, %v8565
        %v8598 = vsel %vm8534, %v8502, %v8566
        %v8599 = vld [vmem:[#allocation3] sm:$0xff]
        %v8600 = vld [vmem:[#allocation3 + $0x8] sm:$0xff]
        %v8601 = vld [vmem:[#allocation3 + $0x10] sm:$0xff]
        %v8602 = vld [vmem:[#allocation3 + $0x18] sm:$0xff]
        %v8603 = vld [vmem:[#allocation3 + $0x20] sm:$0xff]
        %v8604 = vld [vmem:[#allocation3 + $0x28] sm:$0xff]
        %v8605 = vld [vmem:[#allocation3 + $0x30] sm:$0xff]
        %v8606 = vld [vmem:[#allocation3 + $0x38] sm:$0xff]
        %v8607 = vld [vmem:[#allocation3 + $0x40] sm:$0xff]
        %v8608 = vld [vmem:[#allocation3 + $0x48] sm:$0xff]
        %v8609 = vld [vmem:[#allocation3 + $0x50] sm:$0xff]
        %v8610 = vld [vmem:[#allocation3 + $0x58] sm:$0xff]
        %v8611 = vld [vmem:[#allocation3 + $0x60] sm:$0xff]
        %v8612 = vld [vmem:[#allocation3 + $0x68] sm:$0xff]
        %v8613 = vld [vmem:[#allocation3 + $0x70] sm:$0xff]
        %v8614 = vld [vmem:[#allocation3 + $0x78] sm:$0xff]
        %v8615 = vld [vmem:[#allocation3 + $0x80] sm:$0xff]
        %v8616 = vld [vmem:[#allocation3 + $0x88] sm:$0xff]
        %v8617 = vld [vmem:[#allocation3 + $0x90] sm:$0xff]
        %v8618 = vld [vmem:[#allocation3 + $0x98] sm:$0xff]
        %v8619 = vld [vmem:[#allocation3 + $0xa0] sm:$0xff]
        %v8620 = vld [vmem:[#allocation3 + $0xa8] sm:$0xff]
        %v8621 = vld [vmem:[#allocation3 + $0xb0] sm:$0xff]
        %v8622 = vld [vmem:[#allocation3 + $0xb8] sm:$0xff]
        %v8623 = vld [vmem:[#allocation3 + $0xc0] sm:$0xff]
        %v8624 = vld [vmem:[#allocation3 + $0xc8] sm:$0xff]
        %v8625 = vld [vmem:[#allocation3 + $0xd0] sm:$0xff]
        %v8626 = vld [vmem:[#allocation3 + $0xd8] sm:$0xff]
        %v8627 = vld [vmem:[#allocation3 + $0xe0] sm:$0xff]
        %v8628 = vld [vmem:[#allocation3 + $0xe8] sm:$0xff]
        %v8629 = vld [vmem:[#allocation3 + $0xf0] sm:$0xff]
        %v8630 = vld [vmem:[#allocation3 + $0xf8] sm:$0xff]
        %vm8631 = vcmp.ge.f32.partialorder %v8599, 0.0
        %vm8632 = vcmp.ge.f32.partialorder %v8600, 0.0
        %vm8633 = vcmp.ge.f32.partialorder %v8601, 0.0
        %vm8634 = vcmp.ge.f32.partialorder %v8602, 0.0
        %vm8635 = vcmp.ge.f32.partialorder %v8603, 0.0
        %vm8636 = vcmp.ge.f32.partialorder %v8604, 0.0
        %vm8637 = vcmp.ge.f32.partialorder %v8605, 0.0
        %vm8638 = vcmp.ge.f32.partialorder %v8606, 0.0
        %vm8639 = vcmp.ge.f32.partialorder %v8607, 0.0
        %vm8640 = vcmp.ge.f32.partialorder %v8608, 0.0
        %vm8641 = vcmp.ge.f32.partialorder %v8609, 0.0
        %vm8642 = vcmp.ge.f32.partialorder %v8610, 0.0
        %vm8643 = vcmp.ge.f32.partialorder %v8611, 0.0
        %vm8644 = vcmp.ge.f32.partialorder %v8612, 0.0
        %vm8645 = vcmp.ge.f32.partialorder %v8613, 0.0
        %vm8646 = vcmp.ge.f32.partialorder %v8614, 0.0
        %vm8647 = vcmp.ge.f32.partialorder %v8615, 0.0
        %vm8648 = vcmp.ge.f32.partialorder %v8616, 0.0
        %vm8649 = vcmp.ge.f32.partialorder %v8617, 0.0
        %vm8650 = vcmp.ge.f32.partialorder %v8618, 0.0
        %vm8651 = vcmp.ge.f32.partialorder %v8619, 0.0
        %vm8652 = vcmp.ge.f32.partialorder %v8620, 0.0
        %vm8653 = vcmp.ge.f32.partialorder %v8621, 0.0
        %vm8654 = vcmp.ge.f32.partialorder %v8622, 0.0
        %vm8655 = vcmp.ge.f32.partialorder %v8623, 0.0
        %vm8656 = vcmp.ge.f32.partialorder %v8624, 0.0
        %vm8657 = vcmp.ge.f32.partialorder %v8625, 0.0
        %vm8658 = vcmp.ge.f32.partialorder %v8626, 0.0
        %vm8659 = vcmp.ge.f32.partialorder %v8627, 0.0
        %vm8660 = vcmp.ge.f32.partialorder %v8628, 0.0
        %vm8661 = vcmp.ge.f32.partialorder %v8629, 0.0
        %vm8662 = vcmp.ge.f32.partialorder %v8630, 0.0
        %v8663 = vmul.f32 %v8599, 0.01
        %v8664 = vmul.f32 %v8600, 0.01
        %v8665 = vmul.f32 %v8601, 0.01
        %v8666 = vmul.f32 %v8602, 0.01
        %v8667 = vmul.f32 %v8603, 0.01
        %v8668 = vmul.f32 %v8604, 0.01
        %v8669 = vmul.f32 %v8605, 0.01
        %v8670 = vmul.f32 %v8606, 0.01
        %v8671 = vmul.f32 %v8607, 0.01
        %v8672 = vmul.f32 %v8608, 0.01
        %v8673 = vmul.f32 %v8609, 0.01
        %v8674 = vmul.f32 %v8610, 0.01
        %v8675 = vmul.f32 %v8611, 0.01
        %v8676 = vmul.f32 %v8612, 0.01
        %v8677 = vmul.f32 %v8613, 0.01
        %v8678 = vmul.f32 %v8614, 0.01
        %v8679 = vmul.f32 %v8615, 0.01
        %v8680 = vmul.f32 %v8616, 0.01
        %v8681 = vmul.f32 %v8617, 0.01
        %v8682 = vmul.f32 %v8618, 0.01
        %v8683 = vmul.f32 %v8619, 0.01
        %v8684 = vmul.f32 %v8620, 0.01
        %v8685 = vmul.f32 %v8621, 0.01
        %v8686 = vmul.f32 %v8622, 0.01
        %v8687 = vmul.f32 %v8623, 0.01
        %v8688 = vmul.f32 %v8624, 0.01
        %v8689 = vmul.f32 %v8625, 0.01
        %v8690 = vmul.f32 %v8626, 0.01
        %v8691 = vmul.f32 %v8627, 0.01
        %v8692 = vmul.f32 %v8628, 0.01
        %v8693 = vmul.f32 %v8629, 0.01
        %v8694 = vmul.f32 %v8630, 0.01
        %v8695 = vsel %vm8631, %v8599, %v8663
        %v8696 = vsel %vm8632, %v8600, %v8664
        %v8697 = vsel %vm8633, %v8601, %v8665
        %v8698 = vsel %vm8634, %v8602, %v8666
        %v8699 = vsel %vm8635, %v8603, %v8667
        %v8700 = vsel %vm8636, %v8604, %v8668
        %v8701 = vsel %vm8637, %v8605, %v8669
        %v8702 = vsel %vm8638, %v8606, %v8670
        %v8703 = vsel %vm8639, %v8607, %v8671
        %v8704 = vsel %vm8640, %v8608, %v8672
        %v8705 = vsel %vm8641, %v8609, %v8673
        %v8706 = vsel %vm8642, %v8610, %v8674
        %v8707 = vsel %vm8643, %v8611, %v8675
        %v8708 = vsel %vm8644, %v8612, %v8676
        %v8709 = vsel %vm8645, %v8613, %v8677
        %v8710 = vsel %vm8646, %v8614, %v8678
        %v8711 = vsel %vm8647, %v8615, %v8679
        %v8712 = vsel %vm8648, %v8616, %v8680
        %v8713 = vsel %vm8649, %v8617, %v8681
        %v8714 = vsel %vm8650, %v8618, %v8682
        %v8715 = vsel %vm8651, %v8619, %v8683
        %v8716 = vsel %vm8652, %v8620, %v8684
        %v8717 = vsel %vm8653, %v8621, %v8685
        %v8718 = vsel %vm8654, %v8622, %v8686
        %v8719 = vsel %vm8655, %v8623, %v8687
        %v8720 = vsel %vm8656, %v8624, %v8688
        %v8721 = vsel %vm8657, %v8625, %v8689
        %v8722 = vsel %vm8658, %v8626, %v8690
        %v8723 = vsel %vm8659, %v8627, %v8691
        %v8724 = vsel %vm8660, %v8628, %v8692
        %v8725 = vsel %vm8661, %v8629, %v8693
        %v8726 = vsel %vm8662, %v8630, %v8694
        %v8727 = vadd.f32 %v8567, %v8695
        %v8728 = vadd.f32 %v8568, %v8696
        %v8729 = vadd.f32 %v8569, %v8697
        %v8730 = vadd.f32 %v8570, %v8698
        %v8731 = vadd.f32 %v8571, %v8699
        %v8732 = vadd.f32 %v8572, %v8700
        %v8733 = vadd.f32 %v8573, %v8701
        %v8734 = vadd.f32 %v8574, %v8702
        %v8735 = vadd.f32 %v8575, %v8703
        %v8736 = vadd.f32 %v8576, %v8704
        %v8737 = vadd.f32 %v8577, %v8705
        %v8738 = vadd.f32 %v8578, %v8706
        %v8739 = vadd.f32 %v8579, %v8707
        %v8740 = vadd.f32 %v8580, %v8708
        %v8741 = vadd.f32 %v8581, %v8709
        %v8742 = vadd.f32 %v8582, %v8710
        %v8743 = vadd.f32 %v8583, %v8711
        %v8744 = vadd.f32 %v8584, %v8712
        %v8745 = vadd.f32 %v8585, %v8713
        %v8746 = vadd.f32 %v8586, %v8714
        %v8747 = vadd.f32 %v8587, %v8715
        %v8748 = vadd.f32 %v8588, %v8716
        %v8749 = vadd.f32 %v8589, %v8717
        %v8750 = vadd.f32 %v8590, %v8718
        %v8751 = vadd.f32 %v8591, %v8719
        %v8752 = vadd.f32 %v8592, %v8720
        %v8753 = vadd.f32 %v8593, %v8721
        %v8754 = vadd.f32 %v8594, %v8722
        %v8755 = vadd.f32 %v8595, %v8723
        %v8756 = vadd.f32 %v8596, %v8724
        %v8757 = vadd.f32 %v8597, %v8725
        %v8758 = vadd.f32 %v8598, %v8726
        %8759 = vst.msk [vmem:[%s231] sm:$0xff] %vm841, %v8727
        %8760 = vst.msk [vmem:[%s231 + $0x8] sm:$0xff] %vm841, %v8728
        %8761 = vst.msk [vmem:[%s231 + $0x10] sm:$0xff] %vm841, %v8729
        %8762 = vst.msk [vmem:[%s231 + $0x18] sm:$0xff] %vm841, %v8730
        %8763 = vst.msk [vmem:[%s231 + $0x20] sm:$0xff] %vm841, %v8731
        %8764 = vst.msk [vmem:[%s231 + $0x28] sm:$0xff] %vm841, %v8732
        %8765 = vst.msk [vmem:[%s231 + $0x30] sm:$0xff] %vm841, %v8733
        %8766 = vst.msk [vmem:[%s231 + $0x38] sm:$0xff] %vm841, %v8734
        %8767 = vst.msk [vmem:[%s231 + $0x40] sm:$0xff] %vm841, %v8735
        %8768 = vst.msk [vmem:[%s231 + $0x48] sm:$0xff] %vm841, %v8736
        %8769 = vst.msk [vmem:[%s231 + $0x50] sm:$0xff] %vm841, %v8737
        %8770 = vst.msk [vmem:[%s231 + $0x58] sm:$0xff] %vm841, %v8738
        %8771 = vst.msk [vmem:[%s231 + $0x60] sm:$0xff] %vm841, %v8739
        %8772 = vst.msk [vmem:[%s231 + $0x68] sm:$0xff] %vm841, %v8740
        %8773 = vst.msk [vmem:[%s231 + $0x70] sm:$0xff] %vm841, %v8741
        %8774 = vst.msk [vmem:[%s231 + $0x78] sm:$0xff] %vm841, %v8742
        %8775 = vst.msk [vmem:[%s231 + $0x80] sm:$0xff] %vm841, %v8743
        %8776 = vst.msk [vmem:[%s231 + $0x88] sm:$0xff] %vm841, %v8744
        %8777 = vst.msk [vmem:[%s231 + $0x90] sm:$0xff] %vm841, %v8745
        %8778 = vst.msk [vmem:[%s231 + $0x98] sm:$0xff] %vm841, %v8746
        %8779 = vst.msk [vmem:[%s231 + $0xa0] sm:$0xff] %vm841, %v8747
        %8780 = vst.msk [vmem:[%s231 + $0xa8] sm:$0xff] %vm841, %v8748
        %8781 = vst.msk [vmem:[%s231 + $0xb0] sm:$0xff] %vm841, %v8749
        %8782 = vst.msk [vmem:[%s231 + $0xb8] sm:$0xff] %vm841, %v8750
        %8783 = vst.msk [vmem:[%s231 + $0xc0] sm:$0xff] %vm841, %v8751
        %8784 = vst.msk [vmem:[%s231 + $0xc8] sm:$0xff] %vm841, %v8752
        %8785 = vst.msk [vmem:[%s231 + $0xd0] sm:$0xff] %vm841, %v8753
        %8786 = vst.msk [vmem:[%s231 + $0xd8] sm:$0xff] %vm841, %v8754
        %8787 = vst.msk [vmem:[%s231 + $0xe0] sm:$0xff] %vm841, %v8755
        %8788 = vst.msk [vmem:[%s231 + $0xe8] sm:$0xff] %vm841, %v8756
        %8789 = vst.msk [vmem:[%s231 + $0xf0] sm:$0xff] %vm841, %v8757
        %8790 = vst.msk [vmem:[%s231 + $0xf8] sm:$0xff] %vm841, %v8758
        %s8791 = sand.u32 %s111, 1
        %s8792 = scalar_lea.sflag [#allocation7], %s8791
        %s8793 = sand.u32 %s111, 1
        %s8794 = smul.addr %s8793, 256
        %s8795 = scalar_lea.vmem [#allocation11], %s8794
        // Predicated region
        $region45: #{tpu_custom_call.1} parent=31 // pred_check
          %p8796 = pneg %p121
        $region46: #{tpu_custom_call.1} parent=31 // pred_check_branch
          %8798 = sbr.rel (%p8796) target = $region48
        $region47: #{tpu_custom_call.1} parent=31 // pred_region
          %s8800 = ssub.s32 4096, 4096
          %8801 = vsyncadd %s8792, %s8800
          %s8802 = smul.addr %s26, 32
          %s8803 = smul.addr %s25, 256
          %s8804 = sadd.s32 %s8802, %s8803
          %s8805 = smul.addr %s8804, 128
          %s8806 = scalar_lea.hbm %s3, %s8805
          %s8807 = sshll.u32 %s8795, 4
          %s8808 = int_to_ptr.vmem [resolvable:$true] %s8807
          %8813 = dma.vmem_to_hbm [thread:$0]  %s8808, 4096, %s8806, %s8792, 128, 128, 8
        $region48: #{tpu_custom_call.1} parent=31 // pred_fallthru
          _
      $region32: #{tpu_custom_call.1} parent=5 // pred_fallthru
        _
      %p8814 = scmp.le.s32.totalorder 2, %s16
      // Predicated region
      $region49: #{tpu_custom_call.1} parent=5 // pred_check
        %p8815 = pneg %p8814
      $region50: #{tpu_custom_call.1} parent=5 // pred_check_branch
        %8817 = sbr.rel (%p8815) target = $region52
      $region51: #{tpu_custom_call.1} parent=5 // pred_region
        %s8818 = ssub.s32 %s16, 2
        // Predicated region
        $region53: #{tpu_custom_call.1} parent=51 // pred_check
          %p8819 = pneg %p127
        $region54: #{tpu_custom_call.1} parent=51 // pred_check_branch
          %8821 = sbr.rel (%p8819) target = $region56
        $region55: #{tpu_custom_call.1} parent=51 // pred_region
          %s8822 = sand.u32 %s112, 1
          %s8823 = scalar_lea.sflag [#allocation7], %s8822
          %s8824 = sand.u32 %s112, 1
          %s8825 = smul.addr %s8824, 256
          %s8826 = scalar_lea.vmem [#allocation11], %s8825
          %8827 = dma.done %s8823, 4096
        $region56: #{tpu_custom_call.1} parent=51 // pred_fallthru
          _
      $region52: #{tpu_custom_call.1} parent=5 // pred_fallthru
        _
    $region6: #{tpu_custom_call.1} parent=1 // loop_footer
      %s20 = sadd.s32 1, %s16
    $region7: #{tpu_custom_call.1} parent=1 // loop_footer_branch
      %15 = sbr.rel target = $region3
    $region8: #{tpu_custom_call.1} parent=1 // loop_exit
      _
    %8828 = vsyncpa [#allocation6], 1
    %s8829 = scalar_lea.sflag [#allocation6], 1
    %8830 = vsyncpa %s8829, 1
    %8831 = vsyncpa [#allocation9], 1
    %8832 = vsyncpa [#allocation7], 1
    %s8833 = scalar_lea.sflag [#allocation7], 1
    %8834 = vsyncpa %s8833, 1

</llo_original>
